<compile_context>
chip_gen: v7x
topology: tpu7x:2x2x1
jax: 0.10.0
libtpu: 0.0.40
codegen_flags: <defaults>
</compile_context>

<pallas_src>
import functools
from typing import NamedTuple, Tuple

import jax
import jax.numpy as jnp
import numpy as np
from jax import lax
from jax.experimental import pallas as pl
from jax.experimental.pallas import tpu as pltpu

LANE = 128


# --------------------------------------------------------------------------- helpers
def _round_up(x, m):
    return ((x + m - 1) // m) * m


def _pick_sub_tile(dim, target):
    """Tile for a sublane (second-to-last) dim: full dim or a divisor >= 8."""
    if dim <= target:
        return dim
    for t in (512, 256, 128, 64, 32, 16, 8):
        if t <= target and dim % t == 0:
            return t
    return dim


def _pick_lane_tile(dim, target):
    """Tile for a lane (last) dim: full dim or a multiple-of-128 divisor."""
    if dim <= target:
        return dim
    for t in (2048, 1024, 512, 256, 128):
        if t <= target and dim % t == 0:
            return t
    return dim


# ---------------------------------------------------------------------------- kernel
def _grouped_matmul_kernel(a_ref, w_ref, bias_ref, o_ref, acc_ref, *, act):
    """One (tm,tk)@(tk,tn) MXU step of a grouped matmul with f32 accumulation.

    Grid = (G, M/tm, N/tn, K/tk); K is innermost ("arbitrary") and drives the
    accumulator; bias + activation happen in f32 on the last K step only.
    """
    k = pl.program_id(3)

    @pl.when(k == 0)
    def _init():
        acc_ref[...] = jnp.zeros_like(acc_ref)

    acc_ref[...] += jnp.dot(a_ref[...], w_ref[...],
                            preferred_element_type=jnp.float32)

    @pl.when(k == pl.num_programs(3) - 1)
    def _finalize():
        acc = acc_ref[...] + bias_ref[...]          # f32 epilogue (v5e-friendly)
        if act == "leaky_relu":
            acc = jnp.where(acc > 0, acc, 0.2 * acc)
        elif act == "tanh":
            acc = jnp.tanh(acc)
        o_ref[...] = acc.astype(o_ref.dtype)


def grouped_matmul_bias_act(a, w, bias, *, act="none", out_dtype=jnp.bfloat16,
                            tm_target=256, tn_target=512, tk_target=1024):
    """a: (G, M, K) bf16, w: (G, K, N) bf16, bias: (G, 1, N) f32 -> (G, M, N)."""
    G, M, K = a.shape
    Gw, Kw, N = w.shape
    assert (G, K) == (Gw, Kw) and bias.shape == (G, 1, N)

    tm = _pick_sub_tile(M, tm_target)
    tn = _pick_lane_tile(N, tn_target)
    tk = _pick_lane_tile(K, tk_target)
    assert M % tm == 0 and N % tn == 0 and K % tk == 0

    grid = (G, M // tm, N // tn, K // tk)

    return pl.pallas_call(
        functools.partial(_grouped_matmul_kernel, act=act),
        out_shape=jax.ShapeDtypeStruct((G, M, N), out_dtype),
        grid=grid,
        in_specs=[
            pl.BlockSpec((None, tm, tk), lambda g, i, j, k: (g, i, k)),
            pl.BlockSpec((None, tk, tn), lambda g, i, j, k: (g, k, j)),
            pl.BlockSpec((None, 1, tn), lambda g, i, j, k: (g, 0, j)),
        ],
        out_specs=pl.BlockSpec((None, tm, tn), lambda g, i, j, k: (g, i, j)),
        scratch_shapes=[pltpu.VMEM((tm, tn), jnp.float32)],
        compiler_params=pltpu.CompilerParams(
            dimension_semantics=("parallel", "parallel", "parallel", "arbitrary"),
            vmem_limit_bytes=32 * 1024 * 1024,
        ),
    )(a, w, bias)


# ---------------------------------------------------------------------- conv lowering
def _conv2d_s2_nhwc(x, w_packed, b_packed, act):
    """4x4 / stride-2 / pad-1 Conv2d on NHWC bf16 input via im2col + Pallas matmul."""
    B, H, W, C = x.shape
    xp = jnp.pad(x, ((0, 0), (1, 1), (1, 1), (0, 0)))
    Ho, Wo = H // 2, W // 2
    cols = [xp[:, ki:ki + 2 * Ho:2, kj:kj + 2 * Wo:2, :]
            for ki in range(4) for kj in range(4)]
    a = jnp.concatenate(cols, axis=-1).reshape(1, B * Ho * Wo, 16 * C)
    out = grouped_matmul_bias_act(a, w_packed, b_packed, act=act)
    return out[0].reshape(B, Ho, Wo, -1)


def _conv_transpose2x_subpixel(x, w_groups, b_groups, act):
    """4x4 / stride-2 / pad-1 ConvTranspose2d on NHWC bf16 input via sub-pixel
    decomposition: 4 parity groups, each a 2x2/stride-1 conv, one grouped matmul."""
    B, H, W, C = x.shape
    xp = jnp.pad(x, ((0, 0), (1, 1), (1, 1), (0, 0)))
    groups = []
    for dy in range(2):
        for dx in range(2):
            feats = [xp[:, dy + a:dy + a + H, dx + b:dx + b + W, :]
                     for a in range(2) for b in range(2)]
            groups.append(jnp.concatenate(feats, axis=-1).reshape(B * H * W, 4 * C))
    a = jnp.stack(groups, axis=0)                      # (4, B*H*W, 4*C)
    out = grouped_matmul_bias_act(a, w_groups, b_groups, act=act)   # (4, B*H*W, Np)
    Np = out.shape[-1]
    out = out.reshape(2, 2, B, H, W, Np).transpose(2, 3, 0, 4, 1, 5)
    return out.reshape(B, 2 * H, 2 * W, Np)


# ------------------------------------------------------------------------------ model
class GANConfig(NamedTuple):
    latent_dim: int
    img_size: int
    hidden_dims: Tuple[int, ...]
    channels: int
    s0: int
    ch_pad: int
    hd_pad: Tuple[int, ...]


def init_gan(key, latent_dim=8, img_size=16, hidden_dims=(32, 16), channels=3):
    """Build pre-packed (bf16, lane-padded) Pallas params + PyTorch-layout reference
    copies of the same weights (used only by the f32 correctness reference)."""
    hd = tuple(hidden_dims)
    n_up = len(hd)
    s0 = img_size // (2 ** n_up)
    assert s0 * (2 ** n_up) == img_size

    p128 = lambda c: _round_up(c, LANE)
    keys = iter(jax.random.split(key, 64))

    def rnd(shape, fan_in):
        return jax.random.normal(next(keys), shape, jnp.float32) / jnp.sqrt(fan_in)

    params, torch_params = {}, {}

    # ---------------- generator (decoder) ----------------
    hd0, hd0p = hd[0], p128(hd[0])
    w_fc = rnd((hd0 * s0 * s0, latent_dim), latent_dim)          # nn.Linear (out, in)
    b_fc = 0.1 * jax.random.normal(next(keys), (hd0 * s0 * s0,), jnp.float32)
    torch_params["g_fc"] = (w_fc, b_fc)
    w_fc_p = w_fc.T.reshape(latent_dim, hd0, s0, s0).transpose(0, 2, 3, 1)
    w_fc_p = jnp.pad(w_fc_p, ((0, 0), (0, 0), (0, 0), (0, hd0p - hd0)))
    params["g_fc_w"] = w_fc_p.reshape(1, latent_dim, s0 * s0 * hd0p).astype(jnp.bfloat16)
    b_fc_p = jnp.pad(b_fc.reshape(hd0, s0, s0).transpose(1, 2, 0),
                     ((0, 0), (0, 0), (0, hd0p - hd0)))
    params["g_fc_b"] = b_fc_p.reshape(1, 1, s0 * s0 * hd0p)

    g_chans = list(hd) + [channels]
    g_convs, g_convs_torch = [], []
    for cin, cout in zip(g_chans[:-1], g_chans[1:]):
        cinp, coutp = p128(cin), p128(cout)
        w_t = rnd((cin, cout, 4, 4), cin * 16)                   # ConvTranspose2d weight
        b_t = 0.1 * jax.random.normal(next(keys), (cout,), jnp.float32)
        g_convs_torch.append((w_t, b_t))
        w_pad = jnp.zeros((cinp, coutp, 4, 4), jnp.float32).at[:cin, :cout].set(w_t)
        groups = []
        for dy in range(2):
            for dx in range(2):
                taps = [w_pad[:, :, 3 - dy - 2 * a, 3 - dx - 2 * b]
                        for a in range(2) for b in range(2)]
                groups.append(jnp.concatenate(taps, axis=0))      # (4*cinp, coutp)
        wg = jnp.stack(groups, axis=0).astype(jnp.bfloat16)       # (4, 4*cinp, coutp)
        bg = jnp.tile(jnp.pad(b_t, (0, coutp - cout)).reshape(1, 1, coutp), (4, 1, 1))
        g_convs.append((wg, bg))
    params["g_convs"] = g_convs
    torch_params["g_convs"] = g_convs_torch

    # ---------------- discriminator (hidden_dims reversed, as in GAN.__init__) -------
    hd_r = list(reversed(hd))
    d_chans = [channels] + hd_r
    d_convs, d_convs_torch = [], []
    for cin, cout in zip(d_chans[:-1], d_chans[1:]):
        cinp, coutp = p128(cin), p128(cout)
        w_c = rnd((cout, cin, 4, 4), cin * 16)                    # Conv2d weight
        b_c = 0.1 * jax.random.normal(next(keys), (cout,), jnp.float32)
        d_convs_torch.append((w_c, b_c))
        w_pad = jnp.zeros((coutp, cinp, 4, 4), jnp.float32).at[:cout, :cin].set(w_c)
        w_packed = w_pad.transpose(2, 3, 1, 0).reshape(1, 16 * cinp, coutp)
        d_convs.append((w_packed.astype(jnp.bfloat16),
                        jnp.pad(b_c, (0, coutp - cout)).reshape(1, 1, coutp)))
    params["d_convs"] = d_convs
    torch_params["d_convs"] = d_convs_torch

    sf = img_size // (2 ** len(hd_r))
    cf, cfp = hd_r[-1], p128(hd_r[-1])
    w_dfc = rnd((1, cf * sf * sf), cf * sf * sf)                  # nn.Linear (1, in)
    b_dfc = 0.1 * jax.random.normal(next(keys), (1,), jnp.float32)
    torch_params["d_fc"] = (w_dfc, b_dfc)
    w_p = w_dfc.reshape(1, cf, sf, sf).transpose(0, 2, 3, 1)
    w_p = jnp.pad(w_p, ((0, 0), (0, 0), (0, 0), (0, cfp - cf)))
    w_p = w_p.reshape(1, sf * sf * cfp).T                          # (K, 1)
    params["d_fc_w"] = jnp.pad(w_p, ((0, 0), (0, LANE - 1)))[None].astype(jnp.bfloat16)
    params["d_fc_b"] = jnp.pad(b_dfc, (0, LANE - 1)).reshape(1, 1, LANE)

    cfg = GANConfig(latent_dim, img_size, hd, channels, s0,
                    p128(channels), tuple(p128(c) for c in hd))
    return cfg, params, torch_params


def _generate_nhwc(cfg, params, z):
    B = z.shape[0]
    z_bf = z.astype(jnp.bfloat16).reshape(1, B, cfg.latent_dim)
    h = grouped_matmul_bias_act(z_bf, params["g_fc_w"], params["g_fc_b"], act="none")
    h = h[0].reshape(B, cfg.s0, cfg.s0, cfg.hd_pad[0])
    n_layers = len(params["g_convs"])
    for idx, (wg, bg) in enumerate(params["g_convs"]):
        act = "tanh" if idx == n_layers - 1 else "leaky_relu"
        h = _conv_transpose2x_subpixel(h, wg, bg, act)
    return h                                     # (B, img, img, ch_pad) bf16, pad chans == 0


def _discriminate_nhwc(cfg, params, x):
    B = x.shape[0]
    h = x
    for (wp, bp) in params["d_convs"]:
        h = _conv2d_s2_nhwc(h, wp, bp, act="leaky_relu")
    h = h.reshape(1, B, -1)                      # NHWC flatten (weights packed to match)
    logits = grouped_matmul_bias_act(h, params["d_fc_w"], params["d_fc_b"],
                                     act="none", out_dtype=jnp.float32)
    return logits[0, :, :1]                      # strip lane padding of the N=1 head


@functools.partial(jax.jit, static_argnums=0)
def generate(cfg, params, z):
    h = _generate_nhwc(cfg, params, z)
    return h[..., :cfg.channels].astype(jnp.float32).transpose(0, 3, 1, 2)   # NCHW


@functools.partial(jax.jit, static_argnums=0)
def discriminate(cfg, params, x_nchw):
    x = x_nchw.transpose(0, 2, 3, 1).astype(jnp.bfloat16)
    x = jnp.pad(x, ((0, 0), (0, 0), (0, 0), (0, cfg.ch_pad - cfg.channels)))
    return _discriminate_nhwc(cfg, params, x)


@functools.partial(jax.jit, static_argnums=0)
def gan_forward(cfg, params, z):
    """GAN.forward(z) = discriminate(generate(z)) -> (B, 1) logits."""
    return _discriminate_nhwc(cfg, params, _generate_nhwc(cfg, params, z))


# ------------------------------------------------------------------- pure-JAX reference
def _q(x):   # round through bf16, mirroring the kernel path's storage dtype
    return x.astype(jnp.bfloat16).astype(jnp.float32)


def reference_forward(cfg, tp, z):
    lrelu = lambda t: jnp.where(t > 0, t, 0.2 * t)
    dn = ("NCHW", "OIHW", "NCHW")
    B = z.shape[0]
    # generator
    w_fc, b_fc = tp["g_fc"]
    h = _q(_q(z) @ _q(w_fc).T + b_fc).reshape(B, cfg.hidden_dims[0], cfg.s0, cfg.s0)
    n = len(tp["g_convs"])
    for idx, (w_t, b_t) in enumerate(tp["g_convs"]):
        w_conv = jnp.flip(_q(w_t), axis=(2, 3)).transpose(1, 0, 2, 3)
        h = lax.conv_general_dilated(h, w_conv, window_strides=(1, 1),
                                     padding=[(2, 2), (2, 2)], lhs_dilation=(2, 2),
                                     dimension_numbers=dn) + b_t.reshape(1, -1, 1, 1)
        h = _q(jnp.tanh(h) if idx == n - 1 else lrelu(h))
    img = h
    # discriminator
    for (w_c, b_c) in tp["d_convs"]:
        h = lax.conv_general_dilated(h, _q(w_c), window_strides=(2, 2),
                                     padding=[(1, 1), (1, 1)], dimension_numbers=dn)
        h = _q(lrelu(h + b_c.reshape(1, -1, 1, 1)))
    w_dfc, b_dfc = tp["d_fc"]
    logits = h.reshape(B, -1) @ _q(w_dfc).T + b_dfc
    return img, logits


# ----------------------------------------------------------------------------- driver
if __name__ == "__main__":
    latent_dim, img_size, hidden_dims, channels, batch = 8, 16, (32, 16), 3, 2

    key = jax.random.PRNGKey(0)
    pkey, zkey = jax.random.split(key)
    cfg, params, torch_params = init_gan(pkey, latent_dim, img_size, hidden_dims, channels)
    z = jax.random.normal(zkey, (batch, latent_dim), jnp.float32)

    logits = jax.block_until_ready(gan_forward(cfg, params, z))
    imgs = jax.block_until_ready(generate(cfg, params, z))
    assert logits.shape == (batch, 1), logits.shape
    assert imgs.shape == (batch, channels, img_size, img_size), imgs.shape

    # correctness check against a plain-JAX (PyTorch-semantics) reference
    ref_imgs, ref_logits = reference_forward(cfg, torch_params, z)
    np.testing.assert_allclose(np.asarray(imgs), np.asarray(ref_imgs), rtol=5e-2, atol=5e-2)
    np.testing.assert_allclose(np.asarray(logits), np.asarray(ref_logits), rtol=5e-2, atol=5e-2)

    # standalone discriminate() path agrees with the fused forward
    d_logits = jax.block_until_ready(discriminate(cfg, params, imgs))
    np.testing.assert_allclose(np.asarray(d_logits), np.asarray(logits), rtol=1e-3, atol=1e-3)

    print("KERNEL_OK")
</pallas_src>

<mosaic_0001>
module attributes {stable_mosaic.version = 11 : i64} {
  func.func @_grouped_matmul_kernel(%arg0: i32, %arg1: i32, %arg2: i32, %arg3: i32, %arg4: memref<1x2x8xbf16, #tpu.memory_space<vmem>>, %arg5: memref<1x8x512xbf16, #tpu.memory_space<vmem>>, %arg6: memref<1x1x512xf32, #tpu.memory_space<vmem>>, %arg7: memref<1x2x512xbf16, #tpu.memory_space<vmem>>, %arg8: memref<2x512xf32, #tpu.memory_space<vmem>>) attributes {dimension_semantics = [#tpu.dimension_semantics<parallel>, #tpu.dimension_semantics<parallel>, #tpu.dimension_semantics<parallel>, #tpu.dimension_semantics<arbitrary>], iteration_bounds = array<i64: 1, 1, 4, 1>, scalar_prefetch = 0 : i64, scratch_operands = 1 : i64, tpu.core_type = #tpu.core_type<tc>, window_params = [{transform_indices = @transform_0, window_bounds = array<i64: 1, 2, 8>}, {transform_indices = @transform_1, window_bounds = array<i64: 1, 8, 512>}, {transform_indices = @transform_2, window_bounds = array<i64: 1, 1, 512>}, {transform_indices = @transform_3, window_bounds = array<i64: 1, 2, 512>}]} {
    %c0_i32 = arith.constant 0 : i32
    %0 = arith.cmpi eq, %arg3, %c0_i32 : i32
    %1 = arith.extui %0 : i1 to i32
    %c0_i32_0 = arith.constant 0 : i32
    %2 = arith.cmpi ne, %1, %c0_i32_0 : i32
    scf.if %2 {
      %cst_12 = arith.constant 0.000000e+00 : f32
      %14 = vector.broadcast %cst_12 : f32 to vector<2x512xf32>
      %c0_13 = arith.constant 0 : index
      %c0_14 = arith.constant 0 : index
      %15 = vector.load %arg8[%c0_13, %c0_14] : memref<2x512xf32, #tpu.memory_space<vmem>>, vector<2x512xf32>
      tpu.vector_store %arg8[%c0_13, %c0_14], %14 {strides = array<i32>} : memref<2x512xf32, #tpu.memory_space<vmem>>, vector<2x512xf32>,
    } else {
    }
    %c0 = arith.constant 0 : index
    %c0_1 = arith.constant 0 : index
    %3 = vector.load %arg8[%c0, %c0_1] : memref<2x512xf32, #tpu.memory_space<vmem>>, vector<2x512xf32>
    %c0_2 = arith.constant 0 : index
    %c0_3 = arith.constant 0 : index
    %c0_4 = arith.constant 0 : index
    %4 = vector.load %arg4[%c0_2, %c0_3, %c0_4] : memref<1x2x8xbf16, #tpu.memory_space<vmem>>, vector<1x2x8xbf16>
    %5 = vector.shape_cast %4 : vector<1x2x8xbf16> to vector<2x8xbf16>
    %c0_5 = arith.constant 0 : index
    %c0_6 = arith.constant 0 : index
    %c0_7 = arith.constant 0 : index
    %6 = vector.load %arg5[%c0_5, %c0_6, %c0_7] : memref<1x8x512xbf16, #tpu.memory_space<vmem>>, vector<1x8x512xbf16>
    %7 = vector.shape_cast %6 : vector<1x8x512xbf16> to vector<8x512xbf16>
    %cst = arith.constant dense<0.000000e+00> : vector<2x512xf32>
    %8 = tpu.matmul %5, %7, %cst {dimension_numbers = #tpu.dot_dimension_numbers<[1], [0], [0], [1], [0, 0, 1, 1], [], []>} : vector<2x8xbf16>, vector<8x512xbf16>, vector<2x512xf32> -> vector<2x512xf32>
    %9 = arith.addf %3, %8 : vector<2x512xf32>
    %c0_8 = arith.constant 0 : index
    %c0_9 = arith.constant 0 : index
    %10 = vector.load %arg8[%c0_8, %c0_9] : memref<2x512xf32, #tpu.memory_space<vmem>>, vector<2x512xf32>
    tpu.vector_store %arg8[%c0_8, %c0_9], %9 {strides = array<i32>} : memref<2x512xf32, #tpu.memory_space<vmem>>, vector<2x512xf32>,
    %c0_i32_10 = arith.constant 0 : i32
    %11 = arith.cmpi eq, %arg3, %c0_i32_10 : i32
    %12 = arith.extui %11 : i1 to i32
    %c0_i32_11 = arith.constant 0 : i32
    %13 = arith.cmpi ne, %12, %c0_i32_11 : i32
    scf.if %13 {
      %c0_12 = arith.constant 0 : index
      %c0_13 = arith.constant 0 : index
      %14 = vector.load %arg8[%c0_12, %c0_13] : memref<2x512xf32, #tpu.memory_space<vmem>>, vector<2x512xf32>
      %c0_14 = arith.constant 0 : index
      %c0_15 = arith.constant 0 : index
      %c0_16 = arith.constant 0 : index
      %15 = vector.load %arg6[%c0_14, %c0_15, %c0_16] : memref<1x1x512xf32, #tpu.memory_space<vmem>>, vector<1x1x512xf32>
      %16 = vector.shape_cast %15 : vector<1x1x512xf32> to vector<1x512xf32>
      %17 = vector.broadcast %16 : vector<1x512xf32> to vector<2x512xf32>
      %18 = arith.addf %14, %17 : vector<2x512xf32>
      %19 = arith.truncf %18 : vector<2x512xf32> to vector<2x512xbf16>
      %c0_17 = arith.constant 0 : index
      %c0_18 = arith.constant 0 : index
      %c0_19 = arith.constant 0 : index
      %20 = vector.load %arg7[%c0_17, %c0_18, %c0_19] : memref<1x2x512xbf16, #tpu.memory_space<vmem>>, vector<1x2x512xbf16>
      %21 = vector.shape_cast %20 : vector<1x2x512xbf16> to vector<2x512xbf16>
      %22 = vector.shape_cast %19 : vector<2x512xbf16> to vector<1x2x512xbf16>
      tpu.vector_store %arg7[%c0_17, %c0_18, %c0_19], %22 {strides = array<i32>} : memref<1x2x512xbf16, #tpu.memory_space<vmem>>, vector<1x2x512xbf16>,
    } else {
    }
    return
  }
  func.func @transform_0(%arg0: i32, %arg1: i32, %arg2: i32, %arg3: i32) -> (i32, i32, i32) {
    %c0_i32 = arith.constant 0 : i32
    return %arg0, %arg1, %arg3 : i32, i32, i32
  }
  func.func @transform_1(%arg0: i32, %arg1: i32, %arg2: i32, %arg3: i32) -> (i32, i32, i32) {
    %c0_i32 = arith.constant 0 : i32
    return %arg0, %arg3, %arg2 : i32, i32, i32
  }
  func.func @transform_2(%arg0: i32, %arg1: i32, %arg2: i32, %arg3: i32) -> (i32, i32, i32) {
    %c0_i32 = arith.constant 0 : i32
    %c0_i32_0 = arith.constant 0 : i32
    return %arg0, %c0_i32, %arg2 : i32, i32, i32
  }
  func.func @transform_3(%arg0: i32, %arg1: i32, %arg2: i32, %arg3: i32) -> (i32, i32, i32) {
    %c0_i32 = arith.constant 0 : i32
    return %arg0, %arg1, %arg2 : i32, i32, i32
  }
}

module attributes {stable_mosaic.version = 11 : i64} {
  func.func @_grouped_matmul_kernel(%arg0: i32, %arg1: i32, %arg2: i32, %arg3: i32, %arg4: memref<1x32x512xbf16, #tpu.memory_space<vmem>>, %arg5: memref<1x512x128xbf16, #tpu.memory_space<vmem>>, %arg6: memref<1x1x128xf32, #tpu.memory_space<vmem>>, %arg7: memref<1x32x128xbf16, #tpu.memory_space<vmem>>, %arg8: memref<32x128xf32, #tpu.memory_space<vmem>>) attributes {dimension_semantics = [#tpu.dimension_semantics<parallel>, #tpu.dimension_semantics<parallel>, #tpu.dimension_semantics<parallel>, #tpu.dimension_semantics<arbitrary>], iteration_bounds = array<i64: 4, 1, 1, 1>, scalar_prefetch = 0 : i64, scratch_operands = 1 : i64, tpu.core_type = #tpu.core_type<tc>, window_params = [{transform_indices = @transform_0, window_bounds = array<i64: 1, 32, 512>}, {transform_indices = @transform_1, window_bounds = array<i64: 1, 512, 128>}, {transform_indices = @transform_2, window_bounds = array<i64: 1, 1, 128>}, {transform_indices = @transform_3, window_bounds = array<i64: 1, 32, 128>}]} {
    %c0_i32 = arith.constant 0 : i32
    %0 = arith.cmpi eq, %arg3, %c0_i32 : i32
    %1 = arith.extui %0 : i1 to i32
    %c0_i32_0 = arith.constant 0 : i32
    %2 = arith.cmpi ne, %1, %c0_i32_0 : i32
    scf.if %2 {
      %cst_12 = arith.constant 0.000000e+00 : f32
      %14 = vector.broadcast %cst_12 : f32 to vector<32x128xf32>
      %c0_13 = arith.constant 0 : index
      %c0_14 = arith.constant 0 : index
      %15 = vector.load %arg8[%c0_13, %c0_14] : memref<32x128xf32, #tpu.memory_space<vmem>>, vector<32x128xf32>
      tpu.vector_store %arg8[%c0_13, %c0_14], %14 {strides = array<i32>} : memref<32x128xf32, #tpu.memory_space<vmem>>, vector<32x128xf32>,
    } else {
    }
    %c0 = arith.constant 0 : index
    %c0_1 = arith.constant 0 : index
    %3 = vector.load %arg8[%c0, %c0_1] : memref<32x128xf32, #tpu.memory_space<vmem>>, vector<32x128xf32>
    %c0_2 = arith.constant 0 : index
    %c0_3 = arith.constant 0 : index
    %c0_4 = arith.constant 0 : index
    %4 = vector.load %arg4[%c0_2, %c0_3, %c0_4] : memref<1x32x512xbf16, #tpu.memory_space<vmem>>, vector<1x32x512xbf16>
    %5 = vector.shape_cast %4 : vector<1x32x512xbf16> to vector<32x512xbf16>
    %c0_5 = arith.constant 0 : index
    %c0_6 = arith.constant 0 : index
    %c0_7 = arith.constant 0 : index
    %6 = vector.load %arg5[%c0_5, %c0_6, %c0_7] : memref<1x512x128xbf16, #tpu.memory_space<vmem>>, vector<1x512x128xbf16>
    %7 = vector.shape_cast %6 : vector<1x512x128xbf16> to vector<512x128xbf16>
    %cst = arith.constant dense<0.000000e+00> : vector<32x128xf32>
    %8 = tpu.matmul %5, %7, %cst {dimension_numbers = #tpu.dot_dimension_numbers<[1], [0], [0], [1], [0, 0, 1, 1], [], []>} : vector<32x512xbf16>, vector<512x128xbf16>, vector<32x128xf32> -> vector<32x128xf32>
    %9 = arith.addf %3, %8 : vector<32x128xf32>
    %c0_8 = arith.constant 0 : index
    %c0_9 = arith.constant 0 : index
    %10 = vector.load %arg8[%c0_8, %c0_9] : memref<32x128xf32, #tpu.memory_space<vmem>>, vector<32x128xf32>
    tpu.vector_store %arg8[%c0_8, %c0_9], %9 {strides = array<i32>} : memref<32x128xf32, #tpu.memory_space<vmem>>, vector<32x128xf32>,
    %c0_i32_10 = arith.constant 0 : i32
    %11 = arith.cmpi eq, %arg3, %c0_i32_10 : i32
    %12 = arith.extui %11 : i1 to i32
    %c0_i32_11 = arith.constant 0 : i32
    %13 = arith.cmpi ne, %12, %c0_i32_11 : i32
    scf.if %13 {
      %c0_12 = arith.constant 0 : index
      %c0_13 = arith.constant 0 : index
      %14 = vector.load %arg8[%c0_12, %c0_13] : memref<32x128xf32, #tpu.memory_space<vmem>>, vector<32x128xf32>
      %c0_14 = arith.constant 0 : index
      %c0_15 = arith.constant 0 : index
      %c0_16 = arith.constant 0 : index
      %15 = vector.load %arg6[%c0_14, %c0_15, %c0_16] : memref<1x1x128xf32, #tpu.memory_space<vmem>>, vector<1x1x128xf32>
      %16 = vector.shape_cast %15 : vector<1x1x128xf32> to vector<1x128xf32>
      %17 = vector.broadcast %16 : vector<1x128xf32> to vector<32x128xf32>
      %18 = arith.addf %14, %17 : vector<32x128xf32>
      %cst_17 = arith.constant 0.000000e+00 : f32
      %19 = vector.broadcast %cst_17 : f32 to vector<32x128xf32>
      %20 = arith.cmpf ogt, %18, %19 : vector<32x128xf32>
      %cst_18 = arith.constant 2.000000e-01 : f32
      %21 = vector.broadcast %cst_18 : f32 to vector<32x128xf32>
      %22 = arith.mulf %21, %18 : vector<32x128xf32>
      %23 = arith.select %20, %18, %22 : vector<32x128xi1>, vector<32x128xf32>
      %24 = arith.truncf %23 : vector<32x128xf32> to vector<32x128xbf16>
      %c0_19 = arith.constant 0 : index
      %c0_20 = arith.constant 0 : index
      %c0_21 = arith.constant 0 : index
      %25 = vector.load %arg7[%c0_19, %c0_20, %c0_21] : memref<1x32x128xbf16, #tpu.memory_space<vmem>>, vector<1x32x128xbf16>
      %26 = vector.shape_cast %25 : vector<1x32x128xbf16> to vector<32x128xbf16>
      %27 = vector.shape_cast %24 : vector<32x128xbf16> to vector<1x32x128xbf16>
      tpu.vector_store %arg7[%c0_19, %c0_20, %c0_21], %27 {strides = array<i32>} : memref<1x32x128xbf16, #tpu.memory_space<vmem>>, vector<1x32x128xbf16>,
    } else {
    }
    return
  }
  func.func @transform_0(%arg0: i32, %arg1: i32, %arg2: i32, %arg3: i32) -> (i32, i32, i32) {
    %c0_i32 = arith.constant 0 : i32
    return %arg0, %arg1, %arg3 : i32, i32, i32
  }
  func.func @transform_1(%arg0: i32, %arg1: i32, %arg2: i32, %arg3: i32) -> (i32, i32, i32) {
    %c0_i32 = arith.constant 0 : i32
    return %arg0, %arg3, %arg2 : i32, i32, i32
  }
  func.func @transform_2(%arg0: i32, %arg1: i32, %arg2: i32, %arg3: i32) -> (i32, i32, i32) {
    %c0_i32 = arith.constant 0 : i32
    %c0_i32_0 = arith.constant 0 : i32
    return %arg0, %c0_i32, %arg2 : i32, i32, i32
  }
  func.func @transform_3(%arg0: i32, %arg1: i32, %arg2: i32, %arg3: i32) -> (i32, i32, i32) {
    %c0_i32 = arith.constant 0 : i32
    return %arg0, %arg1, %arg2 : i32, i32, i32
  }
}

module attributes {stable_mosaic.version = 11 : i64} {
  func.func @_grouped_matmul_kernel(%arg0: i32, %arg1: i32, %arg2: i32, %arg3: i32, %arg4: memref<1x128x512xbf16, #tpu.memory_space<vmem>>, %arg5: memref<1x512x128xbf16, #tpu.memory_space<vmem>>, %arg6: memref<1x1x128xf32, #tpu.memory_space<vmem>>, %arg7: memref<1x128x128xbf16, #tpu.memory_space<vmem>>, %arg8: memref<128x128xf32, #tpu.memory_space<vmem>>) attributes {dimension_semantics = [#tpu.dimension_semantics<parallel>, #tpu.dimension_semantics<parallel>, #tpu.dimension_semantics<parallel>, #tpu.dimension_semantics<arbitrary>], iteration_bounds = array<i64: 4, 1, 1, 1>, scalar_prefetch = 0 : i64, scratch_operands = 1 : i64, tpu.core_type = #tpu.core_type<tc>, window_params = [{transform_indices = @transform_0, window_bounds = array<i64: 1, 128, 512>}, {transform_indices = @transform_1, window_bounds = array<i64: 1, 512, 128>}, {transform_indices = @transform_2, window_bounds = array<i64: 1, 1, 128>}, {transform_indices = @transform_3, window_bounds = array<i64: 1, 128, 128>}]} {
    %c0_i32 = arith.constant 0 : i32
    %0 = arith.cmpi eq, %arg3, %c0_i32 : i32
    %1 = arith.extui %0 : i1 to i32
    %c0_i32_0 = arith.constant 0 : i32
    %2 = arith.cmpi ne, %1, %c0_i32_0 : i32
    scf.if %2 {
      %cst_12 = arith.constant 0.000000e+00 : f32
      %14 = vector.broadcast %cst_12 : f32 to vector<128x128xf32>
      %c0_13 = arith.constant 0 : index
      %c0_14 = arith.constant 0 : index
      %15 = vector.load %arg8[%c0_13, %c0_14] : memref<128x128xf32, #tpu.memory_space<vmem>>, vector<128x128xf32>
      tpu.vector_store %arg8[%c0_13, %c0_14], %14 {strides = array<i32>} : memref<128x128xf32, #tpu.memory_space<vmem>>, vector<128x128xf32>,
    } else {
    }
    %c0 = arith.constant 0 : index
    %c0_1 = arith.constant 0 : index
    %3 = vector.load %arg8[%c0, %c0_1] : memref<128x128xf32, #tpu.memory_space<vmem>>, vector<128x128xf32>
    %c0_2 = arith.constant 0 : index
    %c0_3 = arith.constant 0 : index
    %c0_4 = arith.constant 0 : index
    %4 = vector.load %arg4[%c0_2, %c0_3, %c0_4] : memref<1x128x512xbf16, #tpu.memory_space<vmem>>, vector<1x128x512xbf16>
    %5 = vector.shape_cast %4 : vector<1x128x512xbf16> to vector<128x512xbf16>
    %c0_5 = arith.constant 0 : index
    %c0_6 = arith.constant 0 : index
    %c0_7 = arith.constant 0 : index
    %6 = vector.load %arg5[%c0_5, %c0_6, %c0_7] : memref<1x512x128xbf16, #tpu.memory_space<vmem>>, vector<1x512x128xbf16>
    %7 = vector.shape_cast %6 : vector<1x512x128xbf16> to vector<512x128xbf16>
    %cst = arith.constant dense<0.000000e+00> : vector<128x128xf32>
    %8 = tpu.matmul %5, %7, %cst {dimension_numbers = #tpu.dot_dimension_numbers<[1], [0], [0], [1], [0, 0, 1, 1], [], []>} : vector<128x512xbf16>, vector<512x128xbf16>, vector<128x128xf32> -> vector<128x128xf32>
    %9 = arith.addf %3, %8 : vector<128x128xf32>
    %c0_8 = arith.constant 0 : index
    %c0_9 = arith.constant 0 : index
    %10 = vector.load %arg8[%c0_8, %c0_9] : memref<128x128xf32, #tpu.memory_space<vmem>>, vector<128x128xf32>
    tpu.vector_store %arg8[%c0_8, %c0_9], %9 {strides = array<i32>} : memref<128x128xf32, #tpu.memory_space<vmem>>, vector<128x128xf32>,
    %c0_i32_10 = arith.constant 0 : i32
    %11 = arith.cmpi eq, %arg3, %c0_i32_10 : i32
    %12 = arith.extui %11 : i1 to i32
    %c0_i32_11 = arith.constant 0 : i32
    %13 = arith.cmpi ne, %12, %c0_i32_11 : i32
    scf.if %13 {
      %c0_12 = arith.constant 0 : index
      %c0_13 = arith.constant 0 : index
      %14 = vector.load %arg8[%c0_12, %c0_13] : memref<128x128xf32, #tpu.memory_space<vmem>>, vector<128x128xf32>
      %c0_14 = arith.constant 0 : index
      %c0_15 = arith.constant 0 : index
      %c0_16 = arith.constant 0 : index
      %15 = vector.load %arg6[%c0_14, %c0_15, %c0_16] : memref<1x1x128xf32, #tpu.memory_space<vmem>>, vector<1x1x128xf32>
      %16 = vector.shape_cast %15 : vector<1x1x128xf32> to vector<1x128xf32>
      %17 = vector.broadcast %16 : vector<1x128xf32> to vector<128x128xf32>
      %18 = arith.addf %14, %17 : vector<128x128xf32>
      %19 = math.tanh %18 : vector<128x128xf32>
      %20 = arith.truncf %19 : vector<128x128xf32> to vector<128x128xbf16>
      %c0_17 = arith.constant 0 : index
      %c0_18 = arith.constant 0 : index
      %c0_19 = arith.constant 0 : index
      %21 = vector.load %arg7[%c0_17, %c0_18, %c0_19] : memref<1x128x128xbf16, #tpu.memory_space<vmem>>, vector<1x128x128xbf16>
      %22 = vector.shape_cast %21 : vector<1x128x128xbf16> to vector<128x128xbf16>
      %23 = vector.shape_cast %20 : vector<128x128xbf16> to vector<1x128x128xbf16>
      tpu.vector_store %arg7[%c0_17, %c0_18, %c0_19], %23 {strides = array<i32>} : memref<1x128x128xbf16, #tpu.memory_space<vmem>>, vector<1x128x128xbf16>,
    } else {
    }
    return
  }
  func.func @transform_0(%arg0: i32, %arg1: i32, %arg2: i32, %arg3: i32) -> (i32, i32, i32) {
    %c0_i32 = arith.constant 0 : i32
    return %arg0, %arg1, %arg3 : i32, i32, i32
  }
  func.func @transform_1(%arg0: i32, %arg1: i32, %arg2: i32, %arg3: i32) -> (i32, i32, i32) {
    %c0_i32 = arith.constant 0 : i32
    return %arg0, %arg3, %arg2 : i32, i32, i32
  }
  func.func @transform_2(%arg0: i32, %arg1: i32, %arg2: i32, %arg3: i32) -> (i32, i32, i32) {
    %c0_i32 = arith.constant 0 : i32
    %c0_i32_0 = arith.constant 0 : i32
    return %arg0, %c0_i32, %arg2 : i32, i32, i32
  }
  func.func @transform_3(%arg0: i32, %arg1: i32, %arg2: i32, %arg3: i32) -> (i32, i32, i32) {
    %c0_i32 = arith.constant 0 : i32
    return %arg0, %arg1, %arg2 : i32, i32, i32
  }
}

module attributes {stable_mosaic.version = 11 : i64} {
  func.func @_grouped_matmul_kernel(%arg0: i32, %arg1: i32, %arg2: i32, %arg3: i32, %arg4: memref<1x128x1024xbf16, #tpu.memory_space<vmem>>, %arg5: memref<1x1024x128xbf16, #tpu.memory_space<vmem>>, %arg6: memref<1x1x128xf32, #tpu.memory_space<vmem>>, %arg7: memref<1x128x128xbf16, #tpu.memory_space<vmem>>, %arg8: memref<128x128xf32, #tpu.memory_space<vmem>>) attributes {dimension_semantics = [#tpu.dimension_semantics<parallel>, #tpu.dimension_semantics<parallel>, #tpu.dimension_semantics<parallel>, #tpu.dimension_semantics<arbitrary>], iteration_bounds = array<i64: 1, 1, 1, 2>, scalar_prefetch = 0 : i64, scratch_operands = 1 : i64, tpu.core_type = #tpu.core_type<tc>, window_params = [{transform_indices = @transform_0, window_bounds = array<i64: 1, 128, 1024>}, {transform_indices = @transform_1, window_bounds = array<i64: 1, 1024, 128>}, {transform_indices = @transform_2, window_bounds = array<i64: 1, 1, 128>}, {transform_indices = @transform_3, window_bounds = array<i64: 1, 128, 128>}]} {
    %c0_i32 = arith.constant 0 : i32
    %0 = arith.cmpi eq, %arg3, %c0_i32 : i32
    %1 = arith.extui %0 : i1 to i32
    %c0_i32_0 = arith.constant 0 : i32
    %2 = arith.cmpi ne, %1, %c0_i32_0 : i32
    scf.if %2 {
      %cst_11 = arith.constant 0.000000e+00 : f32
      %14 = vector.broadcast %cst_11 : f32 to vector<128x128xf32>
      %c0_12 = arith.constant 0 : index
      %c0_13 = arith.constant 0 : index
      %15 = vector.load %arg8[%c0_12, %c0_13] : memref<128x128xf32, #tpu.memory_space<vmem>>, vector<128x128xf32>
      tpu.vector_store %arg8[%c0_12, %c0_13], %14 {strides = array<i32>} : memref<128x128xf32, #tpu.memory_space<vmem>>, vector<128x128xf32>,
    } else {
    }
    %c0 = arith.constant 0 : index
    %c0_1 = arith.constant 0 : index
    %3 = vector.load %arg8[%c0, %c0_1] : memref<128x128xf32, #tpu.memory_space<vmem>>, vector<128x128xf32>
    %c0_2 = arith.constant 0 : index
    %c0_3 = arith.constant 0 : index
    %c0_4 = arith.constant 0 : index
    %4 = vector.load %arg4[%c0_2, %c0_3, %c0_4] : memref<1x128x1024xbf16, #tpu.memory_space<vmem>>, vector<1x128x1024xbf16>
    %5 = vector.shape_cast %4 : vector<1x128x1024xbf16> to vector<128x1024xbf16>
    %c0_5 = arith.constant 0 : index
    %c0_6 = arith.constant 0 : index
    %c0_7 = arith.constant 0 : index
    %6 = vector.load %arg5[%c0_5, %c0_6, %c0_7] : memref<1x1024x128xbf16, #tpu.memory_space<vmem>>, vector<1x1024x128xbf16>
    %7 = vector.shape_cast %6 : vector<1x1024x128xbf16> to vector<1024x128xbf16>
    %cst = arith.constant dense<0.000000e+00> : vector<128x128xf32>
    %8 = tpu.matmul %5, %7, %cst {dimension_numbers = #tpu.dot_dimension_numbers<[1], [0], [0], [1], [0, 0, 1, 1], [], []>} : vector<128x1024xbf16>, vector<1024x128xbf16>, vector<128x128xf32> -> vector<128x128xf32>
    %9 = arith.addf %3, %8 : vector<128x128xf32>
    %c0_8 = arith.constant 0 : index
    %c0_9 = arith.constant 0 : index
    %10 = vector.load %arg8[%c0_8, %c0_9] : memref<128x128xf32, #tpu.memory_space<vmem>>, vector<128x128xf32>
    tpu.vector_store %arg8[%c0_8, %c0_9], %9 {strides = array<i32>} : memref<128x128xf32, #tpu.memory_space<vmem>>, vector<128x128xf32>,
    %c1_i32 = arith.constant 1 : i32
    %11 = arith.cmpi eq, %arg3, %c1_i32 : i32
    %12 = arith.extui %11 : i1 to i32
    %c0_i32_10 = arith.constant 0 : i32
    %13 = arith.cmpi ne, %12, %c0_i32_10 : i32
    scf.if %13 {
      %c0_11 = arith.constant 0 : index
      %c0_12 = arith.constant 0 : index
      %14 = vector.load %arg8[%c0_11, %c0_12] : memref<128x128xf32, #tpu.memory_space<vmem>>, vector<128x128xf32>
      %c0_13 = arith.constant 0 : index
      %c0_14 = arith.constant 0 : index
      %c0_15 = arith.constant 0 : index
      %15 = vector.load %arg6[%c0_13, %c0_14, %c0_15] : memref<1x1x128xf32, #tpu.memory_space<vmem>>, vector<1x1x128xf32>
      %16 = vector.shape_cast %15 : vector<1x1x128xf32> to vector<1x128xf32>
      %17 = vector.broadcast %16 : vector<1x128xf32> to vector<128x128xf32>
      %18 = arith.addf %14, %17 : vector<128x128xf32>
      %cst_16 = arith.constant 0.000000e+00 : f32
      %19 = vector.broadcast %cst_16 : f32 to vector<128x128xf32>
      %20 = arith.cmpf ogt, %18, %19 : vector<128x128xf32>
      %cst_17 = arith.constant 2.000000e-01 : f32
      %21 = vector.broadcast %cst_17 : f32 to vector<128x128xf32>
      %22 = arith.mulf %21, %18 : vector<128x128xf32>
      %23 = arith.select %20, %18, %22 : vector<128x128xi1>, vector<128x128xf32>
      %24 = arith.truncf %23 : vector<128x128xf32> to vector<128x128xbf16>
      %c0_18 = arith.constant 0 : index
      %c0_19 = arith.constant 0 : index
      %c0_20 = arith.constant 0 : index
      %25 = vector.load %arg7[%c0_18, %c0_19, %c0_20] : memref<1x128x128xbf16, #tpu.memory_space<vmem>>, vector<1x128x128xbf16>
      %26 = vector.shape_cast %25 : vector<1x128x128xbf16> to vector<128x128xbf16>
      %27 = vector.shape_cast %24 : vector<128x128xbf16> to vector<1x128x128xbf16>
      tpu.vector_store %arg7[%c0_18, %c0_19, %c0_20], %27 {strides = array<i32>} : memref<1x128x128xbf16, #tpu.memory_space<vmem>>, vector<1x128x128xbf16>,
    } else {
    }
    return
  }
  func.func @transform_0(%arg0: i32, %arg1: i32, %arg2: i32, %arg3: i32) -> (i32, i32, i32) {
    %c0_i32 = arith.constant 0 : i32
    return %arg0, %arg1, %arg3 : i32, i32, i32
  }
  func.func @transform_1(%arg0: i32, %arg1: i32, %arg2: i32, %arg3: i32) -> (i32, i32, i32) {
    %c0_i32 = arith.constant 0 : i32
    return %arg0, %arg3, %arg2 : i32, i32, i32
  }
  func.func @transform_2(%arg0: i32, %arg1: i32, %arg2: i32, %arg3: i32) -> (i32, i32, i32) {
    %c0_i32 = arith.constant 0 : i32
    %c0_i32_0 = arith.constant 0 : i32
    return %arg0, %c0_i32, %arg2 : i32, i32, i32
  }
  func.func @transform_3(%arg0: i32, %arg1: i32, %arg2: i32, %arg3: i32) -> (i32, i32, i32) {
    %c0_i32 = arith.constant 0 : i32
    return %arg0, %arg1, %arg2 : i32, i32, i32
  }
}

module attributes {stable_mosaic.version = 11 : i64} {
  func.func @_grouped_matmul_kernel(%arg0: i32, %arg1: i32, %arg2: i32, %arg3: i32, %arg4: memref<1x32x1024xbf16, #tpu.memory_space<vmem>>, %arg5: memref<1x1024x128xbf16, #tpu.memory_space<vmem>>, %arg6: memref<1x1x128xf32, #tpu.memory_space<vmem>>, %arg7: memref<1x32x128xbf16, #tpu.memory_space<vmem>>, %arg8: memref<32x128xf32, #tpu.memory_space<vmem>>) attributes {dimension_semantics = [#tpu.dimension_semantics<parallel>, #tpu.dimension_semantics<parallel>, #tpu.dimension_semantics<parallel>, #tpu.dimension_semantics<arbitrary>], iteration_bounds = array<i64: 1, 1, 1, 2>, scalar_prefetch = 0 : i64, scratch_operands = 1 : i64, tpu.core_type = #tpu.core_type<tc>, window_params = [{transform_indices = @transform_0, window_bounds = array<i64: 1, 32, 1024>}, {transform_indices = @transform_1, window_bounds = array<i64: 1, 1024, 128>}, {transform_indices = @transform_2, window_bounds = array<i64: 1, 1, 128>}, {transform_indices = @transform_3, window_bounds = array<i64: 1, 32, 128>}]} {
    %c0_i32 = arith.constant 0 : i32
    %0 = arith.cmpi eq, %arg3, %c0_i32 : i32
    %1 = arith.extui %0 : i1 to i32
    %c0_i32_0 = arith.constant 0 : i32
    %2 = arith.cmpi ne, %1, %c0_i32_0 : i32
    scf.if %2 {
      %cst_11 = arith.constant 0.000000e+00 : f32
      %14 = vector.broadcast %cst_11 : f32 to vector<32x128xf32>
      %c0_12 = arith.constant 0 : index
      %c0_13 = arith.constant 0 : index
      %15 = vector.load %arg8[%c0_12, %c0_13] : memref<32x128xf32, #tpu.memory_space<vmem>>, vector<32x128xf32>
      tpu.vector_store %arg8[%c0_12, %c0_13], %14 {strides = array<i32>} : memref<32x128xf32, #tpu.memory_space<vmem>>, vector<32x128xf32>,
    } else {
    }
    %c0 = arith.constant 0 : index
    %c0_1 = arith.constant 0 : index
    %3 = vector.load %arg8[%c0, %c0_1] : memref<32x128xf32, #tpu.memory_space<vmem>>, vector<32x128xf32>
    %c0_2 = arith.constant 0 : index
    %c0_3 = arith.constant 0 : index
    %c0_4 = arith.constant 0 : index
    %4 = vector.load %arg4[%c0_2, %c0_3, %c0_4] : memref<1x32x1024xbf16, #tpu.memory_space<vmem>>, vector<1x32x1024xbf16>
    %5 = vector.shape_cast %4 : vector<1x32x1024xbf16> to vector<32x1024xbf16>
    %c0_5 = arith.constant 0 : index
    %c0_6 = arith.constant 0 : index
    %c0_7 = arith.constant 0 : index
    %6 = vector.load %arg5[%c0_5, %c0_6, %c0_7] : memref<1x1024x128xbf16, #tpu.memory_space<vmem>>, vector<1x1024x128xbf16>
    %7 = vector.shape_cast %6 : vector<1x1024x128xbf16> to vector<1024x128xbf16>
    %cst = arith.constant dense<0.000000e+00> : vector<32x128xf32>
    %8 = tpu.matmul %5, %7, %cst {dimension_numbers = #tpu.dot_dimension_numbers<[1], [0], [0], [1], [0, 0, 1, 1], [], []>} : vector<32x1024xbf16>, vector<1024x128xbf16>, vector<32x128xf32> -> vector<32x128xf32>
    %9 = arith.addf %3, %8 : vector<32x128xf32>
    %c0_8 = arith.constant 0 : index
    %c0_9 = arith.constant 0 : index
    %10 = vector.load %arg8[%c0_8, %c0_9] : memref<32x128xf32, #tpu.memory_space<vmem>>, vector<32x128xf32>
    tpu.vector_store %arg8[%c0_8, %c0_9], %9 {strides = array<i32>} : memref<32x128xf32, #tpu.memory_space<vmem>>, vector<32x128xf32>,
    %c1_i32 = arith.constant 1 : i32
    %11 = arith.cmpi eq, %arg3, %c1_i32 : i32
    %12 = arith.extui %11 : i1 to i32
    %c0_i32_10 = arith.constant 0 : i32
    %13 = arith.cmpi ne, %12, %c0_i32_10 : i32
    scf.if %13 {
      %c0_11 = arith.constant 0 : index
      %c0_12 = arith.constant 0 : index
      %14 = vector.load %arg8[%c0_11, %c0_12] : memref<32x128xf32, #tpu.memory_space<vmem>>, vector<32x128xf32>
      %c0_13 = arith.constant 0 : index
      %c0_14 = arith.constant 0 : index
      %c0_15 = arith.constant 0 : index
      %15 = vector.load %arg6[%c0_13, %c0_14, %c0_15] : memref<1x1x128xf32, #tpu.memory_space<vmem>>, vector<1x1x128xf32>
      %16 = vector.shape_cast %15 : vector<1x1x128xf32> to vector<1x128xf32>
      %17 = vector.broadcast %16 : vector<1x128xf32> to vector<32x128xf32>
      %18 = arith.addf %14, %17 : vector<32x128xf32>
      %cst_16 = arith.constant 0.000000e+00 : f32
      %19 = vector.broadcast %cst_16 : f32 to vector<32x128xf32>
      %20 = arith.cmpf ogt, %18, %19 : vector<32x128xf32>
      %cst_17 = arith.constant 2.000000e-01 : f32
      %21 = vector.broadcast %cst_17 : f32 to vector<32x128xf32>
      %22 = arith.mulf %21, %18 : vector<32x128xf32>
      %23 = arith.select %20, %18, %22 : vector<32x128xi1>, vector<32x128xf32>
      %24 = arith.truncf %23 : vector<32x128xf32> to vector<32x128xbf16>
      %c0_18 = arith.constant 0 : index
      %c0_19 = arith.constant 0 : index
      %c0_20 = arith.constant 0 : index
      %25 = vector.load %arg7[%c0_18, %c0_19, %c0_20] : memref<1x32x128xbf16, #tpu.memory_space<vmem>>, vector<1x32x128xbf16>
      %26 = vector.shape_cast %25 : vector<1x32x128xbf16> to vector<32x128xbf16>
      %27 = vector.shape_cast %24 : vector<32x128xbf16> to vector<1x32x128xbf16>
      tpu.vector_store %arg7[%c0_18, %c0_19, %c0_20], %27 {strides = array<i32>} : memref<1x32x128xbf16, #tpu.memory_space<vmem>>, vector<1x32x128xbf16>,
    } else {
    }
    return
  }
  func.func @transform_0(%arg0: i32, %arg1: i32, %arg2: i32, %arg3: i32) -> (i32, i32, i32) {
    %c0_i32 = arith.constant 0 : i32
    return %arg0, %arg1, %arg3 : i32, i32, i32
  }
  func.func @transform_1(%arg0: i32, %arg1: i32, %arg2: i32, %arg3: i32) -> (i32, i32, i32) {
    %c0_i32 = arith.constant 0 : i32
    return %arg0, %arg3, %arg2 : i32, i32, i32
  }
  func.func @transform_2(%arg0: i32, %arg1: i32, %arg2: i32, %arg3: i32) -> (i32, i32, i32) {
    %c0_i32 = arith.constant 0 : i32
    %c0_i32_0 = arith.constant 0 : i32
    return %arg0, %c0_i32, %arg2 : i32, i32, i32
  }
  func.func @transform_3(%arg0: i32, %arg1: i32, %arg2: i32, %arg3: i32) -> (i32, i32, i32) {
    %c0_i32 = arith.constant 0 : i32
    return %arg0, %arg1, %arg2 : i32, i32, i32
  }
}

module attributes {stable_mosaic.version = 11 : i64} {
  func.func @_grouped_matmul_kernel(%arg0: i32, %arg1: i32, %arg2: i32, %arg3: i32, %arg4: memref<1x2x1024xbf16, #tpu.memory_space<vmem>>, %arg5: memref<1x1024x128xbf16, #tpu.memory_space<vmem>>, %arg6: memref<1x1x128xf32, #tpu.memory_space<vmem>>, %arg7: memref<1x2x128xf32, #tpu.memory_space<vmem>>, %arg8: memref<2x128xf32, #tpu.memory_space<vmem>>) attributes {dimension_semantics = [#tpu.dimension_semantics<parallel>, #tpu.dimension_semantics<parallel>, #tpu.dimension_semantics<parallel>, #tpu.dimension_semantics<arbitrary>], iteration_bounds = array<i64: 1, 1, 1, 2>, scalar_prefetch = 0 : i64, scratch_operands = 1 : i64, tpu.core_type = #tpu.core_type<tc>, window_params = [{transform_indices = @transform_0, window_bounds = array<i64: 1, 2, 1024>}, {transform_indices = @transform_1, window_bounds = array<i64: 1, 1024, 128>}, {transform_indices = @transform_2, window_bounds = array<i64: 1, 1, 128>}, {transform_indices = @transform_3, window_bounds = array<i64: 1, 2, 128>}]} {
    %c0_i32 = arith.constant 0 : i32
    %0 = arith.cmpi eq, %arg3, %c0_i32 : i32
    %1 = arith.extui %0 : i1 to i32
    %c0_i32_0 = arith.constant 0 : i32
    %2 = arith.cmpi ne, %1, %c0_i32_0 : i32
    scf.if %2 {
      %cst_11 = arith.constant 0.000000e+00 : f32
      %14 = vector.broadcast %cst_11 : f32 to vector<2x128xf32>
      %c0_12 = arith.constant 0 : index
      %c0_13 = arith.constant 0 : index
      %15 = vector.load %arg8[%c0_12, %c0_13] : memref<2x128xf32, #tpu.memory_space<vmem>>, vector<2x128xf32>
      tpu.vector_store %arg8[%c0_12, %c0_13], %14 {strides = array<i32>} : memref<2x128xf32, #tpu.memory_space<vmem>>, vector<2x128xf32>,
    } else {
    }
    %c0 = arith.constant 0 : index
    %c0_1 = arith.constant 0 : index
    %3 = vector.load %arg8[%c0, %c0_1] : memref<2x128xf32, #tpu.memory_space<vmem>>, vector<2x128xf32>
    %c0_2 = arith.constant 0 : index
    %c0_3 = arith.constant 0 : index
    %c0_4 = arith.constant 0 : index
    %4 = vector.load %arg4[%c0_2, %c0_3, %c0_4] : memref<1x2x1024xbf16, #tpu.memory_space<vmem>>, vector<1x2x1024xbf16>
    %5 = vector.shape_cast %4 : vector<1x2x1024xbf16> to vector<2x1024xbf16>
    %c0_5 = arith.constant 0 : index
    %c0_6 = arith.constant 0 : index
    %c0_7 = arith.constant 0 : index
    %6 = vector.load %arg5[%c0_5, %c0_6, %c0_7] : memref<1x1024x128xbf16, #tpu.memory_space<vmem>>, vector<1x1024x128xbf16>
    %7 = vector.shape_cast %6 : vector<1x1024x128xbf16> to vector<1024x128xbf16>
    %cst = arith.constant dense<0.000000e+00> : vector<2x128xf32>
    %8 = tpu.matmul %5, %7, %cst {dimension_numbers = #tpu.dot_dimension_numbers<[1], [0], [0], [1], [0, 0, 1, 1], [], []>} : vector<2x1024xbf16>, vector<1024x128xbf16>, vector<2x128xf32> -> vector<2x128xf32>
    %9 = arith.addf %3, %8 : vector<2x128xf32>
    %c0_8 = arith.constant 0 : index
    %c0_9 = arith.constant 0 : index
    %10 = vector.load %arg8[%c0_8, %c0_9] : memref<2x128xf32, #tpu.memory_space<vmem>>, vector<2x128xf32>
    tpu.vector_store %arg8[%c0_8, %c0_9], %9 {strides = array<i32>} : memref<2x128xf32, #tpu.memory_space<vmem>>, vector<2x128xf32>,
    %c1_i32 = arith.constant 1 : i32
    %11 = arith.cmpi eq, %arg3, %c1_i32 : i32
    %12 = arith.extui %11 : i1 to i32
    %c0_i32_10 = arith.constant 0 : i32
    %13 = arith.cmpi ne, %12, %c0_i32_10 : i32
    scf.if %13 {
      %c0_11 = arith.constant 0 : index
      %c0_12 = arith.constant 0 : index
      %14 = vector.load %arg8[%c0_11, %c0_12] : memref<2x128xf32, #tpu.memory_space<vmem>>, vector<2x128xf32>
      %c0_13 = arith.constant 0 : index
      %c0_14 = arith.constant 0 : index
      %c0_15 = arith.constant 0 : index
      %15 = vector.load %arg6[%c0_13, %c0_14, %c0_15] : memref<1x1x128xf32, #tpu.memory_space<vmem>>, vector<1x1x128xf32>
      %16 = vector.shape_cast %15 : vector<1x1x128xf32> to vector<1x128xf32>
      %17 = vector.broadcast %16 : vector<1x128xf32> to vector<2x128xf32>
      %18 = arith.addf %14, %17 : vector<2x128xf32>
      %c0_16 = arith.constant 0 : index
      %c0_17 = arith.constant 0 : index
      %c0_18 = arith.constant 0 : index
      %19 = vector.load %arg7[%c0_16, %c0_17, %c0_18] : memref<1x2x128xf32, #tpu.memory_space<vmem>>, vector<1x2x128xf32>
      %20 = vector.shape_cast %19 : vector<1x2x128xf32> to vector<2x128xf32>
      %21 = vector.shape_cast %18 : vector<2x128xf32> to vector<1x2x128xf32>
      tpu.vector_store %arg7[%c0_16, %c0_17, %c0_18], %21 {strides = array<i32>} : memref<1x2x128xf32, #tpu.memory_space<vmem>>, vector<1x2x128xf32>,
    } else {
    }
    return
  }
  func.func @transform_0(%arg0: i32, %arg1: i32, %arg2: i32, %arg3: i32) -> (i32, i32, i32) {
    %c0_i32 = arith.constant 0 : i32
    return %arg0, %arg1, %arg3 : i32, i32, i32
  }
  func.func @transform_1(%arg0: i32, %arg1: i32, %arg2: i32, %arg3: i32) -> (i32, i32, i32) {
    %c0_i32 = arith.constant 0 : i32
    return %arg0, %arg3, %arg2 : i32, i32, i32
  }
  func.func @transform_2(%arg0: i32, %arg1: i32, %arg2: i32, %arg3: i32) -> (i32, i32, i32) {
    %c0_i32 = arith.constant 0 : i32
    %c0_i32_0 = arith.constant 0 : i32
    return %arg0, %c0_i32, %arg2 : i32, i32, i32
  }
  func.func @transform_3(%arg0: i32, %arg1: i32, %arg2: i32, %arg3: i32) -> (i32, i32, i32) {
    %c0_i32 = arith.constant 0 : i32
    return %arg0, %arg1, %arg2 : i32, i32, i32
  }
}

</mosaic_0001>

<llo_original>
// kernel: squeeze.4
$region0: #{squeeze.4}
  %s0 = inlined_call_operand.vmem [shape: bf16[1,2,2048], index: 0, kind: input, shape index: {}]
  %s1 = inlined_call_operand.vmem [shape: bf16[2,4,4,128], index: 1, kind: output, shape index: {}]
  $region1: #{squeeze.4} parent=0
    #allocation0 [shape = 'u8[32768]{0}', space=vmem, size = 0x8000, scoped, tag = 'scoped mem for output reshape']
    #allocation1 [shape = 'u8[65536]{0}', space=vmem, size = 0x10000, scoped, tag = 'scoped mem for input reshape']
    %s3 = smul.u32 1, 2
    %s4 = sshllo.u32 0, %s3
    %s5 = smul.addr 1, 15
    %s6 = scalar_lea.vmem %s0, %s5
    %s7 = sshrl.u32 %s4, 1
    %s8 = sor.u32 %s4, %s7
    %s9 = sand.u32 %s8, 85
    %s10 = sshrl.u32 %s9, 1
    %s11 = sor.u32 %s9, %s10
    %s12 = sand.u32 51, %s11
    %s13 = sshrl.u32 %s12, 2
    %s14 = sor.u32 %s12, %s13
    %s15 = sand.u32 15, %s14
    %v16 = vld [vmem:[%s6] sm:%s15]
    %v17 = vunpack.c.l.bf16 %v16
    %v18 = vunpack.c.h.bf16 %v16
    %s19 = scalar_lea.vmem [#allocation1], 120
    %20 = vst [vmem:[%s19] sm:%s4] %v17
    %s21 = smul.addr 1, 14
    %s22 = scalar_lea.vmem %s0, %s21
    %s23 = sshrl.u32 %s4, 1
    %s24 = sor.u32 %s4, %s23
    %s25 = sand.u32 %s24, 85
    %s26 = sshrl.u32 %s25, 1
    %s27 = sor.u32 %s25, %s26
    %s28 = sand.u32 51, %s27
    %s29 = sshrl.u32 %s28, 2
    %s30 = sor.u32 %s28, %s29
    %s31 = sand.u32 15, %s30
    %v32 = vld [vmem:[%s22] sm:%s31]
    %v33 = vunpack.c.l.bf16 %v32
    %v34 = vunpack.c.h.bf16 %v32
    %s35 = scalar_lea.vmem [#allocation1], 112
    %36 = vst [vmem:[%s35] sm:%s4] %v33
    %s37 = smul.addr 1, 13
    %s38 = scalar_lea.vmem %s0, %s37
    %s39 = sshrl.u32 %s4, 1
    %s40 = sor.u32 %s4, %s39
    %s41 = sand.u32 %s40, 85
    %s42 = sshrl.u32 %s41, 1
    %s43 = sor.u32 %s41, %s42
    %s44 = sand.u32 51, %s43
    %s45 = sshrl.u32 %s44, 2
    %s46 = sor.u32 %s44, %s45
    %s47 = sand.u32 15, %s46
    %v48 = vld [vmem:[%s38] sm:%s47]
    %v49 = vunpack.c.l.bf16 %v48
    %v50 = vunpack.c.h.bf16 %v48
    %s51 = scalar_lea.vmem [#allocation1], 104
    %52 = vst [vmem:[%s51] sm:%s4] %v49
    %s53 = smul.addr 1, 12
    %s54 = scalar_lea.vmem %s0, %s53
    %s55 = sshrl.u32 %s4, 1
    %s56 = sor.u32 %s4, %s55
    %s57 = sand.u32 %s56, 85
    %s58 = sshrl.u32 %s57, 1
    %s59 = sor.u32 %s57, %s58
    %s60 = sand.u32 51, %s59
    %s61 = sshrl.u32 %s60, 2
    %s62 = sor.u32 %s60, %s61
    %s63 = sand.u32 15, %s62
    %v64 = vld [vmem:[%s54] sm:%s63]
    %v65 = vunpack.c.l.bf16 %v64
    %v66 = vunpack.c.h.bf16 %v64
    %s67 = scalar_lea.vmem [#allocation1], 96
    %68 = vst [vmem:[%s67] sm:%s4] %v65
    %s69 = smul.addr 1, 11
    %s70 = scalar_lea.vmem %s0, %s69
    %s71 = sshrl.u32 %s4, 1
    %s72 = sor.u32 %s4, %s71
    %s73 = sand.u32 %s72, 85
    %s74 = sshrl.u32 %s73, 1
    %s75 = sor.u32 %s73, %s74
    %s76 = sand.u32 51, %s75
    %s77 = sshrl.u32 %s76, 2
    %s78 = sor.u32 %s76, %s77
    %s79 = sand.u32 15, %s78
    %v80 = vld [vmem:[%s70] sm:%s79]
    %v81 = vunpack.c.l.bf16 %v80
    %v82 = vunpack.c.h.bf16 %v80
    %s83 = scalar_lea.vmem [#allocation1], 88
    %84 = vst [vmem:[%s83] sm:%s4] %v81
    %s85 = smul.addr 1, 10
    %s86 = scalar_lea.vmem %s0, %s85
    %s87 = sshrl.u32 %s4, 1
    %s88 = sor.u32 %s4, %s87
    %s89 = sand.u32 %s88, 85
    %s90 = sshrl.u32 %s89, 1
    %s91 = sor.u32 %s89, %s90
    %s92 = sand.u32 51, %s91
    %s93 = sshrl.u32 %s92, 2
    %s94 = sor.u32 %s92, %s93
    %s95 = sand.u32 15, %s94
    %v96 = vld [vmem:[%s86] sm:%s95]
    %v97 = vunpack.c.l.bf16 %v96
    %v98 = vunpack.c.h.bf16 %v96
    %s99 = scalar_lea.vmem [#allocation1], 80
    %100 = vst [vmem:[%s99] sm:%s4] %v97
    %s101 = smul.addr 1, 9
    %s102 = scalar_lea.vmem %s0, %s101
    %s103 = sshrl.u32 %s4, 1
    %s104 = sor.u32 %s4, %s103
    %s105 = sand.u32 %s104, 85
    %s106 = sshrl.u32 %s105, 1
    %s107 = sor.u32 %s105, %s106
    %s108 = sand.u32 51, %s107
    %s109 = sshrl.u32 %s108, 2
    %s110 = sor.u32 %s108, %s109
    %s111 = sand.u32 15, %s110
    %v112 = vld [vmem:[%s102] sm:%s111]
    %v113 = vunpack.c.l.bf16 %v112
    %v114 = vunpack.c.h.bf16 %v112
    %s115 = scalar_lea.vmem [#allocation1], 72
    %116 = vst [vmem:[%s115] sm:%s4] %v113
    %s117 = smul.addr 1, 8
    %s118 = scalar_lea.vmem %s0, %s117
    %s119 = sshrl.u32 %s4, 1
    %s120 = sor.u32 %s4, %s119
    %s121 = sand.u32 %s120, 85
    %s122 = sshrl.u32 %s121, 1
    %s123 = sor.u32 %s121, %s122
    %s124 = sand.u32 51, %s123
    %s125 = sshrl.u32 %s124, 2
    %s126 = sor.u32 %s124, %s125
    %s127 = sand.u32 15, %s126
    %v128 = vld [vmem:[%s118] sm:%s127]
    %v129 = vunpack.c.l.bf16 %v128
    %v130 = vunpack.c.h.bf16 %v128
    %s131 = scalar_lea.vmem [#allocation1], 64
    %132 = vst [vmem:[%s131] sm:%s4] %v129
    %s133 = smul.addr 1, 7
    %s134 = scalar_lea.vmem %s0, %s133
    %s135 = sshrl.u32 %s4, 1
    %s136 = sor.u32 %s4, %s135
    %s137 = sand.u32 %s136, 85
    %s138 = sshrl.u32 %s137, 1
    %s139 = sor.u32 %s137, %s138
    %s140 = sand.u32 51, %s139
    %s141 = sshrl.u32 %s140, 2
    %s142 = sor.u32 %s140, %s141
    %s143 = sand.u32 15, %s142
    %v144 = vld [vmem:[%s134] sm:%s143]
    %v145 = vunpack.c.l.bf16 %v144
    %v146 = vunpack.c.h.bf16 %v144
    %s147 = scalar_lea.vmem [#allocation1], 56
    %148 = vst [vmem:[%s147] sm:%s4] %v145
    %s149 = smul.addr 1, 6
    %s150 = scalar_lea.vmem %s0, %s149
    %s151 = sshrl.u32 %s4, 1
    %s152 = sor.u32 %s4, %s151
    %s153 = sand.u32 %s152, 85
    %s154 = sshrl.u32 %s153, 1
    %s155 = sor.u32 %s153, %s154
    %s156 = sand.u32 51, %s155
    %s157 = sshrl.u32 %s156, 2
    %s158 = sor.u32 %s156, %s157
    %s159 = sand.u32 15, %s158
    %v160 = vld [vmem:[%s150] sm:%s159]
    %v161 = vunpack.c.l.bf16 %v160
    %v162 = vunpack.c.h.bf16 %v160
    %s163 = scalar_lea.vmem [#allocation1], 48
    %164 = vst [vmem:[%s163] sm:%s4] %v161
    %s165 = smul.addr 1, 5
    %s166 = scalar_lea.vmem %s0, %s165
    %s167 = sshrl.u32 %s4, 1
    %s168 = sor.u32 %s4, %s167
    %s169 = sand.u32 %s168, 85
    %s170 = sshrl.u32 %s169, 1
    %s171 = sor.u32 %s169, %s170
    %s172 = sand.u32 51, %s171
    %s173 = sshrl.u32 %s172, 2
    %s174 = sor.u32 %s172, %s173
    %s175 = sand.u32 15, %s174
    %v176 = vld [vmem:[%s166] sm:%s175]
    %v177 = vunpack.c.l.bf16 %v176
    %v178 = vunpack.c.h.bf16 %v176
    %s179 = scalar_lea.vmem [#allocation1], 40
    %180 = vst [vmem:[%s179] sm:%s4] %v177
    %s181 = smul.addr 1, 4
    %s182 = scalar_lea.vmem %s0, %s181
    %s183 = sshrl.u32 %s4, 1
    %s184 = sor.u32 %s4, %s183
    %s185 = sand.u32 %s184, 85
    %s186 = sshrl.u32 %s185, 1
    %s187 = sor.u32 %s185, %s186
    %s188 = sand.u32 51, %s187
    %s189 = sshrl.u32 %s188, 2
    %s190 = sor.u32 %s188, %s189
    %s191 = sand.u32 15, %s190
    %v192 = vld [vmem:[%s182] sm:%s191]
    %v193 = vunpack.c.l.bf16 %v192
    %v194 = vunpack.c.h.bf16 %v192
    %s195 = scalar_lea.vmem [#allocation1], 32
    %196 = vst [vmem:[%s195] sm:%s4] %v193
    %s197 = smul.addr 1, 3
    %s198 = scalar_lea.vmem %s0, %s197
    %s199 = sshrl.u32 %s4, 1
    %s200 = sor.u32 %s4, %s199
    %s201 = sand.u32 %s200, 85
    %s202 = sshrl.u32 %s201, 1
    %s203 = sor.u32 %s201, %s202
    %s204 = sand.u32 51, %s203
    %s205 = sshrl.u32 %s204, 2
    %s206 = sor.u32 %s204, %s205
    %s207 = sand.u32 15, %s206
    %v208 = vld [vmem:[%s198] sm:%s207]
    %v209 = vunpack.c.l.bf16 %v208
    %v210 = vunpack.c.h.bf16 %v208
    %s211 = scalar_lea.vmem [#allocation1], 24
    %212 = vst [vmem:[%s211] sm:%s4] %v209
    %s213 = smul.addr 1, 2
    %s214 = scalar_lea.vmem %s0, %s213
    %s215 = sshrl.u32 %s4, 1
    %s216 = sor.u32 %s4, %s215
    %s217 = sand.u32 %s216, 85
    %s218 = sshrl.u32 %s217, 1
    %s219 = sor.u32 %s217, %s218
    %s220 = sand.u32 51, %s219
    %s221 = sshrl.u32 %s220, 2
    %s222 = sor.u32 %s220, %s221
    %s223 = sand.u32 15, %s222
    %v224 = vld [vmem:[%s214] sm:%s223]
    %v225 = vunpack.c.l.bf16 %v224
    %v226 = vunpack.c.h.bf16 %v224
    %s227 = scalar_lea.vmem [#allocation1], 16
    %228 = vst [vmem:[%s227] sm:%s4] %v225
    %s229 = scalar_lea.vmem %s0, 1
    %s230 = sshrl.u32 %s4, 1
    %s231 = sor.u32 %s4, %s230
    %s232 = sand.u32 %s231, 85
    %s233 = sshrl.u32 %s232, 1
    %s234 = sor.u32 %s232, %s233
    %s235 = sand.u32 51, %s234
    %s236 = sshrl.u32 %s235, 2
    %s237 = sor.u32 %s235, %s236
    %s238 = sand.u32 15, %s237
    %v239 = vld [vmem:[%s229] sm:%s238]
    %v240 = vunpack.c.l.bf16 %v239
    %v241 = vunpack.c.h.bf16 %v239
    %s242 = scalar_lea.vmem [#allocation1], 8
    %243 = vst [vmem:[%s242] sm:%s4] %v240
    %s244 = sshrl.u32 %s4, 1
    %s245 = sor.u32 %s4, %s244
    %s246 = sand.u32 %s245, 85
    %s247 = sshrl.u32 %s246, 1
    %s248 = sor.u32 %s246, %s247
    %s249 = sand.u32 51, %s248
    %s250 = sshrl.u32 %s249, 2
    %s251 = sor.u32 %s249, %s250
    %s252 = sand.u32 15, %s251
    %v253 = vld [vmem:[%s0] sm:%s252]
    %v254 = vunpack.c.l.bf16 %v253
    %v255 = vunpack.c.h.bf16 %v253
    %256 = vst [vmem:[#allocation1] sm:%s4] %v254
    %v257 = vld [vmem:[#allocation1] sm:$0x3]
    %258 = vst [vmem:[#allocation0] sm:$0x1] %v257
    %s259 = scalar_lea.vmem [#allocation0], 31
    %260 = vst [vmem:[%s259] sm:$0x2] %v257
    %s261 = scalar_lea.vmem [#allocation1], 8
    %v262 = vld [vmem:[%s261] sm:$0x3]
    %s263 = scalar_lea.vmem [#allocation0], 1
    %264 = vst [vmem:[%s263] sm:$0x1] %v262
    %s265 = scalar_lea.vmem [#allocation0], 32
    %266 = vst [vmem:[%s265] sm:$0x2] %v262
    %s267 = scalar_lea.vmem [#allocation1], 16
    %v268 = vld [vmem:[%s267] sm:$0x3]
    %s269 = scalar_lea.vmem [#allocation0], 2
    %270 = vst [vmem:[%s269] sm:$0x1] %v268
    %s271 = scalar_lea.vmem [#allocation0], 33
    %272 = vst [vmem:[%s271] sm:$0x2] %v268
    %s273 = scalar_lea.vmem [#allocation1], 24
    %v274 = vld [vmem:[%s273] sm:$0x3]
    %s275 = scalar_lea.vmem [#allocation0], 3
    %276 = vst [vmem:[%s275] sm:$0x1] %v274
    %s277 = scalar_lea.vmem [#allocation0], 34
    %278 = vst [vmem:[%s277] sm:$0x2] %v274
    %s279 = scalar_lea.vmem [#allocation1], 32
    %v280 = vld [vmem:[%s279] sm:$0x3]
    %s281 = scalar_lea.vmem [#allocation0], 8
    %282 = vst [vmem:[%s281] sm:$0x1] %v280
    %s283 = scalar_lea.vmem [#allocation0], 39
    %284 = vst [vmem:[%s283] sm:$0x2] %v280
    %s285 = scalar_lea.vmem [#allocation1], 40
    %v286 = vld [vmem:[%s285] sm:$0x3]
    %s287 = scalar_lea.vmem [#allocation0], 9
    %288 = vst [vmem:[%s287] sm:$0x1] %v286
    %s289 = scalar_lea.vmem [#allocation0], 40
    %290 = vst [vmem:[%s289] sm:$0x2] %v286
    %s291 = scalar_lea.vmem [#allocation1], 48
    %v292 = vld [vmem:[%s291] sm:$0x3]
    %s293 = scalar_lea.vmem [#allocation0], 10
    %294 = vst [vmem:[%s293] sm:$0x1] %v292
    %s295 = scalar_lea.vmem [#allocation0], 41
    %296 = vst [vmem:[%s295] sm:$0x2] %v292
    %s297 = scalar_lea.vmem [#allocation1], 56
    %v298 = vld [vmem:[%s297] sm:$0x3]
    %s299 = scalar_lea.vmem [#allocation0], 11
    %300 = vst [vmem:[%s299] sm:$0x1] %v298
    %s301 = scalar_lea.vmem [#allocation0], 42
    %302 = vst [vmem:[%s301] sm:$0x2] %v298
    %s303 = scalar_lea.vmem [#allocation1], 64
    %v304 = vld [vmem:[%s303] sm:$0x3]
    %s305 = scalar_lea.vmem [#allocation0], 16
    %306 = vst [vmem:[%s305] sm:$0x1] %v304
    %s307 = scalar_lea.vmem [#allocation0], 47
    %308 = vst [vmem:[%s307] sm:$0x2] %v304
    %s309 = scalar_lea.vmem [#allocation1], 72
    %v310 = vld [vmem:[%s309] sm:$0x3]
    %s311 = scalar_lea.vmem [#allocation0], 17
    %312 = vst [vmem:[%s311] sm:$0x1] %v310
    %s313 = scalar_lea.vmem [#allocation0], 48
    %314 = vst [vmem:[%s313] sm:$0x2] %v310
    %s315 = scalar_lea.vmem [#allocation1], 80
    %v316 = vld [vmem:[%s315] sm:$0x3]
    %s317 = scalar_lea.vmem [#allocation0], 18
    %318 = vst [vmem:[%s317] sm:$0x1] %v316
    %s319 = scalar_lea.vmem [#allocation0], 49
    %320 = vst [vmem:[%s319] sm:$0x2] %v316
    %s321 = scalar_lea.vmem [#allocation1], 88
    %v322 = vld [vmem:[%s321] sm:$0x3]
    %s323 = scalar_lea.vmem [#allocation0], 19
    %324 = vst [vmem:[%s323] sm:$0x1] %v322
    %s325 = scalar_lea.vmem [#allocation0], 50
    %326 = vst [vmem:[%s325] sm:$0x2] %v322
    %s327 = scalar_lea.vmem [#allocation1], 96
    %v328 = vld [vmem:[%s327] sm:$0x3]
    %s329 = scalar_lea.vmem [#allocation0], 24
    %330 = vst [vmem:[%s329] sm:$0x1] %v328
    %s331 = scalar_lea.vmem [#allocation0], 55
    %332 = vst [vmem:[%s331] sm:$0x2] %v328
    %s333 = scalar_lea.vmem [#allocation1], 104
    %v334 = vld [vmem:[%s333] sm:$0x3]
    %s335 = scalar_lea.vmem [#allocation0], 25
    %336 = vst [vmem:[%s335] sm:$0x1] %v334
    %s337 = scalar_lea.vmem [#allocation0], 56
    %338 = vst [vmem:[%s337] sm:$0x2] %v334
    %s339 = scalar_lea.vmem [#allocation1], 112
    %v340 = vld [vmem:[%s339] sm:$0x3]
    %s341 = scalar_lea.vmem [#allocation0], 26
    %342 = vst [vmem:[%s341] sm:$0x1] %v340
    %s343 = scalar_lea.vmem [#allocation0], 57
    %344 = vst [vmem:[%s343] sm:$0x2] %v340
    %s345 = scalar_lea.vmem [#allocation1], 120
    %v346 = vld [vmem:[%s345] sm:$0x3]
    %s347 = scalar_lea.vmem [#allocation0], 27
    %348 = vst [vmem:[%s347] sm:$0x1] %v346
    %s349 = scalar_lea.vmem [#allocation0], 58
    %350 = vst [vmem:[%s349] sm:$0x2] %v346
    %s352 = smul.u32 2, 2
    %s353 = sshllo.u32 0, %s352
    %s354 = sshrl.u32 %s352, 1
    %v355 = vld [vmem:[#allocation0] sm:%s353]
    %v356 = vpack.c.bf16 0.0, %v355
    %s357 = sshllo.u32 0, %s354
    %358 = vst [vmem:[%s1] sm:%s357] %v356
    %s359 = scalar_lea.vmem [#allocation0], 8
    %v360 = vld [vmem:[%s359] sm:%s353]
    %v361 = vpack.c.bf16 0.0, %v360
    %s362 = sshllo.u32 0, %s354
    %s363 = scalar_lea.vmem %s1, 2
    %364 = vst [vmem:[%s363] sm:%s362] %v361
    %s365 = scalar_lea.vmem [#allocation0], 16
    %v366 = vld [vmem:[%s365] sm:%s353]
    %v367 = vpack.c.bf16 0.0, %v366
    %s368 = sshllo.u32 0, %s354
    %s369 = smul.addr 2, 2
    %s370 = scalar_lea.vmem %s1, %s369
    %371 = vst [vmem:[%s370] sm:%s368] %v367
    %s372 = scalar_lea.vmem [#allocation0], 24
    %v373 = vld [vmem:[%s372] sm:%s353]
    %v374 = vpack.c.bf16 0.0, %v373
    %s375 = sshllo.u32 0, %s354
    %s376 = smul.addr 2, 3
    %s377 = scalar_lea.vmem %s1, %s376
    %378 = vst [vmem:[%s377] sm:%s375] %v374
    %s379 = scalar_lea.vmem [#allocation0], 32
    %v380 = vld [vmem:[%s379] sm:%s353]
    %v381 = vpack.c.bf16 0.0, %v380
    %s382 = sshllo.u32 0, %s354
    %s383 = smul.addr 2, 4
    %s384 = scalar_lea.vmem %s1, %s383
    %385 = vst [vmem:[%s384] sm:%s382] %v381
    %s386 = scalar_lea.vmem [#allocation0], 40
    %v387 = vld [vmem:[%s386] sm:%s353]
    %v388 = vpack.c.bf16 0.0, %v387
    %s389 = sshllo.u32 0, %s354
    %s390 = smul.addr 2, 5
    %s391 = scalar_lea.vmem %s1, %s390
    %392 = vst [vmem:[%s391] sm:%s389] %v388
    %s393 = scalar_lea.vmem [#allocation0], 48
    %v394 = vld [vmem:[%s393] sm:%s353]
    %v395 = vpack.c.bf16 0.0, %v394
    %s396 = sshllo.u32 0, %s354
    %s397 = smul.addr 2, 6
    %s398 = scalar_lea.vmem %s1, %s397
    %399 = vst [vmem:[%s398] sm:%s396] %v395
    %s400 = scalar_lea.vmem [#allocation0], 56
    %v401 = vld [vmem:[%s400] sm:%s353]
    %v402 = vpack.c.bf16 0.0, %v401
    %s403 = sshllo.u32 0, %s354
    %s404 = smul.addr 2, 7
    %s405 = scalar_lea.vmem %s1, %s404
    %406 = vst [vmem:[%s405] sm:%s403] %v402

// kernel: gan_forward.6
$region0: #{gan_forward.6}
  #allocation0 [shape = 'u32[]', space=smem, size = 0x4, offset = 0x4, fixed_abs, tag = 'smem constant byte address 0x4 - core index']
  #allocation1 [shape = 'u32[144,128]{1,0:T(1,128)}', space=vmem, size = 0x12000, scoped, tag = 'internal scratch']
  #allocation2 [shape = 'f32[2,512]{1,0:T(2,128)}', space=vmem, size = 0x1000, scoped, tag = 'scratch operand']
  %s0 = inlined_call_operand.vmem [shape: bf16[1,2,8], index: 0, kind: input, shape index: {}]
  %s1 = inlined_call_operand.hbm [shape: bf16[1,8,2048], index: 1, kind: input, shape index: {}]
  %s2 = inlined_call_operand.vmem [shape: f32[1,1,2048], index: 2, kind: input, shape index: {}]
  %s3 = inlined_call_operand.vmem [shape: bf16[1,2,2048], index: 3, kind: output, shape index: {}]
  %s4 = sld [smem:[#allocation0]]
  $region57: #{gan_forward.6} parent=0
    _
  %s6 = ssub.s32 1, %s4
  %s7 = scalar_select 0, %s6, %s4
  $region1: #{gan_forward.6} parent=0
    #allocation3 [shape = 'u8[16384]{0}', space=vmem, size = 0x4000, scoped, tag = 'input window, operand 1']
    #allocation4 [shape = 's32[2]{0}', space=sflag, size = 0x8, scoped, tag = 'scoped memory for gan_forward.6']
    %8 = vsyncpa [#allocation4], 0
    %s9 = scalar_lea.sflag [#allocation4], 1
    %10 = vsyncpa %s9, 0
    loop: start=0, step=1, limit=6
    $region2: #{gan_forward.6} parent=1 // loop_pre_header
      _
    $region3: #{gan_forward.6} parent=1 // loop_header
      %s12 = sphi 0, %s16
      %p13 = scmp.ge.s32.totalorder %s12, 6
      %s19 = sphi 0, %s45
      %s20 = sphi 0, %s41
      %s21 = sphi 0, %s37
      %s22 = sphi 0, %s33
      %s23 = sphi 0, %s19
      %s24 = sphi 0, %s20
      %s25 = sphi 0, %s21
      %s26 = sphi 0, %s22
      %s27 = sphi 0, %s23
      %s28 = sphi 0, %s24
      %s29 = sphi 0, %s25
      %s30 = sphi 0, %s26
      %s52 = sphi 0, %s54
      %s55 = sphi 0, %s52
      %s56 = sphi 0, %s55
      %s72 = sphi 0, %s56
      %s82 = sphi 0, %s84
      %s85 = sphi 0, %s82
      %s86 = sphi 0, %s85
      %s102 = sphi 0, %s86
      %s110 = sphi 0, %s112
      %s113 = sphi 0, %s110
      %s114 = sphi 0, %s113
      %s130 = sphi 0, %s114
      %s140 = sphi 0, %s142
      %s143 = sphi 0, %s140
      %s144 = sphi 0, %s143
      %s160 = sphi 0, %s144
    $region4: #{gan_forward.6} parent=1 // loop_header_branch
      %15 = sbr.rel (%p13) target = $region8
    $region5: #{gan_forward.6} parent=1 // loop_body
      %s17 = ssub.s32 %s12, 1
      %s18 = ssub.s32 %s12, 2
      %s31 = sadd.s32 1, %s22
      %p32 = scmp.ge.s32.totalorder %s31, 1
      %s33 = scalar_select %p32, 0, %s31
      %s34 = sadd.s32 1, %s21
      %s35 = scalar_select %p32, %s34, %s21
      %p36 = scmp.ge.s32.totalorder %s35, 4
      %s37 = scalar_select %p36, 0, %s35
      %s38 = sadd.s32 1, %s20
      %s39 = scalar_select %p36, %s38, %s20
      %p40 = scmp.ge.s32.totalorder %s39, 1
      %s41 = scalar_select %p40, 0, %s39
      %s42 = sadd.s32 1, %s19
      %s43 = scalar_select %p40, %s42, %s19
      %p44 = scmp.ge.s32.totalorder %s43, 1
      %s45 = scalar_select %p44, 0, %s43
      %s46 = ssub.s32 %s19, %s45
      %s47 = ssub.s32 %s20, %s41
      %s48 = sor.u32 %s46, %s47
      %s49 = ssub.s32 %s22, %s33
      %s50 = sor.u32 %s48, %s49
      %p51 = scmp.eq.s32.totalorder %s50, 0
      %s53 = sadd.s32 %s52, 1
      %s54 = scalar_select %p51, %s52, %s53
      %p57 = pneg %p51
      %p58 = scmp.eq.s32.totalorder %s12, 3
      %p59 = por %p57, %p58
      %p60 = scmp.ne.s32.totalorder %s52, %s55
      %p61 = scmp.eq.s32.totalorder %s12, 0
      %p62 = por %p60, %p61
      %p63 = scmp.ne.s32.totalorder %s52, %s55
      %p64 = scmp.eq.s32.totalorder %s17, 3
      %p65 = por %p63, %p64
      %p66 = scmp.ne.s32.totalorder %s55, %s56
      %p67 = scmp.eq.s32.totalorder %s17, 0
      %p68 = por %p66, %p67
      %p69 = scmp.ne.s32.totalorder %s55, %s56
      %p70 = scmp.eq.s32.totalorder %s18, 3
      %p71 = por %p69, %p70
      %p73 = scmp.ne.s32.totalorder %s56, %s72
      %p74 = scmp.eq.s32.totalorder %s18, 0
      %p75 = por %p73, %p74
      %s76 = ssub.s32 %s19, %s45
      %s77 = ssub.s32 %s22, %s33
      %s78 = sor.u32 %s76, %s77
      %s79 = ssub.s32 %s21, %s37
      %s80 = sor.u32 %s78, %s79
      %p81 = scmp.eq.s32.totalorder %s80, 0
      %s83 = sadd.s32 %s82, 1
      %s84 = scalar_select %p81, %s82, %s83
      %p87 = pneg %p81
      %p88 = scmp.eq.s32.totalorder %s12, 3
      %p89 = por %p87, %p88
      %p90 = scmp.ne.s32.totalorder %s82, %s85
      %p91 = scmp.eq.s32.totalorder %s12, 0
      %p92 = por %p90, %p91
      %p93 = scmp.ne.s32.totalorder %s82, %s85
      %p94 = scmp.eq.s32.totalorder %s17, 3
      %p95 = por %p93, %p94
      %p96 = scmp.ne.s32.totalorder %s85, %s86
      %p97 = scmp.eq.s32.totalorder %s17, 0
      %p98 = por %p96, %p97
      %p99 = scmp.ne.s32.totalorder %s85, %s86
      %p100 = scmp.eq.s32.totalorder %s18, 3
      %p101 = por %p99, %p100
      %p103 = scmp.ne.s32.totalorder %s86, %s102
      %p104 = scmp.eq.s32.totalorder %s18, 0
      %p105 = por %p103, %p104
      %s106 = ssub.s32 %s19, %s45
      %s107 = ssub.s32 %s21, %s37
      %s108 = sor.u32 %s106, %s107
      %p109 = scmp.eq.s32.totalorder %s108, 0
      %s111 = sadd.s32 %s110, 1
      %s112 = scalar_select %p109, %s110, %s111
      %p115 = pneg %p109
      %p116 = scmp.eq.s32.totalorder %s12, 3
      %p117 = por %p115, %p116
      %p118 = scmp.ne.s32.totalorder %s110, %s113
      %p119 = scmp.eq.s32.totalorder %s12, 0
      %p120 = por %p118, %p119
      %p121 = scmp.ne.s32.totalorder %s110, %s113
      %p122 = scmp.eq.s32.totalorder %s17, 3
      %p123 = por %p121, %p122
      %p124 = scmp.ne.s32.totalorder %s113, %s114
      %p125 = scmp.eq.s32.totalorder %s17, 0
      %p126 = por %p124, %p125
      %p127 = scmp.ne.s32.totalorder %s113, %s114
      %p128 = scmp.eq.s32.totalorder %s18, 3
      %p129 = por %p127, %p128
      %p131 = scmp.ne.s32.totalorder %s114, %s130
      %p132 = scmp.eq.s32.totalorder %s18, 0
      %p133 = por %p131, %p132
      %s134 = ssub.s32 %s19, %s45
      %s135 = ssub.s32 %s20, %s41
      %s136 = sor.u32 %s134, %s135
      %s137 = ssub.s32 %s21, %s37
      %s138 = sor.u32 %s136, %s137
      %p139 = scmp.eq.s32.totalorder %s138, 0
      %s141 = sadd.s32 %s140, 1
      %s142 = scalar_select %p139, %s140, %s141
      %p145 = pneg %p139
      %p146 = scmp.eq.s32.totalorder %s12, 3
      %p147 = por %p145, %p146
      %p148 = scmp.ne.s32.totalorder %s140, %s143
      %p149 = scmp.eq.s32.totalorder %s12, 0
      %p150 = por %p148, %p149
      %p151 = scmp.ne.s32.totalorder %s140, %s143
      %p152 = scmp.eq.s32.totalorder %s17, 3
      %p153 = por %p151, %p152
      %p154 = scmp.ne.s32.totalorder %s143, %s144
      %p155 = scmp.eq.s32.totalorder %s17, 0
      %p156 = por %p154, %p155
      %p157 = scmp.ne.s32.totalorder %s143, %s144
      %p158 = scmp.eq.s32.totalorder %s18, 3
      %p159 = por %p157, %p158
      %p161 = scmp.ne.s32.totalorder %s144, %s160
      %p162 = scmp.eq.s32.totalorder %s18, 0
      %p163 = por %p161, %p162
      %p164 = scmp.le.s32.totalorder 1, %s12
      %p165 = scmp.lt.s32.totalorder %s12, 5
      %p166 = pnand %p164, %p165
      %p167 = pneg %p166
      // Predicated region
      $region9: #{gan_forward.6} parent=5 // pred_check
        _
      $region10: #{gan_forward.6} parent=5 // pred_check_branch
        %169 = sbr.rel (%p166) target = $region12
      $region11: #{gan_forward.6} parent=5 // pred_region
        %s170 = ssub.s32 %s12, 1
        // Predicated region
        $region13: #{gan_forward.6} parent=11 // pred_check
          %p171 = pneg %p68
        $region14: #{gan_forward.6} parent=11 // pred_check_branch
          %173 = sbr.rel (%p171) target = $region16
        $region15: #{gan_forward.6} parent=11 // pred_region
          %p174 = scmp.lt.s32.totalorder %s23, 0
          %s175 = scalar_select %p174, %s23, 0
          %p176 = scmp.lt.s32.totalorder %s24, 0
          %s177 = scalar_select %p176, %s24, 0
          %p178 = scmp.lt.s32.totalorder %s26, 0
          %s179 = scalar_select %p178, %s26, 0
          %s180 = sadd.s32 %s179, %s177
          %s181 = sadd.s32 %s180, %s175
          %s182 = scalar_lea.vmem %s0, %s181
        $region16: #{gan_forward.6} parent=11 // pred_fallthru
          _
      $region12: #{gan_forward.6} parent=5 // pred_fallthru
        _
      %p183 = scmp.lt.s32.totalorder %s12, 4
      // Predicated region
      $region17: #{gan_forward.6} parent=5 // pred_check
        %p184 = pneg %p183
      $region18: #{gan_forward.6} parent=5 // pred_check_branch
        %186 = sbr.rel (%p184) target = $region20
      $region19: #{gan_forward.6} parent=5 // pred_region
        // Predicated region
        $region21: #{gan_forward.6} parent=19 // pred_check
          %p187 = pneg %p92
        $region22: #{gan_forward.6} parent=19 // pred_check_branch
          %189 = sbr.rel (%p187) target = $region24
        $region23: #{gan_forward.6} parent=19 // pred_region
          %s190 = sand.u32 %s82, 1
          %s191 = scalar_lea.sflag [#allocation4], %s190
          %s192 = sand.u32 %s82, 1
          %s193 = smul.addr %s192, 16
          %s194 = scalar_lea.vmem [#allocation3], %s193
          %s195 = smul.u32 4, %s21
          %s197 = ssub.s32 256, 256
          %198 = vsyncadd %s191, %s197
          %s199 = smul.addr %s22, 16
          %s200 = sadd.s32 %s195, %s199
          %s201 = smul.addr %s19, 16
          %s202 = sadd.s32 %s200, %s201
          %s203 = smul.addr %s202, 64
          %s204 = scalar_lea.hbm %s1, %s203
          %s206 = sshll.u32 %s194, 4
          %s207 = int_to_ptr.vmem [resolvable:$true] %s206
          %209 = dma.hbm_to_vmem [thread:$0]  %s204, 256, %s207, %s191
        $region24: #{gan_forward.6} parent=19 // pred_fallthru
          _
        // Predicated region
        $region25: #{gan_forward.6} parent=19 // pred_check
          %p210 = pneg %p120
        $region26: #{gan_forward.6} parent=19 // pred_check_branch
          %212 = sbr.rel (%p210) target = $region28
        $region27: #{gan_forward.6} parent=19 // pred_region
          %s213 = smul.u32 4, %s21
          %p214 = scmp.lt.s32.totalorder %s19, 0
          %s215 = scalar_select %p214, %s19, 0
          %p216 = scmp.lt.s32.totalorder %s213, 15
          %s217 = scalar_select %p216, %s213, 15
          %s218 = smul.addr %s215, 16
          %s219 = sadd.s32 %s217, %s218
          %s220 = scalar_lea.vmem %s2, %s219
          %s221 = smul.u32 4, %s21
        $region28: #{gan_forward.6} parent=19 // pred_fallthru
          _
      $region20: #{gan_forward.6} parent=5 // pred_fallthru
        _
      %p222 = scmp.le.s32.totalorder 1, %s12
      %p223 = scmp.lt.s32.totalorder %s12, 5
      %p224 = pnand %p222, %p223
      %p225 = pneg %p224
      // Predicated region
      $region29: #{gan_forward.6} parent=5 // pred_check
        _
      $region30: #{gan_forward.6} parent=5 // pred_check_branch
        %227 = sbr.rel (%p224) target = $region32
      $region31: #{gan_forward.6} parent=5 // pred_region
        %s228 = ssub.s32 %s12, 1
        %s229 = sand.u32 %s85, 1
        %s230 = scalar_lea.sflag [#allocation4], %s229
        %s231 = sand.u32 %s85, 1
        %s232 = smul.addr %s231, 16
        %s233 = scalar_lea.vmem [#allocation3], %s232
        // Predicated region
        $region33: #{gan_forward.6} parent=31 // pred_check
          %p234 = pneg %p98
        $region34: #{gan_forward.6} parent=31 // pred_check_branch
          %236 = sbr.rel (%p234) target = $region36
        $region35: #{gan_forward.6} parent=31 // pred_region
          %237 = dma.done %s230, 256
        $region36: #{gan_forward.6} parent=31 // pred_fallthru
          _
        %p238 = scmp.lt.s32.totalorder %s23, 0
        %s239 = scalar_select %p238, %s23, 0
        %p240 = scmp.lt.s32.totalorder %s24, 0
        %s241 = scalar_select %p240, %s24, 0
        %p242 = scmp.lt.s32.totalorder %s26, 0
        %s243 = scalar_select %p242, %s26, 0
        %s244 = sadd.s32 %s243, %s241
        %s245 = sadd.s32 %s244, %s239
        %s246 = scalar_lea.vmem %s0, %s245
        %p247 = pneg %p68
        %p248 = pneg %p65
        %s249 = sand.u32 %s85, 1
        %s250 = scalar_lea.sflag [#allocation4], %s249
        %s251 = sand.u32 %s85, 1
        %s252 = smul.addr %s251, 16
        %s253 = scalar_lea.vmem [#allocation3], %s252
        %p254 = pneg %p98
        %p255 = pneg %p95
        %s256 = smul.u32 4, %s25
        %p257 = scmp.lt.s32.totalorder %s23, 0
        %s258 = scalar_select %p257, %s23, 0
        %p259 = scmp.lt.s32.totalorder %s256, 15
        %s260 = scalar_select %p259, %s256, 15
        %s261 = smul.addr %s258, 16
        %s262 = sadd.s32 %s260, %s261
        %s263 = scalar_lea.vmem %s2, %s262
        %p264 = pneg %p126
        %p265 = pneg %p123
        %p266 = pneg %p156
        %p267 = pneg %p153
        %s268 = smul.u32 4, %s25
        %p269 = scmp.lt.s32.totalorder %s23, 0
        %s270 = scalar_select %p269, %s23, 0
        %p271 = scmp.lt.s32.totalorder %s24, 0
        %s272 = scalar_select %p271, %s24, 0
        %p273 = scmp.lt.s32.totalorder %s268, 15
        %s274 = scalar_select %p273, %s268, 15
        %s275 = smul.addr %s272, 16
        %s276 = sadd.s32 %s274, %s275
        %s277 = smul.addr %s270, 16
        %s278 = sadd.s32 %s276, %s277
        %s279 = scalar_lea.vmem %s3, %s278
        %p280 = scmp.lt.s32.totalorder %s23, 0
        %s281 = scalar_select %p280, %s23, 0
        %p282 = scmp.lt.s32.totalorder %s24, 0
        %s283 = scalar_select %p282, %s24, 0
        %p284 = scmp.lt.s32.totalorder %s26, 0
        %s285 = scalar_select %p284, %s26, 0
        %s286 = sadd.s32 %s285, %s283
        %s287 = sadd.s32 %s286, %s281
        %s288 = scalar_lea.vmem %s0, %s287
        %s289 = smul.u32 4, %s25
        %s290 = smul.u32 4, %s25
        %p291 = scmp.lt.s32.totalorder %s23, 0
        %s292 = scalar_select %p291, %s23, 0
        %p293 = scmp.lt.s32.totalorder %s290, 15
        %s294 = scalar_select %p293, %s290, 15
        %s295 = smul.addr %s292, 16
        %s296 = sadd.s32 %s294, %s295
        %s297 = scalar_lea.vmem %s2, %s296
        %s298 = smul.u32 4, %s25
        %s299 = smul.u32 4, %s25
        %p300 = scmp.lt.s32.totalorder %s23, 0
        %s301 = scalar_select %p300, %s23, 0
        %p302 = scmp.lt.s32.totalorder %s24, 0
        %s303 = scalar_select %p302, %s24, 0
        %p304 = scmp.lt.s32.totalorder %s299, 15
        %s305 = scalar_select %p304, %s299, 15
        %s306 = smul.addr %s303, 16
        %s307 = sadd.s32 %s305, %s306
        %s308 = smul.addr %s301, 16
        %s309 = sadd.s32 %s307, %s308
        %s310 = scalar_lea.vmem %s3, %s309
        %s311 = smul.u32 4, %s25
        %p313 = scmp.eq.s32.totalorder %s26, 0
        // Predicated region
        $region37: #{gan_forward.6} parent=31 // pred_check
          %p314 = pneg %p313
        $region38: #{gan_forward.6} parent=31 // pred_check_branch
          %316 = sbr.rel (%p314) target = $region40
        $region39: #{gan_forward.6} parent=31 // pred_region
          %317 = vst [vmem:[#allocation2] sm:$0xff] 0.0
        $region40: #{gan_forward.6} parent=31 // pred_fallthru
          _
        %v318 = vld [vmem:[#allocation2] sm:$0xff]
        %v319 = vld [vmem:[%s288] sm:$0x1]
        %v320 = vld [vmem:[%s233] sm:$0xff]
        %v321 = vld [vmem:[%s233 + $0x8] sm:$0xff]
        %v324 = vunpack.c.l.b16 %v320
        %v325 = vunpack.c.h.b16 %v320
        %v326 = vunpack.c.l.b16 %v321
        %v327 = vunpack.c.h.b16 %v321
        %v328 = vpack.c.b16 %v324, %v324
        %v329 = vpack.c.b16 %v325, %v325
        %v330 = vpack.c.b16 %v326, %v326
        %v331 = vpack.c.b16 %v327, %v327
        %vm332 = vcmask 64512
        %v334 = vsel %vm332, %v319, 0
        %vm336 = vcmask 1043456
        %v338 = vsel %vm336, %v328, 0
        %v341 = vsel %vm336, %v329, 0
        %v344 = vsel %vm336, %v330, 0
        %v347 = vsel %vm336, %v331, 0
        %349 = vmatprep.subr.bf16.mxu0 %v341
        %350 = vmatpush1.bf16.msra.mxu0 %v338
        %351 = vmatprep.subr.bf16.mxu0 0
        %352 = vmatpush1.bf16.msra.mxu0 0
        %353 = vmatprep.subr.bf16.mxu0 0
        %354 = vmatpush1.bf16.msra.mxu0 0
        %355 = vmatprep.subr.bf16.mxu0 0
        %356 = vmatpush1.bf16.msra.mxu0 0
        %357 = vmatprep.subr.bf16.mxu0 0
        %358 = vmatpush1.bf16.msra.mxu0 0
        %359 = vmatprep.subr.bf16.mxu0 0
        %360 = vmatpush1.bf16.msra.mxu0 0
        %361 = vmatprep.subr.bf16.mxu0 0
        %362 = vmatpush1.bf16.msra.mxu0 0
        %363 = vmatprep.subr.bf16.mxu0 0
        %364 = vmatpush1.bf16.msra.mxu0 0
        %365 = vmatprep.subr.bf16.mxu0 0
        %366 = vmatpush1.bf16.msra.mxu0 0
        %367 = vmatprep.subr.bf16.mxu0 0
        %368 = vmatpush1.bf16.msra.mxu0 0
        %369 = vmatprep.subr.bf16.mxu0 0
        %370 = vmatpush1.bf16.msra.mxu0 0
        %371 = vmatprep.subr.bf16.mxu0 0
        %372 = vmatpush1.bf16.msra.mxu0 0
        %373 = vmatprep.subr.bf16.mxu0 0
        %374 = vmatpush1.bf16.msra.mxu0 0
        %375 = vmatprep.subr.bf16.mxu0 0
        %376 = vmatpush1.bf16.msra.mxu0 0
        %377 = vmatprep.subr.bf16.mxu0 0
        %378 = vmatpush1.bf16.msra.mxu0 0
        %379 = vmatprep.subr.bf16.mxu0 0
        %380 = vmatpush1.bf16.msra.mxu0 0
        %381 = vmatprep.mubr.bf16.mxu0 0
        %382 = vmatmul.mubr.bf16.gmra.mrb[0].mxu0 %v334
        %v383 = vpop.f32.mrb[0].mxu0
        %v384 = vadd.f32 0.0, %v383
        %v385 = vpop.f32.mrb[0].mxu0
        %v386 = vadd.f32 0.0, %v385
        %v387 = vpop.f32.mrb[0].mxu0
        %v388 = vpop.f32.mrb[0].mxu0
        %389 = vdwg.mxu0
        %390 = vmatprep.subr.bf16.mxu0 %v347
        %391 = vmatpush1.bf16.msra.mxu0 %v344
        %392 = vmatprep.subr.bf16.mxu0 0
        %393 = vmatpush1.bf16.msra.mxu0 0
        %394 = vmatprep.subr.bf16.mxu0 0
        %395 = vmatpush1.bf16.msra.mxu0 0
        %396 = vmatprep.subr.bf16.mxu0 0
        %397 = vmatpush1.bf16.msra.mxu0 0
        %398 = vmatprep.subr.bf16.mxu0 0
        %399 = vmatpush1.bf16.msra.mxu0 0
        %400 = vmatprep.subr.bf16.mxu0 0
        %401 = vmatpush1.bf16.msra.mxu0 0
        %402 = vmatprep.subr.bf16.mxu0 0
        %403 = vmatpush1.bf16.msra.mxu0 0
        %404 = vmatprep.subr.bf16.mxu0 0
        %405 = vmatpush1.bf16.msra.mxu0 0
        %406 = vmatprep.subr.bf16.mxu0 0
        %407 = vmatpush1.bf16.msra.mxu0 0
        %408 = vmatprep.subr.bf16.mxu0 0
        %409 = vmatpush1.bf16.msra.mxu0 0
        %410 = vmatprep.subr.bf16.mxu0 0
        %411 = vmatpush1.bf16.msra.mxu0 0
        %412 = vmatprep.subr.bf16.mxu0 0
        %413 = vmatpush1.bf16.msra.mxu0 0
        %414 = vmatprep.subr.bf16.mxu0 0
        %415 = vmatpush1.bf16.msra.mxu0 0
        %416 = vmatprep.subr.bf16.mxu0 0
        %417 = vmatpush1.bf16.msra.mxu0 0
        %418 = vmatprep.subr.bf16.mxu0 0
        %419 = vmatpush1.bf16.msra.mxu0 0
        %420 = vmatprep.subr.bf16.mxu0 0
        %421 = vmatpush1.bf16.msra.mxu0 0
        %422 = vmatprep.mubr.bf16.mxu0 0
        %423 = vmatmul.mubr.bf16.gmra.mrb[0].mxu0 %v334
        %v424 = vpop.f32.mrb[0].mxu0
        %v425 = vadd.f32 0.0, %v424
        %v426 = vpop.f32.mrb[0].mxu0
        %v427 = vadd.f32 0.0, %v426
        %v428 = vpop.f32.mrb[0].mxu0
        %v429 = vpop.f32.mrb[0].mxu0
        %430 = vdwg.mxu0
        %v435 = vcombine.low %v384, %v386
        %v436 = vcombine.low %v425, %v427
        %v438 = vunpack.c.l.s4 1983009808
        %v439 = vunpack.c.0.s8 %v438
        %v440 = vlaneseq
        %v441 = vshrl.u32 %v440, 7
        %v442 = vsub.s32 %v439, %v441
        %v443 = vrot.slane %v435, %v442
        %v445 = vunpack.c.l.s4 1983009808
        %v446 = vunpack.c.0.s8 %v445
        %v447 = vlaneseq
        %v448 = vshrl.u32 %v447, 7
        %v449 = vsub.s32 %v446, %v448
        %v450 = vrot.slane %v436, %v449
        %v451 = vcombine.low %v443, %v450
        %v453 = vadd.f32 %v318, %v451
        %454 = vst [vmem:[#allocation2] sm:$0xff] %v453
        // Predicated region
        $region41: #{gan_forward.6} parent=31 // pred_check
          %p455 = pneg %p313
        $region42: #{gan_forward.6} parent=31 // pred_check_branch
          %457 = sbr.rel (%p455) target = $region44
        $region43: #{gan_forward.6} parent=31 // pred_region
          %v458 = vld [vmem:[#allocation2] sm:$0xff]
          %v459 = vld [vmem:[%s297] sm:$0xf]
          %v461 = vlaneseq
          %v462 = vshrl.u32 %v461, 7
          %v463 = vsub.s32 0, %v462
          %v464 = vrot.slane %v459, %v463
          %v465 = vlaneseq
          %v466 = vshrl.u32 %v465, 7
          %v467 = vsub.s32 1, %v466
          %v468 = vrot.slane %v459, %v467
          %v469 = vlaneseq
          %v470 = vshrl.u32 %v469, 7
          %v471 = vsub.s32 2, %v470
          %v472 = vrot.slane %v459, %v471
          %v473 = vlaneseq
          %v474 = vshrl.u32 %v473, 7
          %v475 = vsub.s32 3, %v474
          %v476 = vrot.slane %v459, %v475
          %v477 = vcombine.low %v464, %v468
          %v478 = vcombine.low %v472, %v476
          %v480 = vunpack.c.l.s4 1983009808
          %v481 = vunpack.c.0.s8 %v480
          %v482 = vlaneseq
          %v483 = vshrl.u32 %v482, 7
          %v484 = vsub.s32 %v481, %v483
          %v485 = vrot.slane %v477, %v484
          %v487 = vunpack.c.l.s4 1983009808
          %v488 = vunpack.c.0.s8 %v487
          %v489 = vlaneseq
          %v490 = vshrl.u32 %v489, 7
          %v491 = vsub.s32 %v488, %v490
          %v492 = vrot.slane %v478, %v491
          %v493 = vcombine.low %v485, %v492
          %v495 = vadd.f32 %v458, %v493
          %v497 = vcombine.high %v495, %v495
          %v499 = vunpack.c.l.s4 1983009808
          %v500 = vunpack.c.0.s8 %v499
          %v501 = vlaneseq
          %v502 = vshrl.u32 %v501, 7
          %v503 = vsub.s32 %v500, %v502
          %v504 = vrot.slane %v495, %v503
          %v506 = vunpack.c.l.s4 1983009808
          %v507 = vunpack.c.0.s8 %v506
          %v508 = vlaneseq
          %v509 = vshrl.u32 %v508, 7
          %v510 = vsub.s32 %v507, %v509
          %v511 = vrot.slane %v497, %v510
          %v512 = vcombine.high %v504, %v504
          %v513 = vcombine.high %v511, %v511
          %v518 = vpack.c.bf16 %v504, %v504
          %v519 = vpack.c.bf16 %v512, %v512
          %v520 = vpack.c.bf16 %v511, %v511
          %v521 = vpack.c.bf16 %v513, %v513
          %v526 = vcombine.low %v518, %v519
          %v527 = vcombine.low %v520, %v521
          %v529 = vunpack.c.l.s4 1966171168
          %v530 = vunpack.c.0.s8 %v529
          %v531 = vlaneseq
          %v532 = vshrl.u32 %v531, 7
          %v533 = vsub.s32 %v530, %v532
          %v534 = vrot.slane %v526, %v533
          %v536 = vunpack.c.l.s4 1966171168
          %v537 = vunpack.c.0.s8 %v536
          %v538 = vlaneseq
          %v539 = vshrl.u32 %v538, 7
          %v540 = vsub.s32 %v537, %v539
          %v541 = vrot.slane %v527, %v540
          %v542 = vcombine.low %v534, %v541
          %v544 = vunpack.c.l.s4 1966171168
          %v545 = vunpack.c.0.s8 %v544
          %v546 = vlaneseq
          %v547 = vshrl.u32 %v546, 7
          %v548 = vsub.s32 %v545, %v547
          %v549 = vrot.slane %v542, %v548
          %551 = vst [vmem:[%s310] sm:$0xf] %v549
        $region44: #{gan_forward.6} parent=31 // pred_fallthru
          _
        %s552 = smul.u32 4, %s25
        %p553 = scmp.lt.s32.totalorder %s23, 0
        %s554 = scalar_select %p553, %s23, 0
        %p555 = scmp.lt.s32.totalorder %s24, 0
        %s556 = scalar_select %p555, %s24, 0
        %p557 = scmp.lt.s32.totalorder %s552, 15
        %s558 = scalar_select %p557, %s552, 15
        %s559 = smul.addr %s556, 16
        %s560 = sadd.s32 %s558, %s559
        %s561 = smul.addr %s554, 16
        %s562 = sadd.s32 %s560, %s561
        %s563 = scalar_lea.vmem %s3, %s562
        // Predicated region
        $region45: #{gan_forward.6} parent=31 // pred_check
          %p564 = pneg %p153
        $region46: #{gan_forward.6} parent=31 // pred_check_branch
          %566 = sbr.rel (%p564) target = $region48
        $region47: #{gan_forward.6} parent=31 // pred_region
          %s567 = smul.u32 4, %s25
        $region48: #{gan_forward.6} parent=31 // pred_fallthru
          _
      $region32: #{gan_forward.6} parent=5 // pred_fallthru
        _
      %p568 = scmp.le.s32.totalorder 2, %s12
      // Predicated region
      $region49: #{gan_forward.6} parent=5 // pred_check
        %p569 = pneg %p568
      $region50: #{gan_forward.6} parent=5 // pred_check_branch
        %571 = sbr.rel (%p569) target = $region52
      $region51: #{gan_forward.6} parent=5 // pred_region
        %s572 = ssub.s32 %s12, 2
        // Predicated region
        $region53: #{gan_forward.6} parent=51 // pred_check
          %p573 = pneg %p159
        $region54: #{gan_forward.6} parent=51 // pred_check_branch
          %575 = sbr.rel (%p573) target = $region56
        $region55: #{gan_forward.6} parent=51 // pred_region
          %s576 = smul.u32 4, %s29
          %p577 = scmp.lt.s32.totalorder %s27, 0
          %s578 = scalar_select %p577, %s27, 0
          %p579 = scmp.lt.s32.totalorder %s28, 0
          %s580 = scalar_select %p579, %s28, 0
          %p581 = scmp.lt.s32.totalorder %s576, 15
          %s582 = scalar_select %p581, %s576, 15
          %s583 = smul.addr %s580, 16
          %s584 = sadd.s32 %s582, %s583
          %s585 = smul.addr %s578, 16
          %s586 = sadd.s32 %s584, %s585
          %s587 = scalar_lea.vmem %s3, %s586
        $region56: #{gan_forward.6} parent=51 // pred_fallthru
          _
      $region52: #{gan_forward.6} parent=5 // pred_fallthru
        _
    $region6: #{gan_forward.6} parent=1 // loop_footer
      %s16 = sadd.s32 1, %s12
    $region7: #{gan_forward.6} parent=1 // loop_footer_branch
      %11 = sbr.rel target = $region3
    $region8: #{gan_forward.6} parent=1 // loop_exit
      _
    %588 = vsyncpa [#allocation4], 1
    %s589 = scalar_lea.sflag [#allocation4], 1
    %590 = vsyncpa %s589, 1

// kernel: gan_forward.7
$region0: #{gan_forward.7}
  #allocation0 [shape = 'u32[]', space=smem, size = 0x4, offset = 0x4, fixed_abs, tag = 'smem constant byte address 0x4 - core index']
  #allocation1 [shape = 'u32[144,128]{1,0:T(1,128)}', space=vmem, size = 0x12000, scoped, tag = 'internal scratch']
  #allocation2 [shape = 'f32[32,128]{1,0:T(8,128)}', space=vmem, size = 0x4000, scoped, tag = 'scratch operand']
  %s0 = inlined_call_operand.vmem [shape: bf16[4,32,512], index: 0, kind: input, shape index: {}]
  %s1 = inlined_call_operand.hbm [shape: bf16[4,512,128], index: 1, kind: input, shape index: {}]
  %s2 = inlined_call_operand.vmem [shape: f32[4,1,128], index: 2, kind: input, shape index: {}]
  %s3 = inlined_call_operand.vmem [shape: bf16[4,32,128], index: 3, kind: output, shape index: {}]
  %s4 = sld [smem:[#allocation0]]
  $region57: #{gan_forward.7} parent=0
    _
  %s6 = ssub.s32 1, %s4
  %s7 = scalar_select 0, %s6, %s4
  $region1: #{gan_forward.7} parent=0
    #allocation3 [shape = 'u8[262144]{0}', space=vmem, size = 0x40000, scoped, tag = 'input window, operand 1']
    #allocation4 [shape = 's32[2]{0}', space=sflag, size = 0x8, scoped, tag = 'scoped memory for gan_forward.7']
    %8 = vsyncpa [#allocation4], 0
    %s9 = scalar_lea.sflag [#allocation4], 1
    %10 = vsyncpa %s9, 0
    loop: start=0, step=1, limit=6
    $region2: #{gan_forward.7} parent=1 // loop_pre_header
      _
    $region3: #{gan_forward.7} parent=1 // loop_header
      %s12 = sphi 0, %s16
      %p13 = scmp.ge.s32.totalorder %s12, 6
      %s19 = sphi 0, %s45
      %s20 = sphi 0, %s41
      %s21 = sphi 0, %s37
      %s22 = sphi 0, %s33
      %s23 = sphi 0, %s19
      %s24 = sphi 0, %s20
      %s25 = sphi 0, %s21
      %s26 = sphi 0, %s22
      %s27 = sphi 0, %s23
      %s28 = sphi 0, %s24
      %s29 = sphi 0, %s25
      %s30 = sphi 0, %s26
      %s52 = sphi 0, %s54
      %s55 = sphi 0, %s52
      %s56 = sphi 0, %s55
      %s72 = sphi 0, %s56
      %s82 = sphi 0, %s84
      %s85 = sphi 0, %s82
      %s86 = sphi 0, %s85
      %s102 = sphi 0, %s86
      %s110 = sphi 0, %s112
      %s113 = sphi 0, %s110
      %s114 = sphi 0, %s113
      %s130 = sphi 0, %s114
      %s140 = sphi 0, %s142
      %s143 = sphi 0, %s140
      %s144 = sphi 0, %s143
      %s160 = sphi 0, %s144
    $region4: #{gan_forward.7} parent=1 // loop_header_branch
      %15 = sbr.rel (%p13) target = $region8
    $region5: #{gan_forward.7} parent=1 // loop_body
      %s17 = ssub.s32 %s12, 1
      %s18 = ssub.s32 %s12, 2
      %s31 = sadd.s32 1, %s22
      %p32 = scmp.ge.s32.totalorder %s31, 1
      %s33 = scalar_select %p32, 0, %s31
      %s34 = sadd.s32 1, %s21
      %s35 = scalar_select %p32, %s34, %s21
      %p36 = scmp.ge.s32.totalorder %s35, 1
      %s37 = scalar_select %p36, 0, %s35
      %s38 = sadd.s32 1, %s20
      %s39 = scalar_select %p36, %s38, %s20
      %p40 = scmp.ge.s32.totalorder %s39, 1
      %s41 = scalar_select %p40, 0, %s39
      %s42 = sadd.s32 1, %s19
      %s43 = scalar_select %p40, %s42, %s19
      %p44 = scmp.ge.s32.totalorder %s43, 4
      %s45 = scalar_select %p44, 0, %s43
      %s46 = ssub.s32 %s19, %s45
      %s47 = ssub.s32 %s20, %s41
      %s48 = sor.u32 %s46, %s47
      %s49 = ssub.s32 %s22, %s33
      %s50 = sor.u32 %s48, %s49
      %p51 = scmp.eq.s32.totalorder %s50, 0
      %s53 = sadd.s32 %s52, 1
      %s54 = scalar_select %p51, %s52, %s53
      %p57 = pneg %p51
      %p58 = scmp.eq.s32.totalorder %s12, 3
      %p59 = por %p57, %p58
      %p60 = scmp.ne.s32.totalorder %s52, %s55
      %p61 = scmp.eq.s32.totalorder %s12, 0
      %p62 = por %p60, %p61
      %p63 = scmp.ne.s32.totalorder %s52, %s55
      %p64 = scmp.eq.s32.totalorder %s17, 3
      %p65 = por %p63, %p64
      %p66 = scmp.ne.s32.totalorder %s55, %s56
      %p67 = scmp.eq.s32.totalorder %s17, 0
      %p68 = por %p66, %p67
      %p69 = scmp.ne.s32.totalorder %s55, %s56
      %p70 = scmp.eq.s32.totalorder %s18, 3
      %p71 = por %p69, %p70
      %p73 = scmp.ne.s32.totalorder %s56, %s72
      %p74 = scmp.eq.s32.totalorder %s18, 0
      %p75 = por %p73, %p74
      %s76 = ssub.s32 %s19, %s45
      %s77 = ssub.s32 %s22, %s33
      %s78 = sor.u32 %s76, %s77
      %s79 = ssub.s32 %s21, %s37
      %s80 = sor.u32 %s78, %s79
      %p81 = scmp.eq.s32.totalorder %s80, 0
      %s83 = sadd.s32 %s82, 1
      %s84 = scalar_select %p81, %s82, %s83
      %p87 = pneg %p81
      %p88 = scmp.eq.s32.totalorder %s12, 3
      %p89 = por %p87, %p88
      %p90 = scmp.ne.s32.totalorder %s82, %s85
      %p91 = scmp.eq.s32.totalorder %s12, 0
      %p92 = por %p90, %p91
      %p93 = scmp.ne.s32.totalorder %s82, %s85
      %p94 = scmp.eq.s32.totalorder %s17, 3
      %p95 = por %p93, %p94
      %p96 = scmp.ne.s32.totalorder %s85, %s86
      %p97 = scmp.eq.s32.totalorder %s17, 0
      %p98 = por %p96, %p97
      %p99 = scmp.ne.s32.totalorder %s85, %s86
      %p100 = scmp.eq.s32.totalorder %s18, 3
      %p101 = por %p99, %p100
      %p103 = scmp.ne.s32.totalorder %s86, %s102
      %p104 = scmp.eq.s32.totalorder %s18, 0
      %p105 = por %p103, %p104
      %s106 = ssub.s32 %s19, %s45
      %s107 = ssub.s32 %s21, %s37
      %s108 = sor.u32 %s106, %s107
      %p109 = scmp.eq.s32.totalorder %s108, 0
      %s111 = sadd.s32 %s110, 1
      %s112 = scalar_select %p109, %s110, %s111
      %p115 = pneg %p109
      %p116 = scmp.eq.s32.totalorder %s12, 3
      %p117 = por %p115, %p116
      %p118 = scmp.ne.s32.totalorder %s110, %s113
      %p119 = scmp.eq.s32.totalorder %s12, 0
      %p120 = por %p118, %p119
      %p121 = scmp.ne.s32.totalorder %s110, %s113
      %p122 = scmp.eq.s32.totalorder %s17, 3
      %p123 = por %p121, %p122
      %p124 = scmp.ne.s32.totalorder %s113, %s114
      %p125 = scmp.eq.s32.totalorder %s17, 0
      %p126 = por %p124, %p125
      %p127 = scmp.ne.s32.totalorder %s113, %s114
      %p128 = scmp.eq.s32.totalorder %s18, 3
      %p129 = por %p127, %p128
      %p131 = scmp.ne.s32.totalorder %s114, %s130
      %p132 = scmp.eq.s32.totalorder %s18, 0
      %p133 = por %p131, %p132
      %s134 = ssub.s32 %s19, %s45
      %s135 = ssub.s32 %s20, %s41
      %s136 = sor.u32 %s134, %s135
      %s137 = ssub.s32 %s21, %s37
      %s138 = sor.u32 %s136, %s137
      %p139 = scmp.eq.s32.totalorder %s138, 0
      %s141 = sadd.s32 %s140, 1
      %s142 = scalar_select %p139, %s140, %s141
      %p145 = pneg %p139
      %p146 = scmp.eq.s32.totalorder %s12, 3
      %p147 = por %p145, %p146
      %p148 = scmp.ne.s32.totalorder %s140, %s143
      %p149 = scmp.eq.s32.totalorder %s12, 0
      %p150 = por %p148, %p149
      %p151 = scmp.ne.s32.totalorder %s140, %s143
      %p152 = scmp.eq.s32.totalorder %s17, 3
      %p153 = por %p151, %p152
      %p154 = scmp.ne.s32.totalorder %s143, %s144
      %p155 = scmp.eq.s32.totalorder %s17, 0
      %p156 = por %p154, %p155
      %p157 = scmp.ne.s32.totalorder %s143, %s144
      %p158 = scmp.eq.s32.totalorder %s18, 3
      %p159 = por %p157, %p158
      %p161 = scmp.ne.s32.totalorder %s144, %s160
      %p162 = scmp.eq.s32.totalorder %s18, 0
      %p163 = por %p161, %p162
      %p164 = scmp.le.s32.totalorder 1, %s12
      %p165 = scmp.lt.s32.totalorder %s12, 5
      %p166 = pnand %p164, %p165
      %p167 = pneg %p166
      // Predicated region
      $region9: #{gan_forward.7} parent=5 // pred_check
        _
      $region10: #{gan_forward.7} parent=5 // pred_check_branch
        %169 = sbr.rel (%p166) target = $region12
      $region11: #{gan_forward.7} parent=5 // pred_region
        %s170 = ssub.s32 %s12, 1
      $region12: #{gan_forward.7} parent=5 // pred_fallthru
        _
      %p171 = scmp.lt.s32.totalorder %s12, 4
      // Predicated region
      $region13: #{gan_forward.7} parent=5 // pred_check
        %p172 = pneg %p171
      $region14: #{gan_forward.7} parent=5 // pred_check_branch
        %174 = sbr.rel (%p172) target = $region16
      $region15: #{gan_forward.7} parent=5 // pred_region
        // Predicated region
        $region17: #{gan_forward.7} parent=15 // pred_check
          %p175 = pneg %p62
        $region18: #{gan_forward.7} parent=15 // pred_check_branch
          %177 = sbr.rel (%p175) target = $region20
        $region19: #{gan_forward.7} parent=15 // pred_region
          %s178 = smul.u32 4, %s20
          %s179 = smul.u32 4, %s22
          %p180 = scmp.lt.s32.totalorder %s19, 3
          %s181 = scalar_select %p180, %s19, 3
          %p182 = scmp.lt.s32.totalorder %s178, 3
          %s183 = scalar_select %p182, %s178, 3
          %p184 = scmp.lt.s32.totalorder %s179, 3
          %s185 = scalar_select %p184, %s179, 3
          %s186 = smul.addr %s183, 4
          %s187 = sadd.s32 %s185, %s186
          %s188 = smul.addr %s181, 16
          %s189 = sadd.s32 %s187, %s188
          %s190 = smul.addr %s189, 4
          %s191 = scalar_lea.vmem %s0, %s190
          %s192 = smul.u32 4, %s20
          %s193 = smul.u32 4, %s22
        $region20: #{gan_forward.7} parent=15 // pred_fallthru
          _
        // Predicated region
        $region21: #{gan_forward.7} parent=15 // pred_check
          %p194 = pneg %p92
        $region22: #{gan_forward.7} parent=15 // pred_check_branch
          %196 = sbr.rel (%p194) target = $region24
        $region23: #{gan_forward.7} parent=15 // pred_region
          %s197 = sand.u32 %s82, 1
          %s198 = scalar_lea.sflag [#allocation4], %s197
          %s199 = sand.u32 %s82, 1
          %s200 = smul.addr %s199, 256
          %s201 = scalar_lea.vmem [#allocation3], %s200
          %s202 = smul.u32 64, %s22
          %s204 = ssub.s32 4096, 4096
          %205 = vsyncadd %s198, %s204
          %s206 = sadd.s32 %s21, %s202
          %s207 = smul.addr %s19, 64
          %s208 = sadd.s32 %s206, %s207
          %s209 = smul.addr %s208, 64
          %s210 = scalar_lea.hbm %s1, %s209
          %s211 = sshll.u32 %s201, 4
          %s212 = int_to_ptr.vmem [resolvable:$true] %s211
          %217 = dma.hbm_to_vmem [thread:$0]  %s210, 4096, %s212, %s198, 64, 64, 4
        $region24: #{gan_forward.7} parent=15 // pred_fallthru
          _
        // Predicated region
        $region25: #{gan_forward.7} parent=15 // pred_check
          %p218 = pneg %p120
        $region26: #{gan_forward.7} parent=15 // pred_check_branch
          %220 = sbr.rel (%p218) target = $region28
        $region27: #{gan_forward.7} parent=15 // pred_region
          %p221 = scmp.lt.s32.totalorder %s19, 3
          %s222 = scalar_select %p221, %s19, 3
          %p223 = scmp.lt.s32.totalorder %s21, 0
          %s224 = scalar_select %p223, %s21, 0
          %s225 = sadd.s32 %s224, %s222
          %s226 = scalar_lea.vmem %s2, %s225
        $region28: #{gan_forward.7} parent=15 // pred_fallthru
          _
      $region16: #{gan_forward.7} parent=5 // pred_fallthru
        _
      %p227 = scmp.le.s32.totalorder 1, %s12
      %p228 = scmp.lt.s32.totalorder %s12, 5
      %p229 = pnand %p227, %p228
      %p230 = pneg %p229
      // Predicated region
      $region29: #{gan_forward.7} parent=5 // pred_check
        _
      $region30: #{gan_forward.7} parent=5 // pred_check_branch
        %232 = sbr.rel (%p229) target = $region32
      $region31: #{gan_forward.7} parent=5 // pred_region
        %s233 = ssub.s32 %s12, 1
        %s234 = sand.u32 %s85, 1
        %s235 = scalar_lea.sflag [#allocation4], %s234
        %s236 = sand.u32 %s85, 1
        %s237 = smul.addr %s236, 256
        %s238 = scalar_lea.vmem [#allocation3], %s237
        // Predicated region
        $region33: #{gan_forward.7} parent=31 // pred_check
          %p239 = pneg %p98
        $region34: #{gan_forward.7} parent=31 // pred_check_branch
          %241 = sbr.rel (%p239) target = $region36
        $region35: #{gan_forward.7} parent=31 // pred_region
          %242 = dma.done %s235, 4096
        $region36: #{gan_forward.7} parent=31 // pred_fallthru
          _
        %s243 = smul.u32 4, %s24
        %s244 = smul.u32 4, %s26
        %p245 = scmp.lt.s32.totalorder %s23, 3
        %s246 = scalar_select %p245, %s23, 3
        %p247 = scmp.lt.s32.totalorder %s243, 3
        %s248 = scalar_select %p247, %s243, 3
        %p249 = scmp.lt.s32.totalorder %s244, 3
        %s250 = scalar_select %p249, %s244, 3
        %s251 = smul.addr %s248, 4
        %s252 = sadd.s32 %s250, %s251
        %s253 = smul.addr %s246, 16
        %s254 = sadd.s32 %s252, %s253
        %s255 = smul.addr %s254, 4
        %s256 = scalar_lea.vmem %s0, %s255
        %p257 = pneg %p68
        %p258 = pneg %p65
        %s259 = sand.u32 %s85, 1
        %s260 = scalar_lea.sflag [#allocation4], %s259
        %s261 = sand.u32 %s85, 1
        %s262 = smul.addr %s261, 256
        %s263 = scalar_lea.vmem [#allocation3], %s262
        %p264 = pneg %p98
        %p265 = pneg %p95
        %p266 = scmp.lt.s32.totalorder %s23, 3
        %s267 = scalar_select %p266, %s23, 3
        %p268 = scmp.lt.s32.totalorder %s25, 0
        %s269 = scalar_select %p268, %s25, 0
        %s270 = sadd.s32 %s269, %s267
        %s271 = scalar_lea.vmem %s2, %s270
        %p272 = pneg %p126
        %p273 = pneg %p123
        %p274 = pneg %p156
        %p275 = pneg %p153
        %s276 = smul.u32 4, %s24
        %p277 = scmp.lt.s32.totalorder %s23, 3
        %s278 = scalar_select %p277, %s23, 3
        %p279 = scmp.lt.s32.totalorder %s276, 3
        %s280 = scalar_select %p279, %s276, 3
        %p281 = scmp.lt.s32.totalorder %s25, 0
        %s282 = scalar_select %p281, %s25, 0
        %s283 = sadd.s32 %s282, %s280
        %s284 = smul.addr %s278, 4
        %s285 = sadd.s32 %s283, %s284
        %s286 = smul.addr %s285, 4
        %s287 = scalar_lea.vmem %s3, %s286
        %s288 = smul.u32 4, %s24
        %s289 = smul.u32 4, %s26
        %p290 = scmp.lt.s32.totalorder %s23, 3
        %s291 = scalar_select %p290, %s23, 3
        %p292 = scmp.lt.s32.totalorder %s288, 3
        %s293 = scalar_select %p292, %s288, 3
        %p294 = scmp.lt.s32.totalorder %s289, 3
        %s295 = scalar_select %p294, %s289, 3
        %s296 = smul.addr %s293, 4
        %s297 = sadd.s32 %s295, %s296
        %s298 = smul.addr %s291, 16
        %s299 = sadd.s32 %s297, %s298
        %s300 = smul.addr %s299, 4
        %s301 = scalar_lea.vmem %s0, %s300
        %s302 = smul.u32 4, %s24
        %s303 = smul.u32 4, %s26
        %s304 = smul.u32 64, %s26
        %p305 = scmp.lt.s32.totalorder %s23, 3
        %s306 = scalar_select %p305, %s23, 3
        %p307 = scmp.lt.s32.totalorder %s25, 0
        %s308 = scalar_select %p307, %s25, 0
        %s309 = sadd.s32 %s308, %s306
        %s310 = scalar_lea.vmem %s2, %s309
        %s311 = smul.u32 4, %s24
        %p312 = scmp.lt.s32.totalorder %s23, 3
        %s313 = scalar_select %p312, %s23, 3
        %p314 = scmp.lt.s32.totalorder %s311, 3
        %s315 = scalar_select %p314, %s311, 3
        %p316 = scmp.lt.s32.totalorder %s25, 0
        %s317 = scalar_select %p316, %s25, 0
        %s318 = sadd.s32 %s317, %s315
        %s319 = smul.addr %s313, 4
        %s320 = sadd.s32 %s318, %s319
        %s321 = smul.addr %s320, 4
        %s322 = scalar_lea.vmem %s3, %s321
        %s323 = smul.u32 4, %s24
        %p325 = scmp.eq.s32.totalorder %s26, 0
        // Predicated region
        $region37: #{gan_forward.7} parent=31 // pred_check
          %p326 = pneg %p325
        $region38: #{gan_forward.7} parent=31 // pred_check_branch
          %328 = sbr.rel (%p326) target = $region40
        $region39: #{gan_forward.7} parent=31 // pred_region
          %329 = vst [vmem:[#allocation2] sm:$0xff] 0.0
          %330 = vst [vmem:[#allocation2 + $0x8] sm:$0xff] 0.0
          %331 = vst [vmem:[#allocation2 + $0x10] sm:$0xff] 0.0
          %332 = vst [vmem:[#allocation2 + $0x18] sm:$0xff] 0.0
        $region40: #{gan_forward.7} parent=31 // pred_fallthru
          _
        %v333 = vld [vmem:[#allocation2] sm:$0xff]
        %v334 = vld [vmem:[#allocation2 + $0x8] sm:$0xff]
        %v335 = vld [vmem:[#allocation2 + $0x10] sm:$0xff]
        %v336 = vld [vmem:[#allocation2 + $0x18] sm:$0xff]
        %v337 = vld [vmem:[%s301] sm:$0xff]
        %v338 = vld [vmem:[%s301 + $0x8] sm:$0xff]
        %v339 = vld [vmem:[%s301 + $0x10] sm:$0xff]
        %v340 = vld [vmem:[%s301 + $0x18] sm:$0xff]
        %v341 = vld [vmem:[%s301 + $0x20] sm:$0xff]
        %v342 = vld [vmem:[%s301 + $0x28] sm:$0xff]
        %v343 = vld [vmem:[%s301 + $0x30] sm:$0xff]
        %v344 = vld [vmem:[%s301 + $0x38] sm:$0xff]
        %v345 = vld [vmem:[%s238] sm:$0xf]
        %v346 = vld [vmem:[%s238 + $0x4] sm:$0xf]
        %v347 = vld [vmem:[%s238 + $0x8] sm:$0xf]
        %v348 = vld [vmem:[%s238 + $0xc] sm:$0xf]
        %v349 = vld [vmem:[%s238 + $0x10] sm:$0xf]
        %v350 = vld [vmem:[%s238 + $0x14] sm:$0xf]
        %v351 = vld [vmem:[%s238 + $0x18] sm:$0xf]
        %v352 = vld [vmem:[%s238 + $0x1c] sm:$0xf]
        %v353 = vld [vmem:[%s238 + $0x20] sm:$0xf]
        %v354 = vld [vmem:[%s238 + $0x24] sm:$0xf]
        %v355 = vld [vmem:[%s238 + $0x28] sm:$0xf]
        %v356 = vld [vmem:[%s238 + $0x2c] sm:$0xf]
        %v357 = vld [vmem:[%s238 + $0x30] sm:$0xf]
        %v358 = vld [vmem:[%s238 + $0x34] sm:$0xf]
        %v359 = vld [vmem:[%s238 + $0x38] sm:$0xf]
        %v360 = vld [vmem:[%s238 + $0x3c] sm:$0xf]
        %v361 = vld [vmem:[%s238 + $0x40] sm:$0xf]
        %v362 = vld [vmem:[%s238 + $0x44] sm:$0xf]
        %v363 = vld [vmem:[%s238 + $0x48] sm:$0xf]
        %v364 = vld [vmem:[%s238 + $0x4c] sm:$0xf]
        %v365 = vld [vmem:[%s238 + $0x50] sm:$0xf]
        %v366 = vld [vmem:[%s238 + $0x54] sm:$0xf]
        %v367 = vld [vmem:[%s238 + $0x58] sm:$0xf]
        %v368 = vld [vmem:[%s238 + $0x5c] sm:$0xf]
        %v369 = vld [vmem:[%s238 + $0x60] sm:$0xf]
        %v370 = vld [vmem:[%s238 + $0x64] sm:$0xf]
        %v371 = vld [vmem:[%s238 + $0x68] sm:$0xf]
        %v372 = vld [vmem:[%s238 + $0x6c] sm:$0xf]
        %v373 = vld [vmem:[%s238 + $0x70] sm:$0xf]
        %v374 = vld [vmem:[%s238 + $0x74] sm:$0xf]
        %v375 = vld [vmem:[%s238 + $0x78] sm:$0xf]
        %v376 = vld [vmem:[%s238 + $0x7c] sm:$0xf]
        %v377 = vld [vmem:[%s238 + $0x80] sm:$0xf]
        %v378 = vld [vmem:[%s238 + $0x84] sm:$0xf]
        %v379 = vld [vmem:[%s238 + $0x88] sm:$0xf]
        %v380 = vld [vmem:[%s238 + $0x8c] sm:$0xf]
        %v381 = vld [vmem:[%s238 + $0x90] sm:$0xf]
        %v382 = vld [vmem:[%s238 + $0x94] sm:$0xf]
        %v383 = vld [vmem:[%s238 + $0x98] sm:$0xf]
        %v384 = vld [vmem:[%s238 + $0x9c] sm:$0xf]
        %v385 = vld [vmem:[%s238 + $0xa0] sm:$0xf]
        %v386 = vld [vmem:[%s238 + $0xa4] sm:$0xf]
        %v387 = vld [vmem:[%s238 + $0xa8] sm:$0xf]
        %v388 = vld [vmem:[%s238 + $0xac] sm:$0xf]
        %v389 = vld [vmem:[%s238 + $0xb0] sm:$0xf]
        %v390 = vld [vmem:[%s238 + $0xb4] sm:$0xf]
        %v391 = vld [vmem:[%s238 + $0xb8] sm:$0xf]
        %v392 = vld [vmem:[%s238 + $0xbc] sm:$0xf]
        %v393 = vld [vmem:[%s238 + $0xc0] sm:$0xf]
        %v394 = vld [vmem:[%s238 + $0xc4] sm:$0xf]
        %v395 = vld [vmem:[%s238 + $0xc8] sm:$0xf]
        %v396 = vld [vmem:[%s238 + $0xcc] sm:$0xf]
        %v397 = vld [vmem:[%s238 + $0xd0] sm:$0xf]
        %v398 = vld [vmem:[%s238 + $0xd4] sm:$0xf]
        %v399 = vld [vmem:[%s238 + $0xd8] sm:$0xf]
        %v400 = vld [vmem:[%s238 + $0xdc] sm:$0xf]
        %v401 = vld [vmem:[%s238 + $0xe0] sm:$0xf]
        %v402 = vld [vmem:[%s238 + $0xe4] sm:$0xf]
        %v403 = vld [vmem:[%s238 + $0xe8] sm:$0xf]
        %v404 = vld [vmem:[%s238 + $0xec] sm:$0xf]
        %v405 = vld [vmem:[%s238 + $0xf0] sm:$0xf]
        %v406 = vld [vmem:[%s238 + $0xf4] sm:$0xf]
        %v407 = vld [vmem:[%s238 + $0xf8] sm:$0xf]
        %v408 = vld [vmem:[%s238 + $0xfc] sm:$0xf]
        %v417 = vunpack.c.l.b16 %v337
        %v418 = vunpack.c.h.b16 %v337
        %v419 = vunpack.c.l.b16 %v338
        %v420 = vunpack.c.h.b16 %v338
        %v421 = vunpack.c.l.b16 %v339
        %v422 = vunpack.c.h.b16 %v339
        %v423 = vunpack.c.l.b16 %v340
        %v424 = vunpack.c.h.b16 %v340
        %v425 = vunpack.c.l.b16 %v341
        %v426 = vunpack.c.h.b16 %v341
        %v427 = vunpack.c.l.b16 %v342
        %v428 = vunpack.c.h.b16 %v342
        %v429 = vunpack.c.l.b16 %v343
        %v430 = vunpack.c.h.b16 %v343
        %v431 = vunpack.c.l.b16 %v344
        %v432 = vunpack.c.h.b16 %v344
        %v433 = vpack.c.b16 %v421, %v417
        %v434 = vpack.c.b16 %v422, %v418
        %v435 = vpack.c.b16 %v423, %v419
        %v436 = vpack.c.b16 %v424, %v420
        %v437 = vpack.c.b16 %v429, %v425
        %v438 = vpack.c.b16 %v430, %v426
        %v439 = vpack.c.b16 %v431, %v427
        %v440 = vpack.c.b16 %v432, %v428
        %v513 = vunpack.c.l.b16 %v345
        %v514 = vunpack.c.l.b16 %v346
        %v515 = vunpack.c.l.b16 %v347
        %v516 = vunpack.c.l.b16 %v348
        %v517 = vunpack.c.l.b16 %v349
        %v518 = vunpack.c.l.b16 %v350
        %v519 = vunpack.c.l.b16 %v351
        %v520 = vunpack.c.l.b16 %v352
        %v521 = vunpack.c.l.b16 %v353
        %v522 = vunpack.c.l.b16 %v354
        %v523 = vunpack.c.l.b16 %v355
        %v524 = vunpack.c.l.b16 %v356
        %v525 = vunpack.c.l.b16 %v357
        %v526 = vunpack.c.l.b16 %v358
        %v527 = vunpack.c.l.b16 %v359
        %v528 = vunpack.c.l.b16 %v360
        %v529 = vunpack.c.l.b16 %v361
        %v530 = vunpack.c.l.b16 %v362
        %v531 = vunpack.c.l.b16 %v363
        %v532 = vunpack.c.l.b16 %v364
        %v533 = vunpack.c.l.b16 %v365
        %v534 = vunpack.c.l.b16 %v366
        %v535 = vunpack.c.l.b16 %v367
        %v536 = vunpack.c.l.b16 %v368
        %v537 = vunpack.c.l.b16 %v369
        %v538 = vunpack.c.l.b16 %v370
        %v539 = vunpack.c.l.b16 %v371
        %v540 = vunpack.c.l.b16 %v372
        %v541 = vunpack.c.l.b16 %v373
        %v542 = vunpack.c.l.b16 %v374
        %v543 = vunpack.c.l.b16 %v375
        %v544 = vunpack.c.l.b16 %v376
        %v545 = vunpack.c.l.b16 %v377
        %v546 = vunpack.c.l.b16 %v378
        %v547 = vunpack.c.l.b16 %v379
        %v548 = vunpack.c.l.b16 %v380
        %v549 = vunpack.c.l.b16 %v381
        %v550 = vunpack.c.l.b16 %v382
        %v551 = vunpack.c.l.b16 %v383
        %v552 = vunpack.c.l.b16 %v384
        %v553 = vunpack.c.l.b16 %v385
        %v554 = vunpack.c.l.b16 %v386
        %v555 = vunpack.c.l.b16 %v387
        %v556 = vunpack.c.l.b16 %v388
        %v557 = vunpack.c.l.b16 %v389
        %v558 = vunpack.c.l.b16 %v390
        %v559 = vunpack.c.l.b16 %v391
        %v560 = vunpack.c.l.b16 %v392
        %v561 = vunpack.c.l.b16 %v393
        %v562 = vunpack.c.l.b16 %v394
        %v563 = vunpack.c.l.b16 %v395
        %v564 = vunpack.c.l.b16 %v396
        %v565 = vunpack.c.l.b16 %v397
        %v566 = vunpack.c.l.b16 %v398
        %v567 = vunpack.c.l.b16 %v399
        %v568 = vunpack.c.l.b16 %v400
        %v569 = vunpack.c.l.b16 %v401
        %v570 = vunpack.c.l.b16 %v402
        %v571 = vunpack.c.l.b16 %v403
        %v572 = vunpack.c.l.b16 %v404
        %v573 = vunpack.c.l.b16 %v405
        %v574 = vunpack.c.l.b16 %v406
        %v575 = vunpack.c.l.b16 %v407
        %v576 = vunpack.c.l.b16 %v408
        %v577 = vpack.c.b16 %v514, %v513
        %v578 = vpack.c.b16 %v516, %v515
        %v579 = vpack.c.b16 %v518, %v517
        %v580 = vpack.c.b16 %v520, %v519
        %v581 = vpack.c.b16 %v522, %v521
        %v582 = vpack.c.b16 %v524, %v523
        %v583 = vpack.c.b16 %v526, %v525
        %v584 = vpack.c.b16 %v528, %v527
        %v585 = vpack.c.b16 %v530, %v529
        %v586 = vpack.c.b16 %v532, %v531
        %v587 = vpack.c.b16 %v534, %v533
        %v588 = vpack.c.b16 %v536, %v535
        %v589 = vpack.c.b16 %v538, %v537
        %v590 = vpack.c.b16 %v540, %v539
        %v591 = vpack.c.b16 %v542, %v541
        %v592 = vpack.c.b16 %v544, %v543
        %v593 = vpack.c.b16 %v546, %v545
        %v594 = vpack.c.b16 %v548, %v547
        %v595 = vpack.c.b16 %v550, %v549
        %v596 = vpack.c.b16 %v552, %v551
        %v597 = vpack.c.b16 %v554, %v553
        %v598 = vpack.c.b16 %v556, %v555
        %v599 = vpack.c.b16 %v558, %v557
        %v600 = vpack.c.b16 %v560, %v559
        %v601 = vpack.c.b16 %v562, %v561
        %v602 = vpack.c.b16 %v564, %v563
        %v603 = vpack.c.b16 %v566, %v565
        %v604 = vpack.c.b16 %v568, %v567
        %v605 = vpack.c.b16 %v570, %v569
        %v606 = vpack.c.b16 %v572, %v571
        %v607 = vpack.c.b16 %v574, %v573
        %v608 = vpack.c.b16 %v576, %v575
        %641 = vmatprep.subr.bf16.mxu0 0
        %642 = vmatpush1.bf16.msra.mxu0 %v577
        %643 = vmatprep.subr.bf16.mxu0 0
        %644 = vmatpush1.bf16.msra.mxu0 %v578
        %645 = vmatprep.subr.bf16.mxu0 0
        %646 = vmatpush1.bf16.msra.mxu0 %v579
        %647 = vmatprep.subr.bf16.mxu0 0
        %648 = vmatpush1.bf16.msra.mxu0 %v580
        %649 = vmatprep.subr.bf16.mxu0 0
        %650 = vmatpush1.bf16.msra.mxu0 %v581
        %651 = vmatprep.subr.bf16.mxu0 0
        %652 = vmatpush1.bf16.msra.mxu0 %v582
        %653 = vmatprep.subr.bf16.mxu0 0
        %654 = vmatpush1.bf16.msra.mxu0 %v583
        %655 = vmatprep.subr.bf16.mxu0 0
        %656 = vmatpush1.bf16.msra.mxu0 %v584
        %657 = vmatprep.subr.bf16.mxu0 0
        %658 = vmatpush1.bf16.msra.mxu0 %v585
        %659 = vmatprep.subr.bf16.mxu0 0
        %660 = vmatpush1.bf16.msra.mxu0 %v586
        %661 = vmatprep.subr.bf16.mxu0 0
        %662 = vmatpush1.bf16.msra.mxu0 %v587
        %663 = vmatprep.subr.bf16.mxu0 0
        %664 = vmatpush1.bf16.msra.mxu0 %v588
        %665 = vmatprep.subr.bf16.mxu0 0
        %666 = vmatpush1.bf16.msra.mxu0 %v589
        %667 = vmatprep.subr.bf16.mxu0 0
        %668 = vmatpush1.bf16.msra.mxu0 %v590
        %669 = vmatprep.subr.bf16.mxu0 0
        %670 = vmatpush1.bf16.msra.mxu0 %v591
        %671 = vmatprep.subr.bf16.mxu0 0
        %672 = vmatpush1.bf16.msra.mxu0 %v592
        %673 = vmatprep.mubr.bf16.mxu0 %v434
        %674 = vmatmul.mubr.bf16.gmra.mrb[0].mxu0 %v433
        %v675 = vpop.f32.mrb[0].mxu0
        %v676 = vadd.f32 0.0, %v675
        %v677 = vpop.f32.mrb[0].mxu0
        %v678 = vpop.f32.mrb[0].mxu0
        %v679 = vadd.f32 0.0, %v678
        %v680 = vpop.f32.mrb[0].mxu0
        %681 = vmatprep.mubr.bf16.mxu0 %v438
        %682 = vmatmul.mubr.bf16.gmra.mrb[0].mxu0 %v437
        %v683 = vpop.f32.mrb[0].mxu0
        %v684 = vadd.f32 0.0, %v683
        %v685 = vpop.f32.mrb[0].mxu0
        %v686 = vpop.f32.mrb[0].mxu0
        %v687 = vadd.f32 0.0, %v686
        %v688 = vpop.f32.mrb[0].mxu0
        %689 = vdwg.mxu0
        %690 = vmatprep.subr.bf16.mxu0 0
        %691 = vmatpush1.bf16.msra.mxu0 %v593
        %692 = vmatprep.subr.bf16.mxu0 0
        %693 = vmatpush1.bf16.msra.mxu0 %v594
        %694 = vmatprep.subr.bf16.mxu0 0
        %695 = vmatpush1.bf16.msra.mxu0 %v595
        %696 = vmatprep.subr.bf16.mxu0 0
        %697 = vmatpush1.bf16.msra.mxu0 %v596
        %698 = vmatprep.subr.bf16.mxu0 0
        %699 = vmatpush1.bf16.msra.mxu0 %v597
        %700 = vmatprep.subr.bf16.mxu0 0
        %701 = vmatpush1.bf16.msra.mxu0 %v598
        %702 = vmatprep.subr.bf16.mxu0 0
        %703 = vmatpush1.bf16.msra.mxu0 %v599
        %704 = vmatprep.subr.bf16.mxu0 0
        %705 = vmatpush1.bf16.msra.mxu0 %v600
        %706 = vmatprep.subr.bf16.mxu0 0
        %707 = vmatpush1.bf16.msra.mxu0 %v601
        %708 = vmatprep.subr.bf16.mxu0 0
        %709 = vmatpush1.bf16.msra.mxu0 %v602
        %710 = vmatprep.subr.bf16.mxu0 0
        %711 = vmatpush1.bf16.msra.mxu0 %v603
        %712 = vmatprep.subr.bf16.mxu0 0
        %713 = vmatpush1.bf16.msra.mxu0 %v604
        %714 = vmatprep.subr.bf16.mxu0 0
        %715 = vmatpush1.bf16.msra.mxu0 %v605
        %716 = vmatprep.subr.bf16.mxu0 0
        %717 = vmatpush1.bf16.msra.mxu0 %v606
        %718 = vmatprep.subr.bf16.mxu0 0
        %719 = vmatpush1.bf16.msra.mxu0 %v607
        %720 = vmatprep.subr.bf16.mxu0 0
        %721 = vmatpush1.bf16.msra.mxu0 %v608
        %722 = vmatprep.mubr.bf16.mxu0 %v436
        %723 = vmatmul.mubr.bf16.gmra.mrb[0].mxu0 %v435
        %v724 = vpop.f32.mrb[0].mxu0
        %v725 = vadd.f32 %v676, %v724
        %v726 = vpop.f32.mrb[0].mxu0
        %v727 = vpop.f32.mrb[0].mxu0
        %v728 = vadd.f32 %v679, %v727
        %v729 = vpop.f32.mrb[0].mxu0
        %730 = vmatprep.mubr.bf16.mxu0 %v440
        %731 = vmatmul.mubr.bf16.gmra.mrb[0].mxu0 %v439
        %v732 = vpop.f32.mrb[0].mxu0
        %v733 = vadd.f32 %v684, %v732
        %v734 = vpop.f32.mrb[0].mxu0
        %v735 = vpop.f32.mrb[0].mxu0
        %v736 = vadd.f32 %v687, %v735
        %v737 = vpop.f32.mrb[0].mxu0
        %738 = vdwg.mxu0
        %v739 = vadd.f32 %v333, %v725
        %v740 = vadd.f32 %v334, %v728
        %v741 = vadd.f32 %v335, %v733
        %v742 = vadd.f32 %v336, %v736
        %743 = vst [vmem:[#allocation2] sm:$0xff] %v739
        %744 = vst [vmem:[#allocation2 + $0x8] sm:$0xff] %v740
        %745 = vst [vmem:[#allocation2 + $0x10] sm:$0xff] %v741
        %746 = vst [vmem:[#allocation2 + $0x18] sm:$0xff] %v742
        // Predicated region
        $region41: #{gan_forward.7} parent=31 // pred_check
          %p747 = pneg %p325
        $region42: #{gan_forward.7} parent=31 // pred_check_branch
          %749 = sbr.rel (%p747) target = $region44
        $region43: #{gan_forward.7} parent=31 // pred_region
          %v750 = vld [vmem:[#allocation2] sm:$0xff]
          %v751 = vld [vmem:[#allocation2 + $0x8] sm:$0xff]
          %v752 = vld [vmem:[#allocation2 + $0x10] sm:$0xff]
          %v753 = vld [vmem:[#allocation2 + $0x18] sm:$0xff]
          %v754 = vld [vmem:[%s310] sm:$0x1]
          %v756 = vlaneseq
          %v757 = vshrl.u32 %v756, 7
          %v758 = vsub.s32 0, %v757
          %v759 = vrot.slane %v754, %v758
          %v761 = vadd.f32 %v750, %v759
          %v762 = vadd.f32 %v751, %v759
          %v763 = vadd.f32 %v752, %v759
          %v764 = vadd.f32 %v753, %v759
          %vm765 = vcmp.gt.f32.partialorder %v761, 0.0
          %vm766 = vcmp.gt.f32.partialorder %v762, 0.0
          %vm767 = vcmp.gt.f32.partialorder %v763, 0.0
          %vm768 = vcmp.gt.f32.partialorder %v764, 0.0
          %v769 = vmul.f32 %v761, 0.2
          %v770 = vmul.f32 %v762, 0.2
          %v771 = vmul.f32 %v763, 0.2
          %v772 = vmul.f32 %v764, 0.2
          %v773 = vsel %vm765, %v761, %v769
          %v774 = vsel %vm766, %v762, %v770
          %v775 = vsel %vm767, %v763, %v771
          %v776 = vsel %vm768, %v764, %v772
          %v777 = vpack.c.bf16 %v774, %v773
          %v778 = vpack.c.bf16 %v776, %v775
          %v781 = vunpack.c.l.b16 %v777
          %v782 = vunpack.c.h.b16 %v777
          %v783 = vunpack.c.l.b16 %v778
          %v784 = vunpack.c.h.b16 %v778
          %v785 = vpack.c.b16 %v781, %v781
          %v786 = vpack.c.b16 %v782, %v782
          %v787 = vpack.c.b16 %v783, %v783
          %v788 = vpack.c.b16 %v784, %v784
          %793 = vst [vmem:[%s322] sm:$0xf] %v785
          %794 = vst [vmem:[%s322 + $0x4] sm:$0xf] %v786
          %795 = vst [vmem:[%s322 + $0x8] sm:$0xf] %v787
          %796 = vst [vmem:[%s322 + $0xc] sm:$0xf] %v788
        $region44: #{gan_forward.7} parent=31 // pred_fallthru
          _
        %s797 = smul.u32 4, %s24
        %p798 = scmp.lt.s32.totalorder %s23, 3
        %s799 = scalar_select %p798, %s23, 3
        %p800 = scmp.lt.s32.totalorder %s797, 3
        %s801 = scalar_select %p800, %s797, 3
        %p802 = scmp.lt.s32.totalorder %s25, 0
        %s803 = scalar_select %p802, %s25, 0
        %s804 = sadd.s32 %s803, %s801
        %s805 = smul.addr %s799, 4
        %s806 = sadd.s32 %s804, %s805
        %s807 = smul.addr %s806, 4
        %s808 = scalar_lea.vmem %s3, %s807
        // Predicated region
        $region45: #{gan_forward.7} parent=31 // pred_check
          %p809 = pneg %p153
        $region46: #{gan_forward.7} parent=31 // pred_check_branch
          %811 = sbr.rel (%p809) target = $region48
        $region47: #{gan_forward.7} parent=31 // pred_region
          %s812 = smul.u32 4, %s24
        $region48: #{gan_forward.7} parent=31 // pred_fallthru
          _
      $region32: #{gan_forward.7} parent=5 // pred_fallthru
        _
      %p813 = scmp.le.s32.totalorder 2, %s12
      // Predicated region
      $region49: #{gan_forward.7} parent=5 // pred_check
        %p814 = pneg %p813
      $region50: #{gan_forward.7} parent=5 // pred_check_branch
        %816 = sbr.rel (%p814) target = $region52
      $region51: #{gan_forward.7} parent=5 // pred_region
        %s817 = ssub.s32 %s12, 2
        // Predicated region
        $region53: #{gan_forward.7} parent=51 // pred_check
          %p818 = pneg %p159
        $region54: #{gan_forward.7} parent=51 // pred_check_branch
          %820 = sbr.rel (%p818) target = $region56
        $region55: #{gan_forward.7} parent=51 // pred_region
          %s821 = smul.u32 4, %s28
          %p822 = scmp.lt.s32.totalorder %s27, 3
          %s823 = scalar_select %p822, %s27, 3
          %p824 = scmp.lt.s32.totalorder %s821, 3
          %s825 = scalar_select %p824, %s821, 3
          %p826 = scmp.lt.s32.totalorder %s29, 0
          %s827 = scalar_select %p826, %s29, 0
          %s828 = sadd.s32 %s827, %s825
          %s829 = smul.addr %s823, 4
          %s830 = sadd.s32 %s828, %s829
          %s831 = smul.addr %s830, 4
          %s832 = scalar_lea.vmem %s3, %s831
        $region56: #{gan_forward.7} parent=51 // pred_fallthru
          _
      $region52: #{gan_forward.7} parent=5 // pred_fallthru
        _
    $region6: #{gan_forward.7} parent=1 // loop_footer
      %s16 = sadd.s32 1, %s12
    $region7: #{gan_forward.7} parent=1 // loop_footer_branch
      %11 = sbr.rel target = $region3
    $region8: #{gan_forward.7} parent=1 // loop_exit
      _
    %833 = vsyncpa [#allocation4], 1
    %s834 = scalar_lea.sflag [#allocation4], 1
    %835 = vsyncpa %s834, 1

// kernel: gan_forward.8
$region0: #{gan_forward.8}
  #allocation0 [shape = 'u32[]', space=smem, size = 0x4, offset = 0x4, fixed_abs, tag = 'smem constant byte address 0x4 - core index']
  #allocation1 [shape = 'u32[144,128]{1,0:T(1,128)}', space=vmem, size = 0x12000, scoped, tag = 'internal scratch']
  #allocation2 [shape = 'f32[128,128]{1,0:T(8,128)}', space=vmem, size = 0x10000, scoped, tag = 'scratch operand']
  %s0 = inlined_call_operand.vmem [shape: bf16[4,128,512], index: 0, kind: input, shape index: {}]
  %s1 = inlined_call_operand.vmem [shape: bf16[4,512,128], index: 1, kind: input, shape index: {}]
  %s2 = inlined_call_operand.vmem [shape: f32[4,1,128], index: 2, kind: input, shape index: {}]
  %s3 = inlined_call_operand.vmem [shape: bf16[4,128,128], index: 3, kind: output, shape index: {}]
  %s4 = sld [smem:[#allocation0]]
  $region53: #{gan_forward.8} parent=0
    _
  %s6 = ssub.s32 1, %s4
  %s7 = scalar_select 0, %s6, %s4
  loop: start=0, step=1, limit=6
  $region2: #{gan_forward.8} parent=0 // loop_pre_header
    _
  $region3: #{gan_forward.8} parent=0 // loop_header
    %s9 = sphi 0, %s13
    %p10 = scmp.ge.s32.totalorder %s9, 6
    %s16 = sphi 0, %s42
    %s17 = sphi 0, %s38
    %s18 = sphi 0, %s34
    %s19 = sphi 0, %s30
    %s20 = sphi 0, %s16
    %s21 = sphi 0, %s17
    %s22 = sphi 0, %s18
    %s23 = sphi 0, %s19
    %s24 = sphi 0, %s20
    %s25 = sphi 0, %s21
    %s26 = sphi 0, %s22
    %s27 = sphi 0, %s23
    %s49 = sphi 0, %s51
    %s52 = sphi 0, %s49
    %s53 = sphi 0, %s52
    %s69 = sphi 0, %s53
    %s79 = sphi 0, %s81
    %s82 = sphi 0, %s79
    %s83 = sphi 0, %s82
    %s99 = sphi 0, %s83
    %s107 = sphi 0, %s109
    %s110 = sphi 0, %s107
    %s111 = sphi 0, %s110
    %s127 = sphi 0, %s111
    %s137 = sphi 0, %s139
    %s140 = sphi 0, %s137
    %s141 = sphi 0, %s140
    %s157 = sphi 0, %s141
  $region4: #{gan_forward.8} parent=0 // loop_header_branch
    %12 = sbr.rel (%p10) target = $region8
  $region5: #{gan_forward.8} parent=0 // loop_body
    %s14 = ssub.s32 %s9, 1
    %s15 = ssub.s32 %s9, 2
    %s28 = sadd.s32 1, %s19
    %p29 = scmp.ge.s32.totalorder %s28, 1
    %s30 = scalar_select %p29, 0, %s28
    %s31 = sadd.s32 1, %s18
    %s32 = scalar_select %p29, %s31, %s18
    %p33 = scmp.ge.s32.totalorder %s32, 1
    %s34 = scalar_select %p33, 0, %s32
    %s35 = sadd.s32 1, %s17
    %s36 = scalar_select %p33, %s35, %s17
    %p37 = scmp.ge.s32.totalorder %s36, 1
    %s38 = scalar_select %p37, 0, %s36
    %s39 = sadd.s32 1, %s16
    %s40 = scalar_select %p37, %s39, %s16
    %p41 = scmp.ge.s32.totalorder %s40, 4
    %s42 = scalar_select %p41, 0, %s40
    %s43 = ssub.s32 %s16, %s42
    %s44 = ssub.s32 %s17, %s38
    %s45 = sor.u32 %s43, %s44
    %s46 = ssub.s32 %s19, %s30
    %s47 = sor.u32 %s45, %s46
    %p48 = scmp.eq.s32.totalorder %s47, 0
    %s50 = sadd.s32 %s49, 1
    %s51 = scalar_select %p48, %s49, %s50
    %p54 = pneg %p48
    %p55 = scmp.eq.s32.totalorder %s9, 3
    %p56 = por %p54, %p55
    %p57 = scmp.ne.s32.totalorder %s49, %s52
    %p58 = scmp.eq.s32.totalorder %s9, 0
    %p59 = por %p57, %p58
    %p60 = scmp.ne.s32.totalorder %s49, %s52
    %p61 = scmp.eq.s32.totalorder %s14, 3
    %p62 = por %p60, %p61
    %p63 = scmp.ne.s32.totalorder %s52, %s53
    %p64 = scmp.eq.s32.totalorder %s14, 0
    %p65 = por %p63, %p64
    %p66 = scmp.ne.s32.totalorder %s52, %s53
    %p67 = scmp.eq.s32.totalorder %s15, 3
    %p68 = por %p66, %p67
    %p70 = scmp.ne.s32.totalorder %s53, %s69
    %p71 = scmp.eq.s32.totalorder %s15, 0
    %p72 = por %p70, %p71
    %s73 = ssub.s32 %s16, %s42
    %s74 = ssub.s32 %s19, %s30
    %s75 = sor.u32 %s73, %s74
    %s76 = ssub.s32 %s18, %s34
    %s77 = sor.u32 %s75, %s76
    %p78 = scmp.eq.s32.totalorder %s77, 0
    %s80 = sadd.s32 %s79, 1
    %s81 = scalar_select %p78, %s79, %s80
    %p84 = pneg %p78
    %p85 = scmp.eq.s32.totalorder %s9, 3
    %p86 = por %p84, %p85
    %p87 = scmp.ne.s32.totalorder %s79, %s82
    %p88 = scmp.eq.s32.totalorder %s9, 0
    %p89 = por %p87, %p88
    %p90 = scmp.ne.s32.totalorder %s79, %s82
    %p91 = scmp.eq.s32.totalorder %s14, 3
    %p92 = por %p90, %p91
    %p93 = scmp.ne.s32.totalorder %s82, %s83
    %p94 = scmp.eq.s32.totalorder %s14, 0
    %p95 = por %p93, %p94
    %p96 = scmp.ne.s32.totalorder %s82, %s83
    %p97 = scmp.eq.s32.totalorder %s15, 3
    %p98 = por %p96, %p97
    %p100 = scmp.ne.s32.totalorder %s83, %s99
    %p101 = scmp.eq.s32.totalorder %s15, 0
    %p102 = por %p100, %p101
    %s103 = ssub.s32 %s16, %s42
    %s104 = ssub.s32 %s18, %s34
    %s105 = sor.u32 %s103, %s104
    %p106 = scmp.eq.s32.totalorder %s105, 0
    %s108 = sadd.s32 %s107, 1
    %s109 = scalar_select %p106, %s107, %s108
    %p112 = pneg %p106
    %p113 = scmp.eq.s32.totalorder %s9, 3
    %p114 = por %p112, %p113
    %p115 = scmp.ne.s32.totalorder %s107, %s110
    %p116 = scmp.eq.s32.totalorder %s9, 0
    %p117 = por %p115, %p116
    %p118 = scmp.ne.s32.totalorder %s107, %s110
    %p119 = scmp.eq.s32.totalorder %s14, 3
    %p120 = por %p118, %p119
    %p121 = scmp.ne.s32.totalorder %s110, %s111
    %p122 = scmp.eq.s32.totalorder %s14, 0
    %p123 = por %p121, %p122
    %p124 = scmp.ne.s32.totalorder %s110, %s111
    %p125 = scmp.eq.s32.totalorder %s15, 3
    %p126 = por %p124, %p125
    %p128 = scmp.ne.s32.totalorder %s111, %s127
    %p129 = scmp.eq.s32.totalorder %s15, 0
    %p130 = por %p128, %p129
    %s131 = ssub.s32 %s16, %s42
    %s132 = ssub.s32 %s17, %s38
    %s133 = sor.u32 %s131, %s132
    %s134 = ssub.s32 %s18, %s34
    %s135 = sor.u32 %s133, %s134
    %p136 = scmp.eq.s32.totalorder %s135, 0
    %s138 = sadd.s32 %s137, 1
    %s139 = scalar_select %p136, %s137, %s138
    %p142 = pneg %p136
    %p143 = scmp.eq.s32.totalorder %s9, 3
    %p144 = por %p142, %p143
    %p145 = scmp.ne.s32.totalorder %s137, %s140
    %p146 = scmp.eq.s32.totalorder %s9, 0
    %p147 = por %p145, %p146
    %p148 = scmp.ne.s32.totalorder %s137, %s140
    %p149 = scmp.eq.s32.totalorder %s14, 3
    %p150 = por %p148, %p149
    %p151 = scmp.ne.s32.totalorder %s140, %s141
    %p152 = scmp.eq.s32.totalorder %s14, 0
    %p153 = por %p151, %p152
    %p154 = scmp.ne.s32.totalorder %s140, %s141
    %p155 = scmp.eq.s32.totalorder %s15, 3
    %p156 = por %p154, %p155
    %p158 = scmp.ne.s32.totalorder %s141, %s157
    %p159 = scmp.eq.s32.totalorder %s15, 0
    %p160 = por %p158, %p159
    %p161 = scmp.le.s32.totalorder 1, %s9
    %p162 = scmp.lt.s32.totalorder %s9, 5
    %p163 = pnand %p161, %p162
    %p164 = pneg %p163
    // Predicated region
    $region9: #{gan_forward.8} parent=5 // pred_check
      _
    $region10: #{gan_forward.8} parent=5 // pred_check_branch
      %166 = sbr.rel (%p163) target = $region12
    $region11: #{gan_forward.8} parent=5 // pred_region
      %s167 = ssub.s32 %s9, 1
    $region12: #{gan_forward.8} parent=5 // pred_fallthru
      _
    %p168 = scmp.lt.s32.totalorder %s9, 4
    // Predicated region
    $region13: #{gan_forward.8} parent=5 // pred_check
      %p169 = pneg %p168
    $region14: #{gan_forward.8} parent=5 // pred_check_branch
      %171 = sbr.rel (%p169) target = $region16
    $region15: #{gan_forward.8} parent=5 // pred_region
      // Predicated region
      $region17: #{gan_forward.8} parent=15 // pred_check
        %p172 = pneg %p59
      $region18: #{gan_forward.8} parent=15 // pred_check_branch
        %174 = sbr.rel (%p172) target = $region20
      $region19: #{gan_forward.8} parent=15 // pred_region
        %s175 = smul.u32 16, %s17
        %s176 = smul.u32 4, %s19
        %p177 = scmp.lt.s32.totalorder %s16, 3
        %s178 = scalar_select %p177, %s16, 3
        %p179 = scmp.lt.s32.totalorder %s175, 15
        %s180 = scalar_select %p179, %s175, 15
        %p181 = scmp.lt.s32.totalorder %s176, 3
        %s182 = scalar_select %p181, %s176, 3
        %s183 = smul.addr %s180, 4
        %s184 = sadd.s32 %s182, %s183
        %s185 = smul.addr %s178, 64
        %s186 = sadd.s32 %s184, %s185
        %s187 = smul.addr %s186, 4
        %s188 = scalar_lea.vmem %s0, %s187
        %s189 = smul.u32 16, %s17
        %s190 = smul.u32 4, %s19
      $region20: #{gan_forward.8} parent=15 // pred_fallthru
        _
      // Predicated region
      $region21: #{gan_forward.8} parent=15 // pred_check
        %p191 = pneg %p89
      $region22: #{gan_forward.8} parent=15 // pred_check_branch
        %193 = sbr.rel (%p191) target = $region24
      $region23: #{gan_forward.8} parent=15 // pred_region
        %s194 = smul.u32 64, %s19
        %p195 = scmp.lt.s32.totalorder %s16, 3
        %s196 = scalar_select %p195, %s16, 3
        %p197 = scmp.lt.s32.totalorder %s194, 63
        %s198 = scalar_select %p197, %s194, 63
        %p199 = scmp.lt.s32.totalorder %s18, 0
        %s200 = scalar_select %p199, %s18, 0
        %s201 = sadd.s32 %s200, %s198
        %s202 = smul.addr %s196, 64
        %s203 = sadd.s32 %s201, %s202
        %s204 = smul.addr %s203, 4
        %s205 = scalar_lea.vmem %s1, %s204
        %s206 = smul.u32 64, %s19
      $region24: #{gan_forward.8} parent=15 // pred_fallthru
        _
      // Predicated region
      $region25: #{gan_forward.8} parent=15 // pred_check
        %p207 = pneg %p117
      $region26: #{gan_forward.8} parent=15 // pred_check_branch
        %209 = sbr.rel (%p207) target = $region28
      $region27: #{gan_forward.8} parent=15 // pred_region
        %p210 = scmp.lt.s32.totalorder %s16, 3
        %s211 = scalar_select %p210, %s16, 3
        %p212 = scmp.lt.s32.totalorder %s18, 0
        %s213 = scalar_select %p212, %s18, 0
        %s214 = sadd.s32 %s213, %s211
        %s215 = scalar_lea.vmem %s2, %s214
      $region28: #{gan_forward.8} parent=15 // pred_fallthru
        _
    $region16: #{gan_forward.8} parent=5 // pred_fallthru
      _
    %p216 = scmp.le.s32.totalorder 1, %s9
    %p217 = scmp.lt.s32.totalorder %s9, 5
    %p218 = pnand %p216, %p217
    %p219 = pneg %p218
    // Predicated region
    $region29: #{gan_forward.8} parent=5 // pred_check
      _
    $region30: #{gan_forward.8} parent=5 // pred_check_branch
      %221 = sbr.rel (%p218) target = $region32
    $region31: #{gan_forward.8} parent=5 // pred_region
      %s222 = ssub.s32 %s9, 1
      %s223 = smul.u32 16, %s21
      %s224 = smul.u32 4, %s23
      %p225 = scmp.lt.s32.totalorder %s20, 3
      %s226 = scalar_select %p225, %s20, 3
      %p227 = scmp.lt.s32.totalorder %s223, 15
      %s228 = scalar_select %p227, %s223, 15
      %p229 = scmp.lt.s32.totalorder %s224, 3
      %s230 = scalar_select %p229, %s224, 3
      %s231 = smul.addr %s228, 4
      %s232 = sadd.s32 %s230, %s231
      %s233 = smul.addr %s226, 64
      %s234 = sadd.s32 %s232, %s233
      %s235 = smul.addr %s234, 4
      %s236 = scalar_lea.vmem %s0, %s235
      %p237 = pneg %p65
      %p238 = pneg %p62
      %s239 = smul.u32 64, %s23
      %p240 = scmp.lt.s32.totalorder %s20, 3
      %s241 = scalar_select %p240, %s20, 3
      %p242 = scmp.lt.s32.totalorder %s239, 63
      %s243 = scalar_select %p242, %s239, 63
      %p244 = scmp.lt.s32.totalorder %s22, 0
      %s245 = scalar_select %p244, %s22, 0
      %s246 = sadd.s32 %s245, %s243
      %s247 = smul.addr %s241, 64
      %s248 = sadd.s32 %s246, %s247
      %s249 = smul.addr %s248, 4
      %s250 = scalar_lea.vmem %s1, %s249
      %p251 = pneg %p95
      %p252 = pneg %p92
      %p253 = scmp.lt.s32.totalorder %s20, 3
      %s254 = scalar_select %p253, %s20, 3
      %p255 = scmp.lt.s32.totalorder %s22, 0
      %s256 = scalar_select %p255, %s22, 0
      %s257 = sadd.s32 %s256, %s254
      %s258 = scalar_lea.vmem %s2, %s257
      %p259 = pneg %p123
      %p260 = pneg %p120
      %p261 = pneg %p153
      %p262 = pneg %p150
      %s263 = smul.u32 16, %s21
      %p264 = scmp.lt.s32.totalorder %s20, 3
      %s265 = scalar_select %p264, %s20, 3
      %p266 = scmp.lt.s32.totalorder %s263, 15
      %s267 = scalar_select %p266, %s263, 15
      %p268 = scmp.lt.s32.totalorder %s22, 0
      %s269 = scalar_select %p268, %s22, 0
      %s270 = sadd.s32 %s269, %s267
      %s271 = smul.addr %s265, 16
      %s272 = sadd.s32 %s270, %s271
      %s273 = smul.addr %s272, 4
      %s274 = scalar_lea.vmem %s3, %s273
      %s275 = smul.u32 16, %s21
      %s276 = smul.u32 4, %s23
      %p277 = scmp.lt.s32.totalorder %s20, 3
      %s278 = scalar_select %p277, %s20, 3
      %p279 = scmp.lt.s32.totalorder %s275, 15
      %s280 = scalar_select %p279, %s275, 15
      %p281 = scmp.lt.s32.totalorder %s276, 3
      %s282 = scalar_select %p281, %s276, 3
      %s283 = smul.addr %s280, 4
      %s284 = sadd.s32 %s282, %s283
      %s285 = smul.addr %s278, 64
      %s286 = sadd.s32 %s284, %s285
      %s287 = smul.addr %s286, 4
      %s288 = scalar_lea.vmem %s0, %s287
      %s289 = smul.u32 16, %s21
      %s290 = smul.u32 4, %s23
      %s291 = smul.u32 64, %s23
      %p292 = scmp.lt.s32.totalorder %s20, 3
      %s293 = scalar_select %p292, %s20, 3
      %p294 = scmp.lt.s32.totalorder %s291, 63
      %s295 = scalar_select %p294, %s291, 63
      %p296 = scmp.lt.s32.totalorder %s22, 0
      %s297 = scalar_select %p296, %s22, 0
      %s298 = sadd.s32 %s297, %s295
      %s299 = smul.addr %s293, 64
      %s300 = sadd.s32 %s298, %s299
      %s301 = smul.addr %s300, 4
      %s302 = scalar_lea.vmem %s1, %s301
      %s303 = smul.u32 64, %s23
      %p304 = scmp.lt.s32.totalorder %s20, 3
      %s305 = scalar_select %p304, %s20, 3
      %p306 = scmp.lt.s32.totalorder %s22, 0
      %s307 = scalar_select %p306, %s22, 0
      %s308 = sadd.s32 %s307, %s305
      %s309 = scalar_lea.vmem %s2, %s308
      %s310 = smul.u32 16, %s21
      %p311 = scmp.lt.s32.totalorder %s20, 3
      %s312 = scalar_select %p311, %s20, 3
      %p313 = scmp.lt.s32.totalorder %s310, 15
      %s314 = scalar_select %p313, %s310, 15
      %p315 = scmp.lt.s32.totalorder %s22, 0
      %s316 = scalar_select %p315, %s22, 0
      %s317 = sadd.s32 %s316, %s314
      %s318 = smul.addr %s312, 16
      %s319 = sadd.s32 %s317, %s318
      %s320 = smul.addr %s319, 4
      %s321 = scalar_lea.vmem %s3, %s320
      %s322 = smul.u32 16, %s21
      %p324 = scmp.eq.s32.totalorder %s23, 0
      // Predicated region
      $region33: #{gan_forward.8} parent=31 // pred_check
        %p325 = pneg %p324
      $region34: #{gan_forward.8} parent=31 // pred_check_branch
        %327 = sbr.rel (%p325) target = $region36
      $region35: #{gan_forward.8} parent=31 // pred_region
        %328 = vst [vmem:[#allocation2] sm:$0xff] 0.0
        %329 = vst [vmem:[#allocation2 + $0x8] sm:$0xff] 0.0
        %330 = vst [vmem:[#allocation2 + $0x10] sm:$0xff] 0.0
        %331 = vst [vmem:[#allocation2 + $0x18] sm:$0xff] 0.0
        %332 = vst [vmem:[#allocation2 + $0x20] sm:$0xff] 0.0
        %333 = vst [vmem:[#allocation2 + $0x28] sm:$0xff] 0.0
        %334 = vst [vmem:[#allocation2 + $0x30] sm:$0xff] 0.0
        %335 = vst [vmem:[#allocation2 + $0x38] sm:$0xff] 0.0
        %336 = vst [vmem:[#allocation2 + $0x40] sm:$0xff] 0.0
        %337 = vst [vmem:[#allocation2 + $0x48] sm:$0xff] 0.0
        %338 = vst [vmem:[#allocation2 + $0x50] sm:$0xff] 0.0
        %339 = vst [vmem:[#allocation2 + $0x58] sm:$0xff] 0.0
        %340 = vst [vmem:[#allocation2 + $0x60] sm:$0xff] 0.0
        %341 = vst [vmem:[#allocation2 + $0x68] sm:$0xff] 0.0
        %342 = vst [vmem:[#allocation2 + $0x70] sm:$0xff] 0.0
        %343 = vst [vmem:[#allocation2 + $0x78] sm:$0xff] 0.0
      $region36: #{gan_forward.8} parent=31 // pred_fallthru
        _
      %v344 = vld [vmem:[#allocation2] sm:$0xff]
      %v345 = vld [vmem:[#allocation2 + $0x8] sm:$0xff]
      %v346 = vld [vmem:[#allocation2 + $0x10] sm:$0xff]
      %v347 = vld [vmem:[#allocation2 + $0x18] sm:$0xff]
      %v348 = vld [vmem:[#allocation2 + $0x20] sm:$0xff]
      %v349 = vld [vmem:[#allocation2 + $0x28] sm:$0xff]
      %v350 = vld [vmem:[#allocation2 + $0x30] sm:$0xff]
      %v351 = vld [vmem:[#allocation2 + $0x38] sm:$0xff]
      %v352 = vld [vmem:[#allocation2 + $0x40] sm:$0xff]
      %v353 = vld [vmem:[#allocation2 + $0x48] sm:$0xff]
      %v354 = vld [vmem:[#allocation2 + $0x50] sm:$0xff]
      %v355 = vld [vmem:[#allocation2 + $0x58] sm:$0xff]
      %v356 = vld [vmem:[#allocation2 + $0x60] sm:$0xff]
      %v357 = vld [vmem:[#allocation2 + $0x68] sm:$0xff]
      %v358 = vld [vmem:[#allocation2 + $0x70] sm:$0xff]
      %v359 = vld [vmem:[#allocation2 + $0x78] sm:$0xff]
      %v360 = vld [vmem:[%s288] sm:$0xff]
      %v361 = vld [vmem:[%s288 + $0x8] sm:$0xff]
      %v362 = vld [vmem:[%s288 + $0x10] sm:$0xff]
      %v363 = vld [vmem:[%s288 + $0x18] sm:$0xff]
      %v364 = vld [vmem:[%s288 + $0x20] sm:$0xff]
      %v365 = vld [vmem:[%s288 + $0x28] sm:$0xff]
      %v366 = vld [vmem:[%s288 + $0x30] sm:$0xff]
      %v367 = vld [vmem:[%s288 + $0x38] sm:$0xff]
      %v368 = vld [vmem:[%s288 + $0x40] sm:$0xff]
      %v369 = vld [vmem:[%s288 + $0x48] sm:$0xff]
      %v370 = vld [vmem:[%s288 + $0x50] sm:$0xff]
      %v371 = vld [vmem:[%s288 + $0x58] sm:$0xff]
      %v372 = vld [vmem:[%s288 + $0x60] sm:$0xff]
      %v373 = vld [vmem:[%s288 + $0x68] sm:$0xff]
      %v374 = vld [vmem:[%s288 + $0x70] sm:$0xff]
      %v375 = vld [vmem:[%s288 + $0x78] sm:$0xff]
      %v376 = vld [vmem:[%s288 + $0x80] sm:$0xff]
      %v377 = vld [vmem:[%s288 + $0x88] sm:$0xff]
      %v378 = vld [vmem:[%s288 + $0x90] sm:$0xff]
      %v379 = vld [vmem:[%s288 + $0x98] sm:$0xff]
      %v380 = vld [vmem:[%s288 + $0xa0] sm:$0xff]
      %v381 = vld [vmem:[%s288 + $0xa8] sm:$0xff]
      %v382 = vld [vmem:[%s288 + $0xb0] sm:$0xff]
      %v383 = vld [vmem:[%s288 + $0xb8] sm:$0xff]
      %v384 = vld [vmem:[%s288 + $0xc0] sm:$0xff]
      %v385 = vld [vmem:[%s288 + $0xc8] sm:$0xff]
      %v386 = vld [vmem:[%s288 + $0xd0] sm:$0xff]
      %v387 = vld [vmem:[%s288 + $0xd8] sm:$0xff]
      %v388 = vld [vmem:[%s288 + $0xe0] sm:$0xff]
      %v389 = vld [vmem:[%s288 + $0xe8] sm:$0xff]
      %v390 = vld [vmem:[%s288 + $0xf0] sm:$0xff]
      %v391 = vld [vmem:[%s288 + $0xf8] sm:$0xff]
      %v392 = vld [vmem:[%s302] sm:$0xf]
      %v393 = vld [vmem:[%s302 + $0x4] sm:$0xf]
      %v394 = vld [vmem:[%s302 + $0x8] sm:$0xf]
      %v395 = vld [vmem:[%s302 + $0xc] sm:$0xf]
      %v396 = vld [vmem:[%s302 + $0x10] sm:$0xf]
      %v397 = vld [vmem:[%s302 + $0x14] sm:$0xf]
      %v398 = vld [vmem:[%s302 + $0x18] sm:$0xf]
      %v399 = vld [vmem:[%s302 + $0x1c] sm:$0xf]
      %v400 = vld [vmem:[%s302 + $0x20] sm:$0xf]
      %v401 = vld [vmem:[%s302 + $0x24] sm:$0xf]
      %v402 = vld [vmem:[%s302 + $0x28] sm:$0xf]
      %v403 = vld [vmem:[%s302 + $0x2c] sm:$0xf]
      %v404 = vld [vmem:[%s302 + $0x30] sm:$0xf]
      %v405 = vld [vmem:[%s302 + $0x34] sm:$0xf]
      %v406 = vld [vmem:[%s302 + $0x38] sm:$0xf]
      %v407 = vld [vmem:[%s302 + $0x3c] sm:$0xf]
      %v408 = vld [vmem:[%s302 + $0x40] sm:$0xf]
      %v409 = vld [vmem:[%s302 + $0x44] sm:$0xf]
      %v410 = vld [vmem:[%s302 + $0x48] sm:$0xf]
      %v411 = vld [vmem:[%s302 + $0x4c] sm:$0xf]
      %v412 = vld [vmem:[%s302 + $0x50] sm:$0xf]
      %v413 = vld [vmem:[%s302 + $0x54] sm:$0xf]
      %v414 = vld [vmem:[%s302 + $0x58] sm:$0xf]
      %v415 = vld [vmem:[%s302 + $0x5c] sm:$0xf]
      %v416 = vld [vmem:[%s302 + $0x60] sm:$0xf]
      %v417 = vld [vmem:[%s302 + $0x64] sm:$0xf]
      %v418 = vld [vmem:[%s302 + $0x68] sm:$0xf]
      %v419 = vld [vmem:[%s302 + $0x6c] sm:$0xf]
      %v420 = vld [vmem:[%s302 + $0x70] sm:$0xf]
      %v421 = vld [vmem:[%s302 + $0x74] sm:$0xf]
      %v422 = vld [vmem:[%s302 + $0x78] sm:$0xf]
      %v423 = vld [vmem:[%s302 + $0x7c] sm:$0xf]
      %v424 = vld [vmem:[%s302 + $0x80] sm:$0xf]
      %v425 = vld [vmem:[%s302 + $0x84] sm:$0xf]
      %v426 = vld [vmem:[%s302 + $0x88] sm:$0xf]
      %v427 = vld [vmem:[%s302 + $0x8c] sm:$0xf]
      %v428 = vld [vmem:[%s302 + $0x90] sm:$0xf]
      %v429 = vld [vmem:[%s302 + $0x94] sm:$0xf]
      %v430 = vld [vmem:[%s302 + $0x98] sm:$0xf]
      %v431 = vld [vmem:[%s302 + $0x9c] sm:$0xf]
      %v432 = vld [vmem:[%s302 + $0xa0] sm:$0xf]
      %v433 = vld [vmem:[%s302 + $0xa4] sm:$0xf]
      %v434 = vld [vmem:[%s302 + $0xa8] sm:$0xf]
      %v435 = vld [vmem:[%s302 + $0xac] sm:$0xf]
      %v436 = vld [vmem:[%s302 + $0xb0] sm:$0xf]
      %v437 = vld [vmem:[%s302 + $0xb4] sm:$0xf]
      %v438 = vld [vmem:[%s302 + $0xb8] sm:$0xf]
      %v439 = vld [vmem:[%s302 + $0xbc] sm:$0xf]
      %v440 = vld [vmem:[%s302 + $0xc0] sm:$0xf]
      %v441 = vld [vmem:[%s302 + $0xc4] sm:$0xf]
      %v442 = vld [vmem:[%s302 + $0xc8] sm:$0xf]
      %v443 = vld [vmem:[%s302 + $0xcc] sm:$0xf]
      %v444 = vld [vmem:[%s302 + $0xd0] sm:$0xf]
      %v445 = vld [vmem:[%s302 + $0xd4] sm:$0xf]
      %v446 = vld [vmem:[%s302 + $0xd8] sm:$0xf]
      %v447 = vld [vmem:[%s302 + $0xdc] sm:$0xf]
      %v448 = vld [vmem:[%s302 + $0xe0] sm:$0xf]
      %v449 = vld [vmem:[%s302 + $0xe4] sm:$0xf]
      %v450 = vld [vmem:[%s302 + $0xe8] sm:$0xf]
      %v451 = vld [vmem:[%s302 + $0xec] sm:$0xf]
      %v452 = vld [vmem:[%s302 + $0xf0] sm:$0xf]
      %v453 = vld [vmem:[%s302 + $0xf4] sm:$0xf]
      %v454 = vld [vmem:[%s302 + $0xf8] sm:$0xf]
      %v455 = vld [vmem:[%s302 + $0xfc] sm:$0xf]
      %v488 = vunpack.c.l.b16 %v360
      %v489 = vunpack.c.h.b16 %v360
      %v490 = vunpack.c.l.b16 %v361
      %v491 = vunpack.c.h.b16 %v361
      %v492 = vunpack.c.l.b16 %v362
      %v493 = vunpack.c.h.b16 %v362
      %v494 = vunpack.c.l.b16 %v363
      %v495 = vunpack.c.h.b16 %v363
      %v496 = vunpack.c.l.b16 %v364
      %v497 = vunpack.c.h.b16 %v364
      %v498 = vunpack.c.l.b16 %v365
      %v499 = vunpack.c.h.b16 %v365
      %v500 = vunpack.c.l.b16 %v366
      %v501 = vunpack.c.h.b16 %v366
      %v502 = vunpack.c.l.b16 %v367
      %v503 = vunpack.c.h.b16 %v367
      %v504 = vunpack.c.l.b16 %v368
      %v505 = vunpack.c.h.b16 %v368
      %v506 = vunpack.c.l.b16 %v369
      %v507 = vunpack.c.h.b16 %v369
      %v508 = vunpack.c.l.b16 %v370
      %v509 = vunpack.c.h.b16 %v370
      %v510 = vunpack.c.l.b16 %v371
      %v511 = vunpack.c.h.b16 %v371
      %v512 = vunpack.c.l.b16 %v372
      %v513 = vunpack.c.h.b16 %v372
      %v514 = vunpack.c.l.b16 %v373
      %v515 = vunpack.c.h.b16 %v373
      %v516 = vunpack.c.l.b16 %v374
      %v517 = vunpack.c.h.b16 %v374
      %v518 = vunpack.c.l.b16 %v375
      %v519 = vunpack.c.h.b16 %v375
      %v520 = vunpack.c.l.b16 %v376
      %v521 = vunpack.c.h.b16 %v376
      %v522 = vunpack.c.l.b16 %v377
      %v523 = vunpack.c.h.b16 %v377
      %v524 = vunpack.c.l.b16 %v378
      %v525 = vunpack.c.h.b16 %v378
      %v526 = vunpack.c.l.b16 %v379
      %v527 = vunpack.c.h.b16 %v379
      %v528 = vunpack.c.l.b16 %v380
      %v529 = vunpack.c.h.b16 %v380
      %v530 = vunpack.c.l.b16 %v381
      %v531 = vunpack.c.h.b16 %v381
      %v532 = vunpack.c.l.b16 %v382
      %v533 = vunpack.c.h.b16 %v382
      %v534 = vunpack.c.l.b16 %v383
      %v535 = vunpack.c.h.b16 %v383
      %v536 = vunpack.c.l.b16 %v384
      %v537 = vunpack.c.h.b16 %v384
      %v538 = vunpack.c.l.b16 %v385
      %v539 = vunpack.c.h.b16 %v385
      %v540 = vunpack.c.l.b16 %v386
      %v541 = vunpack.c.h.b16 %v386
      %v542 = vunpack.c.l.b16 %v387
      %v543 = vunpack.c.h.b16 %v387
      %v544 = vunpack.c.l.b16 %v388
      %v545 = vunpack.c.h.b16 %v388
      %v546 = vunpack.c.l.b16 %v389
      %v547 = vunpack.c.h.b16 %v389
      %v548 = vunpack.c.l.b16 %v390
      %v549 = vunpack.c.h.b16 %v390
      %v550 = vunpack.c.l.b16 %v391
      %v551 = vunpack.c.h.b16 %v391
      %v552 = vpack.c.b16 %v492, %v488
      %v553 = vpack.c.b16 %v493, %v489
      %v554 = vpack.c.b16 %v494, %v490
      %v555 = vpack.c.b16 %v495, %v491
      %v556 = vpack.c.b16 %v500, %v496
      %v557 = vpack.c.b16 %v501, %v497
      %v558 = vpack.c.b16 %v502, %v498
      %v559 = vpack.c.b16 %v503, %v499
      %v560 = vpack.c.b16 %v508, %v504
      %v561 = vpack.c.b16 %v509, %v505
      %v562 = vpack.c.b16 %v510, %v506
      %v563 = vpack.c.b16 %v511, %v507
      %v564 = vpack.c.b16 %v516, %v512
      %v565 = vpack.c.b16 %v517, %v513
      %v566 = vpack.c.b16 %v518, %v514
      %v567 = vpack.c.b16 %v519, %v515
      %v568 = vpack.c.b16 %v524, %v520
      %v569 = vpack.c.b16 %v525, %v521
      %v570 = vpack.c.b16 %v526, %v522
      %v571 = vpack.c.b16 %v527, %v523
      %v572 = vpack.c.b16 %v532, %v528
      %v573 = vpack.c.b16 %v533, %v529
      %v574 = vpack.c.b16 %v534, %v530
      %v575 = vpack.c.b16 %v535, %v531
      %v576 = vpack.c.b16 %v540, %v536
      %v577 = vpack.c.b16 %v541, %v537
      %v578 = vpack.c.b16 %v542, %v538
      %v579 = vpack.c.b16 %v543, %v539
      %v580 = vpack.c.b16 %v548, %v544
      %v581 = vpack.c.b16 %v549, %v545
      %v582 = vpack.c.b16 %v550, %v546
      %v583 = vpack.c.b16 %v551, %v547
      %v680 = vunpack.c.l.b16 %v392
      %v681 = vunpack.c.l.b16 %v393
      %v682 = vunpack.c.l.b16 %v394
      %v683 = vunpack.c.l.b16 %v395
      %v684 = vunpack.c.l.b16 %v396
      %v685 = vunpack.c.l.b16 %v397
      %v686 = vunpack.c.l.b16 %v398
      %v687 = vunpack.c.l.b16 %v399
      %v688 = vunpack.c.l.b16 %v400
      %v689 = vunpack.c.l.b16 %v401
      %v690 = vunpack.c.l.b16 %v402
      %v691 = vunpack.c.l.b16 %v403
      %v692 = vunpack.c.l.b16 %v404
      %v693 = vunpack.c.l.b16 %v405
      %v694 = vunpack.c.l.b16 %v406
      %v695 = vunpack.c.l.b16 %v407
      %v696 = vunpack.c.l.b16 %v408
      %v697 = vunpack.c.l.b16 %v409
      %v698 = vunpack.c.l.b16 %v410
      %v699 = vunpack.c.l.b16 %v411
      %v700 = vunpack.c.l.b16 %v412
      %v701 = vunpack.c.l.b16 %v413
      %v702 = vunpack.c.l.b16 %v414
      %v703 = vunpack.c.l.b16 %v415
      %v704 = vunpack.c.l.b16 %v416
      %v705 = vunpack.c.l.b16 %v417
      %v706 = vunpack.c.l.b16 %v418
      %v707 = vunpack.c.l.b16 %v419
      %v708 = vunpack.c.l.b16 %v420
      %v709 = vunpack.c.l.b16 %v421
      %v710 = vunpack.c.l.b16 %v422
      %v711 = vunpack.c.l.b16 %v423
      %v712 = vunpack.c.l.b16 %v424
      %v713 = vunpack.c.l.b16 %v425
      %v714 = vunpack.c.l.b16 %v426
      %v715 = vunpack.c.l.b16 %v427
      %v716 = vunpack.c.l.b16 %v428
      %v717 = vunpack.c.l.b16 %v429
      %v718 = vunpack.c.l.b16 %v430
      %v719 = vunpack.c.l.b16 %v431
      %v720 = vunpack.c.l.b16 %v432
      %v721 = vunpack.c.l.b16 %v433
      %v722 = vunpack.c.l.b16 %v434
      %v723 = vunpack.c.l.b16 %v435
      %v724 = vunpack.c.l.b16 %v436
      %v725 = vunpack.c.l.b16 %v437
      %v726 = vunpack.c.l.b16 %v438
      %v727 = vunpack.c.l.b16 %v439
      %v728 = vunpack.c.l.b16 %v440
      %v729 = vunpack.c.l.b16 %v441
      %v730 = vunpack.c.l.b16 %v442
      %v731 = vunpack.c.l.b16 %v443
      %v732 = vunpack.c.l.b16 %v444
      %v733 = vunpack.c.l.b16 %v445
      %v734 = vunpack.c.l.b16 %v446
      %v735 = vunpack.c.l.b16 %v447
      %v736 = vunpack.c.l.b16 %v448
      %v737 = vunpack.c.l.b16 %v449
      %v738 = vunpack.c.l.b16 %v450
      %v739 = vunpack.c.l.b16 %v451
      %v740 = vunpack.c.l.b16 %v452
      %v741 = vunpack.c.l.b16 %v453
      %v742 = vunpack.c.l.b16 %v454
      %v743 = vunpack.c.l.b16 %v455
      %v744 = vpack.c.b16 %v681, %v680
      %v745 = vpack.c.b16 %v683, %v682
      %v746 = vpack.c.b16 %v685, %v684
      %v747 = vpack.c.b16 %v687, %v686
      %v748 = vpack.c.b16 %v689, %v688
      %v749 = vpack.c.b16 %v691, %v690
      %v750 = vpack.c.b16 %v693, %v692
      %v751 = vpack.c.b16 %v695, %v694
      %v752 = vpack.c.b16 %v697, %v696
      %v753 = vpack.c.b16 %v699, %v698
      %v754 = vpack.c.b16 %v701, %v700
      %v755 = vpack.c.b16 %v703, %v702
      %v756 = vpack.c.b16 %v705, %v704
      %v757 = vpack.c.b16 %v707, %v706
      %v758 = vpack.c.b16 %v709, %v708
      %v759 = vpack.c.b16 %v711, %v710
      %v760 = vpack.c.b16 %v713, %v712
      %v761 = vpack.c.b16 %v715, %v714
      %v762 = vpack.c.b16 %v717, %v716
      %v763 = vpack.c.b16 %v719, %v718
      %v764 = vpack.c.b16 %v721, %v720
      %v765 = vpack.c.b16 %v723, %v722
      %v766 = vpack.c.b16 %v725, %v724
      %v767 = vpack.c.b16 %v727, %v726
      %v768 = vpack.c.b16 %v729, %v728
      %v769 = vpack.c.b16 %v731, %v730
      %v770 = vpack.c.b16 %v733, %v732
      %v771 = vpack.c.b16 %v735, %v734
      %v772 = vpack.c.b16 %v737, %v736
      %v773 = vpack.c.b16 %v739, %v738
      %v774 = vpack.c.b16 %v741, %v740
      %v775 = vpack.c.b16 %v743, %v742
      %808 = vmatprep.subr.bf16.mxu0 0
      %809 = vmatpush1.bf16.msra.mxu0 %v744
      %810 = vmatprep.subr.bf16.mxu0 0
      %811 = vmatpush1.bf16.msra.mxu0 %v745
      %812 = vmatprep.subr.bf16.mxu0 0
      %813 = vmatpush1.bf16.msra.mxu0 %v746
      %814 = vmatprep.subr.bf16.mxu0 0
      %815 = vmatpush1.bf16.msra.mxu0 %v747
      %816 = vmatprep.subr.bf16.mxu0 0
      %817 = vmatpush1.bf16.msra.mxu0 %v748
      %818 = vmatprep.subr.bf16.mxu0 0
      %819 = vmatpush1.bf16.msra.mxu0 %v749
      %820 = vmatprep.subr.bf16.mxu0 0
      %821 = vmatpush1.bf16.msra.mxu0 %v750
      %822 = vmatprep.subr.bf16.mxu0 0
      %823 = vmatpush1.bf16.msra.mxu0 %v751
      %824 = vmatprep.subr.bf16.mxu0 0
      %825 = vmatpush1.bf16.msra.mxu0 %v752
      %826 = vmatprep.subr.bf16.mxu0 0
      %827 = vmatpush1.bf16.msra.mxu0 %v753
      %828 = vmatprep.subr.bf16.mxu0 0
      %829 = vmatpush1.bf16.msra.mxu0 %v754
      %830 = vmatprep.subr.bf16.mxu0 0
      %831 = vmatpush1.bf16.msra.mxu0 %v755
      %832 = vmatprep.subr.bf16.mxu0 0
      %833 = vmatpush1.bf16.msra.mxu0 %v756
      %834 = vmatprep.subr.bf16.mxu0 0
      %835 = vmatpush1.bf16.msra.mxu0 %v757
      %836 = vmatprep.subr.bf16.mxu0 0
      %837 = vmatpush1.bf16.msra.mxu0 %v758
      %838 = vmatprep.subr.bf16.mxu0 0
      %839 = vmatpush1.bf16.msra.mxu0 %v759
      %840 = vmatprep.mubr.bf16.mxu0 %v553
      %841 = vmatmul.mubr.bf16.gmra.mrb[0].mxu0 %v552
      %v842 = vpop.f32.mrb[0].mxu0
      %v843 = vadd.f32 0.0, %v842
      %v844 = vpop.f32.mrb[0].mxu0
      %v845 = vpop.f32.mrb[0].mxu0
      %v846 = vadd.f32 0.0, %v845
      %v847 = vpop.f32.mrb[0].mxu0
      %848 = vmatprep.mubr.bf16.mxu0 %v557
      %849 = vmatmul.mubr.bf16.gmra.mrb[0].mxu0 %v556
      %v850 = vpop.f32.mrb[0].mxu0
      %v851 = vadd.f32 0.0, %v850
      %v852 = vpop.f32.mrb[0].mxu0
      %v853 = vpop.f32.mrb[0].mxu0
      %v854 = vadd.f32 0.0, %v853
      %v855 = vpop.f32.mrb[0].mxu0
      %856 = vmatprep.mubr.bf16.mxu0 %v561
      %857 = vmatmul.mubr.bf16.gmra.mrb[0].mxu0 %v560
      %v858 = vpop.f32.mrb[0].mxu0
      %v859 = vadd.f32 0.0, %v858
      %v860 = vpop.f32.mrb[0].mxu0
      %v861 = vpop.f32.mrb[0].mxu0
      %v862 = vadd.f32 0.0, %v861
      %v863 = vpop.f32.mrb[0].mxu0
      %864 = vmatprep.mubr.bf16.mxu0 %v565
      %865 = vmatmul.mubr.bf16.gmra.mrb[0].mxu0 %v564
      %v866 = vpop.f32.mrb[0].mxu0
      %v867 = vadd.f32 0.0, %v866
      %v868 = vpop.f32.mrb[0].mxu0
      %v869 = vpop.f32.mrb[0].mxu0
      %v870 = vadd.f32 0.0, %v869
      %v871 = vpop.f32.mrb[0].mxu0
      %872 = vmatprep.mubr.bf16.mxu0 %v569
      %873 = vmatmul.mubr.bf16.gmra.mrb[0].mxu0 %v568
      %v874 = vpop.f32.mrb[0].mxu0
      %v875 = vadd.f32 0.0, %v874
      %v876 = vpop.f32.mrb[0].mxu0
      %v877 = vpop.f32.mrb[0].mxu0
      %v878 = vadd.f32 0.0, %v877
      %v879 = vpop.f32.mrb[0].mxu0
      %880 = vmatprep.mubr.bf16.mxu0 %v573
      %881 = vmatmul.mubr.bf16.gmra.mrb[0].mxu0 %v572
      %v882 = vpop.f32.mrb[0].mxu0
      %v883 = vadd.f32 0.0, %v882
      %v884 = vpop.f32.mrb[0].mxu0
      %v885 = vpop.f32.mrb[0].mxu0
      %v886 = vadd.f32 0.0, %v885
      %v887 = vpop.f32.mrb[0].mxu0
      %888 = vmatprep.mubr.bf16.mxu0 %v577
      %889 = vmatmul.mubr.bf16.gmra.mrb[0].mxu0 %v576
      %v890 = vpop.f32.mrb[0].mxu0
      %v891 = vadd.f32 0.0, %v890
      %v892 = vpop.f32.mrb[0].mxu0
      %v893 = vpop.f32.mrb[0].mxu0
      %v894 = vadd.f32 0.0, %v893
      %v895 = vpop.f32.mrb[0].mxu0
      %896 = vmatprep.mubr.bf16.mxu0 %v581
      %897 = vmatmul.mubr.bf16.gmra.mrb[0].mxu0 %v580
      %v898 = vpop.f32.mrb[0].mxu0
      %v899 = vadd.f32 0.0, %v898
      %v900 = vpop.f32.mrb[0].mxu0
      %v901 = vpop.f32.mrb[0].mxu0
      %v902 = vadd.f32 0.0, %v901
      %v903 = vpop.f32.mrb[0].mxu0
      %904 = vdwg.mxu0
      %905 = vmatprep.subr.bf16.mxu0 0
      %906 = vmatpush1.bf16.msra.mxu0 %v760
      %907 = vmatprep.subr.bf16.mxu0 0
      %908 = vmatpush1.bf16.msra.mxu0 %v761
      %909 = vmatprep.subr.bf16.mxu0 0
      %910 = vmatpush1.bf16.msra.mxu0 %v762
      %911 = vmatprep.subr.bf16.mxu0 0
      %912 = vmatpush1.bf16.msra.mxu0 %v763
      %913 = vmatprep.subr.bf16.mxu0 0
      %914 = vmatpush1.bf16.msra.mxu0 %v764
      %915 = vmatprep.subr.bf16.mxu0 0
      %916 = vmatpush1.bf16.msra.mxu0 %v765
      %917 = vmatprep.subr.bf16.mxu0 0
      %918 = vmatpush1.bf16.msra.mxu0 %v766
      %919 = vmatprep.subr.bf16.mxu0 0
      %920 = vmatpush1.bf16.msra.mxu0 %v767
      %921 = vmatprep.subr.bf16.mxu0 0
      %922 = vmatpush1.bf16.msra.mxu0 %v768
      %923 = vmatprep.subr.bf16.mxu0 0
      %924 = vmatpush1.bf16.msra.mxu0 %v769
      %925 = vmatprep.subr.bf16.mxu0 0
      %926 = vmatpush1.bf16.msra.mxu0 %v770
      %927 = vmatprep.subr.bf16.mxu0 0
      %928 = vmatpush1.bf16.msra.mxu0 %v771
      %929 = vmatprep.subr.bf16.mxu0 0
      %930 = vmatpush1.bf16.msra.mxu0 %v772
      %931 = vmatprep.subr.bf16.mxu0 0
      %932 = vmatpush1.bf16.msra.mxu0 %v773
      %933 = vmatprep.subr.bf16.mxu0 0
      %934 = vmatpush1.bf16.msra.mxu0 %v774
      %935 = vmatprep.subr.bf16.mxu0 0
      %936 = vmatpush1.bf16.msra.mxu0 %v775
      %937 = vmatprep.mubr.bf16.mxu0 %v555
      %938 = vmatmul.mubr.bf16.gmra.mrb[0].mxu0 %v554
      %v939 = vpop.f32.mrb[0].mxu0
      %v940 = vadd.f32 %v843, %v939
      %v941 = vpop.f32.mrb[0].mxu0
      %v942 = vpop.f32.mrb[0].mxu0
      %v943 = vadd.f32 %v846, %v942
      %v944 = vpop.f32.mrb[0].mxu0
      %945 = vmatprep.mubr.bf16.mxu0 %v559
      %946 = vmatmul.mubr.bf16.gmra.mrb[0].mxu0 %v558
      %v947 = vpop.f32.mrb[0].mxu0
      %v948 = vadd.f32 %v851, %v947
      %v949 = vpop.f32.mrb[0].mxu0
      %v950 = vpop.f32.mrb[0].mxu0
      %v951 = vadd.f32 %v854, %v950
      %v952 = vpop.f32.mrb[0].mxu0
      %953 = vmatprep.mubr.bf16.mxu0 %v563
      %954 = vmatmul.mubr.bf16.gmra.mrb[0].mxu0 %v562
      %v955 = vpop.f32.mrb[0].mxu0
      %v956 = vadd.f32 %v859, %v955
      %v957 = vpop.f32.mrb[0].mxu0
      %v958 = vpop.f32.mrb[0].mxu0
      %v959 = vadd.f32 %v862, %v958
      %v960 = vpop.f32.mrb[0].mxu0
      %961 = vmatprep.mubr.bf16.mxu0 %v567
      %962 = vmatmul.mubr.bf16.gmra.mrb[0].mxu0 %v566
      %v963 = vpop.f32.mrb[0].mxu0
      %v964 = vadd.f32 %v867, %v963
      %v965 = vpop.f32.mrb[0].mxu0
      %v966 = vpop.f32.mrb[0].mxu0
      %v967 = vadd.f32 %v870, %v966
      %v968 = vpop.f32.mrb[0].mxu0
      %969 = vmatprep.mubr.bf16.mxu0 %v571
      %970 = vmatmul.mubr.bf16.gmra.mrb[0].mxu0 %v570
      %v971 = vpop.f32.mrb[0].mxu0
      %v972 = vadd.f32 %v875, %v971
      %v973 = vpop.f32.mrb[0].mxu0
      %v974 = vpop.f32.mrb[0].mxu0
      %v975 = vadd.f32 %v878, %v974
      %v976 = vpop.f32.mrb[0].mxu0
      %977 = vmatprep.mubr.bf16.mxu0 %v575
      %978 = vmatmul.mubr.bf16.gmra.mrb[0].mxu0 %v574
      %v979 = vpop.f32.mrb[0].mxu0
      %v980 = vadd.f32 %v883, %v979
      %v981 = vpop.f32.mrb[0].mxu0
      %v982 = vpop.f32.mrb[0].mxu0
      %v983 = vadd.f32 %v886, %v982
      %v984 = vpop.f32.mrb[0].mxu0
      %985 = vmatprep.mubr.bf16.mxu0 %v579
      %986 = vmatmul.mubr.bf16.gmra.mrb[0].mxu0 %v578
      %v987 = vpop.f32.mrb[0].mxu0
      %v988 = vadd.f32 %v891, %v987
      %v989 = vpop.f32.mrb[0].mxu0
      %v990 = vpop.f32.mrb[0].mxu0
      %v991 = vadd.f32 %v894, %v990
      %v992 = vpop.f32.mrb[0].mxu0
      %993 = vmatprep.mubr.bf16.mxu0 %v583
      %994 = vmatmul.mubr.bf16.gmra.mrb[0].mxu0 %v582
      %v995 = vpop.f32.mrb[0].mxu0
      %v996 = vadd.f32 %v899, %v995
      %v997 = vpop.f32.mrb[0].mxu0
      %v998 = vpop.f32.mrb[0].mxu0
      %v999 = vadd.f32 %v902, %v998
      %v1000 = vpop.f32.mrb[0].mxu0
      %1001 = vdwg.mxu0
      %v1002 = vadd.f32 %v344, %v940
      %v1003 = vadd.f32 %v345, %v943
      %v1004 = vadd.f32 %v346, %v948
      %v1005 = vadd.f32 %v347, %v951
      %v1006 = vadd.f32 %v348, %v956
      %v1007 = vadd.f32 %v349, %v959
      %v1008 = vadd.f32 %v350, %v964
      %v1009 = vadd.f32 %v351, %v967
      %v1010 = vadd.f32 %v352, %v972
      %v1011 = vadd.f32 %v353, %v975
      %v1012 = vadd.f32 %v354, %v980
      %v1013 = vadd.f32 %v355, %v983
      %v1014 = vadd.f32 %v356, %v988
      %v1015 = vadd.f32 %v357, %v991
      %v1016 = vadd.f32 %v358, %v996
      %v1017 = vadd.f32 %v359, %v999
      %1018 = vst [vmem:[#allocation2] sm:$0xff] %v1002
      %1019 = vst [vmem:[#allocation2 + $0x8] sm:$0xff] %v1003
      %1020 = vst [vmem:[#allocation2 + $0x10] sm:$0xff] %v1004
      %1021 = vst [vmem:[#allocation2 + $0x18] sm:$0xff] %v1005
      %1022 = vst [vmem:[#allocation2 + $0x20] sm:$0xff] %v1006
      %1023 = vst [vmem:[#allocation2 + $0x28] sm:$0xff] %v1007
      %1024 = vst [vmem:[#allocation2 + $0x30] sm:$0xff] %v1008
      %1025 = vst [vmem:[#allocation2 + $0x38] sm:$0xff] %v1009
      %1026 = vst [vmem:[#allocation2 + $0x40] sm:$0xff] %v1010
      %1027 = vst [vmem:[#allocation2 + $0x48] sm:$0xff] %v1011
      %1028 = vst [vmem:[#allocation2 + $0x50] sm:$0xff] %v1012
      %1029 = vst [vmem:[#allocation2 + $0x58] sm:$0xff] %v1013
      %1030 = vst [vmem:[#allocation2 + $0x60] sm:$0xff] %v1014
      %1031 = vst [vmem:[#allocation2 + $0x68] sm:$0xff] %v1015
      %1032 = vst [vmem:[#allocation2 + $0x70] sm:$0xff] %v1016
      %1033 = vst [vmem:[#allocation2 + $0x78] sm:$0xff] %v1017
      // Predicated region
      $region37: #{gan_forward.8} parent=31 // pred_check
        %p1034 = pneg %p324
      $region38: #{gan_forward.8} parent=31 // pred_check_branch
        %1036 = sbr.rel (%p1034) target = $region40
      $region39: #{gan_forward.8} parent=31 // pred_region
        %v1037 = vld [vmem:[#allocation2] sm:$0xff]
        %v1038 = vld [vmem:[#allocation2 + $0x8] sm:$0xff]
        %v1039 = vld [vmem:[#allocation2 + $0x10] sm:$0xff]
        %v1040 = vld [vmem:[#allocation2 + $0x18] sm:$0xff]
        %v1041 = vld [vmem:[#allocation2 + $0x20] sm:$0xff]
        %v1042 = vld [vmem:[#allocation2 + $0x28] sm:$0xff]
        %v1043 = vld [vmem:[#allocation2 + $0x30] sm:$0xff]
        %v1044 = vld [vmem:[#allocation2 + $0x38] sm:$0xff]
        %v1045 = vld [vmem:[#allocation2 + $0x40] sm:$0xff]
        %v1046 = vld [vmem:[#allocation2 + $0x48] sm:$0xff]
        %v1047 = vld [vmem:[#allocation2 + $0x50] sm:$0xff]
        %v1048 = vld [vmem:[#allocation2 + $0x58] sm:$0xff]
        %v1049 = vld [vmem:[#allocation2 + $0x60] sm:$0xff]
        %v1050 = vld [vmem:[#allocation2 + $0x68] sm:$0xff]
        %v1051 = vld [vmem:[#allocation2 + $0x70] sm:$0xff]
        %v1052 = vld [vmem:[#allocation2 + $0x78] sm:$0xff]
        %v1053 = vld [vmem:[%s309] sm:$0x1]
        %v1055 = vlaneseq
        %v1056 = vshrl.u32 %v1055, 7
        %v1057 = vsub.s32 0, %v1056
        %v1058 = vrot.slane %v1053, %v1057
        %v1060 = vadd.f32 %v1037, %v1058
        %v1061 = vadd.f32 %v1038, %v1058
        %v1062 = vadd.f32 %v1039, %v1058
        %v1063 = vadd.f32 %v1040, %v1058
        %v1064 = vadd.f32 %v1041, %v1058
        %v1065 = vadd.f32 %v1042, %v1058
        %v1066 = vadd.f32 %v1043, %v1058
        %v1067 = vadd.f32 %v1044, %v1058
        %v1068 = vadd.f32 %v1045, %v1058
        %v1069 = vadd.f32 %v1046, %v1058
        %v1070 = vadd.f32 %v1047, %v1058
        %v1071 = vadd.f32 %v1048, %v1058
        %v1072 = vadd.f32 %v1049, %v1058
        %v1073 = vadd.f32 %v1050, %v1058
        %v1074 = vadd.f32 %v1051, %v1058
        %v1075 = vadd.f32 %v1052, %v1058
        %v1076 = vtanh.pop %v1060
        %v1077 = vtanh.pop %v1061
        %v1078 = vtanh.pop %v1062
        %v1079 = vtanh.pop %v1063
        %v1080 = vtanh.pop %v1064
        %v1081 = vtanh.pop %v1065
        %v1082 = vtanh.pop %v1066
        %v1083 = vtanh.pop %v1067
        %v1084 = vtanh.pop %v1068
        %v1085 = vtanh.pop %v1069
        %v1086 = vtanh.pop %v1070
        %v1087 = vtanh.pop %v1071
        %v1088 = vtanh.pop %v1072
        %v1089 = vtanh.pop %v1073
        %v1090 = vtanh.pop %v1074
        %v1091 = vtanh.pop %v1075
        %v1092 = vpack.c.bf16 %v1077, %v1076
        %v1093 = vpack.c.bf16 %v1079, %v1078
        %v1094 = vpack.c.bf16 %v1081, %v1080
        %v1095 = vpack.c.bf16 %v1083, %v1082
        %v1096 = vpack.c.bf16 %v1085, %v1084
        %v1097 = vpack.c.bf16 %v1087, %v1086
        %v1098 = vpack.c.bf16 %v1089, %v1088
        %v1099 = vpack.c.bf16 %v1091, %v1090
        %v1108 = vunpack.c.l.b16 %v1092
        %v1109 = vunpack.c.h.b16 %v1092
        %v1110 = vunpack.c.l.b16 %v1093
        %v1111 = vunpack.c.h.b16 %v1093
        %v1112 = vunpack.c.l.b16 %v1094
        %v1113 = vunpack.c.h.b16 %v1094
        %v1114 = vunpack.c.l.b16 %v1095
        %v1115 = vunpack.c.h.b16 %v1095
        %v1116 = vunpack.c.l.b16 %v1096
        %v1117 = vunpack.c.h.b16 %v1096
        %v1118 = vunpack.c.l.b16 %v1097
        %v1119 = vunpack.c.h.b16 %v1097
        %v1120 = vunpack.c.l.b16 %v1098
        %v1121 = vunpack.c.h.b16 %v1098
        %v1122 = vunpack.c.l.b16 %v1099
        %v1123 = vunpack.c.h.b16 %v1099
        %v1124 = vpack.c.b16 %v1108, %v1108
        %v1125 = vpack.c.b16 %v1109, %v1109
        %v1126 = vpack.c.b16 %v1110, %v1110
        %v1127 = vpack.c.b16 %v1111, %v1111
        %v1128 = vpack.c.b16 %v1112, %v1112
        %v1129 = vpack.c.b16 %v1113, %v1113
        %v1130 = vpack.c.b16 %v1114, %v1114
        %v1131 = vpack.c.b16 %v1115, %v1115
        %v1132 = vpack.c.b16 %v1116, %v1116
        %v1133 = vpack.c.b16 %v1117, %v1117
        %v1134 = vpack.c.b16 %v1118, %v1118
        %v1135 = vpack.c.b16 %v1119, %v1119
        %v1136 = vpack.c.b16 %v1120, %v1120
        %v1137 = vpack.c.b16 %v1121, %v1121
        %v1138 = vpack.c.b16 %v1122, %v1122
        %v1139 = vpack.c.b16 %v1123, %v1123
        %1156 = vst [vmem:[%s321] sm:$0xf] %v1124
        %1157 = vst [vmem:[%s321 + $0x4] sm:$0xf] %v1125
        %1158 = vst [vmem:[%s321 + $0x8] sm:$0xf] %v1126
        %1159 = vst [vmem:[%s321 + $0xc] sm:$0xf] %v1127
        %1160 = vst [vmem:[%s321 + $0x10] sm:$0xf] %v1128
        %1161 = vst [vmem:[%s321 + $0x14] sm:$0xf] %v1129
        %1162 = vst [vmem:[%s321 + $0x18] sm:$0xf] %v1130
        %1163 = vst [vmem:[%s321 + $0x1c] sm:$0xf] %v1131
        %1164 = vst [vmem:[%s321 + $0x20] sm:$0xf] %v1132
        %1165 = vst [vmem:[%s321 + $0x24] sm:$0xf] %v1133
        %1166 = vst [vmem:[%s321 + $0x28] sm:$0xf] %v1134
        %1167 = vst [vmem:[%s321 + $0x2c] sm:$0xf] %v1135
        %1168 = vst [vmem:[%s321 + $0x30] sm:$0xf] %v1136
        %1169 = vst [vmem:[%s321 + $0x34] sm:$0xf] %v1137
        %1170 = vst [vmem:[%s321 + $0x38] sm:$0xf] %v1138
        %1171 = vst [vmem:[%s321 + $0x3c] sm:$0xf] %v1139
      $region40: #{gan_forward.8} parent=31 // pred_fallthru
        _
      %s1172 = smul.u32 16, %s21
      %p1173 = scmp.lt.s32.totalorder %s20, 3
      %s1174 = scalar_select %p1173, %s20, 3
      %p1175 = scmp.lt.s32.totalorder %s1172, 15
      %s1176 = scalar_select %p1175, %s1172, 15
      %p1177 = scmp.lt.s32.totalorder %s22, 0
      %s1178 = scalar_select %p1177, %s22, 0
      %s1179 = sadd.s32 %s1178, %s1176
      %s1180 = smul.addr %s1174, 16
      %s1181 = sadd.s32 %s1179, %s1180
      %s1182 = smul.addr %s1181, 4
      %s1183 = scalar_lea.vmem %s3, %s1182
      // Predicated region
      $region41: #{gan_forward.8} parent=31 // pred_check
        %p1184 = pneg %p150
      $region42: #{gan_forward.8} parent=31 // pred_check_branch
        %1186 = sbr.rel (%p1184) target = $region44
      $region43: #{gan_forward.8} parent=31 // pred_region
        %s1187 = smul.u32 16, %s21
      $region44: #{gan_forward.8} parent=31 // pred_fallthru
        _
    $region32: #{gan_forward.8} parent=5 // pred_fallthru
      _
    %p1188 = scmp.le.s32.totalorder 2, %s9
    // Predicated region
    $region45: #{gan_forward.8} parent=5 // pred_check
      %p1189 = pneg %p1188
    $region46: #{gan_forward.8} parent=5 // pred_check_branch
      %1191 = sbr.rel (%p1189) target = $region48
    $region47: #{gan_forward.8} parent=5 // pred_region
      %s1192 = ssub.s32 %s9, 2
      // Predicated region
      $region49: #{gan_forward.8} parent=47 // pred_check
        %p1193 = pneg %p156
      $region50: #{gan_forward.8} parent=47 // pred_check_branch
        %1195 = sbr.rel (%p1193) target = $region52
      $region51: #{gan_forward.8} parent=47 // pred_region
        %s1196 = smul.u32 16, %s25
        %p1197 = scmp.lt.s32.totalorder %s24, 3
        %s1198 = scalar_select %p1197, %s24, 3
        %p1199 = scmp.lt.s32.totalorder %s1196, 15
        %s1200 = scalar_select %p1199, %s1196, 15
        %p1201 = scmp.lt.s32.totalorder %s26, 0
        %s1202 = scalar_select %p1201, %s26, 0
        %s1203 = sadd.s32 %s1202, %s1200
        %s1204 = smul.addr %s1198, 16
        %s1205 = sadd.s32 %s1203, %s1204
        %s1206 = smul.addr %s1205, 4
        %s1207 = scalar_lea.vmem %s3, %s1206
      $region52: #{gan_forward.8} parent=47 // pred_fallthru
        _
    $region48: #{gan_forward.8} parent=5 // pred_fallthru
      _
  $region6: #{gan_forward.8} parent=0 // loop_footer
    %s13 = sadd.s32 1, %s9
  $region7: #{gan_forward.8} parent=0 // loop_footer_branch
    %8 = sbr.rel target = $region3
  $region8: #{gan_forward.8} parent=0 // loop_exit
    _

// kernel: squeeze.6
$region0: #{squeeze.6}
  %s0 = inlined_call_operand.vmem [shape: bf16[1,32,128], index: 0, kind: input, shape index: {}]
  %s1 = inlined_call_operand.vmem [shape: bf16[1,2,2048], index: 1, kind: output, shape index: {}]
  $region1: #{squeeze.6} parent=0
    #allocation0 [shape = 'u8[65536]{0}', space=vmem, size = 0x10000, scoped, tag = 'scoped mem for output reshape']
    #allocation1 [shape = 'u8[16384]{0}', space=vmem, size = 0x4000, scoped, tag = 'scoped mem for input reshape']
    %s3 = smul.u32 4, 2
    %s4 = sshllo.u32 0, %s3
    %s5 = smul.addr 4, 3
    %s6 = scalar_lea.vmem %s0, %s5
    %s7 = sshrl.u32 %s4, 1
    %s8 = sor.u32 %s4, %s7
    %s9 = sand.u32 %s8, 85
    %s10 = sshrl.u32 %s9, 1
    %s11 = sor.u32 %s9, %s10
    %s12 = sand.u32 51, %s11
    %s13 = sshrl.u32 %s12, 2
    %s14 = sor.u32 %s12, %s13
    %s15 = sand.u32 15, %s14
    %v16 = vld [vmem:[%s6] sm:%s15]
    %v17 = vunpack.c.l.bf16 %v16
    %v18 = vunpack.c.h.bf16 %v16
    %s19 = scalar_lea.vmem [#allocation1], 24
    %20 = vst [vmem:[%s19] sm:%s4] %v17
    %s21 = smul.addr 4, 2
    %s22 = scalar_lea.vmem %s0, %s21
    %s23 = sshrl.u32 %s4, 1
    %s24 = sor.u32 %s4, %s23
    %s25 = sand.u32 %s24, 85
    %s26 = sshrl.u32 %s25, 1
    %s27 = sor.u32 %s25, %s26
    %s28 = sand.u32 51, %s27
    %s29 = sshrl.u32 %s28, 2
    %s30 = sor.u32 %s28, %s29
    %s31 = sand.u32 15, %s30
    %v32 = vld [vmem:[%s22] sm:%s31]
    %v33 = vunpack.c.l.bf16 %v32
    %v34 = vunpack.c.h.bf16 %v32
    %s35 = scalar_lea.vmem [#allocation1], 16
    %36 = vst [vmem:[%s35] sm:%s4] %v33
    %s37 = scalar_lea.vmem %s0, 4
    %s38 = sshrl.u32 %s4, 1
    %s39 = sor.u32 %s4, %s38
    %s40 = sand.u32 %s39, 85
    %s41 = sshrl.u32 %s40, 1
    %s42 = sor.u32 %s40, %s41
    %s43 = sand.u32 51, %s42
    %s44 = sshrl.u32 %s43, 2
    %s45 = sor.u32 %s43, %s44
    %s46 = sand.u32 15, %s45
    %v47 = vld [vmem:[%s37] sm:%s46]
    %v48 = vunpack.c.l.bf16 %v47
    %v49 = vunpack.c.h.bf16 %v47
    %s50 = scalar_lea.vmem [#allocation1], 8
    %51 = vst [vmem:[%s50] sm:%s4] %v48
    %s52 = sshrl.u32 %s4, 1
    %s53 = sor.u32 %s4, %s52
    %s54 = sand.u32 %s53, 85
    %s55 = sshrl.u32 %s54, 1
    %s56 = sor.u32 %s54, %s55
    %s57 = sand.u32 51, %s56
    %s58 = sshrl.u32 %s57, 2
    %s59 = sor.u32 %s57, %s58
    %s60 = sand.u32 15, %s59
    %v61 = vld [vmem:[%s0] sm:%s60]
    %v62 = vunpack.c.l.bf16 %v61
    %v63 = vunpack.c.h.bf16 %v61
    %64 = vst [vmem:[#allocation1] sm:%s4] %v62
    %v65 = vld [vmem:[#allocation1] sm:$0xff]
    %66 = vst [vmem:[#allocation0] ss:$8 sm:$0xf] %v65
    %67 = vst [vmem:[#allocation0] ss:$8 sm:$0xf0] %v65
    %s68 = scalar_lea.vmem [#allocation1], 8
    %v69 = vld [vmem:[%s68] sm:$0xff]
    %s70 = scalar_lea.vmem [#allocation0], 64
    %71 = vst [vmem:[%s70] ss:$8 sm:$0xf] %v69
    %s72 = scalar_lea.vmem [#allocation0], 64
    %73 = vst [vmem:[%s72] ss:$8 sm:$0xf0] %v69
    %s74 = scalar_lea.vmem [#allocation1], 16
    %v75 = vld [vmem:[%s74] sm:$0xff]
    %s76 = scalar_lea.vmem [#allocation0], 1
    %77 = vst [vmem:[%s76] ss:$8 sm:$0xf] %v75
    %s78 = scalar_lea.vmem [#allocation0], 1
    %79 = vst [vmem:[%s78] ss:$8 sm:$0xf0] %v75
    %s80 = scalar_lea.vmem [#allocation1], 24
    %v81 = vld [vmem:[%s80] sm:$0xff]
    %s82 = scalar_lea.vmem [#allocation0], 65
    %83 = vst [vmem:[%s82] ss:$8 sm:$0xf] %v81
    %s84 = scalar_lea.vmem [#allocation0], 65
    %85 = vst [vmem:[%s84] ss:$8 sm:$0xf0] %v81
    %s87 = smul.u32 1, 2
    %s88 = sshllo.u32 0, %s87
    %s89 = sshrl.u32 %s87, 1
    %v90 = vld [vmem:[#allocation0] sm:%s88]
    %v91 = vpack.c.bf16 0.0, %v90
    %s92 = sshllo.u32 0, %s89
    %93 = vst [vmem:[%s1] sm:%s92] %v91
    %s94 = scalar_lea.vmem [#allocation0], 8
    %v95 = vld [vmem:[%s94] sm:%s88]
    %v96 = vpack.c.bf16 0.0, %v95
    %s97 = sshllo.u32 0, %s89
    %s98 = scalar_lea.vmem %s1, 1
    %99 = vst [vmem:[%s98] sm:%s97] %v96
    %s100 = scalar_lea.vmem [#allocation0], 16
    %v101 = vld [vmem:[%s100] sm:%s88]
    %v102 = vpack.c.bf16 0.0, %v101
    %s103 = sshllo.u32 0, %s89
    %s104 = smul.addr 1, 2
    %s105 = scalar_lea.vmem %s1, %s104
    %106 = vst [vmem:[%s105] sm:%s103] %v102
    %s107 = scalar_lea.vmem [#allocation0], 24
    %v108 = vld [vmem:[%s107] sm:%s88]
    %v109 = vpack.c.bf16 0.0, %v108
    %s110 = sshllo.u32 0, %s89
    %s111 = smul.addr 1, 3
    %s112 = scalar_lea.vmem %s1, %s111
    %113 = vst [vmem:[%s112] sm:%s110] %v109
    %s114 = scalar_lea.vmem [#allocation0], 32
    %v115 = vld [vmem:[%s114] sm:%s88]
    %v116 = vpack.c.bf16 0.0, %v115
    %s117 = sshllo.u32 0, %s89
    %s118 = smul.addr 1, 4
    %s119 = scalar_lea.vmem %s1, %s118
    %120 = vst [vmem:[%s119] sm:%s117] %v116
    %s121 = scalar_lea.vmem [#allocation0], 40
    %v122 = vld [vmem:[%s121] sm:%s88]
    %v123 = vpack.c.bf16 0.0, %v122
    %s124 = sshllo.u32 0, %s89
    %s125 = smul.addr 1, 5
    %s126 = scalar_lea.vmem %s1, %s125
    %127 = vst [vmem:[%s126] sm:%s124] %v123
    %s128 = scalar_lea.vmem [#allocation0], 48
    %v129 = vld [vmem:[%s128] sm:%s88]
    %v130 = vpack.c.bf16 0.0, %v129
    %s131 = sshllo.u32 0, %s89
    %s132 = smul.addr 1, 6
    %s133 = scalar_lea.vmem %s1, %s132
    %134 = vst [vmem:[%s133] sm:%s131] %v130
    %s135 = scalar_lea.vmem [#allocation0], 56
    %v136 = vld [vmem:[%s135] sm:%s88]
    %v137 = vpack.c.bf16 0.0, %v136
    %s138 = sshllo.u32 0, %s89
    %s139 = smul.addr 1, 7
    %s140 = scalar_lea.vmem %s1, %s139
    %141 = vst [vmem:[%s140] sm:%s138] %v137
    %s142 = scalar_lea.vmem [#allocation0], 64
    %v143 = vld [vmem:[%s142] sm:%s88]
    %v144 = vpack.c.bf16 0.0, %v143
    %s145 = sshllo.u32 0, %s89
    %s146 = smul.addr 1, 8
    %s147 = scalar_lea.vmem %s1, %s146
    %148 = vst [vmem:[%s147] sm:%s145] %v144
    %s149 = scalar_lea.vmem [#allocation0], 72
    %v150 = vld [vmem:[%s149] sm:%s88]
    %v151 = vpack.c.bf16 0.0, %v150
    %s152 = sshllo.u32 0, %s89
    %s153 = smul.addr 1, 9
    %s154 = scalar_lea.vmem %s1, %s153
    %155 = vst [vmem:[%s154] sm:%s152] %v151
    %s156 = scalar_lea.vmem [#allocation0], 80
    %v157 = vld [vmem:[%s156] sm:%s88]
    %v158 = vpack.c.bf16 0.0, %v157
    %s159 = sshllo.u32 0, %s89
    %s160 = smul.addr 1, 10
    %s161 = scalar_lea.vmem %s1, %s160
    %162 = vst [vmem:[%s161] sm:%s159] %v158
    %s163 = scalar_lea.vmem [#allocation0], 88
    %v164 = vld [vmem:[%s163] sm:%s88]
    %v165 = vpack.c.bf16 0.0, %v164
    %s166 = sshllo.u32 0, %s89
    %s167 = smul.addr 1, 11
    %s168 = scalar_lea.vmem %s1, %s167
    %169 = vst [vmem:[%s168] sm:%s166] %v165
    %s170 = scalar_lea.vmem [#allocation0], 96
    %v171 = vld [vmem:[%s170] sm:%s88]
    %v172 = vpack.c.bf16 0.0, %v171
    %s173 = sshllo.u32 0, %s89
    %s174 = smul.addr 1, 12
    %s175 = scalar_lea.vmem %s1, %s174
    %176 = vst [vmem:[%s175] sm:%s173] %v172
    %s177 = scalar_lea.vmem [#allocation0], 104
    %v178 = vld [vmem:[%s177] sm:%s88]
    %v179 = vpack.c.bf16 0.0, %v178
    %s180 = sshllo.u32 0, %s89
    %s181 = smul.addr 1, 13
    %s182 = scalar_lea.vmem %s1, %s181
    %183 = vst [vmem:[%s182] sm:%s180] %v179
    %s184 = scalar_lea.vmem [#allocation0], 112
    %v185 = vld [vmem:[%s184] sm:%s88]
    %v186 = vpack.c.bf16 0.0, %v185
    %s187 = sshllo.u32 0, %s89
    %s188 = smul.addr 1, 14
    %s189 = scalar_lea.vmem %s1, %s188
    %190 = vst [vmem:[%s189] sm:%s187] %v186
    %s191 = scalar_lea.vmem [#allocation0], 120
    %v192 = vld [vmem:[%s191] sm:%s88]
    %v193 = vpack.c.bf16 0.0, %v192
    %s194 = sshllo.u32 0, %s89
    %s195 = smul.addr 1, 15
    %s196 = scalar_lea.vmem %s1, %s195
    %197 = vst [vmem:[%s196] sm:%s194] %v193

// kernel: gan_forward.9
$region0: #{gan_forward.9}
  #allocation0 [shape = 'u32[]', space=smem, size = 0x4, offset = 0x4, fixed_abs, tag = 'smem constant byte address 0x4 - core index']
  #allocation1 [shape = 'u32[144,128]{1,0:T(1,128)}', space=vmem, size = 0x12000, scoped, tag = 'internal scratch']
  #allocation2 [shape = 'f32[128,128]{1,0:T(8,128)}', space=vmem, size = 0x10000, scoped, tag = 'scratch operand']
  %s0 = inlined_call_operand.vmem [shape: bf16[1,128,2048], index: 0, kind: input, shape index: {}]
  %s1 = inlined_call_operand.vmem [shape: bf16[1,2048,128], index: 1, kind: input, shape index: {}]
  %s2 = inlined_call_operand.vmem [shape: f32[1,1,128], index: 2, kind: input, shape index: {}]
  %s3 = inlined_call_operand.vmem [shape: bf16[1,128,128], index: 3, kind: output, shape index: {}]
  %s4 = sld [smem:[#allocation0]]
  $region76: #{gan_forward.9} parent=0
    _
  %s6 = ssub.s32 1, %s4
  %s7 = scalar_select 0, %s6, %s4
  $region1: #{gan_forward.9} parent=0
    #allocation3 [shape = 'u8[524288]{0}', space=vmem, size = 0x80000, scoped, tag = 'input window, operand 0']
    loop: start=0, step=1, limit=4
    $region2: #{gan_forward.9} parent=1 // loop_pre_header
      _
    $region3: #{gan_forward.9} parent=1 // loop_header
      %s9 = sphi 0, %s13
      %p10 = scmp.ge.s32.totalorder %s9, 4
      %s16 = sphi 0, %s42
      %s17 = sphi 0, %s38
      %s18 = sphi 0, %s34
      %s19 = sphi 0, %s30
      %s20 = sphi 0, %s16
      %s21 = sphi 0, %s17
      %s22 = sphi 0, %s18
      %s23 = sphi 0, %s19
      %s24 = sphi 0, %s20
      %s25 = sphi 0, %s21
      %s26 = sphi 0, %s22
      %s27 = sphi 0, %s23
      %s49 = sphi 0, %s51
      %s52 = sphi 0, %s49
      %s53 = sphi 0, %s52
      %s69 = sphi 0, %s53
      %s79 = sphi 0, %s81
      %s82 = sphi 0, %s79
      %s83 = sphi 0, %s82
      %s99 = sphi 0, %s83
      %s107 = sphi 0, %s109
      %s110 = sphi 0, %s107
      %s111 = sphi 0, %s110
      %s127 = sphi 0, %s111
      %s137 = sphi 0, %s139
      %s140 = sphi 0, %s137
      %s141 = sphi 0, %s140
      %s157 = sphi 0, %s141
    $region4: #{gan_forward.9} parent=1 // loop_header_branch
      %12 = sbr.rel (%p10) target = $region8
    $region5: #{gan_forward.9} parent=1 // loop_body
      %s14 = ssub.s32 %s9, 1
      %s15 = ssub.s32 %s9, 2
      %s28 = sadd.s32 1, %s19
      %p29 = scmp.ge.s32.totalorder %s28, 2
      %s30 = scalar_select %p29, 0, %s28
      %s31 = sadd.s32 1, %s18
      %s32 = scalar_select %p29, %s31, %s18
      %p33 = scmp.ge.s32.totalorder %s32, 1
      %s34 = scalar_select %p33, 0, %s32
      %s35 = sadd.s32 1, %s17
      %s36 = scalar_select %p33, %s35, %s17
      %p37 = scmp.ge.s32.totalorder %s36, 1
      %s38 = scalar_select %p37, 0, %s36
      %s39 = sadd.s32 1, %s16
      %s40 = scalar_select %p37, %s39, %s16
      %p41 = scmp.ge.s32.totalorder %s40, 1
      %s42 = scalar_select %p41, 0, %s40
      %s43 = ssub.s32 %s16, %s42
      %s44 = ssub.s32 %s17, %s38
      %s45 = sor.u32 %s43, %s44
      %s46 = ssub.s32 %s19, %s30
      %s47 = sor.u32 %s45, %s46
      %p48 = scmp.eq.s32.totalorder %s47, 0
      %s50 = sadd.s32 %s49, 1
      %s51 = scalar_select %p48, %s49, %s50
      %p54 = pneg %p48
      %p55 = scmp.eq.s32.totalorder %s9, 1
      %p56 = por %p54, %p55
      %p57 = scmp.ne.s32.totalorder %s49, %s52
      %p58 = scmp.eq.s32.totalorder %s9, 0
      %p59 = por %p57, %p58
      %p60 = scmp.ne.s32.totalorder %s49, %s52
      %p61 = scmp.eq.s32.totalorder %s14, 1
      %p62 = por %p60, %p61
      %p63 = scmp.ne.s32.totalorder %s52, %s53
      %p64 = scmp.eq.s32.totalorder %s14, 0
      %p65 = por %p63, %p64
      %p66 = scmp.ne.s32.totalorder %s52, %s53
      %p67 = scmp.eq.s32.totalorder %s15, 1
      %p68 = por %p66, %p67
      %p70 = scmp.ne.s32.totalorder %s53, %s69
      %p71 = scmp.eq.s32.totalorder %s15, 0
      %p72 = por %p70, %p71
      %s73 = ssub.s32 %s16, %s42
      %s74 = ssub.s32 %s19, %s30
      %s75 = sor.u32 %s73, %s74
      %s76 = ssub.s32 %s18, %s34
      %s77 = sor.u32 %s75, %s76
      %p78 = scmp.eq.s32.totalorder %s77, 0
      %s80 = sadd.s32 %s79, 1
      %s81 = scalar_select %p78, %s79, %s80
      %p84 = pneg %p78
      %p85 = scmp.eq.s32.totalorder %s9, 1
      %p86 = por %p84, %p85
      %p87 = scmp.ne.s32.totalorder %s79, %s82
      %p88 = scmp.eq.s32.totalorder %s9, 0
      %p89 = por %p87, %p88
      %p90 = scmp.ne.s32.totalorder %s79, %s82
      %p91 = scmp.eq.s32.totalorder %s14, 1
      %p92 = por %p90, %p91
      %p93 = scmp.ne.s32.totalorder %s82, %s83
      %p94 = scmp.eq.s32.totalorder %s14, 0
      %p95 = por %p93, %p94
      %p96 = scmp.ne.s32.totalorder %s82, %s83
      %p97 = scmp.eq.s32.totalorder %s15, 1
      %p98 = por %p96, %p97
      %p100 = scmp.ne.s32.totalorder %s83, %s99
      %p101 = scmp.eq.s32.totalorder %s15, 0
      %p102 = por %p100, %p101
      %s103 = ssub.s32 %s16, %s42
      %s104 = ssub.s32 %s18, %s34
      %s105 = sor.u32 %s103, %s104
      %p106 = scmp.eq.s32.totalorder %s105, 0
      %s108 = sadd.s32 %s107, 1
      %s109 = scalar_select %p106, %s107, %s108
      %p112 = pneg %p106
      %p113 = scmp.eq.s32.totalorder %s9, 1
      %p114 = por %p112, %p113
      %p115 = scmp.ne.s32.totalorder %s107, %s110
      %p116 = scmp.eq.s32.totalorder %s9, 0
      %p117 = por %p115, %p116
      %p118 = scmp.ne.s32.totalorder %s107, %s110
      %p119 = scmp.eq.s32.totalorder %s14, 1
      %p120 = por %p118, %p119
      %p121 = scmp.ne.s32.totalorder %s110, %s111
      %p122 = scmp.eq.s32.totalorder %s14, 0
      %p123 = por %p121, %p122
      %p124 = scmp.ne.s32.totalorder %s110, %s111
      %p125 = scmp.eq.s32.totalorder %s15, 1
      %p126 = por %p124, %p125
      %p128 = scmp.ne.s32.totalorder %s111, %s127
      %p129 = scmp.eq.s32.totalorder %s15, 0
      %p130 = por %p128, %p129
      %s131 = ssub.s32 %s16, %s42
      %s132 = ssub.s32 %s17, %s38
      %s133 = sor.u32 %s131, %s132
      %s134 = ssub.s32 %s18, %s34
      %s135 = sor.u32 %s133, %s134
      %p136 = scmp.eq.s32.totalorder %s135, 0
      %s138 = sadd.s32 %s137, 1
      %s139 = scalar_select %p136, %s137, %s138
      %p142 = pneg %p136
      %p143 = scmp.eq.s32.totalorder %s9, 1
      %p144 = por %p142, %p143
      %p145 = scmp.ne.s32.totalorder %s137, %s140
      %p146 = scmp.eq.s32.totalorder %s9, 0
      %p147 = por %p145, %p146
      %p148 = scmp.ne.s32.totalorder %s137, %s140
      %p149 = scmp.eq.s32.totalorder %s14, 1
      %p150 = por %p148, %p149
      %p151 = scmp.ne.s32.totalorder %s140, %s141
      %p152 = scmp.eq.s32.totalorder %s14, 0
      %p153 = por %p151, %p152
      %p154 = scmp.ne.s32.totalorder %s140, %s141
      %p155 = scmp.eq.s32.totalorder %s15, 1
      %p156 = por %p154, %p155
      %p158 = scmp.ne.s32.totalorder %s141, %s157
      %p159 = scmp.eq.s32.totalorder %s15, 0
      %p160 = por %p158, %p159
      %p161 = scmp.le.s32.totalorder 1, %s9
      %p162 = scmp.lt.s32.totalorder %s9, 3
      %p163 = pnand %p161, %p162
      %p164 = pneg %p163
      // Predicated region
      $region9: #{gan_forward.9} parent=5 // pred_check
        _
      $region10: #{gan_forward.9} parent=5 // pred_check_branch
        %166 = sbr.rel (%p163) target = $region12
      $region11: #{gan_forward.9} parent=5 // pred_region
        %s167 = ssub.s32 %s9, 1
        // Predicated region
        $region13: #{gan_forward.9} parent=11 // pred_check
          %p168 = pneg %p123
        $region14: #{gan_forward.9} parent=11 // pred_check_branch
          %170 = sbr.rel (%p168) target = $region16
        $region15: #{gan_forward.9} parent=11 // pred_region
          %p171 = scmp.lt.s32.totalorder %s20, 0
          %s172 = scalar_select %p171, %s20, 0
          %p173 = scmp.lt.s32.totalorder %s22, 0
          %s174 = scalar_select %p173, %s22, 0
          %s175 = sadd.s32 %s174, %s172
          %s176 = scalar_lea.vmem %s2, %s175
        $region16: #{gan_forward.9} parent=11 // pred_fallthru
          _
      $region12: #{gan_forward.9} parent=5 // pred_fallthru
        _
      %p177 = scmp.lt.s32.totalorder %s9, 2
      // Predicated region
      $region17: #{gan_forward.9} parent=5 // pred_check
        %p178 = pneg %p177
      $region18: #{gan_forward.9} parent=5 // pred_check_branch
        %180 = sbr.rel (%p178) target = $region20
      $region19: #{gan_forward.9} parent=5 // pred_region
        // Predicated region
        $region21: #{gan_forward.9} parent=19 // pred_check
          %p181 = pneg %p59
        $region22: #{gan_forward.9} parent=19 // pred_check_branch
          %183 = sbr.rel (%p181) target = $region24
        $region23: #{gan_forward.9} parent=19 // pred_region
          %s184 = sand.u32 %s49, 1
          %s185 = sand.u32 %s49, 1
          %s186 = smul.addr %s185, 512
          %s187 = scalar_lea.vmem [#allocation3], %s186
          %s188 = smul.u32 16, %s17
          %s189 = smul.u32 8, %s19
          %s190 = smul.addr %s188, 16
          %s191 = sadd.s32 %s189, %s190
          %s192 = smul.addr %s16, 256
          %s193 = sadd.s32 %s191, %s192
          %s194 = smul.addr %s193, 4
          %s195 = scalar_lea.vmem %s0, %s194
          // Predicated region
          $region25: #{gan_forward.9} parent=23 // pred_check
            _
          $region26: #{gan_forward.9} parent=23 // pred_check_branch
            %197 = sbr.rel (0) target = $region28
          $region27: #{gan_forward.9} parent=23 // pred_region
            // Predicated region
            $region29: #{gan_forward.9} parent=27 // pred_check
              _
            $region30: #{gan_forward.9} parent=27 // pred_check_branch
              %199 = sbr.rel (0) target = $region32
            $region31: #{gan_forward.9} parent=27 // pred_region
              loop: start=0, step=1, limit=1
              $region33: #{gan_forward.9} parent=31 // loop_pre_header
                _
              $region34: #{gan_forward.9} parent=31 // loop_header
                %s201 = sphi 0, %s205
                %p202 = scmp.ge.s32.totalorder %s201, 1
                %s206 = sphi %s195, %s195
                %s207 = sphi %s187, %s187
              $region35: #{gan_forward.9} parent=31 // loop_header_branch
                %204 = sbr.rel (%p202) target = $region39
              $region36: #{gan_forward.9} parent=31 // loop_body
                %v208 = vld [vmem:[%s206] sm:$0xff]
                %209 = vst [vmem:[%s207] sm:$0xff] %v208
                %v210 = vld [vmem:[%s206 + $0x8] sm:$0xff]
                %211 = vst [vmem:[%s207 + $0x8] sm:$0xff] %v210
                %v212 = vld [vmem:[%s206 + $0x10] sm:$0xff]
                %213 = vst [vmem:[%s207 + $0x10] sm:$0xff] %v212
                %v214 = vld [vmem:[%s206 + $0x18] sm:$0xff]
                %215 = vst [vmem:[%s207 + $0x18] sm:$0xff] %v214
                %v216 = vld [vmem:[%s206 + $0x40] sm:$0xff]
                %217 = vst [vmem:[%s207 + $0x20] sm:$0xff] %v216
                %v218 = vld [vmem:[%s206 + $0x48] sm:$0xff]
                %219 = vst [vmem:[%s207 + $0x28] sm:$0xff] %v218
                %v220 = vld [vmem:[%s206 + $0x50] sm:$0xff]
                %221 = vst [vmem:[%s207 + $0x30] sm:$0xff] %v220
                %v222 = vld [vmem:[%s206 + $0x58] sm:$0xff]
                %223 = vst [vmem:[%s207 + $0x38] sm:$0xff] %v222
                %v224 = vld [vmem:[%s206 + $0x80] sm:$0xff]
                %225 = vst [vmem:[%s207 + $0x40] sm:$0xff] %v224
                %v226 = vld [vmem:[%s206 + $0x88] sm:$0xff]
                %227 = vst [vmem:[%s207 + $0x48] sm:$0xff] %v226
                %v228 = vld [vmem:[%s206 + $0x90] sm:$0xff]
                %229 = vst [vmem:[%s207 + $0x50] sm:$0xff] %v228
                %v230 = vld [vmem:[%s206 + $0x98] sm:$0xff]
                %231 = vst [vmem:[%s207 + $0x58] sm:$0xff] %v230
                %v232 = vld [vmem:[%s206 + $0xc0] sm:$0xff]
                %233 = vst [vmem:[%s207 + $0x60] sm:$0xff] %v232
                %v234 = vld [vmem:[%s206 + $0xc8] sm:$0xff]
                %235 = vst [vmem:[%s207 + $0x68] sm:$0xff] %v234
                %v236 = vld [vmem:[%s206 + $0xd0] sm:$0xff]
                %237 = vst [vmem:[%s207 + $0x70] sm:$0xff] %v236
                %v238 = vld [vmem:[%s206 + $0xd8] sm:$0xff]
                %239 = vst [vmem:[%s207 + $0x78] sm:$0xff] %v238
                %v240 = vld [vmem:[%s206 + $0x100] sm:$0xff]
                %241 = vst [vmem:[%s207 + $0x80] sm:$0xff] %v240
                %v242 = vld [vmem:[%s206 + $0x108] sm:$0xff]
                %243 = vst [vmem:[%s207 + $0x88] sm:$0xff] %v242
                %v244 = vld [vmem:[%s206 + $0x110] sm:$0xff]
                %245 = vst [vmem:[%s207 + $0x90] sm:$0xff] %v244
                %v246 = vld [vmem:[%s206 + $0x118] sm:$0xff]
                %247 = vst [vmem:[%s207 + $0x98] sm:$0xff] %v246
                %v248 = vld [vmem:[%s206 + $0x140] sm:$0xff]
                %249 = vst [vmem:[%s207 + $0xa0] sm:$0xff] %v248
                %v250 = vld [vmem:[%s206 + $0x148] sm:$0xff]
                %251 = vst [vmem:[%s207 + $0xa8] sm:$0xff] %v250
                %v252 = vld [vmem:[%s206 + $0x150] sm:$0xff]
                %253 = vst [vmem:[%s207 + $0xb0] sm:$0xff] %v252
                %v254 = vld [vmem:[%s206 + $0x158] sm:$0xff]
                %255 = vst [vmem:[%s207 + $0xb8] sm:$0xff] %v254
                %v256 = vld [vmem:[%s206 + $0x180] sm:$0xff]
                %257 = vst [vmem:[%s207 + $0xc0] sm:$0xff] %v256
                %v258 = vld [vmem:[%s206 + $0x188] sm:$0xff]
                %259 = vst [vmem:[%s207 + $0xc8] sm:$0xff] %v258
                %v260 = vld [vmem:[%s206 + $0x190] sm:$0xff]
                %261 = vst [vmem:[%s207 + $0xd0] sm:$0xff] %v260
                %v262 = vld [vmem:[%s206 + $0x198] sm:$0xff]
                %263 = vst [vmem:[%s207 + $0xd8] sm:$0xff] %v262
                %v264 = vld [vmem:[%s206 + $0x1c0] sm:$0xff]
                %265 = vst [vmem:[%s207 + $0xe0] sm:$0xff] %v264
                %v266 = vld [vmem:[%s206 + $0x1c8] sm:$0xff]
                %267 = vst [vmem:[%s207 + $0xe8] sm:$0xff] %v266
                %v268 = vld [vmem:[%s206 + $0x1d0] sm:$0xff]
                %269 = vst [vmem:[%s207 + $0xf0] sm:$0xff] %v268
                %v270 = vld [vmem:[%s206 + $0x1d8] sm:$0xff]
                %271 = vst [vmem:[%s207 + $0xf8] sm:$0xff] %v270
                %v272 = vld [vmem:[%s206 + $0x200] sm:$0xff]
                %273 = vst [vmem:[%s207 + $0x100] sm:$0xff] %v272
                %v274 = vld [vmem:[%s206 + $0x208] sm:$0xff]
                %275 = vst [vmem:[%s207 + $0x108] sm:$0xff] %v274
                %v276 = vld [vmem:[%s206 + $0x210] sm:$0xff]
                %277 = vst [vmem:[%s207 + $0x110] sm:$0xff] %v276
                %v278 = vld [vmem:[%s206 + $0x218] sm:$0xff]
                %279 = vst [vmem:[%s207 + $0x118] sm:$0xff] %v278
                %v280 = vld [vmem:[%s206 + $0x240] sm:$0xff]
                %281 = vst [vmem:[%s207 + $0x120] sm:$0xff] %v280
                %v282 = vld [vmem:[%s206 + $0x248] sm:$0xff]
                %283 = vst [vmem:[%s207 + $0x128] sm:$0xff] %v282
                %v284 = vld [vmem:[%s206 + $0x250] sm:$0xff]
                %285 = vst [vmem:[%s207 + $0x130] sm:$0xff] %v284
                %v286 = vld [vmem:[%s206 + $0x258] sm:$0xff]
                %287 = vst [vmem:[%s207 + $0x138] sm:$0xff] %v286
                %v288 = vld [vmem:[%s206 + $0x280] sm:$0xff]
                %289 = vst [vmem:[%s207 + $0x140] sm:$0xff] %v288
                %v290 = vld [vmem:[%s206 + $0x288] sm:$0xff]
                %291 = vst [vmem:[%s207 + $0x148] sm:$0xff] %v290
                %v292 = vld [vmem:[%s206 + $0x290] sm:$0xff]
                %293 = vst [vmem:[%s207 + $0x150] sm:$0xff] %v292
                %v294 = vld [vmem:[%s206 + $0x298] sm:$0xff]
                %295 = vst [vmem:[%s207 + $0x158] sm:$0xff] %v294
                %v296 = vld [vmem:[%s206 + $0x2c0] sm:$0xff]
                %297 = vst [vmem:[%s207 + $0x160] sm:$0xff] %v296
                %v298 = vld [vmem:[%s206 + $0x2c8] sm:$0xff]
                %299 = vst [vmem:[%s207 + $0x168] sm:$0xff] %v298
                %v300 = vld [vmem:[%s206 + $0x2d0] sm:$0xff]
                %301 = vst [vmem:[%s207 + $0x170] sm:$0xff] %v300
                %v302 = vld [vmem:[%s206 + $0x2d8] sm:$0xff]
                %303 = vst [vmem:[%s207 + $0x178] sm:$0xff] %v302
                %v304 = vld [vmem:[%s206 + $0x300] sm:$0xff]
                %305 = vst [vmem:[%s207 + $0x180] sm:$0xff] %v304
                %v306 = vld [vmem:[%s206 + $0x308] sm:$0xff]
                %307 = vst [vmem:[%s207 + $0x188] sm:$0xff] %v306
                %v308 = vld [vmem:[%s206 + $0x310] sm:$0xff]
                %309 = vst [vmem:[%s207 + $0x190] sm:$0xff] %v308
                %v310 = vld [vmem:[%s206 + $0x318] sm:$0xff]
                %311 = vst [vmem:[%s207 + $0x198] sm:$0xff] %v310
                %v312 = vld [vmem:[%s206 + $0x340] sm:$0xff]
                %313 = vst [vmem:[%s207 + $0x1a0] sm:$0xff] %v312
                %v314 = vld [vmem:[%s206 + $0x348] sm:$0xff]
                %315 = vst [vmem:[%s207 + $0x1a8] sm:$0xff] %v314
                %v316 = vld [vmem:[%s206 + $0x350] sm:$0xff]
                %317 = vst [vmem:[%s207 + $0x1b0] sm:$0xff] %v316
                %v318 = vld [vmem:[%s206 + $0x358] sm:$0xff]
                %319 = vst [vmem:[%s207 + $0x1b8] sm:$0xff] %v318
                %v320 = vld [vmem:[%s206 + $0x380] sm:$0xff]
                %321 = vst [vmem:[%s207 + $0x1c0] sm:$0xff] %v320
                %v322 = vld [vmem:[%s206 + $0x388] sm:$0xff]
                %323 = vst [vmem:[%s207 + $0x1c8] sm:$0xff] %v322
                %v324 = vld [vmem:[%s206 + $0x390] sm:$0xff]
                %325 = vst [vmem:[%s207 + $0x1d0] sm:$0xff] %v324
                %v326 = vld [vmem:[%s206 + $0x398] sm:$0xff]
                %327 = vst [vmem:[%s207 + $0x1d8] sm:$0xff] %v326
                %v328 = vld [vmem:[%s206 + $0x3c0] sm:$0xff]
                %329 = vst [vmem:[%s207 + $0x1e0] sm:$0xff] %v328
                %v330 = vld [vmem:[%s206 + $0x3c8] sm:$0xff]
                %331 = vst [vmem:[%s207 + $0x1e8] sm:$0xff] %v330
                %v332 = vld [vmem:[%s206 + $0x3d0] sm:$0xff]
                %333 = vst [vmem:[%s207 + $0x1f0] sm:$0xff] %v332
                %v334 = vld [vmem:[%s206 + $0x3d8] sm:$0xff]
                %335 = vst [vmem:[%s207 + $0x1f8] sm:$0xff] %v334
              $region37: #{gan_forward.9} parent=31 // loop_footer
                %s205 = sadd.s32 1, %s201
              $region38: #{gan_forward.9} parent=31 // loop_footer_branch
                %200 = sbr.rel target = $region34
              $region39: #{gan_forward.9} parent=31 // loop_exit
                _
            $region32: #{gan_forward.9} parent=27 // pred_fallthru
              _
            // Predicated region
            $region40: #{gan_forward.9} parent=27 // pred_check
              _
            $region41: #{gan_forward.9} parent=27 // pred_check_branch
              %337 = sbr.rel target = $region43
            $region42: #{gan_forward.9} parent=27 // pred_region
              _
            $region43: #{gan_forward.9} parent=27 // pred_fallthru
              _
          $region28: #{gan_forward.9} parent=23 // pred_fallthru
            _
          %338 = vnop
        $region24: #{gan_forward.9} parent=19 // pred_fallthru
          _
        // Predicated region
        $region44: #{gan_forward.9} parent=19 // pred_check
          %p339 = pneg %p89
        $region45: #{gan_forward.9} parent=19 // pred_check_branch
          %341 = sbr.rel (%p339) target = $region47
        $region46: #{gan_forward.9} parent=19 // pred_region
          %s342 = smul.u32 128, %s19
          %p343 = scmp.lt.s32.totalorder %s16, 0
          %s344 = scalar_select %p343, %s16, 0
          %p345 = scmp.lt.s32.totalorder %s342, 255
          %s346 = scalar_select %p345, %s342, 255
          %p347 = scmp.lt.s32.totalorder %s18, 0
          %s348 = scalar_select %p347, %s18, 0
          %s349 = sadd.s32 %s348, %s346
          %s350 = smul.addr %s344, 256
          %s351 = sadd.s32 %s349, %s350
          %s352 = smul.addr %s351, 4
          %s353 = scalar_lea.vmem %s1, %s352
          %s354 = smul.u32 128, %s19
        $region47: #{gan_forward.9} parent=19 // pred_fallthru
          _
      $region20: #{gan_forward.9} parent=5 // pred_fallthru
        _
      %p355 = scmp.le.s32.totalorder 1, %s9
      %p356 = scmp.lt.s32.totalorder %s9, 3
      %p357 = pnand %p355, %p356
      %p358 = pneg %p357
      // Predicated region
      $region48: #{gan_forward.9} parent=5 // pred_check
        _
      $region49: #{gan_forward.9} parent=5 // pred_check_branch
        %360 = sbr.rel (%p357) target = $region51
      $region50: #{gan_forward.9} parent=5 // pred_region
        %s361 = ssub.s32 %s9, 1
        %s362 = sand.u32 %s52, 1
        %s363 = sand.u32 %s52, 1
        %s364 = smul.addr %s363, 512
        %s365 = scalar_lea.vmem [#allocation3], %s364
        // Predicated region
        $region52: #{gan_forward.9} parent=50 // pred_check
          %p366 = pneg %p65
        $region53: #{gan_forward.9} parent=50 // pred_check_branch
          %368 = sbr.rel (%p366) target = $region55
        $region54: #{gan_forward.9} parent=50 // pred_region
          _
        $region55: #{gan_forward.9} parent=50 // pred_fallthru
          _
        %s369 = sand.u32 %s52, 1
        %s370 = sand.u32 %s52, 1
        %s371 = smul.addr %s370, 512
        %s372 = scalar_lea.vmem [#allocation3], %s371
        %p373 = pneg %p65
        %p374 = pneg %p62
        %s375 = smul.u32 128, %s23
        %p376 = scmp.lt.s32.totalorder %s20, 0
        %s377 = scalar_select %p376, %s20, 0
        %p378 = scmp.lt.s32.totalorder %s375, 255
        %s379 = scalar_select %p378, %s375, 255
        %p380 = scmp.lt.s32.totalorder %s22, 0
        %s381 = scalar_select %p380, %s22, 0
        %s382 = sadd.s32 %s381, %s379
        %s383 = smul.addr %s377, 256
        %s384 = sadd.s32 %s382, %s383
        %s385 = smul.addr %s384, 4
        %s386 = scalar_lea.vmem %s1, %s385
        %p387 = pneg %p95
        %p388 = pneg %p92
        %p389 = scmp.lt.s32.totalorder %s20, 0
        %s390 = scalar_select %p389, %s20, 0
        %p391 = scmp.lt.s32.totalorder %s22, 0
        %s392 = scalar_select %p391, %s22, 0
        %s393 = sadd.s32 %s392, %s390
        %s394 = scalar_lea.vmem %s2, %s393
        %p395 = pneg %p123
        %p396 = pneg %p120
        %p397 = pneg %p153
        %p398 = pneg %p150
        %s399 = smul.u32 16, %s21
        %p400 = scmp.lt.s32.totalorder %s20, 0
        %s401 = scalar_select %p400, %s20, 0
        %p402 = scmp.lt.s32.totalorder %s399, 15
        %s403 = scalar_select %p402, %s399, 15
        %p404 = scmp.lt.s32.totalorder %s22, 0
        %s405 = scalar_select %p404, %s22, 0
        %s406 = sadd.s32 %s405, %s403
        %s407 = smul.addr %s401, 16
        %s408 = sadd.s32 %s406, %s407
        %s409 = smul.addr %s408, 4
        %s410 = scalar_lea.vmem %s3, %s409
        %s411 = smul.u32 16, %s21
        %s412 = smul.u32 8, %s23
        %s413 = smul.u32 128, %s23
        %p414 = scmp.lt.s32.totalorder %s20, 0
        %s415 = scalar_select %p414, %s20, 0
        %p416 = scmp.lt.s32.totalorder %s413, 255
        %s417 = scalar_select %p416, %s413, 255
        %p418 = scmp.lt.s32.totalorder %s22, 0
        %s419 = scalar_select %p418, %s22, 0
        %s420 = sadd.s32 %s419, %s417
        %s421 = smul.addr %s415, 256
        %s422 = sadd.s32 %s420, %s421
        %s423 = smul.addr %s422, 4
        %s424 = scalar_lea.vmem %s1, %s423
        %s425 = smul.u32 128, %s23
        %p426 = scmp.lt.s32.totalorder %s20, 0
        %s427 = scalar_select %p426, %s20, 0
        %p428 = scmp.lt.s32.totalorder %s22, 0
        %s429 = scalar_select %p428, %s22, 0
        %s430 = sadd.s32 %s429, %s427
        %s431 = scalar_lea.vmem %s2, %s430
        %s432 = smul.u32 16, %s21
        %p433 = scmp.lt.s32.totalorder %s20, 0
        %s434 = scalar_select %p433, %s20, 0
        %p435 = scmp.lt.s32.totalorder %s432, 15
        %s436 = scalar_select %p435, %s432, 15
        %p437 = scmp.lt.s32.totalorder %s22, 0
        %s438 = scalar_select %p437, %s22, 0
        %s439 = sadd.s32 %s438, %s436
        %s440 = smul.addr %s434, 16
        %s441 = sadd.s32 %s439, %s440
        %s442 = smul.addr %s441, 4
        %s443 = scalar_lea.vmem %s3, %s442
        %s444 = smul.u32 16, %s21
        %p446 = scmp.eq.s32.totalorder %s23, 0
        // Predicated region
        $region56: #{gan_forward.9} parent=50 // pred_check
          %p447 = pneg %p446
        $region57: #{gan_forward.9} parent=50 // pred_check_branch
          %449 = sbr.rel (%p447) target = $region59
        $region58: #{gan_forward.9} parent=50 // pred_region
          %450 = vst [vmem:[#allocation2] sm:$0xff] 0.0
          %451 = vst [vmem:[#allocation2 + $0x8] sm:$0xff] 0.0
          %452 = vst [vmem:[#allocation2 + $0x10] sm:$0xff] 0.0
          %453 = vst [vmem:[#allocation2 + $0x18] sm:$0xff] 0.0
          %454 = vst [vmem:[#allocation2 + $0x20] sm:$0xff] 0.0
          %455 = vst [vmem:[#allocation2 + $0x28] sm:$0xff] 0.0
          %456 = vst [vmem:[#allocation2 + $0x30] sm:$0xff] 0.0
          %457 = vst [vmem:[#allocation2 + $0x38] sm:$0xff] 0.0
          %458 = vst [vmem:[#allocation2 + $0x40] sm:$0xff] 0.0
          %459 = vst [vmem:[#allocation2 + $0x48] sm:$0xff] 0.0
          %460 = vst [vmem:[#allocation2 + $0x50] sm:$0xff] 0.0
          %461 = vst [vmem:[#allocation2 + $0x58] sm:$0xff] 0.0
          %462 = vst [vmem:[#allocation2 + $0x60] sm:$0xff] 0.0
          %463 = vst [vmem:[#allocation2 + $0x68] sm:$0xff] 0.0
          %464 = vst [vmem:[#allocation2 + $0x70] sm:$0xff] 0.0
          %465 = vst [vmem:[#allocation2 + $0x78] sm:$0xff] 0.0
        $region59: #{gan_forward.9} parent=50 // pred_fallthru
          _
        %v466 = vld [vmem:[#allocation2] sm:$0xff]
        %v467 = vld [vmem:[#allocation2 + $0x8] sm:$0xff]
        %v468 = vld [vmem:[#allocation2 + $0x10] sm:$0xff]
        %v469 = vld [vmem:[#allocation2 + $0x18] sm:$0xff]
        %v470 = vld [vmem:[#allocation2 + $0x20] sm:$0xff]
        %v471 = vld [vmem:[#allocation2 + $0x28] sm:$0xff]
        %v472 = vld [vmem:[#allocation2 + $0x30] sm:$0xff]
        %v473 = vld [vmem:[#allocation2 + $0x38] sm:$0xff]
        %v474 = vld [vmem:[#allocation2 + $0x40] sm:$0xff]
        %v475 = vld [vmem:[#allocation2 + $0x48] sm:$0xff]
        %v476 = vld [vmem:[#allocation2 + $0x50] sm:$0xff]
        %v477 = vld [vmem:[#allocation2 + $0x58] sm:$0xff]
        %v478 = vld [vmem:[#allocation2 + $0x60] sm:$0xff]
        %v479 = vld [vmem:[#allocation2 + $0x68] sm:$0xff]
        %v480 = vld [vmem:[#allocation2 + $0x70] sm:$0xff]
        %v481 = vld [vmem:[#allocation2 + $0x78] sm:$0xff]
        %v482 = vld [vmem:[%s365] sm:$0xff]
        %v483 = vld [vmem:[%s365 + $0x8] sm:$0xff]
        %v484 = vld [vmem:[%s365 + $0x10] sm:$0xff]
        %v485 = vld [vmem:[%s365 + $0x18] sm:$0xff]
        %v486 = vld [vmem:[%s365 + $0x20] sm:$0xff]
        %v487 = vld [vmem:[%s365 + $0x28] sm:$0xff]
        %v488 = vld [vmem:[%s365 + $0x30] sm:$0xff]
        %v489 = vld [vmem:[%s365 + $0x38] sm:$0xff]
        %v490 = vld [vmem:[%s365 + $0x40] sm:$0xff]
        %v491 = vld [vmem:[%s365 + $0x48] sm:$0xff]
        %v492 = vld [vmem:[%s365 + $0x50] sm:$0xff]
        %v493 = vld [vmem:[%s365 + $0x58] sm:$0xff]
        %v494 = vld [vmem:[%s365 + $0x60] sm:$0xff]
        %v495 = vld [vmem:[%s365 + $0x68] sm:$0xff]
        %v496 = vld [vmem:[%s365 + $0x70] sm:$0xff]
        %v497 = vld [vmem:[%s365 + $0x78] sm:$0xff]
        %v498 = vld [vmem:[%s365 + $0x80] sm:$0xff]
        %v499 = vld [vmem:[%s365 + $0x88] sm:$0xff]
        %v500 = vld [vmem:[%s365 + $0x90] sm:$0xff]
        %v501 = vld [vmem:[%s365 + $0x98] sm:$0xff]
        %v502 = vld [vmem:[%s365 + $0xa0] sm:$0xff]
        %v503 = vld [vmem:[%s365 + $0xa8] sm:$0xff]
        %v504 = vld [vmem:[%s365 + $0xb0] sm:$0xff]
        %v505 = vld [vmem:[%s365 + $0xb8] sm:$0xff]
        %v506 = vld [vmem:[%s365 + $0xc0] sm:$0xff]
        %v507 = vld [vmem:[%s365 + $0xc8] sm:$0xff]
        %v508 = vld [vmem:[%s365 + $0xd0] sm:$0xff]
        %v509 = vld [vmem:[%s365 + $0xd8] sm:$0xff]
        %v510 = vld [vmem:[%s365 + $0xe0] sm:$0xff]
        %v511 = vld [vmem:[%s365 + $0xe8] sm:$0xff]
        %v512 = vld [vmem:[%s365 + $0xf0] sm:$0xff]
        %v513 = vld [vmem:[%s365 + $0xf8] sm:$0xff]
        %v514 = vld [vmem:[%s365 + $0x100] sm:$0xff]
        %v515 = vld [vmem:[%s365 + $0x108] sm:$0xff]
        %v516 = vld [vmem:[%s365 + $0x110] sm:$0xff]
        %v517 = vld [vmem:[%s365 + $0x118] sm:$0xff]
        %v518 = vld [vmem:[%s365 + $0x120] sm:$0xff]
        %v519 = vld [vmem:[%s365 + $0x128] sm:$0xff]
        %v520 = vld [vmem:[%s365 + $0x130] sm:$0xff]
        %v521 = vld [vmem:[%s365 + $0x138] sm:$0xff]
        %v522 = vld [vmem:[%s365 + $0x140] sm:$0xff]
        %v523 = vld [vmem:[%s365 + $0x148] sm:$0xff]
        %v524 = vld [vmem:[%s365 + $0x150] sm:$0xff]
        %v525 = vld [vmem:[%s365 + $0x158] sm:$0xff]
        %v526 = vld [vmem:[%s365 + $0x160] sm:$0xff]
        %v527 = vld [vmem:[%s365 + $0x168] sm:$0xff]
        %v528 = vld [vmem:[%s365 + $0x170] sm:$0xff]
        %v529 = vld [vmem:[%s365 + $0x178] sm:$0xff]
        %v530 = vld [vmem:[%s365 + $0x180] sm:$0xff]
        %v531 = vld [vmem:[%s365 + $0x188] sm:$0xff]
        %v532 = vld [vmem:[%s365 + $0x190] sm:$0xff]
        %v533 = vld [vmem:[%s365 + $0x198] sm:$0xff]
        %v534 = vld [vmem:[%s365 + $0x1a0] sm:$0xff]
        %v535 = vld [vmem:[%s365 + $0x1a8] sm:$0xff]
        %v536 = vld [vmem:[%s365 + $0x1b0] sm:$0xff]
        %v537 = vld [vmem:[%s365 + $0x1b8] sm:$0xff]
        %v538 = vld [vmem:[%s365 + $0x1c0] sm:$0xff]
        %v539 = vld [vmem:[%s365 + $0x1c8] sm:$0xff]
        %v540 = vld [vmem:[%s365 + $0x1d0] sm:$0xff]
        %v541 = vld [vmem:[%s365 + $0x1d8] sm:$0xff]
        %v542 = vld [vmem:[%s365 + $0x1e0] sm:$0xff]
        %v543 = vld [vmem:[%s365 + $0x1e8] sm:$0xff]
        %v544 = vld [vmem:[%s365 + $0x1f0] sm:$0xff]
        %v545 = vld [vmem:[%s365 + $0x1f8] sm:$0xff]
        %v546 = vld [vmem:[%s424] sm:$0xf]
        %v547 = vld [vmem:[%s424 + $0x4] sm:$0xf]
        %v548 = vld [vmem:[%s424 + $0x8] sm:$0xf]
        %v549 = vld [vmem:[%s424 + $0xc] sm:$0xf]
        %v550 = vld [vmem:[%s424 + $0x10] sm:$0xf]
        %v551 = vld [vmem:[%s424 + $0x14] sm:$0xf]
        %v552 = vld [vmem:[%s424 + $0x18] sm:$0xf]
        %v553 = vld [vmem:[%s424 + $0x1c] sm:$0xf]
        %v554 = vld [vmem:[%s424 + $0x20] sm:$0xf]
        %v555 = vld [vmem:[%s424 + $0x24] sm:$0xf]
        %v556 = vld [vmem:[%s424 + $0x28] sm:$0xf]
        %v557 = vld [vmem:[%s424 + $0x2c] sm:$0xf]
        %v558 = vld [vmem:[%s424 + $0x30] sm:$0xf]
        %v559 = vld [vmem:[%s424 + $0x34] sm:$0xf]
        %v560 = vld [vmem:[%s424 + $0x38] sm:$0xf]
        %v561 = vld [vmem:[%s424 + $0x3c] sm:$0xf]
        %v562 = vld [vmem:[%s424 + $0x40] sm:$0xf]
        %v563 = vld [vmem:[%s424 + $0x44] sm:$0xf]
        %v564 = vld [vmem:[%s424 + $0x48] sm:$0xf]
        %v565 = vld [vmem:[%s424 + $0x4c] sm:$0xf]
        %v566 = vld [vmem:[%s424 + $0x50] sm:$0xf]
        %v567 = vld [vmem:[%s424 + $0x54] sm:$0xf]
        %v568 = vld [vmem:[%s424 + $0x58] sm:$0xf]
        %v569 = vld [vmem:[%s424 + $0x5c] sm:$0xf]
        %v570 = vld [vmem:[%s424 + $0x60] sm:$0xf]
        %v571 = vld [vmem:[%s424 + $0x64] sm:$0xf]
        %v572 = vld [vmem:[%s424 + $0x68] sm:$0xf]
        %v573 = vld [vmem:[%s424 + $0x6c] sm:$0xf]
        %v574 = vld [vmem:[%s424 + $0x70] sm:$0xf]
        %v575 = vld [vmem:[%s424 + $0x74] sm:$0xf]
        %v576 = vld [vmem:[%s424 + $0x78] sm:$0xf]
        %v577 = vld [vmem:[%s424 + $0x7c] sm:$0xf]
        %v578 = vld [vmem:[%s424 + $0x80] sm:$0xf]
        %v579 = vld [vmem:[%s424 + $0x84] sm:$0xf]
        %v580 = vld [vmem:[%s424 + $0x88] sm:$0xf]
        %v581 = vld [vmem:[%s424 + $0x8c] sm:$0xf]
        %v582 = vld [vmem:[%s424 + $0x90] sm:$0xf]
        %v583 = vld [vmem:[%s424 + $0x94] sm:$0xf]
        %v584 = vld [vmem:[%s424 + $0x98] sm:$0xf]
        %v585 = vld [vmem:[%s424 + $0x9c] sm:$0xf]
        %v586 = vld [vmem:[%s424 + $0xa0] sm:$0xf]
        %v587 = vld [vmem:[%s424 + $0xa4] sm:$0xf]
        %v588 = vld [vmem:[%s424 + $0xa8] sm:$0xf]
        %v589 = vld [vmem:[%s424 + $0xac] sm:$0xf]
        %v590 = vld [vmem:[%s424 + $0xb0] sm:$0xf]
        %v591 = vld [vmem:[%s424 + $0xb4] sm:$0xf]
        %v592 = vld [vmem:[%s424 + $0xb8] sm:$0xf]
        %v593 = vld [vmem:[%s424 + $0xbc] sm:$0xf]
        %v594 = vld [vmem:[%s424 + $0xc0] sm:$0xf]
        %v595 = vld [vmem:[%s424 + $0xc4] sm:$0xf]
        %v596 = vld [vmem:[%s424 + $0xc8] sm:$0xf]
        %v597 = vld [vmem:[%s424 + $0xcc] sm:$0xf]
        %v598 = vld [vmem:[%s424 + $0xd0] sm:$0xf]
        %v599 = vld [vmem:[%s424 + $0xd4] sm:$0xf]
        %v600 = vld [vmem:[%s424 + $0xd8] sm:$0xf]
        %v601 = vld [vmem:[%s424 + $0xdc] sm:$0xf]
        %v602 = vld [vmem:[%s424 + $0xe0] sm:$0xf]
        %v603 = vld [vmem:[%s424 + $0xe4] sm:$0xf]
        %v604 = vld [vmem:[%s424 + $0xe8] sm:$0xf]
        %v605 = vld [vmem:[%s424 + $0xec] sm:$0xf]
        %v606 = vld [vmem:[%s424 + $0xf0] sm:$0xf]
        %v607 = vld [vmem:[%s424 + $0xf4] sm:$0xf]
        %v608 = vld [vmem:[%s424 + $0xf8] sm:$0xf]
        %v609 = vld [vmem:[%s424 + $0xfc] sm:$0xf]
        %v610 = vld [vmem:[%s424 + $0x100] sm:$0xf]
        %v611 = vld [vmem:[%s424 + $0x104] sm:$0xf]
        %v612 = vld [vmem:[%s424 + $0x108] sm:$0xf]
        %v613 = vld [vmem:[%s424 + $0x10c] sm:$0xf]
        %v614 = vld [vmem:[%s424 + $0x110] sm:$0xf]
        %v615 = vld [vmem:[%s424 + $0x114] sm:$0xf]
        %v616 = vld [vmem:[%s424 + $0x118] sm:$0xf]
        %v617 = vld [vmem:[%s424 + $0x11c] sm:$0xf]
        %v618 = vld [vmem:[%s424 + $0x120] sm:$0xf]
        %v619 = vld [vmem:[%s424 + $0x124] sm:$0xf]
        %v620 = vld [vmem:[%s424 + $0x128] sm:$0xf]
        %v621 = vld [vmem:[%s424 + $0x12c] sm:$0xf]
        %v622 = vld [vmem:[%s424 + $0x130] sm:$0xf]
        %v623 = vld [vmem:[%s424 + $0x134] sm:$0xf]
        %v624 = vld [vmem:[%s424 + $0x138] sm:$0xf]
        %v625 = vld [vmem:[%s424 + $0x13c] sm:$0xf]
        %v626 = vld [vmem:[%s424 + $0x140] sm:$0xf]
        %v627 = vld [vmem:[%s424 + $0x144] sm:$0xf]
        %v628 = vld [vmem:[%s424 + $0x148] sm:$0xf]
        %v629 = vld [vmem:[%s424 + $0x14c] sm:$0xf]
        %v630 = vld [vmem:[%s424 + $0x150] sm:$0xf]
        %v631 = vld [vmem:[%s424 + $0x154] sm:$0xf]
        %v632 = vld [vmem:[%s424 + $0x158] sm:$0xf]
        %v633 = vld [vmem:[%s424 + $0x15c] sm:$0xf]
        %v634 = vld [vmem:[%s424 + $0x160] sm:$0xf]
        %v635 = vld [vmem:[%s424 + $0x164] sm:$0xf]
        %v636 = vld [vmem:[%s424 + $0x168] sm:$0xf]
        %v637 = vld [vmem:[%s424 + $0x16c] sm:$0xf]
        %v638 = vld [vmem:[%s424 + $0x170] sm:$0xf]
        %v639 = vld [vmem:[%s424 + $0x174] sm:$0xf]
        %v640 = vld [vmem:[%s424 + $0x178] sm:$0xf]
        %v641 = vld [vmem:[%s424 + $0x17c] sm:$0xf]
        %v642 = vld [vmem:[%s424 + $0x180] sm:$0xf]
        %v643 = vld [vmem:[%s424 + $0x184] sm:$0xf]
        %v644 = vld [vmem:[%s424 + $0x188] sm:$0xf]
        %v645 = vld [vmem:[%s424 + $0x18c] sm:$0xf]
        %v646 = vld [vmem:[%s424 + $0x190] sm:$0xf]
        %v647 = vld [vmem:[%s424 + $0x194] sm:$0xf]
        %v648 = vld [vmem:[%s424 + $0x198] sm:$0xf]
        %v649 = vld [vmem:[%s424 + $0x19c] sm:$0xf]
        %v650 = vld [vmem:[%s424 + $0x1a0] sm:$0xf]
        %v651 = vld [vmem:[%s424 + $0x1a4] sm:$0xf]
        %v652 = vld [vmem:[%s424 + $0x1a8] sm:$0xf]
        %v653 = vld [vmem:[%s424 + $0x1ac] sm:$0xf]
        %v654 = vld [vmem:[%s424 + $0x1b0] sm:$0xf]
        %v655 = vld [vmem:[%s424 + $0x1b4] sm:$0xf]
        %v656 = vld [vmem:[%s424 + $0x1b8] sm:$0xf]
        %v657 = vld [vmem:[%s424 + $0x1bc] sm:$0xf]
        %v658 = vld [vmem:[%s424 + $0x1c0] sm:$0xf]
        %v659 = vld [vmem:[%s424 + $0x1c4] sm:$0xf]
        %v660 = vld [vmem:[%s424 + $0x1c8] sm:$0xf]
        %v661 = vld [vmem:[%s424 + $0x1cc] sm:$0xf]
        %v662 = vld [vmem:[%s424 + $0x1d0] sm:$0xf]
        %v663 = vld [vmem:[%s424 + $0x1d4] sm:$0xf]
        %v664 = vld [vmem:[%s424 + $0x1d8] sm:$0xf]
        %v665 = vld [vmem:[%s424 + $0x1dc] sm:$0xf]
        %v666 = vld [vmem:[%s424 + $0x1e0] sm:$0xf]
        %v667 = vld [vmem:[%s424 + $0x1e4] sm:$0xf]
        %v668 = vld [vmem:[%s424 + $0x1e8] sm:$0xf]
        %v669 = vld [vmem:[%s424 + $0x1ec] sm:$0xf]
        %v670 = vld [vmem:[%s424 + $0x1f0] sm:$0xf]
        %v671 = vld [vmem:[%s424 + $0x1f4] sm:$0xf]
        %v672 = vld [vmem:[%s424 + $0x1f8] sm:$0xf]
        %v673 = vld [vmem:[%s424 + $0x1fc] sm:$0xf]
        %v738 = vunpack.c.l.b16 %v482
        %v739 = vunpack.c.h.b16 %v482
        %v740 = vunpack.c.l.b16 %v483
        %v741 = vunpack.c.h.b16 %v483
        %v742 = vunpack.c.l.b16 %v484
        %v743 = vunpack.c.h.b16 %v484
        %v744 = vunpack.c.l.b16 %v485
        %v745 = vunpack.c.h.b16 %v485
        %v746 = vunpack.c.l.b16 %v486
        %v747 = vunpack.c.h.b16 %v486
        %v748 = vunpack.c.l.b16 %v487
        %v749 = vunpack.c.h.b16 %v487
        %v750 = vunpack.c.l.b16 %v488
        %v751 = vunpack.c.h.b16 %v488
        %v752 = vunpack.c.l.b16 %v489
        %v753 = vunpack.c.h.b16 %v489
        %v754 = vunpack.c.l.b16 %v490
        %v755 = vunpack.c.h.b16 %v490
        %v756 = vunpack.c.l.b16 %v491
        %v757 = vunpack.c.h.b16 %v491
        %v758 = vunpack.c.l.b16 %v492
        %v759 = vunpack.c.h.b16 %v492
        %v760 = vunpack.c.l.b16 %v493
        %v761 = vunpack.c.h.b16 %v493
        %v762 = vunpack.c.l.b16 %v494
        %v763 = vunpack.c.h.b16 %v494
        %v764 = vunpack.c.l.b16 %v495
        %v765 = vunpack.c.h.b16 %v495
        %v766 = vunpack.c.l.b16 %v496
        %v767 = vunpack.c.h.b16 %v496
        %v768 = vunpack.c.l.b16 %v497
        %v769 = vunpack.c.h.b16 %v497
        %v770 = vunpack.c.l.b16 %v498
        %v771 = vunpack.c.h.b16 %v498
        %v772 = vunpack.c.l.b16 %v499
        %v773 = vunpack.c.h.b16 %v499
        %v774 = vunpack.c.l.b16 %v500
        %v775 = vunpack.c.h.b16 %v500
        %v776 = vunpack.c.l.b16 %v501
        %v777 = vunpack.c.h.b16 %v501
        %v778 = vunpack.c.l.b16 %v502
        %v779 = vunpack.c.h.b16 %v502
        %v780 = vunpack.c.l.b16 %v503
        %v781 = vunpack.c.h.b16 %v503
        %v782 = vunpack.c.l.b16 %v504
        %v783 = vunpack.c.h.b16 %v504
        %v784 = vunpack.c.l.b16 %v505
        %v785 = vunpack.c.h.b16 %v505
        %v786 = vunpack.c.l.b16 %v506
        %v787 = vunpack.c.h.b16 %v506
        %v788 = vunpack.c.l.b16 %v507
        %v789 = vunpack.c.h.b16 %v507
        %v790 = vunpack.c.l.b16 %v508
        %v791 = vunpack.c.h.b16 %v508
        %v792 = vunpack.c.l.b16 %v509
        %v793 = vunpack.c.h.b16 %v509
        %v794 = vunpack.c.l.b16 %v510
        %v795 = vunpack.c.h.b16 %v510
        %v796 = vunpack.c.l.b16 %v511
        %v797 = vunpack.c.h.b16 %v511
        %v798 = vunpack.c.l.b16 %v512
        %v799 = vunpack.c.h.b16 %v512
        %v800 = vunpack.c.l.b16 %v513
        %v801 = vunpack.c.h.b16 %v513
        %v802 = vunpack.c.l.b16 %v514
        %v803 = vunpack.c.h.b16 %v514
        %v804 = vunpack.c.l.b16 %v515
        %v805 = vunpack.c.h.b16 %v515
        %v806 = vunpack.c.l.b16 %v516
        %v807 = vunpack.c.h.b16 %v516
        %v808 = vunpack.c.l.b16 %v517
        %v809 = vunpack.c.h.b16 %v517
        %v810 = vunpack.c.l.b16 %v518
        %v811 = vunpack.c.h.b16 %v518
        %v812 = vunpack.c.l.b16 %v519
        %v813 = vunpack.c.h.b16 %v519
        %v814 = vunpack.c.l.b16 %v520
        %v815 = vunpack.c.h.b16 %v520
        %v816 = vunpack.c.l.b16 %v521
        %v817 = vunpack.c.h.b16 %v521
        %v818 = vunpack.c.l.b16 %v522
        %v819 = vunpack.c.h.b16 %v522
        %v820 = vunpack.c.l.b16 %v523
        %v821 = vunpack.c.h.b16 %v523
        %v822 = vunpack.c.l.b16 %v524
        %v823 = vunpack.c.h.b16 %v524
        %v824 = vunpack.c.l.b16 %v525
        %v825 = vunpack.c.h.b16 %v525
        %v826 = vunpack.c.l.b16 %v526
        %v827 = vunpack.c.h.b16 %v526
        %v828 = vunpack.c.l.b16 %v527
        %v829 = vunpack.c.h.b16 %v527
        %v830 = vunpack.c.l.b16 %v528
        %v831 = vunpack.c.h.b16 %v528
        %v832 = vunpack.c.l.b16 %v529
        %v833 = vunpack.c.h.b16 %v529
        %v834 = vunpack.c.l.b16 %v530
        %v835 = vunpack.c.h.b16 %v530
        %v836 = vunpack.c.l.b16 %v531
        %v837 = vunpack.c.h.b16 %v531
        %v838 = vunpack.c.l.b16 %v532
        %v839 = vunpack.c.h.b16 %v532
        %v840 = vunpack.c.l.b16 %v533
        %v841 = vunpack.c.h.b16 %v533
        %v842 = vunpack.c.l.b16 %v534
        %v843 = vunpack.c.h.b16 %v534
        %v844 = vunpack.c.l.b16 %v535
        %v845 = vunpack.c.h.b16 %v535
        %v846 = vunpack.c.l.b16 %v536
        %v847 = vunpack.c.h.b16 %v536
        %v848 = vunpack.c.l.b16 %v537
        %v849 = vunpack.c.h.b16 %v537
        %v850 = vunpack.c.l.b16 %v538
        %v851 = vunpack.c.h.b16 %v538
        %v852 = vunpack.c.l.b16 %v539
        %v853 = vunpack.c.h.b16 %v539
        %v854 = vunpack.c.l.b16 %v540
        %v855 = vunpack.c.h.b16 %v540
        %v856 = vunpack.c.l.b16 %v541
        %v857 = vunpack.c.h.b16 %v541
        %v858 = vunpack.c.l.b16 %v542
        %v859 = vunpack.c.h.b16 %v542
        %v860 = vunpack.c.l.b16 %v543
        %v861 = vunpack.c.h.b16 %v543
        %v862 = vunpack.c.l.b16 %v544
        %v863 = vunpack.c.h.b16 %v544
        %v864 = vunpack.c.l.b16 %v545
        %v865 = vunpack.c.h.b16 %v545
        %v866 = vpack.c.b16 %v746, %v738
        %v867 = vpack.c.b16 %v747, %v739
        %v868 = vpack.c.b16 %v748, %v740
        %v869 = vpack.c.b16 %v749, %v741
        %v870 = vpack.c.b16 %v750, %v742
        %v871 = vpack.c.b16 %v751, %v743
        %v872 = vpack.c.b16 %v752, %v744
        %v873 = vpack.c.b16 %v753, %v745
        %v874 = vpack.c.b16 %v762, %v754
        %v875 = vpack.c.b16 %v763, %v755
        %v876 = vpack.c.b16 %v764, %v756
        %v877 = vpack.c.b16 %v765, %v757
        %v878 = vpack.c.b16 %v766, %v758
        %v879 = vpack.c.b16 %v767, %v759
        %v880 = vpack.c.b16 %v768, %v760
        %v881 = vpack.c.b16 %v769, %v761
        %v882 = vpack.c.b16 %v778, %v770
        %v883 = vpack.c.b16 %v779, %v771
        %v884 = vpack.c.b16 %v780, %v772
        %v885 = vpack.c.b16 %v781, %v773
        %v886 = vpack.c.b16 %v782, %v774
        %v887 = vpack.c.b16 %v783, %v775
        %v888 = vpack.c.b16 %v784, %v776
        %v889 = vpack.c.b16 %v785, %v777
        %v890 = vpack.c.b16 %v794, %v786
        %v891 = vpack.c.b16 %v795, %v787
        %v892 = vpack.c.b16 %v796, %v788
        %v893 = vpack.c.b16 %v797, %v789
        %v894 = vpack.c.b16 %v798, %v790
        %v895 = vpack.c.b16 %v799, %v791
        %v896 = vpack.c.b16 %v800, %v792
        %v897 = vpack.c.b16 %v801, %v793
        %v898 = vpack.c.b16 %v810, %v802
        %v899 = vpack.c.b16 %v811, %v803
        %v900 = vpack.c.b16 %v812, %v804
        %v901 = vpack.c.b16 %v813, %v805
        %v902 = vpack.c.b16 %v814, %v806
        %v903 = vpack.c.b16 %v815, %v807
        %v904 = vpack.c.b16 %v816, %v808
        %v905 = vpack.c.b16 %v817, %v809
        %v906 = vpack.c.b16 %v826, %v818
        %v907 = vpack.c.b16 %v827, %v819
        %v908 = vpack.c.b16 %v828, %v820
        %v909 = vpack.c.b16 %v829, %v821
        %v910 = vpack.c.b16 %v830, %v822
        %v911 = vpack.c.b16 %v831, %v823
        %v912 = vpack.c.b16 %v832, %v824
        %v913 = vpack.c.b16 %v833, %v825
        %v914 = vpack.c.b16 %v842, %v834
        %v915 = vpack.c.b16 %v843, %v835
        %v916 = vpack.c.b16 %v844, %v836
        %v917 = vpack.c.b16 %v845, %v837
        %v918 = vpack.c.b16 %v846, %v838
        %v919 = vpack.c.b16 %v847, %v839
        %v920 = vpack.c.b16 %v848, %v840
        %v921 = vpack.c.b16 %v849, %v841
        %v922 = vpack.c.b16 %v858, %v850
        %v923 = vpack.c.b16 %v859, %v851
        %v924 = vpack.c.b16 %v860, %v852
        %v925 = vpack.c.b16 %v861, %v853
        %v926 = vpack.c.b16 %v862, %v854
        %v927 = vpack.c.b16 %v863, %v855
        %v928 = vpack.c.b16 %v864, %v856
        %v929 = vpack.c.b16 %v865, %v857
        %v1122 = vunpack.c.l.b16 %v546
        %v1123 = vunpack.c.l.b16 %v547
        %v1124 = vunpack.c.l.b16 %v548
        %v1125 = vunpack.c.l.b16 %v549
        %v1126 = vunpack.c.l.b16 %v550
        %v1127 = vunpack.c.l.b16 %v551
        %v1128 = vunpack.c.l.b16 %v552
        %v1129 = vunpack.c.l.b16 %v553
        %v1130 = vunpack.c.l.b16 %v554
        %v1131 = vunpack.c.l.b16 %v555
        %v1132 = vunpack.c.l.b16 %v556
        %v1133 = vunpack.c.l.b16 %v557
        %v1134 = vunpack.c.l.b16 %v558
        %v1135 = vunpack.c.l.b16 %v559
        %v1136 = vunpack.c.l.b16 %v560
        %v1137 = vunpack.c.l.b16 %v561
        %v1138 = vunpack.c.l.b16 %v562
        %v1139 = vunpack.c.l.b16 %v563
        %v1140 = vunpack.c.l.b16 %v564
        %v1141 = vunpack.c.l.b16 %v565
        %v1142 = vunpack.c.l.b16 %v566
        %v1143 = vunpack.c.l.b16 %v567
        %v1144 = vunpack.c.l.b16 %v568
        %v1145 = vunpack.c.l.b16 %v569
        %v1146 = vunpack.c.l.b16 %v570
        %v1147 = vunpack.c.l.b16 %v571
        %v1148 = vunpack.c.l.b16 %v572
        %v1149 = vunpack.c.l.b16 %v573
        %v1150 = vunpack.c.l.b16 %v574
        %v1151 = vunpack.c.l.b16 %v575
        %v1152 = vunpack.c.l.b16 %v576
        %v1153 = vunpack.c.l.b16 %v577
        %v1154 = vunpack.c.l.b16 %v578
        %v1155 = vunpack.c.l.b16 %v579
        %v1156 = vunpack.c.l.b16 %v580
        %v1157 = vunpack.c.l.b16 %v581
        %v1158 = vunpack.c.l.b16 %v582
        %v1159 = vunpack.c.l.b16 %v583
        %v1160 = vunpack.c.l.b16 %v584
        %v1161 = vunpack.c.l.b16 %v585
        %v1162 = vunpack.c.l.b16 %v586
        %v1163 = vunpack.c.l.b16 %v587
        %v1164 = vunpack.c.l.b16 %v588
        %v1165 = vunpack.c.l.b16 %v589
        %v1166 = vunpack.c.l.b16 %v590
        %v1167 = vunpack.c.l.b16 %v591
        %v1168 = vunpack.c.l.b16 %v592
        %v1169 = vunpack.c.l.b16 %v593
        %v1170 = vunpack.c.l.b16 %v594
        %v1171 = vunpack.c.l.b16 %v595
        %v1172 = vunpack.c.l.b16 %v596
        %v1173 = vunpack.c.l.b16 %v597
        %v1174 = vunpack.c.l.b16 %v598
        %v1175 = vunpack.c.l.b16 %v599
        %v1176 = vunpack.c.l.b16 %v600
        %v1177 = vunpack.c.l.b16 %v601
        %v1178 = vunpack.c.l.b16 %v602
        %v1179 = vunpack.c.l.b16 %v603
        %v1180 = vunpack.c.l.b16 %v604
        %v1181 = vunpack.c.l.b16 %v605
        %v1182 = vunpack.c.l.b16 %v606
        %v1183 = vunpack.c.l.b16 %v607
        %v1184 = vunpack.c.l.b16 %v608
        %v1185 = vunpack.c.l.b16 %v609
        %v1186 = vunpack.c.l.b16 %v610
        %v1187 = vunpack.c.l.b16 %v611
        %v1188 = vunpack.c.l.b16 %v612
        %v1189 = vunpack.c.l.b16 %v613
        %v1190 = vunpack.c.l.b16 %v614
        %v1191 = vunpack.c.l.b16 %v615
        %v1192 = vunpack.c.l.b16 %v616
        %v1193 = vunpack.c.l.b16 %v617
        %v1194 = vunpack.c.l.b16 %v618
        %v1195 = vunpack.c.l.b16 %v619
        %v1196 = vunpack.c.l.b16 %v620
        %v1197 = vunpack.c.l.b16 %v621
        %v1198 = vunpack.c.l.b16 %v622
        %v1199 = vunpack.c.l.b16 %v623
        %v1200 = vunpack.c.l.b16 %v624
        %v1201 = vunpack.c.l.b16 %v625
        %v1202 = vunpack.c.l.b16 %v626
        %v1203 = vunpack.c.l.b16 %v627
        %v1204 = vunpack.c.l.b16 %v628
        %v1205 = vunpack.c.l.b16 %v629
        %v1206 = vunpack.c.l.b16 %v630
        %v1207 = vunpack.c.l.b16 %v631
        %v1208 = vunpack.c.l.b16 %v632
        %v1209 = vunpack.c.l.b16 %v633
        %v1210 = vunpack.c.l.b16 %v634
        %v1211 = vunpack.c.l.b16 %v635
        %v1212 = vunpack.c.l.b16 %v636
        %v1213 = vunpack.c.l.b16 %v637
        %v1214 = vunpack.c.l.b16 %v638
        %v1215 = vunpack.c.l.b16 %v639
        %v1216 = vunpack.c.l.b16 %v640
        %v1217 = vunpack.c.l.b16 %v641
        %v1218 = vunpack.c.l.b16 %v642
        %v1219 = vunpack.c.l.b16 %v643
        %v1220 = vunpack.c.l.b16 %v644
        %v1221 = vunpack.c.l.b16 %v645
        %v1222 = vunpack.c.l.b16 %v646
        %v1223 = vunpack.c.l.b16 %v647
        %v1224 = vunpack.c.l.b16 %v648
        %v1225 = vunpack.c.l.b16 %v649
        %v1226 = vunpack.c.l.b16 %v650
        %v1227 = vunpack.c.l.b16 %v651
        %v1228 = vunpack.c.l.b16 %v652
        %v1229 = vunpack.c.l.b16 %v653
        %v1230 = vunpack.c.l.b16 %v654
        %v1231 = vunpack.c.l.b16 %v655
        %v1232 = vunpack.c.l.b16 %v656
        %v1233 = vunpack.c.l.b16 %v657
        %v1234 = vunpack.c.l.b16 %v658
        %v1235 = vunpack.c.l.b16 %v659
        %v1236 = vunpack.c.l.b16 %v660
        %v1237 = vunpack.c.l.b16 %v661
        %v1238 = vunpack.c.l.b16 %v662
        %v1239 = vunpack.c.l.b16 %v663
        %v1240 = vunpack.c.l.b16 %v664
        %v1241 = vunpack.c.l.b16 %v665
        %v1242 = vunpack.c.l.b16 %v666
        %v1243 = vunpack.c.l.b16 %v667
        %v1244 = vunpack.c.l.b16 %v668
        %v1245 = vunpack.c.l.b16 %v669
        %v1246 = vunpack.c.l.b16 %v670
        %v1247 = vunpack.c.l.b16 %v671
        %v1248 = vunpack.c.l.b16 %v672
        %v1249 = vunpack.c.l.b16 %v673
        %v1250 = vpack.c.b16 %v1123, %v1122
        %v1251 = vpack.c.b16 %v1125, %v1124
        %v1252 = vpack.c.b16 %v1127, %v1126
        %v1253 = vpack.c.b16 %v1129, %v1128
        %v1254 = vpack.c.b16 %v1131, %v1130
        %v1255 = vpack.c.b16 %v1133, %v1132
        %v1256 = vpack.c.b16 %v1135, %v1134
        %v1257 = vpack.c.b16 %v1137, %v1136
        %v1258 = vpack.c.b16 %v1139, %v1138
        %v1259 = vpack.c.b16 %v1141, %v1140
        %v1260 = vpack.c.b16 %v1143, %v1142
        %v1261 = vpack.c.b16 %v1145, %v1144
        %v1262 = vpack.c.b16 %v1147, %v1146
        %v1263 = vpack.c.b16 %v1149, %v1148
        %v1264 = vpack.c.b16 %v1151, %v1150
        %v1265 = vpack.c.b16 %v1153, %v1152
        %v1266 = vpack.c.b16 %v1155, %v1154
        %v1267 = vpack.c.b16 %v1157, %v1156
        %v1268 = vpack.c.b16 %v1159, %v1158
        %v1269 = vpack.c.b16 %v1161, %v1160
        %v1270 = vpack.c.b16 %v1163, %v1162
        %v1271 = vpack.c.b16 %v1165, %v1164
        %v1272 = vpack.c.b16 %v1167, %v1166
        %v1273 = vpack.c.b16 %v1169, %v1168
        %v1274 = vpack.c.b16 %v1171, %v1170
        %v1275 = vpack.c.b16 %v1173, %v1172
        %v1276 = vpack.c.b16 %v1175, %v1174
        %v1277 = vpack.c.b16 %v1177, %v1176
        %v1278 = vpack.c.b16 %v1179, %v1178
        %v1279 = vpack.c.b16 %v1181, %v1180
        %v1280 = vpack.c.b16 %v1183, %v1182
        %v1281 = vpack.c.b16 %v1185, %v1184
        %v1282 = vpack.c.b16 %v1187, %v1186
        %v1283 = vpack.c.b16 %v1189, %v1188
        %v1284 = vpack.c.b16 %v1191, %v1190
        %v1285 = vpack.c.b16 %v1193, %v1192
        %v1286 = vpack.c.b16 %v1195, %v1194
        %v1287 = vpack.c.b16 %v1197, %v1196
        %v1288 = vpack.c.b16 %v1199, %v1198
        %v1289 = vpack.c.b16 %v1201, %v1200
        %v1290 = vpack.c.b16 %v1203, %v1202
        %v1291 = vpack.c.b16 %v1205, %v1204
        %v1292 = vpack.c.b16 %v1207, %v1206
        %v1293 = vpack.c.b16 %v1209, %v1208
        %v1294 = vpack.c.b16 %v1211, %v1210
        %v1295 = vpack.c.b16 %v1213, %v1212
        %v1296 = vpack.c.b16 %v1215, %v1214
        %v1297 = vpack.c.b16 %v1217, %v1216
        %v1298 = vpack.c.b16 %v1219, %v1218
        %v1299 = vpack.c.b16 %v1221, %v1220
        %v1300 = vpack.c.b16 %v1223, %v1222
        %v1301 = vpack.c.b16 %v1225, %v1224
        %v1302 = vpack.c.b16 %v1227, %v1226
        %v1303 = vpack.c.b16 %v1229, %v1228
        %v1304 = vpack.c.b16 %v1231, %v1230
        %v1305 = vpack.c.b16 %v1233, %v1232
        %v1306 = vpack.c.b16 %v1235, %v1234
        %v1307 = vpack.c.b16 %v1237, %v1236
        %v1308 = vpack.c.b16 %v1239, %v1238
        %v1309 = vpack.c.b16 %v1241, %v1240
        %v1310 = vpack.c.b16 %v1243, %v1242
        %v1311 = vpack.c.b16 %v1245, %v1244
        %v1312 = vpack.c.b16 %v1247, %v1246
        %v1313 = vpack.c.b16 %v1249, %v1248
        %1378 = vmatprep.subr.bf16.mxu0 0
        %1379 = vmatpush1.bf16.msra.mxu0 %v1250
        %1380 = vmatprep.subr.bf16.mxu0 0
        %1381 = vmatpush1.bf16.msra.mxu0 %v1251
        %1382 = vmatprep.subr.bf16.mxu0 0
        %1383 = vmatpush1.bf16.msra.mxu0 %v1252
        %1384 = vmatprep.subr.bf16.mxu0 0
        %1385 = vmatpush1.bf16.msra.mxu0 %v1253
        %1386 = vmatprep.subr.bf16.mxu0 0
        %1387 = vmatpush1.bf16.msra.mxu0 %v1254
        %1388 = vmatprep.subr.bf16.mxu0 0
        %1389 = vmatpush1.bf16.msra.mxu0 %v1255
        %1390 = vmatprep.subr.bf16.mxu0 0
        %1391 = vmatpush1.bf16.msra.mxu0 %v1256
        %1392 = vmatprep.subr.bf16.mxu0 0
        %1393 = vmatpush1.bf16.msra.mxu0 %v1257
        %1394 = vmatprep.subr.bf16.mxu0 0
        %1395 = vmatpush1.bf16.msra.mxu0 %v1258
        %1396 = vmatprep.subr.bf16.mxu0 0
        %1397 = vmatpush1.bf16.msra.mxu0 %v1259
        %1398 = vmatprep.subr.bf16.mxu0 0
        %1399 = vmatpush1.bf16.msra.mxu0 %v1260
        %1400 = vmatprep.subr.bf16.mxu0 0
        %1401 = vmatpush1.bf16.msra.mxu0 %v1261
        %1402 = vmatprep.subr.bf16.mxu0 0
        %1403 = vmatpush1.bf16.msra.mxu0 %v1262
        %1404 = vmatprep.subr.bf16.mxu0 0
        %1405 = vmatpush1.bf16.msra.mxu0 %v1263
        %1406 = vmatprep.subr.bf16.mxu0 0
        %1407 = vmatpush1.bf16.msra.mxu0 %v1264
        %1408 = vmatprep.subr.bf16.mxu0 0
        %1409 = vmatpush1.bf16.msra.mxu0 %v1265
        %1410 = vmatprep.mubr.bf16.mxu0 %v867
        %1411 = vmatmul.mubr.bf16.gmra.mrb[0].mxu0 %v866
        %v1412 = vpop.f32.mrb[0].mxu0
        %v1413 = vadd.f32 0.0, %v1412
        %v1414 = vpop.f32.mrb[0].mxu0
        %v1415 = vpop.f32.mrb[0].mxu0
        %v1416 = vadd.f32 0.0, %v1415
        %v1417 = vpop.f32.mrb[0].mxu0
        %1418 = vmatprep.mubr.bf16.mxu0 %v875
        %1419 = vmatmul.mubr.bf16.gmra.mrb[0].mxu0 %v874
        %v1420 = vpop.f32.mrb[0].mxu0
        %v1421 = vadd.f32 0.0, %v1420
        %v1422 = vpop.f32.mrb[0].mxu0
        %v1423 = vpop.f32.mrb[0].mxu0
        %v1424 = vadd.f32 0.0, %v1423
        %v1425 = vpop.f32.mrb[0].mxu0
        %1426 = vmatprep.mubr.bf16.mxu0 %v883
        %1427 = vmatmul.mubr.bf16.gmra.mrb[0].mxu0 %v882
        %v1428 = vpop.f32.mrb[0].mxu0
        %v1429 = vadd.f32 0.0, %v1428
        %v1430 = vpop.f32.mrb[0].mxu0
        %v1431 = vpop.f32.mrb[0].mxu0
        %v1432 = vadd.f32 0.0, %v1431
        %v1433 = vpop.f32.mrb[0].mxu0
        %1434 = vmatprep.mubr.bf16.mxu0 %v891
        %1435 = vmatmul.mubr.bf16.gmra.mrb[0].mxu0 %v890
        %v1436 = vpop.f32.mrb[0].mxu0
        %v1437 = vadd.f32 0.0, %v1436
        %v1438 = vpop.f32.mrb[0].mxu0
        %v1439 = vpop.f32.mrb[0].mxu0
        %v1440 = vadd.f32 0.0, %v1439
        %v1441 = vpop.f32.mrb[0].mxu0
        %1442 = vmatprep.mubr.bf16.mxu0 %v899
        %1443 = vmatmul.mubr.bf16.gmra.mrb[0].mxu0 %v898
        %v1444 = vpop.f32.mrb[0].mxu0
        %v1445 = vadd.f32 0.0, %v1444
        %v1446 = vpop.f32.mrb[0].mxu0
        %v1447 = vpop.f32.mrb[0].mxu0
        %v1448 = vadd.f32 0.0, %v1447
        %v1449 = vpop.f32.mrb[0].mxu0
        %1450 = vmatprep.mubr.bf16.mxu0 %v907
        %1451 = vmatmul.mubr.bf16.gmra.mrb[0].mxu0 %v906
        %v1452 = vpop.f32.mrb[0].mxu0
        %v1453 = vadd.f32 0.0, %v1452
        %v1454 = vpop.f32.mrb[0].mxu0
        %v1455 = vpop.f32.mrb[0].mxu0
        %v1456 = vadd.f32 0.0, %v1455
        %v1457 = vpop.f32.mrb[0].mxu0
        %1458 = vmatprep.mubr.bf16.mxu0 %v915
        %1459 = vmatmul.mubr.bf16.gmra.mrb[0].mxu0 %v914
        %v1460 = vpop.f32.mrb[0].mxu0
        %v1461 = vadd.f32 0.0, %v1460
        %v1462 = vpop.f32.mrb[0].mxu0
        %v1463 = vpop.f32.mrb[0].mxu0
        %v1464 = vadd.f32 0.0, %v1463
        %v1465 = vpop.f32.mrb[0].mxu0
        %1466 = vmatprep.mubr.bf16.mxu0 %v923
        %1467 = vmatmul.mubr.bf16.gmra.mrb[0].mxu0 %v922
        %v1468 = vpop.f32.mrb[0].mxu0
        %v1469 = vadd.f32 0.0, %v1468
        %v1470 = vpop.f32.mrb[0].mxu0
        %v1471 = vpop.f32.mrb[0].mxu0
        %v1472 = vadd.f32 0.0, %v1471
        %v1473 = vpop.f32.mrb[0].mxu0
        %1474 = vdwg.mxu0
        %1475 = vmatprep.subr.bf16.mxu0 0
        %1476 = vmatpush1.bf16.msra.mxu0 %v1266
        %1477 = vmatprep.subr.bf16.mxu0 0
        %1478 = vmatpush1.bf16.msra.mxu0 %v1267
        %1479 = vmatprep.subr.bf16.mxu0 0
        %1480 = vmatpush1.bf16.msra.mxu0 %v1268
        %1481 = vmatprep.subr.bf16.mxu0 0
        %1482 = vmatpush1.bf16.msra.mxu0 %v1269
        %1483 = vmatprep.subr.bf16.mxu0 0
        %1484 = vmatpush1.bf16.msra.mxu0 %v1270
        %1485 = vmatprep.subr.bf16.mxu0 0
        %1486 = vmatpush1.bf16.msra.mxu0 %v1271
        %1487 = vmatprep.subr.bf16.mxu0 0
        %1488 = vmatpush1.bf16.msra.mxu0 %v1272
        %1489 = vmatprep.subr.bf16.mxu0 0
        %1490 = vmatpush1.bf16.msra.mxu0 %v1273
        %1491 = vmatprep.subr.bf16.mxu0 0
        %1492 = vmatpush1.bf16.msra.mxu0 %v1274
        %1493 = vmatprep.subr.bf16.mxu0 0
        %1494 = vmatpush1.bf16.msra.mxu0 %v1275
        %1495 = vmatprep.subr.bf16.mxu0 0
        %1496 = vmatpush1.bf16.msra.mxu0 %v1276
        %1497 = vmatprep.subr.bf16.mxu0 0
        %1498 = vmatpush1.bf16.msra.mxu0 %v1277
        %1499 = vmatprep.subr.bf16.mxu0 0
        %1500 = vmatpush1.bf16.msra.mxu0 %v1278
        %1501 = vmatprep.subr.bf16.mxu0 0
        %1502 = vmatpush1.bf16.msra.mxu0 %v1279
        %1503 = vmatprep.subr.bf16.mxu0 0
        %1504 = vmatpush1.bf16.msra.mxu0 %v1280
        %1505 = vmatprep.subr.bf16.mxu0 0
        %1506 = vmatpush1.bf16.msra.mxu0 %v1281
        %1507 = vmatprep.mubr.bf16.mxu0 %v869
        %1508 = vmatmul.mubr.bf16.gmra.mrb[0].mxu0 %v868
        %v1509 = vpop.f32.mrb[0].mxu0
        %v1510 = vadd.f32 %v1413, %v1509
        %v1511 = vpop.f32.mrb[0].mxu0
        %v1512 = vpop.f32.mrb[0].mxu0
        %v1513 = vadd.f32 %v1416, %v1512
        %v1514 = vpop.f32.mrb[0].mxu0
        %1515 = vmatprep.mubr.bf16.mxu0 %v877
        %1516 = vmatmul.mubr.bf16.gmra.mrb[0].mxu0 %v876
        %v1517 = vpop.f32.mrb[0].mxu0
        %v1518 = vadd.f32 %v1421, %v1517
        %v1519 = vpop.f32.mrb[0].mxu0
        %v1520 = vpop.f32.mrb[0].mxu0
        %v1521 = vadd.f32 %v1424, %v1520
        %v1522 = vpop.f32.mrb[0].mxu0
        %1523 = vmatprep.mubr.bf16.mxu0 %v885
        %1524 = vmatmul.mubr.bf16.gmra.mrb[0].mxu0 %v884
        %v1525 = vpop.f32.mrb[0].mxu0
        %v1526 = vadd.f32 %v1429, %v1525
        %v1527 = vpop.f32.mrb[0].mxu0
        %v1528 = vpop.f32.mrb[0].mxu0
        %v1529 = vadd.f32 %v1432, %v1528
        %v1530 = vpop.f32.mrb[0].mxu0
        %1531 = vmatprep.mubr.bf16.mxu0 %v893
        %1532 = vmatmul.mubr.bf16.gmra.mrb[0].mxu0 %v892
        %v1533 = vpop.f32.mrb[0].mxu0
        %v1534 = vadd.f32 %v1437, %v1533
        %v1535 = vpop.f32.mrb[0].mxu0
        %v1536 = vpop.f32.mrb[0].mxu0
        %v1537 = vadd.f32 %v1440, %v1536
        %v1538 = vpop.f32.mrb[0].mxu0
        %1539 = vmatprep.mubr.bf16.mxu0 %v901
        %1540 = vmatmul.mubr.bf16.gmra.mrb[0].mxu0 %v900
        %v1541 = vpop.f32.mrb[0].mxu0
        %v1542 = vadd.f32 %v1445, %v1541
        %v1543 = vpop.f32.mrb[0].mxu0
        %v1544 = vpop.f32.mrb[0].mxu0
        %v1545 = vadd.f32 %v1448, %v1544
        %v1546 = vpop.f32.mrb[0].mxu0
        %1547 = vmatprep.mubr.bf16.mxu0 %v909
        %1548 = vmatmul.mubr.bf16.gmra.mrb[0].mxu0 %v908
        %v1549 = vpop.f32.mrb[0].mxu0
        %v1550 = vadd.f32 %v1453, %v1549
        %v1551 = vpop.f32.mrb[0].mxu0
        %v1552 = vpop.f32.mrb[0].mxu0
        %v1553 = vadd.f32 %v1456, %v1552
        %v1554 = vpop.f32.mrb[0].mxu0
        %1555 = vmatprep.mubr.bf16.mxu0 %v917
        %1556 = vmatmul.mubr.bf16.gmra.mrb[0].mxu0 %v916
        %v1557 = vpop.f32.mrb[0].mxu0
        %v1558 = vadd.f32 %v1461, %v1557
        %v1559 = vpop.f32.mrb[0].mxu0
        %v1560 = vpop.f32.mrb[0].mxu0
        %v1561 = vadd.f32 %v1464, %v1560
        %v1562 = vpop.f32.mrb[0].mxu0
        %1563 = vmatprep.mubr.bf16.mxu0 %v925
        %1564 = vmatmul.mubr.bf16.gmra.mrb[0].mxu0 %v924
        %v1565 = vpop.f32.mrb[0].mxu0
        %v1566 = vadd.f32 %v1469, %v1565
        %v1567 = vpop.f32.mrb[0].mxu0
        %v1568 = vpop.f32.mrb[0].mxu0
        %v1569 = vadd.f32 %v1472, %v1568
        %v1570 = vpop.f32.mrb[0].mxu0
        %1571 = vdwg.mxu0
        %1572 = vmatprep.subr.bf16.mxu0 0
        %1573 = vmatpush1.bf16.msra.mxu0 %v1282
        %1574 = vmatprep.subr.bf16.mxu0 0
        %1575 = vmatpush1.bf16.msra.mxu0 %v1283
        %1576 = vmatprep.subr.bf16.mxu0 0
        %1577 = vmatpush1.bf16.msra.mxu0 %v1284
        %1578 = vmatprep.subr.bf16.mxu0 0
        %1579 = vmatpush1.bf16.msra.mxu0 %v1285
        %1580 = vmatprep.subr.bf16.mxu0 0
        %1581 = vmatpush1.bf16.msra.mxu0 %v1286
        %1582 = vmatprep.subr.bf16.mxu0 0
        %1583 = vmatpush1.bf16.msra.mxu0 %v1287
        %1584 = vmatprep.subr.bf16.mxu0 0
        %1585 = vmatpush1.bf16.msra.mxu0 %v1288
        %1586 = vmatprep.subr.bf16.mxu0 0
        %1587 = vmatpush1.bf16.msra.mxu0 %v1289
        %1588 = vmatprep.subr.bf16.mxu0 0
        %1589 = vmatpush1.bf16.msra.mxu0 %v1290
        %1590 = vmatprep.subr.bf16.mxu0 0
        %1591 = vmatpush1.bf16.msra.mxu0 %v1291
        %1592 = vmatprep.subr.bf16.mxu0 0
        %1593 = vmatpush1.bf16.msra.mxu0 %v1292
        %1594 = vmatprep.subr.bf16.mxu0 0
        %1595 = vmatpush1.bf16.msra.mxu0 %v1293
        %1596 = vmatprep.subr.bf16.mxu0 0
        %1597 = vmatpush1.bf16.msra.mxu0 %v1294
        %1598 = vmatprep.subr.bf16.mxu0 0
        %1599 = vmatpush1.bf16.msra.mxu0 %v1295
        %1600 = vmatprep.subr.bf16.mxu0 0
        %1601 = vmatpush1.bf16.msra.mxu0 %v1296
        %1602 = vmatprep.subr.bf16.mxu0 0
        %1603 = vmatpush1.bf16.msra.mxu0 %v1297
        %1604 = vmatprep.mubr.bf16.mxu0 %v871
        %1605 = vmatmul.mubr.bf16.gmra.mrb[0].mxu0 %v870
        %v1606 = vpop.f32.mrb[0].mxu0
        %v1607 = vadd.f32 %v1510, %v1606
        %v1608 = vpop.f32.mrb[0].mxu0
        %v1609 = vpop.f32.mrb[0].mxu0
        %v1610 = vadd.f32 %v1513, %v1609
        %v1611 = vpop.f32.mrb[0].mxu0
        %1612 = vmatprep.mubr.bf16.mxu0 %v879
        %1613 = vmatmul.mubr.bf16.gmra.mrb[0].mxu0 %v878
        %v1614 = vpop.f32.mrb[0].mxu0
        %v1615 = vadd.f32 %v1518, %v1614
        %v1616 = vpop.f32.mrb[0].mxu0
        %v1617 = vpop.f32.mrb[0].mxu0
        %v1618 = vadd.f32 %v1521, %v1617
        %v1619 = vpop.f32.mrb[0].mxu0
        %1620 = vmatprep.mubr.bf16.mxu0 %v887
        %1621 = vmatmul.mubr.bf16.gmra.mrb[0].mxu0 %v886
        %v1622 = vpop.f32.mrb[0].mxu0
        %v1623 = vadd.f32 %v1526, %v1622
        %v1624 = vpop.f32.mrb[0].mxu0
        %v1625 = vpop.f32.mrb[0].mxu0
        %v1626 = vadd.f32 %v1529, %v1625
        %v1627 = vpop.f32.mrb[0].mxu0
        %1628 = vmatprep.mubr.bf16.mxu0 %v895
        %1629 = vmatmul.mubr.bf16.gmra.mrb[0].mxu0 %v894
        %v1630 = vpop.f32.mrb[0].mxu0
        %v1631 = vadd.f32 %v1534, %v1630
        %v1632 = vpop.f32.mrb[0].mxu0
        %v1633 = vpop.f32.mrb[0].mxu0
        %v1634 = vadd.f32 %v1537, %v1633
        %v1635 = vpop.f32.mrb[0].mxu0
        %1636 = vmatprep.mubr.bf16.mxu0 %v903
        %1637 = vmatmul.mubr.bf16.gmra.mrb[0].mxu0 %v902
        %v1638 = vpop.f32.mrb[0].mxu0
        %v1639 = vadd.f32 %v1542, %v1638
        %v1640 = vpop.f32.mrb[0].mxu0
        %v1641 = vpop.f32.mrb[0].mxu0
        %v1642 = vadd.f32 %v1545, %v1641
        %v1643 = vpop.f32.mrb[0].mxu0
        %1644 = vmatprep.mubr.bf16.mxu0 %v911
        %1645 = vmatmul.mubr.bf16.gmra.mrb[0].mxu0 %v910
        %v1646 = vpop.f32.mrb[0].mxu0
        %v1647 = vadd.f32 %v1550, %v1646
        %v1648 = vpop.f32.mrb[0].mxu0
        %v1649 = vpop.f32.mrb[0].mxu0
        %v1650 = vadd.f32 %v1553, %v1649
        %v1651 = vpop.f32.mrb[0].mxu0
        %1652 = vmatprep.mubr.bf16.mxu0 %v919
        %1653 = vmatmul.mubr.bf16.gmra.mrb[0].mxu0 %v918
        %v1654 = vpop.f32.mrb[0].mxu0
        %v1655 = vadd.f32 %v1558, %v1654
        %v1656 = vpop.f32.mrb[0].mxu0
        %v1657 = vpop.f32.mrb[0].mxu0
        %v1658 = vadd.f32 %v1561, %v1657
        %v1659 = vpop.f32.mrb[0].mxu0
        %1660 = vmatprep.mubr.bf16.mxu0 %v927
        %1661 = vmatmul.mubr.bf16.gmra.mrb[0].mxu0 %v926
        %v1662 = vpop.f32.mrb[0].mxu0
        %v1663 = vadd.f32 %v1566, %v1662
        %v1664 = vpop.f32.mrb[0].mxu0
        %v1665 = vpop.f32.mrb[0].mxu0
        %v1666 = vadd.f32 %v1569, %v1665
        %v1667 = vpop.f32.mrb[0].mxu0
        %1668 = vdwg.mxu0
        %1669 = vmatprep.subr.bf16.mxu0 0
        %1670 = vmatpush1.bf16.msra.mxu0 %v1298
        %1671 = vmatprep.subr.bf16.mxu0 0
        %1672 = vmatpush1.bf16.msra.mxu0 %v1299
        %1673 = vmatprep.subr.bf16.mxu0 0
        %1674 = vmatpush1.bf16.msra.mxu0 %v1300
        %1675 = vmatprep.subr.bf16.mxu0 0
        %1676 = vmatpush1.bf16.msra.mxu0 %v1301
        %1677 = vmatprep.subr.bf16.mxu0 0
        %1678 = vmatpush1.bf16.msra.mxu0 %v1302
        %1679 = vmatprep.subr.bf16.mxu0 0
        %1680 = vmatpush1.bf16.msra.mxu0 %v1303
        %1681 = vmatprep.subr.bf16.mxu0 0
        %1682 = vmatpush1.bf16.msra.mxu0 %v1304
        %1683 = vmatprep.subr.bf16.mxu0 0
        %1684 = vmatpush1.bf16.msra.mxu0 %v1305
        %1685 = vmatprep.subr.bf16.mxu0 0
        %1686 = vmatpush1.bf16.msra.mxu0 %v1306
        %1687 = vmatprep.subr.bf16.mxu0 0
        %1688 = vmatpush1.bf16.msra.mxu0 %v1307
        %1689 = vmatprep.subr.bf16.mxu0 0
        %1690 = vmatpush1.bf16.msra.mxu0 %v1308
        %1691 = vmatprep.subr.bf16.mxu0 0
        %1692 = vmatpush1.bf16.msra.mxu0 %v1309
        %1693 = vmatprep.subr.bf16.mxu0 0
        %1694 = vmatpush1.bf16.msra.mxu0 %v1310
        %1695 = vmatprep.subr.bf16.mxu0 0
        %1696 = vmatpush1.bf16.msra.mxu0 %v1311
        %1697 = vmatprep.subr.bf16.mxu0 0
        %1698 = vmatpush1.bf16.msra.mxu0 %v1312
        %1699 = vmatprep.subr.bf16.mxu0 0
        %1700 = vmatpush1.bf16.msra.mxu0 %v1313
        %1701 = vmatprep.mubr.bf16.mxu0 %v873
        %1702 = vmatmul.mubr.bf16.gmra.mrb[0].mxu0 %v872
        %v1703 = vpop.f32.mrb[0].mxu0
        %v1704 = vadd.f32 %v1607, %v1703
        %v1705 = vpop.f32.mrb[0].mxu0
        %v1706 = vpop.f32.mrb[0].mxu0
        %v1707 = vadd.f32 %v1610, %v1706
        %v1708 = vpop.f32.mrb[0].mxu0
        %1709 = vmatprep.mubr.bf16.mxu0 %v881
        %1710 = vmatmul.mubr.bf16.gmra.mrb[0].mxu0 %v880
        %v1711 = vpop.f32.mrb[0].mxu0
        %v1712 = vadd.f32 %v1615, %v1711
        %v1713 = vpop.f32.mrb[0].mxu0
        %v1714 = vpop.f32.mrb[0].mxu0
        %v1715 = vadd.f32 %v1618, %v1714
        %v1716 = vpop.f32.mrb[0].mxu0
        %1717 = vmatprep.mubr.bf16.mxu0 %v889
        %1718 = vmatmul.mubr.bf16.gmra.mrb[0].mxu0 %v888
        %v1719 = vpop.f32.mrb[0].mxu0
        %v1720 = vadd.f32 %v1623, %v1719
        %v1721 = vpop.f32.mrb[0].mxu0
        %v1722 = vpop.f32.mrb[0].mxu0
        %v1723 = vadd.f32 %v1626, %v1722
        %v1724 = vpop.f32.mrb[0].mxu0
        %1725 = vmatprep.mubr.bf16.mxu0 %v897
        %1726 = vmatmul.mubr.bf16.gmra.mrb[0].mxu0 %v896
        %v1727 = vpop.f32.mrb[0].mxu0
        %v1728 = vadd.f32 %v1631, %v1727
        %v1729 = vpop.f32.mrb[0].mxu0
        %v1730 = vpop.f32.mrb[0].mxu0
        %v1731 = vadd.f32 %v1634, %v1730
        %v1732 = vpop.f32.mrb[0].mxu0
        %1733 = vmatprep.mubr.bf16.mxu0 %v905
        %1734 = vmatmul.mubr.bf16.gmra.mrb[0].mxu0 %v904
        %v1735 = vpop.f32.mrb[0].mxu0
        %v1736 = vadd.f32 %v1639, %v1735
        %v1737 = vpop.f32.mrb[0].mxu0
        %v1738 = vpop.f32.mrb[0].mxu0
        %v1739 = vadd.f32 %v1642, %v1738
        %v1740 = vpop.f32.mrb[0].mxu0
        %1741 = vmatprep.mubr.bf16.mxu0 %v913
        %1742 = vmatmul.mubr.bf16.gmra.mrb[0].mxu0 %v912
        %v1743 = vpop.f32.mrb[0].mxu0
        %v1744 = vadd.f32 %v1647, %v1743
        %v1745 = vpop.f32.mrb[0].mxu0
        %v1746 = vpop.f32.mrb[0].mxu0
        %v1747 = vadd.f32 %v1650, %v1746
        %v1748 = vpop.f32.mrb[0].mxu0
        %1749 = vmatprep.mubr.bf16.mxu0 %v921
        %1750 = vmatmul.mubr.bf16.gmra.mrb[0].mxu0 %v920
        %v1751 = vpop.f32.mrb[0].mxu0
        %v1752 = vadd.f32 %v1655, %v1751
        %v1753 = vpop.f32.mrb[0].mxu0
        %v1754 = vpop.f32.mrb[0].mxu0
        %v1755 = vadd.f32 %v1658, %v1754
        %v1756 = vpop.f32.mrb[0].mxu0
        %1757 = vmatprep.mubr.bf16.mxu0 %v929
        %1758 = vmatmul.mubr.bf16.gmra.mrb[0].mxu0 %v928
        %v1759 = vpop.f32.mrb[0].mxu0
        %v1760 = vadd.f32 %v1663, %v1759
        %v1761 = vpop.f32.mrb[0].mxu0
        %v1762 = vpop.f32.mrb[0].mxu0
        %v1763 = vadd.f32 %v1666, %v1762
        %v1764 = vpop.f32.mrb[0].mxu0
        %1765 = vdwg.mxu0
        %v1766 = vadd.f32 %v466, %v1704
        %v1767 = vadd.f32 %v467, %v1707
        %v1768 = vadd.f32 %v468, %v1712
        %v1769 = vadd.f32 %v469, %v1715
        %v1770 = vadd.f32 %v470, %v1720
        %v1771 = vadd.f32 %v471, %v1723
        %v1772 = vadd.f32 %v472, %v1728
        %v1773 = vadd.f32 %v473, %v1731
        %v1774 = vadd.f32 %v474, %v1736
        %v1775 = vadd.f32 %v475, %v1739
        %v1776 = vadd.f32 %v476, %v1744
        %v1777 = vadd.f32 %v477, %v1747
        %v1778 = vadd.f32 %v478, %v1752
        %v1779 = vadd.f32 %v479, %v1755
        %v1780 = vadd.f32 %v480, %v1760
        %v1781 = vadd.f32 %v481, %v1763
        %1782 = vst [vmem:[#allocation2] sm:$0xff] %v1766
        %1783 = vst [vmem:[#allocation2 + $0x8] sm:$0xff] %v1767
        %1784 = vst [vmem:[#allocation2 + $0x10] sm:$0xff] %v1768
        %1785 = vst [vmem:[#allocation2 + $0x18] sm:$0xff] %v1769
        %1786 = vst [vmem:[#allocation2 + $0x20] sm:$0xff] %v1770
        %1787 = vst [vmem:[#allocation2 + $0x28] sm:$0xff] %v1771
        %1788 = vst [vmem:[#allocation2 + $0x30] sm:$0xff] %v1772
        %1789 = vst [vmem:[#allocation2 + $0x38] sm:$0xff] %v1773
        %1790 = vst [vmem:[#allocation2 + $0x40] sm:$0xff] %v1774
        %1791 = vst [vmem:[#allocation2 + $0x48] sm:$0xff] %v1775
        %1792 = vst [vmem:[#allocation2 + $0x50] sm:$0xff] %v1776
        %1793 = vst [vmem:[#allocation2 + $0x58] sm:$0xff] %v1777
        %1794 = vst [vmem:[#allocation2 + $0x60] sm:$0xff] %v1778
        %1795 = vst [vmem:[#allocation2 + $0x68] sm:$0xff] %v1779
        %1796 = vst [vmem:[#allocation2 + $0x70] sm:$0xff] %v1780
        %1797 = vst [vmem:[#allocation2 + $0x78] sm:$0xff] %v1781
        %p1798 = scmp.eq.s32.totalorder %s23, 1
        // Predicated region
        $region60: #{gan_forward.9} parent=50 // pred_check
          %p1799 = pneg %p1798
        $region61: #{gan_forward.9} parent=50 // pred_check_branch
          %1801 = sbr.rel (%p1799) target = $region63
        $region62: #{gan_forward.9} parent=50 // pred_region
          %v1802 = vld [vmem:[#allocation2] sm:$0xff]
          %v1803 = vld [vmem:[#allocation2 + $0x8] sm:$0xff]
          %v1804 = vld [vmem:[#allocation2 + $0x10] sm:$0xff]
          %v1805 = vld [vmem:[#allocation2 + $0x18] sm:$0xff]
          %v1806 = vld [vmem:[#allocation2 + $0x20] sm:$0xff]
          %v1807 = vld [vmem:[#allocation2 + $0x28] sm:$0xff]
          %v1808 = vld [vmem:[#allocation2 + $0x30] sm:$0xff]
          %v1809 = vld [vmem:[#allocation2 + $0x38] sm:$0xff]
          %v1810 = vld [vmem:[#allocation2 + $0x40] sm:$0xff]
          %v1811 = vld [vmem:[#allocation2 + $0x48] sm:$0xff]
          %v1812 = vld [vmem:[#allocation2 + $0x50] sm:$0xff]
          %v1813 = vld [vmem:[#allocation2 + $0x58] sm:$0xff]
          %v1814 = vld [vmem:[#allocation2 + $0x60] sm:$0xff]
          %v1815 = vld [vmem:[#allocation2 + $0x68] sm:$0xff]
          %v1816 = vld [vmem:[#allocation2 + $0x70] sm:$0xff]
          %v1817 = vld [vmem:[#allocation2 + $0x78] sm:$0xff]
          %v1818 = vld [vmem:[%s431] sm:$0x1]
          %v1820 = vlaneseq
          %v1821 = vshrl.u32 %v1820, 7
          %v1822 = vsub.s32 0, %v1821
          %v1823 = vrot.slane %v1818, %v1822
          %v1825 = vadd.f32 %v1802, %v1823
          %v1826 = vadd.f32 %v1803, %v1823
          %v1827 = vadd.f32 %v1804, %v1823
          %v1828 = vadd.f32 %v1805, %v1823
          %v1829 = vadd.f32 %v1806, %v1823
          %v1830 = vadd.f32 %v1807, %v1823
          %v1831 = vadd.f32 %v1808, %v1823
          %v1832 = vadd.f32 %v1809, %v1823
          %v1833 = vadd.f32 %v1810, %v1823
          %v1834 = vadd.f32 %v1811, %v1823
          %v1835 = vadd.f32 %v1812, %v1823
          %v1836 = vadd.f32 %v1813, %v1823
          %v1837 = vadd.f32 %v1814, %v1823
          %v1838 = vadd.f32 %v1815, %v1823
          %v1839 = vadd.f32 %v1816, %v1823
          %v1840 = vadd.f32 %v1817, %v1823
          %vm1841 = vcmp.gt.f32.partialorder %v1825, 0.0
          %vm1842 = vcmp.gt.f32.partialorder %v1826, 0.0
          %vm1843 = vcmp.gt.f32.partialorder %v1827, 0.0
          %vm1844 = vcmp.gt.f32.partialorder %v1828, 0.0
          %vm1845 = vcmp.gt.f32.partialorder %v1829, 0.0
          %vm1846 = vcmp.gt.f32.partialorder %v1830, 0.0
          %vm1847 = vcmp.gt.f32.partialorder %v1831, 0.0
          %vm1848 = vcmp.gt.f32.partialorder %v1832, 0.0
          %vm1849 = vcmp.gt.f32.partialorder %v1833, 0.0
          %vm1850 = vcmp.gt.f32.partialorder %v1834, 0.0
          %vm1851 = vcmp.gt.f32.partialorder %v1835, 0.0
          %vm1852 = vcmp.gt.f32.partialorder %v1836, 0.0
          %vm1853 = vcmp.gt.f32.partialorder %v1837, 0.0
          %vm1854 = vcmp.gt.f32.partialorder %v1838, 0.0
          %vm1855 = vcmp.gt.f32.partialorder %v1839, 0.0
          %vm1856 = vcmp.gt.f32.partialorder %v1840, 0.0
          %v1857 = vmul.f32 %v1825, 0.2
          %v1858 = vmul.f32 %v1826, 0.2
          %v1859 = vmul.f32 %v1827, 0.2
          %v1860 = vmul.f32 %v1828, 0.2
          %v1861 = vmul.f32 %v1829, 0.2
          %v1862 = vmul.f32 %v1830, 0.2
          %v1863 = vmul.f32 %v1831, 0.2
          %v1864 = vmul.f32 %v1832, 0.2
          %v1865 = vmul.f32 %v1833, 0.2
          %v1866 = vmul.f32 %v1834, 0.2
          %v1867 = vmul.f32 %v1835, 0.2
          %v1868 = vmul.f32 %v1836, 0.2
          %v1869 = vmul.f32 %v1837, 0.2
          %v1870 = vmul.f32 %v1838, 0.2
          %v1871 = vmul.f32 %v1839, 0.2
          %v1872 = vmul.f32 %v1840, 0.2
          %v1873 = vsel %vm1841, %v1825, %v1857
          %v1874 = vsel %vm1842, %v1826, %v1858
          %v1875 = vsel %vm1843, %v1827, %v1859
          %v1876 = vsel %vm1844, %v1828, %v1860
          %v1877 = vsel %vm1845, %v1829, %v1861
          %v1878 = vsel %vm1846, %v1830, %v1862
          %v1879 = vsel %vm1847, %v1831, %v1863
          %v1880 = vsel %vm1848, %v1832, %v1864
          %v1881 = vsel %vm1849, %v1833, %v1865
          %v1882 = vsel %vm1850, %v1834, %v1866
          %v1883 = vsel %vm1851, %v1835, %v1867
          %v1884 = vsel %vm1852, %v1836, %v1868
          %v1885 = vsel %vm1853, %v1837, %v1869
          %v1886 = vsel %vm1854, %v1838, %v1870
          %v1887 = vsel %vm1855, %v1839, %v1871
          %v1888 = vsel %vm1856, %v1840, %v1872
          %v1889 = vpack.c.bf16 %v1874, %v1873
          %v1890 = vpack.c.bf16 %v1876, %v1875
          %v1891 = vpack.c.bf16 %v1878, %v1877
          %v1892 = vpack.c.bf16 %v1880, %v1879
          %v1893 = vpack.c.bf16 %v1882, %v1881
          %v1894 = vpack.c.bf16 %v1884, %v1883
          %v1895 = vpack.c.bf16 %v1886, %v1885
          %v1896 = vpack.c.bf16 %v1888, %v1887
          %v1905 = vunpack.c.l.b16 %v1889
          %v1906 = vunpack.c.h.b16 %v1889
          %v1907 = vunpack.c.l.b16 %v1890
          %v1908 = vunpack.c.h.b16 %v1890
          %v1909 = vunpack.c.l.b16 %v1891
          %v1910 = vunpack.c.h.b16 %v1891
          %v1911 = vunpack.c.l.b16 %v1892
          %v1912 = vunpack.c.h.b16 %v1892
          %v1913 = vunpack.c.l.b16 %v1893
          %v1914 = vunpack.c.h.b16 %v1893
          %v1915 = vunpack.c.l.b16 %v1894
          %v1916 = vunpack.c.h.b16 %v1894
          %v1917 = vunpack.c.l.b16 %v1895
          %v1918 = vunpack.c.h.b16 %v1895
          %v1919 = vunpack.c.l.b16 %v1896
          %v1920 = vunpack.c.h.b16 %v1896
          %v1921 = vpack.c.b16 %v1905, %v1905
          %v1922 = vpack.c.b16 %v1906, %v1906
          %v1923 = vpack.c.b16 %v1907, %v1907
          %v1924 = vpack.c.b16 %v1908, %v1908
          %v1925 = vpack.c.b16 %v1909, %v1909
          %v1926 = vpack.c.b16 %v1910, %v1910
          %v1927 = vpack.c.b16 %v1911, %v1911
          %v1928 = vpack.c.b16 %v1912, %v1912
          %v1929 = vpack.c.b16 %v1913, %v1913
          %v1930 = vpack.c.b16 %v1914, %v1914
          %v1931 = vpack.c.b16 %v1915, %v1915
          %v1932 = vpack.c.b16 %v1916, %v1916
          %v1933 = vpack.c.b16 %v1917, %v1917
          %v1934 = vpack.c.b16 %v1918, %v1918
          %v1935 = vpack.c.b16 %v1919, %v1919
          %v1936 = vpack.c.b16 %v1920, %v1920
          %1953 = vst [vmem:[%s443] sm:$0xf] %v1921
          %1954 = vst [vmem:[%s443 + $0x4] sm:$0xf] %v1922
          %1955 = vst [vmem:[%s443 + $0x8] sm:$0xf] %v1923
          %1956 = vst [vmem:[%s443 + $0xc] sm:$0xf] %v1924
          %1957 = vst [vmem:[%s443 + $0x10] sm:$0xf] %v1925
          %1958 = vst [vmem:[%s443 + $0x14] sm:$0xf] %v1926
          %1959 = vst [vmem:[%s443 + $0x18] sm:$0xf] %v1927
          %1960 = vst [vmem:[%s443 + $0x1c] sm:$0xf] %v1928
          %1961 = vst [vmem:[%s443 + $0x20] sm:$0xf] %v1929
          %1962 = vst [vmem:[%s443 + $0x24] sm:$0xf] %v1930
          %1963 = vst [vmem:[%s443 + $0x28] sm:$0xf] %v1931
          %1964 = vst [vmem:[%s443 + $0x2c] sm:$0xf] %v1932
          %1965 = vst [vmem:[%s443 + $0x30] sm:$0xf] %v1933
          %1966 = vst [vmem:[%s443 + $0x34] sm:$0xf] %v1934
          %1967 = vst [vmem:[%s443 + $0x38] sm:$0xf] %v1935
          %1968 = vst [vmem:[%s443 + $0x3c] sm:$0xf] %v1936
        $region63: #{gan_forward.9} parent=50 // pred_fallthru
          _
        %s1969 = smul.u32 16, %s21
        %p1970 = scmp.lt.s32.totalorder %s20, 0
        %s1971 = scalar_select %p1970, %s20, 0
        %p1972 = scmp.lt.s32.totalorder %s1969, 15
        %s1973 = scalar_select %p1972, %s1969, 15
        %p1974 = scmp.lt.s32.totalorder %s22, 0
        %s1975 = scalar_select %p1974, %s22, 0
        %s1976 = sadd.s32 %s1975, %s1973
        %s1977 = smul.addr %s1971, 16
        %s1978 = sadd.s32 %s1976, %s1977
        %s1979 = smul.addr %s1978, 4
        %s1980 = scalar_lea.vmem %s3, %s1979
        // Predicated region
        $region64: #{gan_forward.9} parent=50 // pred_check
          %p1981 = pneg %p150
        $region65: #{gan_forward.9} parent=50 // pred_check_branch
          %1983 = sbr.rel (%p1981) target = $region67
        $region66: #{gan_forward.9} parent=50 // pred_region
          %s1984 = smul.u32 16, %s21
        $region67: #{gan_forward.9} parent=50 // pred_fallthru
          _
        // Predicated region
        $region68: #{gan_forward.9} parent=50 // pred_check
          %p1985 = pneg %p150
        $region69: #{gan_forward.9} parent=50 // pred_check_branch
          %1987 = sbr.rel (%p1985) target = $region71
        $region70: #{gan_forward.9} parent=50 // pred_region
          %s1988 = smul.u32 16, %s21
          %p1989 = scmp.lt.s32.totalorder %s20, 0
          %s1990 = scalar_select %p1989, %s20, 0
          %p1991 = scmp.lt.s32.totalorder %s1988, 15
          %s1992 = scalar_select %p1991, %s1988, 15
          %p1993 = scmp.lt.s32.totalorder %s22, 0
          %s1994 = scalar_select %p1993, %s22, 0
          %s1995 = sadd.s32 %s1994, %s1992
          %s1996 = smul.addr %s1990, 16
          %s1997 = sadd.s32 %s1995, %s1996
          %s1998 = smul.addr %s1997, 4
          %s1999 = scalar_lea.vmem %s3, %s1998
        $region71: #{gan_forward.9} parent=50 // pred_fallthru
          _
      $region51: #{gan_forward.9} parent=5 // pred_fallthru
        _
      %p2000 = scmp.le.s32.totalorder 2, %s9
      // Predicated region
      $region72: #{gan_forward.9} parent=5 // pred_check
        %p2001 = pneg %p2000
      $region73: #{gan_forward.9} parent=5 // pred_check_branch
        %2003 = sbr.rel (%p2001) target = $region75
      $region74: #{gan_forward.9} parent=5 // pred_region
        %s2004 = ssub.s32 %s9, 2
      $region75: #{gan_forward.9} parent=5 // pred_fallthru
        _
    $region6: #{gan_forward.9} parent=1 // loop_footer
      %s13 = sadd.s32 1, %s9
    $region7: #{gan_forward.9} parent=1 // loop_footer_branch
      %8 = sbr.rel target = $region3
    $region8: #{gan_forward.9} parent=1 // loop_exit
      _

// kernel: gan_forward.10
$region0: #{gan_forward.10}
  #allocation0 [shape = 'u32[]', space=smem, size = 0x4, offset = 0x4, fixed_abs, tag = 'smem constant byte address 0x4 - core index']
  #allocation1 [shape = 'u32[144,128]{1,0:T(1,128)}', space=vmem, size = 0x12000, scoped, tag = 'internal scratch']
  #allocation2 [shape = 'f32[32,128]{1,0:T(8,128)}', space=vmem, size = 0x4000, scoped, tag = 'scratch operand']
  %s0 = inlined_call_operand.vmem [shape: bf16[1,32,2048], index: 0, kind: input, shape index: {}]
  %s1 = inlined_call_operand.vmem [shape: bf16[1,2048,128], index: 1, kind: input, shape index: {}]
  %s2 = inlined_call_operand.vmem [shape: f32[1,1,128], index: 2, kind: input, shape index: {}]
  %s3 = inlined_call_operand.vmem [shape: bf16[1,32,128], index: 3, kind: output, shape index: {}]
  %s4 = sld [smem:[#allocation0]]
  $region76: #{gan_forward.10} parent=0
    _
  %s6 = ssub.s32 1, %s4
  %s7 = scalar_select 0, %s6, %s4
  $region1: #{gan_forward.10} parent=0
    #allocation3 [shape = 'u8[131072]{0}', space=vmem, size = 0x20000, scoped, tag = 'input window, operand 0']
    loop: start=0, step=1, limit=4
    $region2: #{gan_forward.10} parent=1 // loop_pre_header
      _
    $region3: #{gan_forward.10} parent=1 // loop_header
      %s9 = sphi 0, %s13
      %p10 = scmp.ge.s32.totalorder %s9, 4
      %s16 = sphi 0, %s42
      %s17 = sphi 0, %s38
      %s18 = sphi 0, %s34
      %s19 = sphi 0, %s30
      %s20 = sphi 0, %s16
      %s21 = sphi 0, %s17
      %s22 = sphi 0, %s18
      %s23 = sphi 0, %s19
      %s24 = sphi 0, %s20
      %s25 = sphi 0, %s21
      %s26 = sphi 0, %s22
      %s27 = sphi 0, %s23
      %s49 = sphi 0, %s51
      %s52 = sphi 0, %s49
      %s53 = sphi 0, %s52
      %s69 = sphi 0, %s53
      %s79 = sphi 0, %s81
      %s82 = sphi 0, %s79
      %s83 = sphi 0, %s82
      %s99 = sphi 0, %s83
      %s107 = sphi 0, %s109
      %s110 = sphi 0, %s107
      %s111 = sphi 0, %s110
      %s127 = sphi 0, %s111
      %s137 = sphi 0, %s139
      %s140 = sphi 0, %s137
      %s141 = sphi 0, %s140
      %s157 = sphi 0, %s141
    $region4: #{gan_forward.10} parent=1 // loop_header_branch
      %12 = sbr.rel (%p10) target = $region8
    $region5: #{gan_forward.10} parent=1 // loop_body
      %s14 = ssub.s32 %s9, 1
      %s15 = ssub.s32 %s9, 2
      %s28 = sadd.s32 1, %s19
      %p29 = scmp.ge.s32.totalorder %s28, 2
      %s30 = scalar_select %p29, 0, %s28
      %s31 = sadd.s32 1, %s18
      %s32 = scalar_select %p29, %s31, %s18
      %p33 = scmp.ge.s32.totalorder %s32, 1
      %s34 = scalar_select %p33, 0, %s32
      %s35 = sadd.s32 1, %s17
      %s36 = scalar_select %p33, %s35, %s17
      %p37 = scmp.ge.s32.totalorder %s36, 1
      %s38 = scalar_select %p37, 0, %s36
      %s39 = sadd.s32 1, %s16
      %s40 = scalar_select %p37, %s39, %s16
      %p41 = scmp.ge.s32.totalorder %s40, 1
      %s42 = scalar_select %p41, 0, %s40
      %s43 = ssub.s32 %s16, %s42
      %s44 = ssub.s32 %s17, %s38
      %s45 = sor.u32 %s43, %s44
      %s46 = ssub.s32 %s19, %s30
      %s47 = sor.u32 %s45, %s46
      %p48 = scmp.eq.s32.totalorder %s47, 0
      %s50 = sadd.s32 %s49, 1
      %s51 = scalar_select %p48, %s49, %s50
      %p54 = pneg %p48
      %p55 = scmp.eq.s32.totalorder %s9, 1
      %p56 = por %p54, %p55
      %p57 = scmp.ne.s32.totalorder %s49, %s52
      %p58 = scmp.eq.s32.totalorder %s9, 0
      %p59 = por %p57, %p58
      %p60 = scmp.ne.s32.totalorder %s49, %s52
      %p61 = scmp.eq.s32.totalorder %s14, 1
      %p62 = por %p60, %p61
      %p63 = scmp.ne.s32.totalorder %s52, %s53
      %p64 = scmp.eq.s32.totalorder %s14, 0
      %p65 = por %p63, %p64
      %p66 = scmp.ne.s32.totalorder %s52, %s53
      %p67 = scmp.eq.s32.totalorder %s15, 1
      %p68 = por %p66, %p67
      %p70 = scmp.ne.s32.totalorder %s53, %s69
      %p71 = scmp.eq.s32.totalorder %s15, 0
      %p72 = por %p70, %p71
      %s73 = ssub.s32 %s16, %s42
      %s74 = ssub.s32 %s19, %s30
      %s75 = sor.u32 %s73, %s74
      %s76 = ssub.s32 %s18, %s34
      %s77 = sor.u32 %s75, %s76
      %p78 = scmp.eq.s32.totalorder %s77, 0
      %s80 = sadd.s32 %s79, 1
      %s81 = scalar_select %p78, %s79, %s80
      %p84 = pneg %p78
      %p85 = scmp.eq.s32.totalorder %s9, 1
      %p86 = por %p84, %p85
      %p87 = scmp.ne.s32.totalorder %s79, %s82
      %p88 = scmp.eq.s32.totalorder %s9, 0
      %p89 = por %p87, %p88
      %p90 = scmp.ne.s32.totalorder %s79, %s82
      %p91 = scmp.eq.s32.totalorder %s14, 1
      %p92 = por %p90, %p91
      %p93 = scmp.ne.s32.totalorder %s82, %s83
      %p94 = scmp.eq.s32.totalorder %s14, 0
      %p95 = por %p93, %p94
      %p96 = scmp.ne.s32.totalorder %s82, %s83
      %p97 = scmp.eq.s32.totalorder %s15, 1
      %p98 = por %p96, %p97
      %p100 = scmp.ne.s32.totalorder %s83, %s99
      %p101 = scmp.eq.s32.totalorder %s15, 0
      %p102 = por %p100, %p101
      %s103 = ssub.s32 %s16, %s42
      %s104 = ssub.s32 %s18, %s34
      %s105 = sor.u32 %s103, %s104
      %p106 = scmp.eq.s32.totalorder %s105, 0
      %s108 = sadd.s32 %s107, 1
      %s109 = scalar_select %p106, %s107, %s108
      %p112 = pneg %p106
      %p113 = scmp.eq.s32.totalorder %s9, 1
      %p114 = por %p112, %p113
      %p115 = scmp.ne.s32.totalorder %s107, %s110
      %p116 = scmp.eq.s32.totalorder %s9, 0
      %p117 = por %p115, %p116
      %p118 = scmp.ne.s32.totalorder %s107, %s110
      %p119 = scmp.eq.s32.totalorder %s14, 1
      %p120 = por %p118, %p119
      %p121 = scmp.ne.s32.totalorder %s110, %s111
      %p122 = scmp.eq.s32.totalorder %s14, 0
      %p123 = por %p121, %p122
      %p124 = scmp.ne.s32.totalorder %s110, %s111
      %p125 = scmp.eq.s32.totalorder %s15, 1
      %p126 = por %p124, %p125
      %p128 = scmp.ne.s32.totalorder %s111, %s127
      %p129 = scmp.eq.s32.totalorder %s15, 0
      %p130 = por %p128, %p129
      %s131 = ssub.s32 %s16, %s42
      %s132 = ssub.s32 %s17, %s38
      %s133 = sor.u32 %s131, %s132
      %s134 = ssub.s32 %s18, %s34
      %s135 = sor.u32 %s133, %s134
      %p136 = scmp.eq.s32.totalorder %s135, 0
      %s138 = sadd.s32 %s137, 1
      %s139 = scalar_select %p136, %s137, %s138
      %p142 = pneg %p136
      %p143 = scmp.eq.s32.totalorder %s9, 1
      %p144 = por %p142, %p143
      %p145 = scmp.ne.s32.totalorder %s137, %s140
      %p146 = scmp.eq.s32.totalorder %s9, 0
      %p147 = por %p145, %p146
      %p148 = scmp.ne.s32.totalorder %s137, %s140
      %p149 = scmp.eq.s32.totalorder %s14, 1
      %p150 = por %p148, %p149
      %p151 = scmp.ne.s32.totalorder %s140, %s141
      %p152 = scmp.eq.s32.totalorder %s14, 0
      %p153 = por %p151, %p152
      %p154 = scmp.ne.s32.totalorder %s140, %s141
      %p155 = scmp.eq.s32.totalorder %s15, 1
      %p156 = por %p154, %p155
      %p158 = scmp.ne.s32.totalorder %s141, %s157
      %p159 = scmp.eq.s32.totalorder %s15, 0
      %p160 = por %p158, %p159
      %p161 = scmp.le.s32.totalorder 1, %s9
      %p162 = scmp.lt.s32.totalorder %s9, 3
      %p163 = pnand %p161, %p162
      %p164 = pneg %p163
      // Predicated region
      $region9: #{gan_forward.10} parent=5 // pred_check
        _
      $region10: #{gan_forward.10} parent=5 // pred_check_branch
        %166 = sbr.rel (%p163) target = $region12
      $region11: #{gan_forward.10} parent=5 // pred_region
        %s167 = ssub.s32 %s9, 1
        // Predicated region
        $region13: #{gan_forward.10} parent=11 // pred_check
          %p168 = pneg %p123
        $region14: #{gan_forward.10} parent=11 // pred_check_branch
          %170 = sbr.rel (%p168) target = $region16
        $region15: #{gan_forward.10} parent=11 // pred_region
          %p171 = scmp.lt.s32.totalorder %s20, 0
          %s172 = scalar_select %p171, %s20, 0
          %p173 = scmp.lt.s32.totalorder %s22, 0
          %s174 = scalar_select %p173, %s22, 0
          %s175 = sadd.s32 %s174, %s172
          %s176 = scalar_lea.vmem %s2, %s175
        $region16: #{gan_forward.10} parent=11 // pred_fallthru
          _
      $region12: #{gan_forward.10} parent=5 // pred_fallthru
        _
      %p177 = scmp.lt.s32.totalorder %s9, 2
      // Predicated region
      $region17: #{gan_forward.10} parent=5 // pred_check
        %p178 = pneg %p177
      $region18: #{gan_forward.10} parent=5 // pred_check_branch
        %180 = sbr.rel (%p178) target = $region20
      $region19: #{gan_forward.10} parent=5 // pred_region
        // Predicated region
        $region21: #{gan_forward.10} parent=19 // pred_check
          %p181 = pneg %p59
        $region22: #{gan_forward.10} parent=19 // pred_check_branch
          %183 = sbr.rel (%p181) target = $region24
        $region23: #{gan_forward.10} parent=19 // pred_region
          %s184 = sand.u32 %s49, 1
          %s185 = sand.u32 %s49, 1
          %s186 = smul.addr %s185, 128
          %s187 = scalar_lea.vmem [#allocation3], %s186
          %s188 = smul.u32 4, %s17
          %s189 = smul.u32 8, %s19
          %s190 = smul.addr %s188, 16
          %s191 = sadd.s32 %s189, %s190
          %s192 = smul.addr %s16, 64
          %s193 = sadd.s32 %s191, %s192
          %s194 = smul.addr %s193, 4
          %s195 = scalar_lea.vmem %s0, %s194
          // Predicated region
          $region25: #{gan_forward.10} parent=23 // pred_check
            _
          $region26: #{gan_forward.10} parent=23 // pred_check_branch
            %197 = sbr.rel (0) target = $region28
          $region27: #{gan_forward.10} parent=23 // pred_region
            // Predicated region
            $region29: #{gan_forward.10} parent=27 // pred_check
              _
            $region30: #{gan_forward.10} parent=27 // pred_check_branch
              %199 = sbr.rel (0) target = $region32
            $region31: #{gan_forward.10} parent=27 // pred_region
              loop: start=0, step=1, limit=1
              $region33: #{gan_forward.10} parent=31 // loop_pre_header
                _
              $region34: #{gan_forward.10} parent=31 // loop_header
                %s201 = sphi 0, %s205
                %p202 = scmp.ge.s32.totalorder %s201, 1
                %s206 = sphi %s195, %s195
                %s207 = sphi %s187, %s187
              $region35: #{gan_forward.10} parent=31 // loop_header_branch
                %204 = sbr.rel (%p202) target = $region39
              $region36: #{gan_forward.10} parent=31 // loop_body
                %v208 = vld [vmem:[%s206] sm:$0xff]
                %209 = vst [vmem:[%s207] sm:$0xff] %v208
                %v210 = vld [vmem:[%s206 + $0x8] sm:$0xff]
                %211 = vst [vmem:[%s207 + $0x8] sm:$0xff] %v210
                %v212 = vld [vmem:[%s206 + $0x10] sm:$0xff]
                %213 = vst [vmem:[%s207 + $0x10] sm:$0xff] %v212
                %v214 = vld [vmem:[%s206 + $0x18] sm:$0xff]
                %215 = vst [vmem:[%s207 + $0x18] sm:$0xff] %v214
                %v216 = vld [vmem:[%s206 + $0x40] sm:$0xff]
                %217 = vst [vmem:[%s207 + $0x20] sm:$0xff] %v216
                %v218 = vld [vmem:[%s206 + $0x48] sm:$0xff]
                %219 = vst [vmem:[%s207 + $0x28] sm:$0xff] %v218
                %v220 = vld [vmem:[%s206 + $0x50] sm:$0xff]
                %221 = vst [vmem:[%s207 + $0x30] sm:$0xff] %v220
                %v222 = vld [vmem:[%s206 + $0x58] sm:$0xff]
                %223 = vst [vmem:[%s207 + $0x38] sm:$0xff] %v222
                %v224 = vld [vmem:[%s206 + $0x80] sm:$0xff]
                %225 = vst [vmem:[%s207 + $0x40] sm:$0xff] %v224
                %v226 = vld [vmem:[%s206 + $0x88] sm:$0xff]
                %227 = vst [vmem:[%s207 + $0x48] sm:$0xff] %v226
                %v228 = vld [vmem:[%s206 + $0x90] sm:$0xff]
                %229 = vst [vmem:[%s207 + $0x50] sm:$0xff] %v228
                %v230 = vld [vmem:[%s206 + $0x98] sm:$0xff]
                %231 = vst [vmem:[%s207 + $0x58] sm:$0xff] %v230
                %v232 = vld [vmem:[%s206 + $0xc0] sm:$0xff]
                %233 = vst [vmem:[%s207 + $0x60] sm:$0xff] %v232
                %v234 = vld [vmem:[%s206 + $0xc8] sm:$0xff]
                %235 = vst [vmem:[%s207 + $0x68] sm:$0xff] %v234
                %v236 = vld [vmem:[%s206 + $0xd0] sm:$0xff]
                %237 = vst [vmem:[%s207 + $0x70] sm:$0xff] %v236
                %v238 = vld [vmem:[%s206 + $0xd8] sm:$0xff]
                %239 = vst [vmem:[%s207 + $0x78] sm:$0xff] %v238
              $region37: #{gan_forward.10} parent=31 // loop_footer
                %s205 = sadd.s32 1, %s201
              $region38: #{gan_forward.10} parent=31 // loop_footer_branch
                %200 = sbr.rel target = $region34
              $region39: #{gan_forward.10} parent=31 // loop_exit
                _
            $region32: #{gan_forward.10} parent=27 // pred_fallthru
              _
            // Predicated region
            $region40: #{gan_forward.10} parent=27 // pred_check
              _
            $region41: #{gan_forward.10} parent=27 // pred_check_branch
              %241 = sbr.rel target = $region43
            $region42: #{gan_forward.10} parent=27 // pred_region
              _
            $region43: #{gan_forward.10} parent=27 // pred_fallthru
              _
          $region28: #{gan_forward.10} parent=23 // pred_fallthru
            _
          %242 = vnop
        $region24: #{gan_forward.10} parent=19 // pred_fallthru
          _
        // Predicated region
        $region44: #{gan_forward.10} parent=19 // pred_check
          %p243 = pneg %p89
        $region45: #{gan_forward.10} parent=19 // pred_check_branch
          %245 = sbr.rel (%p243) target = $region47
        $region46: #{gan_forward.10} parent=19 // pred_region
          %s246 = smul.u32 128, %s19
          %p247 = scmp.lt.s32.totalorder %s16, 0
          %s248 = scalar_select %p247, %s16, 0
          %p249 = scmp.lt.s32.totalorder %s246, 255
          %s250 = scalar_select %p249, %s246, 255
          %p251 = scmp.lt.s32.totalorder %s18, 0
          %s252 = scalar_select %p251, %s18, 0
          %s253 = sadd.s32 %s252, %s250
          %s254 = smul.addr %s248, 256
          %s255 = sadd.s32 %s253, %s254
          %s256 = smul.addr %s255, 4
          %s257 = scalar_lea.vmem %s1, %s256
          %s258 = smul.u32 128, %s19
        $region47: #{gan_forward.10} parent=19 // pred_fallthru
          _
      $region20: #{gan_forward.10} parent=5 // pred_fallthru
        _
      %p259 = scmp.le.s32.totalorder 1, %s9
      %p260 = scmp.lt.s32.totalorder %s9, 3
      %p261 = pnand %p259, %p260
      %p262 = pneg %p261
      // Predicated region
      $region48: #{gan_forward.10} parent=5 // pred_check
        _
      $region49: #{gan_forward.10} parent=5 // pred_check_branch
        %264 = sbr.rel (%p261) target = $region51
      $region50: #{gan_forward.10} parent=5 // pred_region
        %s265 = ssub.s32 %s9, 1
        %s266 = sand.u32 %s52, 1
        %s267 = sand.u32 %s52, 1
        %s268 = smul.addr %s267, 128
        %s269 = scalar_lea.vmem [#allocation3], %s268
        // Predicated region
        $region52: #{gan_forward.10} parent=50 // pred_check
          %p270 = pneg %p65
        $region53: #{gan_forward.10} parent=50 // pred_check_branch
          %272 = sbr.rel (%p270) target = $region55
        $region54: #{gan_forward.10} parent=50 // pred_region
          _
        $region55: #{gan_forward.10} parent=50 // pred_fallthru
          _
        %s273 = sand.u32 %s52, 1
        %s274 = sand.u32 %s52, 1
        %s275 = smul.addr %s274, 128
        %s276 = scalar_lea.vmem [#allocation3], %s275
        %p277 = pneg %p65
        %p278 = pneg %p62
        %s279 = smul.u32 128, %s23
        %p280 = scmp.lt.s32.totalorder %s20, 0
        %s281 = scalar_select %p280, %s20, 0
        %p282 = scmp.lt.s32.totalorder %s279, 255
        %s283 = scalar_select %p282, %s279, 255
        %p284 = scmp.lt.s32.totalorder %s22, 0
        %s285 = scalar_select %p284, %s22, 0
        %s286 = sadd.s32 %s285, %s283
        %s287 = smul.addr %s281, 256
        %s288 = sadd.s32 %s286, %s287
        %s289 = smul.addr %s288, 4
        %s290 = scalar_lea.vmem %s1, %s289
        %p291 = pneg %p95
        %p292 = pneg %p92
        %p293 = scmp.lt.s32.totalorder %s20, 0
        %s294 = scalar_select %p293, %s20, 0
        %p295 = scmp.lt.s32.totalorder %s22, 0
        %s296 = scalar_select %p295, %s22, 0
        %s297 = sadd.s32 %s296, %s294
        %s298 = scalar_lea.vmem %s2, %s297
        %p299 = pneg %p123
        %p300 = pneg %p120
        %p301 = pneg %p153
        %p302 = pneg %p150
        %s303 = smul.u32 4, %s21
        %p304 = scmp.lt.s32.totalorder %s20, 0
        %s305 = scalar_select %p304, %s20, 0
        %p306 = scmp.lt.s32.totalorder %s303, 3
        %s307 = scalar_select %p306, %s303, 3
        %p308 = scmp.lt.s32.totalorder %s22, 0
        %s309 = scalar_select %p308, %s22, 0
        %s310 = sadd.s32 %s309, %s307
        %s311 = smul.addr %s305, 4
        %s312 = sadd.s32 %s310, %s311
        %s313 = smul.addr %s312, 4
        %s314 = scalar_lea.vmem %s3, %s313
        %s315 = smul.u32 4, %s21
        %s316 = smul.u32 8, %s23
        %s317 = smul.u32 128, %s23
        %p318 = scmp.lt.s32.totalorder %s20, 0
        %s319 = scalar_select %p318, %s20, 0
        %p320 = scmp.lt.s32.totalorder %s317, 255
        %s321 = scalar_select %p320, %s317, 255
        %p322 = scmp.lt.s32.totalorder %s22, 0
        %s323 = scalar_select %p322, %s22, 0
        %s324 = sadd.s32 %s323, %s321
        %s325 = smul.addr %s319, 256
        %s326 = sadd.s32 %s324, %s325
        %s327 = smul.addr %s326, 4
        %s328 = scalar_lea.vmem %s1, %s327
        %s329 = smul.u32 128, %s23
        %p330 = scmp.lt.s32.totalorder %s20, 0
        %s331 = scalar_select %p330, %s20, 0
        %p332 = scmp.lt.s32.totalorder %s22, 0
        %s333 = scalar_select %p332, %s22, 0
        %s334 = sadd.s32 %s333, %s331
        %s335 = scalar_lea.vmem %s2, %s334
        %s336 = smul.u32 4, %s21
        %p337 = scmp.lt.s32.totalorder %s20, 0
        %s338 = scalar_select %p337, %s20, 0
        %p339 = scmp.lt.s32.totalorder %s336, 3
        %s340 = scalar_select %p339, %s336, 3
        %p341 = scmp.lt.s32.totalorder %s22, 0
        %s342 = scalar_select %p341, %s22, 0
        %s343 = sadd.s32 %s342, %s340
        %s344 = smul.addr %s338, 4
        %s345 = sadd.s32 %s343, %s344
        %s346 = smul.addr %s345, 4
        %s347 = scalar_lea.vmem %s3, %s346
        %s348 = smul.u32 4, %s21
        %p350 = scmp.eq.s32.totalorder %s23, 0
        // Predicated region
        $region56: #{gan_forward.10} parent=50 // pred_check
          %p351 = pneg %p350
        $region57: #{gan_forward.10} parent=50 // pred_check_branch
          %353 = sbr.rel (%p351) target = $region59
        $region58: #{gan_forward.10} parent=50 // pred_region
          %354 = vst [vmem:[#allocation2] sm:$0xff] 0.0
          %355 = vst [vmem:[#allocation2 + $0x8] sm:$0xff] 0.0
          %356 = vst [vmem:[#allocation2 + $0x10] sm:$0xff] 0.0
          %357 = vst [vmem:[#allocation2 + $0x18] sm:$0xff] 0.0
        $region59: #{gan_forward.10} parent=50 // pred_fallthru
          _
        %v358 = vld [vmem:[#allocation2] sm:$0xff]
        %v359 = vld [vmem:[#allocation2 + $0x8] sm:$0xff]
        %v360 = vld [vmem:[#allocation2 + $0x10] sm:$0xff]
        %v361 = vld [vmem:[#allocation2 + $0x18] sm:$0xff]
        %v362 = vld [vmem:[%s269] sm:$0xff]
        %v363 = vld [vmem:[%s269 + $0x8] sm:$0xff]
        %v364 = vld [vmem:[%s269 + $0x10] sm:$0xff]
        %v365 = vld [vmem:[%s269 + $0x18] sm:$0xff]
        %v366 = vld [vmem:[%s269 + $0x20] sm:$0xff]
        %v367 = vld [vmem:[%s269 + $0x28] sm:$0xff]
        %v368 = vld [vmem:[%s269 + $0x30] sm:$0xff]
        %v369 = vld [vmem:[%s269 + $0x38] sm:$0xff]
        %v370 = vld [vmem:[%s269 + $0x40] sm:$0xff]
        %v371 = vld [vmem:[%s269 + $0x48] sm:$0xff]
        %v372 = vld [vmem:[%s269 + $0x50] sm:$0xff]
        %v373 = vld [vmem:[%s269 + $0x58] sm:$0xff]
        %v374 = vld [vmem:[%s269 + $0x60] sm:$0xff]
        %v375 = vld [vmem:[%s269 + $0x68] sm:$0xff]
        %v376 = vld [vmem:[%s269 + $0x70] sm:$0xff]
        %v377 = vld [vmem:[%s269 + $0x78] sm:$0xff]
        %v378 = vld [vmem:[%s328] sm:$0xf]
        %v379 = vld [vmem:[%s328 + $0x4] sm:$0xf]
        %v380 = vld [vmem:[%s328 + $0x8] sm:$0xf]
        %v381 = vld [vmem:[%s328 + $0xc] sm:$0xf]
        %v382 = vld [vmem:[%s328 + $0x10] sm:$0xf]
        %v383 = vld [vmem:[%s328 + $0x14] sm:$0xf]
        %v384 = vld [vmem:[%s328 + $0x18] sm:$0xf]
        %v385 = vld [vmem:[%s328 + $0x1c] sm:$0xf]
        %v386 = vld [vmem:[%s328 + $0x20] sm:$0xf]
        %v387 = vld [vmem:[%s328 + $0x24] sm:$0xf]
        %v388 = vld [vmem:[%s328 + $0x28] sm:$0xf]
        %v389 = vld [vmem:[%s328 + $0x2c] sm:$0xf]
        %v390 = vld [vmem:[%s328 + $0x30] sm:$0xf]
        %v391 = vld [vmem:[%s328 + $0x34] sm:$0xf]
        %v392 = vld [vmem:[%s328 + $0x38] sm:$0xf]
        %v393 = vld [vmem:[%s328 + $0x3c] sm:$0xf]
        %v394 = vld [vmem:[%s328 + $0x40] sm:$0xf]
        %v395 = vld [vmem:[%s328 + $0x44] sm:$0xf]
        %v396 = vld [vmem:[%s328 + $0x48] sm:$0xf]
        %v397 = vld [vmem:[%s328 + $0x4c] sm:$0xf]
        %v398 = vld [vmem:[%s328 + $0x50] sm:$0xf]
        %v399 = vld [vmem:[%s328 + $0x54] sm:$0xf]
        %v400 = vld [vmem:[%s328 + $0x58] sm:$0xf]
        %v401 = vld [vmem:[%s328 + $0x5c] sm:$0xf]
        %v402 = vld [vmem:[%s328 + $0x60] sm:$0xf]
        %v403 = vld [vmem:[%s328 + $0x64] sm:$0xf]
        %v404 = vld [vmem:[%s328 + $0x68] sm:$0xf]
        %v405 = vld [vmem:[%s328 + $0x6c] sm:$0xf]
        %v406 = vld [vmem:[%s328 + $0x70] sm:$0xf]
        %v407 = vld [vmem:[%s328 + $0x74] sm:$0xf]
        %v408 = vld [vmem:[%s328 + $0x78] sm:$0xf]
        %v409 = vld [vmem:[%s328 + $0x7c] sm:$0xf]
        %v410 = vld [vmem:[%s328 + $0x80] sm:$0xf]
        %v411 = vld [vmem:[%s328 + $0x84] sm:$0xf]
        %v412 = vld [vmem:[%s328 + $0x88] sm:$0xf]
        %v413 = vld [vmem:[%s328 + $0x8c] sm:$0xf]
        %v414 = vld [vmem:[%s328 + $0x90] sm:$0xf]
        %v415 = vld [vmem:[%s328 + $0x94] sm:$0xf]
        %v416 = vld [vmem:[%s328 + $0x98] sm:$0xf]
        %v417 = vld [vmem:[%s328 + $0x9c] sm:$0xf]
        %v418 = vld [vmem:[%s328 + $0xa0] sm:$0xf]
        %v419 = vld [vmem:[%s328 + $0xa4] sm:$0xf]
        %v420 = vld [vmem:[%s328 + $0xa8] sm:$0xf]
        %v421 = vld [vmem:[%s328 + $0xac] sm:$0xf]
        %v422 = vld [vmem:[%s328 + $0xb0] sm:$0xf]
        %v423 = vld [vmem:[%s328 + $0xb4] sm:$0xf]
        %v424 = vld [vmem:[%s328 + $0xb8] sm:$0xf]
        %v425 = vld [vmem:[%s328 + $0xbc] sm:$0xf]
        %v426 = vld [vmem:[%s328 + $0xc0] sm:$0xf]
        %v427 = vld [vmem:[%s328 + $0xc4] sm:$0xf]
        %v428 = vld [vmem:[%s328 + $0xc8] sm:$0xf]
        %v429 = vld [vmem:[%s328 + $0xcc] sm:$0xf]
        %v430 = vld [vmem:[%s328 + $0xd0] sm:$0xf]
        %v431 = vld [vmem:[%s328 + $0xd4] sm:$0xf]
        %v432 = vld [vmem:[%s328 + $0xd8] sm:$0xf]
        %v433 = vld [vmem:[%s328 + $0xdc] sm:$0xf]
        %v434 = vld [vmem:[%s328 + $0xe0] sm:$0xf]
        %v435 = vld [vmem:[%s328 + $0xe4] sm:$0xf]
        %v436 = vld [vmem:[%s328 + $0xe8] sm:$0xf]
        %v437 = vld [vmem:[%s328 + $0xec] sm:$0xf]
        %v438 = vld [vmem:[%s328 + $0xf0] sm:$0xf]
        %v439 = vld [vmem:[%s328 + $0xf4] sm:$0xf]
        %v440 = vld [vmem:[%s328 + $0xf8] sm:$0xf]
        %v441 = vld [vmem:[%s328 + $0xfc] sm:$0xf]
        %v442 = vld [vmem:[%s328 + $0x100] sm:$0xf]
        %v443 = vld [vmem:[%s328 + $0x104] sm:$0xf]
        %v444 = vld [vmem:[%s328 + $0x108] sm:$0xf]
        %v445 = vld [vmem:[%s328 + $0x10c] sm:$0xf]
        %v446 = vld [vmem:[%s328 + $0x110] sm:$0xf]
        %v447 = vld [vmem:[%s328 + $0x114] sm:$0xf]
        %v448 = vld [vmem:[%s328 + $0x118] sm:$0xf]
        %v449 = vld [vmem:[%s328 + $0x11c] sm:$0xf]
        %v450 = vld [vmem:[%s328 + $0x120] sm:$0xf]
        %v451 = vld [vmem:[%s328 + $0x124] sm:$0xf]
        %v452 = vld [vmem:[%s328 + $0x128] sm:$0xf]
        %v453 = vld [vmem:[%s328 + $0x12c] sm:$0xf]
        %v454 = vld [vmem:[%s328 + $0x130] sm:$0xf]
        %v455 = vld [vmem:[%s328 + $0x134] sm:$0xf]
        %v456 = vld [vmem:[%s328 + $0x138] sm:$0xf]
        %v457 = vld [vmem:[%s328 + $0x13c] sm:$0xf]
        %v458 = vld [vmem:[%s328 + $0x140] sm:$0xf]
        %v459 = vld [vmem:[%s328 + $0x144] sm:$0xf]
        %v460 = vld [vmem:[%s328 + $0x148] sm:$0xf]
        %v461 = vld [vmem:[%s328 + $0x14c] sm:$0xf]
        %v462 = vld [vmem:[%s328 + $0x150] sm:$0xf]
        %v463 = vld [vmem:[%s328 + $0x154] sm:$0xf]
        %v464 = vld [vmem:[%s328 + $0x158] sm:$0xf]
        %v465 = vld [vmem:[%s328 + $0x15c] sm:$0xf]
        %v466 = vld [vmem:[%s328 + $0x160] sm:$0xf]
        %v467 = vld [vmem:[%s328 + $0x164] sm:$0xf]
        %v468 = vld [vmem:[%s328 + $0x168] sm:$0xf]
        %v469 = vld [vmem:[%s328 + $0x16c] sm:$0xf]
        %v470 = vld [vmem:[%s328 + $0x170] sm:$0xf]
        %v471 = vld [vmem:[%s328 + $0x174] sm:$0xf]
        %v472 = vld [vmem:[%s328 + $0x178] sm:$0xf]
        %v473 = vld [vmem:[%s328 + $0x17c] sm:$0xf]
        %v474 = vld [vmem:[%s328 + $0x180] sm:$0xf]
        %v475 = vld [vmem:[%s328 + $0x184] sm:$0xf]
        %v476 = vld [vmem:[%s328 + $0x188] sm:$0xf]
        %v477 = vld [vmem:[%s328 + $0x18c] sm:$0xf]
        %v478 = vld [vmem:[%s328 + $0x190] sm:$0xf]
        %v479 = vld [vmem:[%s328 + $0x194] sm:$0xf]
        %v480 = vld [vmem:[%s328 + $0x198] sm:$0xf]
        %v481 = vld [vmem:[%s328 + $0x19c] sm:$0xf]
        %v482 = vld [vmem:[%s328 + $0x1a0] sm:$0xf]
        %v483 = vld [vmem:[%s328 + $0x1a4] sm:$0xf]
        %v484 = vld [vmem:[%s328 + $0x1a8] sm:$0xf]
        %v485 = vld [vmem:[%s328 + $0x1ac] sm:$0xf]
        %v486 = vld [vmem:[%s328 + $0x1b0] sm:$0xf]
        %v487 = vld [vmem:[%s328 + $0x1b4] sm:$0xf]
        %v488 = vld [vmem:[%s328 + $0x1b8] sm:$0xf]
        %v489 = vld [vmem:[%s328 + $0x1bc] sm:$0xf]
        %v490 = vld [vmem:[%s328 + $0x1c0] sm:$0xf]
        %v491 = vld [vmem:[%s328 + $0x1c4] sm:$0xf]
        %v492 = vld [vmem:[%s328 + $0x1c8] sm:$0xf]
        %v493 = vld [vmem:[%s328 + $0x1cc] sm:$0xf]
        %v494 = vld [vmem:[%s328 + $0x1d0] sm:$0xf]
        %v495 = vld [vmem:[%s328 + $0x1d4] sm:$0xf]
        %v496 = vld [vmem:[%s328 + $0x1d8] sm:$0xf]
        %v497 = vld [vmem:[%s328 + $0x1dc] sm:$0xf]
        %v498 = vld [vmem:[%s328 + $0x1e0] sm:$0xf]
        %v499 = vld [vmem:[%s328 + $0x1e4] sm:$0xf]
        %v500 = vld [vmem:[%s328 + $0x1e8] sm:$0xf]
        %v501 = vld [vmem:[%s328 + $0x1ec] sm:$0xf]
        %v502 = vld [vmem:[%s328 + $0x1f0] sm:$0xf]
        %v503 = vld [vmem:[%s328 + $0x1f4] sm:$0xf]
        %v504 = vld [vmem:[%s328 + $0x1f8] sm:$0xf]
        %v505 = vld [vmem:[%s328 + $0x1fc] sm:$0xf]
        %v522 = vunpack.c.l.b16 %v362
        %v523 = vunpack.c.h.b16 %v362
        %v524 = vunpack.c.l.b16 %v363
        %v525 = vunpack.c.h.b16 %v363
        %v526 = vunpack.c.l.b16 %v364
        %v527 = vunpack.c.h.b16 %v364
        %v528 = vunpack.c.l.b16 %v365
        %v529 = vunpack.c.h.b16 %v365
        %v530 = vunpack.c.l.b16 %v366
        %v531 = vunpack.c.h.b16 %v366
        %v532 = vunpack.c.l.b16 %v367
        %v533 = vunpack.c.h.b16 %v367
        %v534 = vunpack.c.l.b16 %v368
        %v535 = vunpack.c.h.b16 %v368
        %v536 = vunpack.c.l.b16 %v369
        %v537 = vunpack.c.h.b16 %v369
        %v538 = vunpack.c.l.b16 %v370
        %v539 = vunpack.c.h.b16 %v370
        %v540 = vunpack.c.l.b16 %v371
        %v541 = vunpack.c.h.b16 %v371
        %v542 = vunpack.c.l.b16 %v372
        %v543 = vunpack.c.h.b16 %v372
        %v544 = vunpack.c.l.b16 %v373
        %v545 = vunpack.c.h.b16 %v373
        %v546 = vunpack.c.l.b16 %v374
        %v547 = vunpack.c.h.b16 %v374
        %v548 = vunpack.c.l.b16 %v375
        %v549 = vunpack.c.h.b16 %v375
        %v550 = vunpack.c.l.b16 %v376
        %v551 = vunpack.c.h.b16 %v376
        %v552 = vunpack.c.l.b16 %v377
        %v553 = vunpack.c.h.b16 %v377
        %v554 = vpack.c.b16 %v530, %v522
        %v555 = vpack.c.b16 %v531, %v523
        %v556 = vpack.c.b16 %v532, %v524
        %v557 = vpack.c.b16 %v533, %v525
        %v558 = vpack.c.b16 %v534, %v526
        %v559 = vpack.c.b16 %v535, %v527
        %v560 = vpack.c.b16 %v536, %v528
        %v561 = vpack.c.b16 %v537, %v529
        %v562 = vpack.c.b16 %v546, %v538
        %v563 = vpack.c.b16 %v547, %v539
        %v564 = vpack.c.b16 %v548, %v540
        %v565 = vpack.c.b16 %v549, %v541
        %v566 = vpack.c.b16 %v550, %v542
        %v567 = vpack.c.b16 %v551, %v543
        %v568 = vpack.c.b16 %v552, %v544
        %v569 = vpack.c.b16 %v553, %v545
        %v714 = vunpack.c.l.b16 %v378
        %v715 = vunpack.c.l.b16 %v379
        %v716 = vunpack.c.l.b16 %v380
        %v717 = vunpack.c.l.b16 %v381
        %v718 = vunpack.c.l.b16 %v382
        %v719 = vunpack.c.l.b16 %v383
        %v720 = vunpack.c.l.b16 %v384
        %v721 = vunpack.c.l.b16 %v385
        %v722 = vunpack.c.l.b16 %v386
        %v723 = vunpack.c.l.b16 %v387
        %v724 = vunpack.c.l.b16 %v388
        %v725 = vunpack.c.l.b16 %v389
        %v726 = vunpack.c.l.b16 %v390
        %v727 = vunpack.c.l.b16 %v391
        %v728 = vunpack.c.l.b16 %v392
        %v729 = vunpack.c.l.b16 %v393
        %v730 = vunpack.c.l.b16 %v394
        %v731 = vunpack.c.l.b16 %v395
        %v732 = vunpack.c.l.b16 %v396
        %v733 = vunpack.c.l.b16 %v397
        %v734 = vunpack.c.l.b16 %v398
        %v735 = vunpack.c.l.b16 %v399
        %v736 = vunpack.c.l.b16 %v400
        %v737 = vunpack.c.l.b16 %v401
        %v738 = vunpack.c.l.b16 %v402
        %v739 = vunpack.c.l.b16 %v403
        %v740 = vunpack.c.l.b16 %v404
        %v741 = vunpack.c.l.b16 %v405
        %v742 = vunpack.c.l.b16 %v406
        %v743 = vunpack.c.l.b16 %v407
        %v744 = vunpack.c.l.b16 %v408
        %v745 = vunpack.c.l.b16 %v409
        %v746 = vunpack.c.l.b16 %v410
        %v747 = vunpack.c.l.b16 %v411
        %v748 = vunpack.c.l.b16 %v412
        %v749 = vunpack.c.l.b16 %v413
        %v750 = vunpack.c.l.b16 %v414
        %v751 = vunpack.c.l.b16 %v415
        %v752 = vunpack.c.l.b16 %v416
        %v753 = vunpack.c.l.b16 %v417
        %v754 = vunpack.c.l.b16 %v418
        %v755 = vunpack.c.l.b16 %v419
        %v756 = vunpack.c.l.b16 %v420
        %v757 = vunpack.c.l.b16 %v421
        %v758 = vunpack.c.l.b16 %v422
        %v759 = vunpack.c.l.b16 %v423
        %v760 = vunpack.c.l.b16 %v424
        %v761 = vunpack.c.l.b16 %v425
        %v762 = vunpack.c.l.b16 %v426
        %v763 = vunpack.c.l.b16 %v427
        %v764 = vunpack.c.l.b16 %v428
        %v765 = vunpack.c.l.b16 %v429
        %v766 = vunpack.c.l.b16 %v430
        %v767 = vunpack.c.l.b16 %v431
        %v768 = vunpack.c.l.b16 %v432
        %v769 = vunpack.c.l.b16 %v433
        %v770 = vunpack.c.l.b16 %v434
        %v771 = vunpack.c.l.b16 %v435
        %v772 = vunpack.c.l.b16 %v436
        %v773 = vunpack.c.l.b16 %v437
        %v774 = vunpack.c.l.b16 %v438
        %v775 = vunpack.c.l.b16 %v439
        %v776 = vunpack.c.l.b16 %v440
        %v777 = vunpack.c.l.b16 %v441
        %v778 = vunpack.c.l.b16 %v442
        %v779 = vunpack.c.l.b16 %v443
        %v780 = vunpack.c.l.b16 %v444
        %v781 = vunpack.c.l.b16 %v445
        %v782 = vunpack.c.l.b16 %v446
        %v783 = vunpack.c.l.b16 %v447
        %v784 = vunpack.c.l.b16 %v448
        %v785 = vunpack.c.l.b16 %v449
        %v786 = vunpack.c.l.b16 %v450
        %v787 = vunpack.c.l.b16 %v451
        %v788 = vunpack.c.l.b16 %v452
        %v789 = vunpack.c.l.b16 %v453
        %v790 = vunpack.c.l.b16 %v454
        %v791 = vunpack.c.l.b16 %v455
        %v792 = vunpack.c.l.b16 %v456
        %v793 = vunpack.c.l.b16 %v457
        %v794 = vunpack.c.l.b16 %v458
        %v795 = vunpack.c.l.b16 %v459
        %v796 = vunpack.c.l.b16 %v460
        %v797 = vunpack.c.l.b16 %v461
        %v798 = vunpack.c.l.b16 %v462
        %v799 = vunpack.c.l.b16 %v463
        %v800 = vunpack.c.l.b16 %v464
        %v801 = vunpack.c.l.b16 %v465
        %v802 = vunpack.c.l.b16 %v466
        %v803 = vunpack.c.l.b16 %v467
        %v804 = vunpack.c.l.b16 %v468
        %v805 = vunpack.c.l.b16 %v469
        %v806 = vunpack.c.l.b16 %v470
        %v807 = vunpack.c.l.b16 %v471
        %v808 = vunpack.c.l.b16 %v472
        %v809 = vunpack.c.l.b16 %v473
        %v810 = vunpack.c.l.b16 %v474
        %v811 = vunpack.c.l.b16 %v475
        %v812 = vunpack.c.l.b16 %v476
        %v813 = vunpack.c.l.b16 %v477
        %v814 = vunpack.c.l.b16 %v478
        %v815 = vunpack.c.l.b16 %v479
        %v816 = vunpack.c.l.b16 %v480
        %v817 = vunpack.c.l.b16 %v481
        %v818 = vunpack.c.l.b16 %v482
        %v819 = vunpack.c.l.b16 %v483
        %v820 = vunpack.c.l.b16 %v484
        %v821 = vunpack.c.l.b16 %v485
        %v822 = vunpack.c.l.b16 %v486
        %v823 = vunpack.c.l.b16 %v487
        %v824 = vunpack.c.l.b16 %v488
        %v825 = vunpack.c.l.b16 %v489
        %v826 = vunpack.c.l.b16 %v490
        %v827 = vunpack.c.l.b16 %v491
        %v828 = vunpack.c.l.b16 %v492
        %v829 = vunpack.c.l.b16 %v493
        %v830 = vunpack.c.l.b16 %v494
        %v831 = vunpack.c.l.b16 %v495
        %v832 = vunpack.c.l.b16 %v496
        %v833 = vunpack.c.l.b16 %v497
        %v834 = vunpack.c.l.b16 %v498
        %v835 = vunpack.c.l.b16 %v499
        %v836 = vunpack.c.l.b16 %v500
        %v837 = vunpack.c.l.b16 %v501
        %v838 = vunpack.c.l.b16 %v502
        %v839 = vunpack.c.l.b16 %v503
        %v840 = vunpack.c.l.b16 %v504
        %v841 = vunpack.c.l.b16 %v505
        %v842 = vpack.c.b16 %v715, %v714
        %v843 = vpack.c.b16 %v717, %v716
        %v844 = vpack.c.b16 %v719, %v718
        %v845 = vpack.c.b16 %v721, %v720
        %v846 = vpack.c.b16 %v723, %v722
        %v847 = vpack.c.b16 %v725, %v724
        %v848 = vpack.c.b16 %v727, %v726
        %v849 = vpack.c.b16 %v729, %v728
        %v850 = vpack.c.b16 %v731, %v730
        %v851 = vpack.c.b16 %v733, %v732
        %v852 = vpack.c.b16 %v735, %v734
        %v853 = vpack.c.b16 %v737, %v736
        %v854 = vpack.c.b16 %v739, %v738
        %v855 = vpack.c.b16 %v741, %v740
        %v856 = vpack.c.b16 %v743, %v742
        %v857 = vpack.c.b16 %v745, %v744
        %v858 = vpack.c.b16 %v747, %v746
        %v859 = vpack.c.b16 %v749, %v748
        %v860 = vpack.c.b16 %v751, %v750
        %v861 = vpack.c.b16 %v753, %v752
        %v862 = vpack.c.b16 %v755, %v754
        %v863 = vpack.c.b16 %v757, %v756
        %v864 = vpack.c.b16 %v759, %v758
        %v865 = vpack.c.b16 %v761, %v760
        %v866 = vpack.c.b16 %v763, %v762
        %v867 = vpack.c.b16 %v765, %v764
        %v868 = vpack.c.b16 %v767, %v766
        %v869 = vpack.c.b16 %v769, %v768
        %v870 = vpack.c.b16 %v771, %v770
        %v871 = vpack.c.b16 %v773, %v772
        %v872 = vpack.c.b16 %v775, %v774
        %v873 = vpack.c.b16 %v777, %v776
        %v874 = vpack.c.b16 %v779, %v778
        %v875 = vpack.c.b16 %v781, %v780
        %v876 = vpack.c.b16 %v783, %v782
        %v877 = vpack.c.b16 %v785, %v784
        %v878 = vpack.c.b16 %v787, %v786
        %v879 = vpack.c.b16 %v789, %v788
        %v880 = vpack.c.b16 %v791, %v790
        %v881 = vpack.c.b16 %v793, %v792
        %v882 = vpack.c.b16 %v795, %v794
        %v883 = vpack.c.b16 %v797, %v796
        %v884 = vpack.c.b16 %v799, %v798
        %v885 = vpack.c.b16 %v801, %v800
        %v886 = vpack.c.b16 %v803, %v802
        %v887 = vpack.c.b16 %v805, %v804
        %v888 = vpack.c.b16 %v807, %v806
        %v889 = vpack.c.b16 %v809, %v808
        %v890 = vpack.c.b16 %v811, %v810
        %v891 = vpack.c.b16 %v813, %v812
        %v892 = vpack.c.b16 %v815, %v814
        %v893 = vpack.c.b16 %v817, %v816
        %v894 = vpack.c.b16 %v819, %v818
        %v895 = vpack.c.b16 %v821, %v820
        %v896 = vpack.c.b16 %v823, %v822
        %v897 = vpack.c.b16 %v825, %v824
        %v898 = vpack.c.b16 %v827, %v826
        %v899 = vpack.c.b16 %v829, %v828
        %v900 = vpack.c.b16 %v831, %v830
        %v901 = vpack.c.b16 %v833, %v832
        %v902 = vpack.c.b16 %v835, %v834
        %v903 = vpack.c.b16 %v837, %v836
        %v904 = vpack.c.b16 %v839, %v838
        %v905 = vpack.c.b16 %v841, %v840
        %970 = vmatprep.subr.bf16.mxu0 0
        %971 = vmatpush1.bf16.msra.mxu0 %v842
        %972 = vmatprep.subr.bf16.mxu0 0
        %973 = vmatpush1.bf16.msra.mxu0 %v843
        %974 = vmatprep.subr.bf16.mxu0 0
        %975 = vmatpush1.bf16.msra.mxu0 %v844
        %976 = vmatprep.subr.bf16.mxu0 0
        %977 = vmatpush1.bf16.msra.mxu0 %v845
        %978 = vmatprep.subr.bf16.mxu0 0
        %979 = vmatpush1.bf16.msra.mxu0 %v846
        %980 = vmatprep.subr.bf16.mxu0 0
        %981 = vmatpush1.bf16.msra.mxu0 %v847
        %982 = vmatprep.subr.bf16.mxu0 0
        %983 = vmatpush1.bf16.msra.mxu0 %v848
        %984 = vmatprep.subr.bf16.mxu0 0
        %985 = vmatpush1.bf16.msra.mxu0 %v849
        %986 = vmatprep.subr.bf16.mxu0 0
        %987 = vmatpush1.bf16.msra.mxu0 %v850
        %988 = vmatprep.subr.bf16.mxu0 0
        %989 = vmatpush1.bf16.msra.mxu0 %v851
        %990 = vmatprep.subr.bf16.mxu0 0
        %991 = vmatpush1.bf16.msra.mxu0 %v852
        %992 = vmatprep.subr.bf16.mxu0 0
        %993 = vmatpush1.bf16.msra.mxu0 %v853
        %994 = vmatprep.subr.bf16.mxu0 0
        %995 = vmatpush1.bf16.msra.mxu0 %v854
        %996 = vmatprep.subr.bf16.mxu0 0
        %997 = vmatpush1.bf16.msra.mxu0 %v855
        %998 = vmatprep.subr.bf16.mxu0 0
        %999 = vmatpush1.bf16.msra.mxu0 %v856
        %1000 = vmatprep.subr.bf16.mxu0 0
        %1001 = vmatpush1.bf16.msra.mxu0 %v857
        %1002 = vmatprep.mubr.bf16.mxu0 %v555
        %1003 = vmatmul.mubr.bf16.gmra.mrb[0].mxu0 %v554
        %v1004 = vpop.f32.mrb[0].mxu0
        %v1005 = vadd.f32 0.0, %v1004
        %v1006 = vpop.f32.mrb[0].mxu0
        %v1007 = vpop.f32.mrb[0].mxu0
        %v1008 = vadd.f32 0.0, %v1007
        %v1009 = vpop.f32.mrb[0].mxu0
        %1010 = vmatprep.mubr.bf16.mxu0 %v563
        %1011 = vmatmul.mubr.bf16.gmra.mrb[0].mxu0 %v562
        %v1012 = vpop.f32.mrb[0].mxu0
        %v1013 = vadd.f32 0.0, %v1012
        %v1014 = vpop.f32.mrb[0].mxu0
        %v1015 = vpop.f32.mrb[0].mxu0
        %v1016 = vadd.f32 0.0, %v1015
        %v1017 = vpop.f32.mrb[0].mxu0
        %1018 = vdwg.mxu0
        %1019 = vmatprep.subr.bf16.mxu0 0
        %1020 = vmatpush1.bf16.msra.mxu0 %v858
        %1021 = vmatprep.subr.bf16.mxu0 0
        %1022 = vmatpush1.bf16.msra.mxu0 %v859
        %1023 = vmatprep.subr.bf16.mxu0 0
        %1024 = vmatpush1.bf16.msra.mxu0 %v860
        %1025 = vmatprep.subr.bf16.mxu0 0
        %1026 = vmatpush1.bf16.msra.mxu0 %v861
        %1027 = vmatprep.subr.bf16.mxu0 0
        %1028 = vmatpush1.bf16.msra.mxu0 %v862
        %1029 = vmatprep.subr.bf16.mxu0 0
        %1030 = vmatpush1.bf16.msra.mxu0 %v863
        %1031 = vmatprep.subr.bf16.mxu0 0
        %1032 = vmatpush1.bf16.msra.mxu0 %v864
        %1033 = vmatprep.subr.bf16.mxu0 0
        %1034 = vmatpush1.bf16.msra.mxu0 %v865
        %1035 = vmatprep.subr.bf16.mxu0 0
        %1036 = vmatpush1.bf16.msra.mxu0 %v866
        %1037 = vmatprep.subr.bf16.mxu0 0
        %1038 = vmatpush1.bf16.msra.mxu0 %v867
        %1039 = vmatprep.subr.bf16.mxu0 0
        %1040 = vmatpush1.bf16.msra.mxu0 %v868
        %1041 = vmatprep.subr.bf16.mxu0 0
        %1042 = vmatpush1.bf16.msra.mxu0 %v869
        %1043 = vmatprep.subr.bf16.mxu0 0
        %1044 = vmatpush1.bf16.msra.mxu0 %v870
        %1045 = vmatprep.subr.bf16.mxu0 0
        %1046 = vmatpush1.bf16.msra.mxu0 %v871
        %1047 = vmatprep.subr.bf16.mxu0 0
        %1048 = vmatpush1.bf16.msra.mxu0 %v872
        %1049 = vmatprep.subr.bf16.mxu0 0
        %1050 = vmatpush1.bf16.msra.mxu0 %v873
        %1051 = vmatprep.mubr.bf16.mxu0 %v557
        %1052 = vmatmul.mubr.bf16.gmra.mrb[0].mxu0 %v556
        %v1053 = vpop.f32.mrb[0].mxu0
        %v1054 = vadd.f32 %v1005, %v1053
        %v1055 = vpop.f32.mrb[0].mxu0
        %v1056 = vpop.f32.mrb[0].mxu0
        %v1057 = vadd.f32 %v1008, %v1056
        %v1058 = vpop.f32.mrb[0].mxu0
        %1059 = vmatprep.mubr.bf16.mxu0 %v565
        %1060 = vmatmul.mubr.bf16.gmra.mrb[0].mxu0 %v564
        %v1061 = vpop.f32.mrb[0].mxu0
        %v1062 = vadd.f32 %v1013, %v1061
        %v1063 = vpop.f32.mrb[0].mxu0
        %v1064 = vpop.f32.mrb[0].mxu0
        %v1065 = vadd.f32 %v1016, %v1064
        %v1066 = vpop.f32.mrb[0].mxu0
        %1067 = vdwg.mxu0
        %1068 = vmatprep.subr.bf16.mxu0 0
        %1069 = vmatpush1.bf16.msra.mxu0 %v874
        %1070 = vmatprep.subr.bf16.mxu0 0
        %1071 = vmatpush1.bf16.msra.mxu0 %v875
        %1072 = vmatprep.subr.bf16.mxu0 0
        %1073 = vmatpush1.bf16.msra.mxu0 %v876
        %1074 = vmatprep.subr.bf16.mxu0 0
        %1075 = vmatpush1.bf16.msra.mxu0 %v877
        %1076 = vmatprep.subr.bf16.mxu0 0
        %1077 = vmatpush1.bf16.msra.mxu0 %v878
        %1078 = vmatprep.subr.bf16.mxu0 0
        %1079 = vmatpush1.bf16.msra.mxu0 %v879
        %1080 = vmatprep.subr.bf16.mxu0 0
        %1081 = vmatpush1.bf16.msra.mxu0 %v880
        %1082 = vmatprep.subr.bf16.mxu0 0
        %1083 = vmatpush1.bf16.msra.mxu0 %v881
        %1084 = vmatprep.subr.bf16.mxu0 0
        %1085 = vmatpush1.bf16.msra.mxu0 %v882
        %1086 = vmatprep.subr.bf16.mxu0 0
        %1087 = vmatpush1.bf16.msra.mxu0 %v883
        %1088 = vmatprep.subr.bf16.mxu0 0
        %1089 = vmatpush1.bf16.msra.mxu0 %v884
        %1090 = vmatprep.subr.bf16.mxu0 0
        %1091 = vmatpush1.bf16.msra.mxu0 %v885
        %1092 = vmatprep.subr.bf16.mxu0 0
        %1093 = vmatpush1.bf16.msra.mxu0 %v886
        %1094 = vmatprep.subr.bf16.mxu0 0
        %1095 = vmatpush1.bf16.msra.mxu0 %v887
        %1096 = vmatprep.subr.bf16.mxu0 0
        %1097 = vmatpush1.bf16.msra.mxu0 %v888
        %1098 = vmatprep.subr.bf16.mxu0 0
        %1099 = vmatpush1.bf16.msra.mxu0 %v889
        %1100 = vmatprep.mubr.bf16.mxu0 %v559
        %1101 = vmatmul.mubr.bf16.gmra.mrb[0].mxu0 %v558
        %v1102 = vpop.f32.mrb[0].mxu0
        %v1103 = vadd.f32 %v1054, %v1102
        %v1104 = vpop.f32.mrb[0].mxu0
        %v1105 = vpop.f32.mrb[0].mxu0
        %v1106 = vadd.f32 %v1057, %v1105
        %v1107 = vpop.f32.mrb[0].mxu0
        %1108 = vmatprep.mubr.bf16.mxu0 %v567
        %1109 = vmatmul.mubr.bf16.gmra.mrb[0].mxu0 %v566
        %v1110 = vpop.f32.mrb[0].mxu0
        %v1111 = vadd.f32 %v1062, %v1110
        %v1112 = vpop.f32.mrb[0].mxu0
        %v1113 = vpop.f32.mrb[0].mxu0
        %v1114 = vadd.f32 %v1065, %v1113
        %v1115 = vpop.f32.mrb[0].mxu0
        %1116 = vdwg.mxu0
        %1117 = vmatprep.subr.bf16.mxu0 0
        %1118 = vmatpush1.bf16.msra.mxu0 %v890
        %1119 = vmatprep.subr.bf16.mxu0 0
        %1120 = vmatpush1.bf16.msra.mxu0 %v891
        %1121 = vmatprep.subr.bf16.mxu0 0
        %1122 = vmatpush1.bf16.msra.mxu0 %v892
        %1123 = vmatprep.subr.bf16.mxu0 0
        %1124 = vmatpush1.bf16.msra.mxu0 %v893
        %1125 = vmatprep.subr.bf16.mxu0 0
        %1126 = vmatpush1.bf16.msra.mxu0 %v894
        %1127 = vmatprep.subr.bf16.mxu0 0
        %1128 = vmatpush1.bf16.msra.mxu0 %v895
        %1129 = vmatprep.subr.bf16.mxu0 0
        %1130 = vmatpush1.bf16.msra.mxu0 %v896
        %1131 = vmatprep.subr.bf16.mxu0 0
        %1132 = vmatpush1.bf16.msra.mxu0 %v897
        %1133 = vmatprep.subr.bf16.mxu0 0
        %1134 = vmatpush1.bf16.msra.mxu0 %v898
        %1135 = vmatprep.subr.bf16.mxu0 0
        %1136 = vmatpush1.bf16.msra.mxu0 %v899
        %1137 = vmatprep.subr.bf16.mxu0 0
        %1138 = vmatpush1.bf16.msra.mxu0 %v900
        %1139 = vmatprep.subr.bf16.mxu0 0
        %1140 = vmatpush1.bf16.msra.mxu0 %v901
        %1141 = vmatprep.subr.bf16.mxu0 0
        %1142 = vmatpush1.bf16.msra.mxu0 %v902
        %1143 = vmatprep.subr.bf16.mxu0 0
        %1144 = vmatpush1.bf16.msra.mxu0 %v903
        %1145 = vmatprep.subr.bf16.mxu0 0
        %1146 = vmatpush1.bf16.msra.mxu0 %v904
        %1147 = vmatprep.subr.bf16.mxu0 0
        %1148 = vmatpush1.bf16.msra.mxu0 %v905
        %1149 = vmatprep.mubr.bf16.mxu0 %v561
        %1150 = vmatmul.mubr.bf16.gmra.mrb[0].mxu0 %v560
        %v1151 = vpop.f32.mrb[0].mxu0
        %v1152 = vadd.f32 %v1103, %v1151
        %v1153 = vpop.f32.mrb[0].mxu0
        %v1154 = vpop.f32.mrb[0].mxu0
        %v1155 = vadd.f32 %v1106, %v1154
        %v1156 = vpop.f32.mrb[0].mxu0
        %1157 = vmatprep.mubr.bf16.mxu0 %v569
        %1158 = vmatmul.mubr.bf16.gmra.mrb[0].mxu0 %v568
        %v1159 = vpop.f32.mrb[0].mxu0
        %v1160 = vadd.f32 %v1111, %v1159
        %v1161 = vpop.f32.mrb[0].mxu0
        %v1162 = vpop.f32.mrb[0].mxu0
        %v1163 = vadd.f32 %v1114, %v1162
        %v1164 = vpop.f32.mrb[0].mxu0
        %1165 = vdwg.mxu0
        %v1166 = vadd.f32 %v358, %v1152
        %v1167 = vadd.f32 %v359, %v1155
        %v1168 = vadd.f32 %v360, %v1160
        %v1169 = vadd.f32 %v361, %v1163
        %1170 = vst [vmem:[#allocation2] sm:$0xff] %v1166
        %1171 = vst [vmem:[#allocation2 + $0x8] sm:$0xff] %v1167
        %1172 = vst [vmem:[#allocation2 + $0x10] sm:$0xff] %v1168
        %1173 = vst [vmem:[#allocation2 + $0x18] sm:$0xff] %v1169
        %p1174 = scmp.eq.s32.totalorder %s23, 1
        // Predicated region
        $region60: #{gan_forward.10} parent=50 // pred_check
          %p1175 = pneg %p1174
        $region61: #{gan_forward.10} parent=50 // pred_check_branch
          %1177 = sbr.rel (%p1175) target = $region63
        $region62: #{gan_forward.10} parent=50 // pred_region
          %v1178 = vld [vmem:[#allocation2] sm:$0xff]
          %v1179 = vld [vmem:[#allocation2 + $0x8] sm:$0xff]
          %v1180 = vld [vmem:[#allocation2 + $0x10] sm:$0xff]
          %v1181 = vld [vmem:[#allocation2 + $0x18] sm:$0xff]
          %v1182 = vld [vmem:[%s335] sm:$0x1]
          %v1184 = vlaneseq
          %v1185 = vshrl.u32 %v1184, 7
          %v1186 = vsub.s32 0, %v1185
          %v1187 = vrot.slane %v1182, %v1186
          %v1189 = vadd.f32 %v1178, %v1187
          %v1190 = vadd.f32 %v1179, %v1187
          %v1191 = vadd.f32 %v1180, %v1187
          %v1192 = vadd.f32 %v1181, %v1187
          %vm1193 = vcmp.gt.f32.partialorder %v1189, 0.0
          %vm1194 = vcmp.gt.f32.partialorder %v1190, 0.0
          %vm1195 = vcmp.gt.f32.partialorder %v1191, 0.0
          %vm1196 = vcmp.gt.f32.partialorder %v1192, 0.0
          %v1197 = vmul.f32 %v1189, 0.2
          %v1198 = vmul.f32 %v1190, 0.2
          %v1199 = vmul.f32 %v1191, 0.2
          %v1200 = vmul.f32 %v1192, 0.2
          %v1201 = vsel %vm1193, %v1189, %v1197
          %v1202 = vsel %vm1194, %v1190, %v1198
          %v1203 = vsel %vm1195, %v1191, %v1199
          %v1204 = vsel %vm1196, %v1192, %v1200
          %v1205 = vpack.c.bf16 %v1202, %v1201
          %v1206 = vpack.c.bf16 %v1204, %v1203
          %v1209 = vunpack.c.l.b16 %v1205
          %v1210 = vunpack.c.h.b16 %v1205
          %v1211 = vunpack.c.l.b16 %v1206
          %v1212 = vunpack.c.h.b16 %v1206
          %v1213 = vpack.c.b16 %v1209, %v1209
          %v1214 = vpack.c.b16 %v1210, %v1210
          %v1215 = vpack.c.b16 %v1211, %v1211
          %v1216 = vpack.c.b16 %v1212, %v1212
          %1221 = vst [vmem:[%s347] sm:$0xf] %v1213
          %1222 = vst [vmem:[%s347 + $0x4] sm:$0xf] %v1214
          %1223 = vst [vmem:[%s347 + $0x8] sm:$0xf] %v1215
          %1224 = vst [vmem:[%s347 + $0xc] sm:$0xf] %v1216
        $region63: #{gan_forward.10} parent=50 // pred_fallthru
          _
        %s1225 = smul.u32 4, %s21
        %p1226 = scmp.lt.s32.totalorder %s20, 0
        %s1227 = scalar_select %p1226, %s20, 0
        %p1228 = scmp.lt.s32.totalorder %s1225, 3
        %s1229 = scalar_select %p1228, %s1225, 3
        %p1230 = scmp.lt.s32.totalorder %s22, 0
        %s1231 = scalar_select %p1230, %s22, 0
        %s1232 = sadd.s32 %s1231, %s1229
        %s1233 = smul.addr %s1227, 4
        %s1234 = sadd.s32 %s1232, %s1233
        %s1235 = smul.addr %s1234, 4
        %s1236 = scalar_lea.vmem %s3, %s1235
        // Predicated region
        $region64: #{gan_forward.10} parent=50 // pred_check
          %p1237 = pneg %p150
        $region65: #{gan_forward.10} parent=50 // pred_check_branch
          %1239 = sbr.rel (%p1237) target = $region67
        $region66: #{gan_forward.10} parent=50 // pred_region
          %s1240 = smul.u32 4, %s21
        $region67: #{gan_forward.10} parent=50 // pred_fallthru
          _
        // Predicated region
        $region68: #{gan_forward.10} parent=50 // pred_check
          %p1241 = pneg %p150
        $region69: #{gan_forward.10} parent=50 // pred_check_branch
          %1243 = sbr.rel (%p1241) target = $region71
        $region70: #{gan_forward.10} parent=50 // pred_region
          %s1244 = smul.u32 4, %s21
          %p1245 = scmp.lt.s32.totalorder %s20, 0
          %s1246 = scalar_select %p1245, %s20, 0
          %p1247 = scmp.lt.s32.totalorder %s1244, 3
          %s1248 = scalar_select %p1247, %s1244, 3
          %p1249 = scmp.lt.s32.totalorder %s22, 0
          %s1250 = scalar_select %p1249, %s22, 0
          %s1251 = sadd.s32 %s1250, %s1248
          %s1252 = smul.addr %s1246, 4
          %s1253 = sadd.s32 %s1251, %s1252
          %s1254 = smul.addr %s1253, 4
          %s1255 = scalar_lea.vmem %s3, %s1254
        $region71: #{gan_forward.10} parent=50 // pred_fallthru
          _
      $region51: #{gan_forward.10} parent=5 // pred_fallthru
        _
      %p1256 = scmp.le.s32.totalorder 2, %s9
      // Predicated region
      $region72: #{gan_forward.10} parent=5 // pred_check
        %p1257 = pneg %p1256
      $region73: #{gan_forward.10} parent=5 // pred_check_branch
        %1259 = sbr.rel (%p1257) target = $region75
      $region74: #{gan_forward.10} parent=5 // pred_region
        %s1260 = ssub.s32 %s9, 2
      $region75: #{gan_forward.10} parent=5 // pred_fallthru
        _
    $region6: #{gan_forward.10} parent=1 // loop_footer
      %s13 = sadd.s32 1, %s9
    $region7: #{gan_forward.10} parent=1 // loop_footer_branch
      %8 = sbr.rel target = $region3
    $region8: #{gan_forward.10} parent=1 // loop_exit
      _

// kernel: gan_forward.11
$region0: #{gan_forward.11}
  #allocation0 [shape = 'u32[]', space=smem, size = 0x4, offset = 0x4, fixed_abs, tag = 'smem constant byte address 0x4 - core index']
  #allocation1 [shape = 'u32[144,128]{1,0:T(1,128)}', space=vmem, size = 0x12000, scoped, tag = 'internal scratch']
  #allocation2 [shape = 'f32[2,128]{1,0:T(2,128)}', space=vmem, size = 0x400, scoped, tag = 'scratch operand']
  %s0 = inlined_call_operand.vmem [shape: bf16[1,2,2048], index: 0, kind: input, shape index: {}]
  %s1 = inlined_call_operand.vmem [shape: bf16[1,2048,128], index: 1, kind: input, shape index: {}]
  %s2 = inlined_call_operand.vmem [shape: f32[1,1,128], index: 2, kind: input, shape index: {}]
  %s3 = inlined_call_operand.vmem [shape: f32[1,2,128], index: 3, kind: output, shape index: {}]
  %s4 = sld [smem:[#allocation0]]
  $region53: #{gan_forward.11} parent=0
    _
  %s6 = ssub.s32 1, %s4
  %s7 = scalar_select 0, %s6, %s4
  loop: start=0, step=1, limit=4
  $region2: #{gan_forward.11} parent=0 // loop_pre_header
    _
  $region3: #{gan_forward.11} parent=0 // loop_header
    %s9 = sphi 0, %s13
    %p10 = scmp.ge.s32.totalorder %s9, 4
    %s16 = sphi 0, %s42
    %s17 = sphi 0, %s38
    %s18 = sphi 0, %s34
    %s19 = sphi 0, %s30
    %s20 = sphi 0, %s16
    %s21 = sphi 0, %s17
    %s22 = sphi 0, %s18
    %s23 = sphi 0, %s19
    %s24 = sphi 0, %s20
    %s25 = sphi 0, %s21
    %s26 = sphi 0, %s22
    %s27 = sphi 0, %s23
    %s49 = sphi 0, %s51
    %s52 = sphi 0, %s49
    %s53 = sphi 0, %s52
    %s69 = sphi 0, %s53
    %s79 = sphi 0, %s81
    %s82 = sphi 0, %s79
    %s83 = sphi 0, %s82
    %s99 = sphi 0, %s83
    %s107 = sphi 0, %s109
    %s110 = sphi 0, %s107
    %s111 = sphi 0, %s110
    %s127 = sphi 0, %s111
    %s137 = sphi 0, %s139
    %s140 = sphi 0, %s137
    %s141 = sphi 0, %s140
    %s157 = sphi 0, %s141
  $region4: #{gan_forward.11} parent=0 // loop_header_branch
    %12 = sbr.rel (%p10) target = $region8
  $region5: #{gan_forward.11} parent=0 // loop_body
    %s14 = ssub.s32 %s9, 1
    %s15 = ssub.s32 %s9, 2
    %s28 = sadd.s32 1, %s19
    %p29 = scmp.ge.s32.totalorder %s28, 2
    %s30 = scalar_select %p29, 0, %s28
    %s31 = sadd.s32 1, %s18
    %s32 = scalar_select %p29, %s31, %s18
    %p33 = scmp.ge.s32.totalorder %s32, 1
    %s34 = scalar_select %p33, 0, %s32
    %s35 = sadd.s32 1, %s17
    %s36 = scalar_select %p33, %s35, %s17
    %p37 = scmp.ge.s32.totalorder %s36, 1
    %s38 = scalar_select %p37, 0, %s36
    %s39 = sadd.s32 1, %s16
    %s40 = scalar_select %p37, %s39, %s16
    %p41 = scmp.ge.s32.totalorder %s40, 1
    %s42 = scalar_select %p41, 0, %s40
    %s43 = ssub.s32 %s16, %s42
    %s44 = ssub.s32 %s17, %s38
    %s45 = sor.u32 %s43, %s44
    %s46 = ssub.s32 %s19, %s30
    %s47 = sor.u32 %s45, %s46
    %p48 = scmp.eq.s32.totalorder %s47, 0
    %s50 = sadd.s32 %s49, 1
    %s51 = scalar_select %p48, %s49, %s50
    %p54 = pneg %p48
    %p55 = scmp.eq.s32.totalorder %s9, 1
    %p56 = por %p54, %p55
    %p57 = scmp.ne.s32.totalorder %s49, %s52
    %p58 = scmp.eq.s32.totalorder %s9, 0
    %p59 = por %p57, %p58
    %p60 = scmp.ne.s32.totalorder %s49, %s52
    %p61 = scmp.eq.s32.totalorder %s14, 1
    %p62 = por %p60, %p61
    %p63 = scmp.ne.s32.totalorder %s52, %s53
    %p64 = scmp.eq.s32.totalorder %s14, 0
    %p65 = por %p63, %p64
    %p66 = scmp.ne.s32.totalorder %s52, %s53
    %p67 = scmp.eq.s32.totalorder %s15, 1
    %p68 = por %p66, %p67
    %p70 = scmp.ne.s32.totalorder %s53, %s69
    %p71 = scmp.eq.s32.totalorder %s15, 0
    %p72 = por %p70, %p71
    %s73 = ssub.s32 %s16, %s42
    %s74 = ssub.s32 %s19, %s30
    %s75 = sor.u32 %s73, %s74
    %s76 = ssub.s32 %s18, %s34
    %s77 = sor.u32 %s75, %s76
    %p78 = scmp.eq.s32.totalorder %s77, 0
    %s80 = sadd.s32 %s79, 1
    %s81 = scalar_select %p78, %s79, %s80
    %p84 = pneg %p78
    %p85 = scmp.eq.s32.totalorder %s9, 1
    %p86 = por %p84, %p85
    %p87 = scmp.ne.s32.totalorder %s79, %s82
    %p88 = scmp.eq.s32.totalorder %s9, 0
    %p89 = por %p87, %p88
    %p90 = scmp.ne.s32.totalorder %s79, %s82
    %p91 = scmp.eq.s32.totalorder %s14, 1
    %p92 = por %p90, %p91
    %p93 = scmp.ne.s32.totalorder %s82, %s83
    %p94 = scmp.eq.s32.totalorder %s14, 0
    %p95 = por %p93, %p94
    %p96 = scmp.ne.s32.totalorder %s82, %s83
    %p97 = scmp.eq.s32.totalorder %s15, 1
    %p98 = por %p96, %p97
    %p100 = scmp.ne.s32.totalorder %s83, %s99
    %p101 = scmp.eq.s32.totalorder %s15, 0
    %p102 = por %p100, %p101
    %s103 = ssub.s32 %s16, %s42
    %s104 = ssub.s32 %s18, %s34
    %s105 = sor.u32 %s103, %s104
    %p106 = scmp.eq.s32.totalorder %s105, 0
    %s108 = sadd.s32 %s107, 1
    %s109 = scalar_select %p106, %s107, %s108
    %p112 = pneg %p106
    %p113 = scmp.eq.s32.totalorder %s9, 1
    %p114 = por %p112, %p113
    %p115 = scmp.ne.s32.totalorder %s107, %s110
    %p116 = scmp.eq.s32.totalorder %s9, 0
    %p117 = por %p115, %p116
    %p118 = scmp.ne.s32.totalorder %s107, %s110
    %p119 = scmp.eq.s32.totalorder %s14, 1
    %p120 = por %p118, %p119
    %p121 = scmp.ne.s32.totalorder %s110, %s111
    %p122 = scmp.eq.s32.totalorder %s14, 0
    %p123 = por %p121, %p122
    %p124 = scmp.ne.s32.totalorder %s110, %s111
    %p125 = scmp.eq.s32.totalorder %s15, 1
    %p126 = por %p124, %p125
    %p128 = scmp.ne.s32.totalorder %s111, %s127
    %p129 = scmp.eq.s32.totalorder %s15, 0
    %p130 = por %p128, %p129
    %s131 = ssub.s32 %s16, %s42
    %s132 = ssub.s32 %s17, %s38
    %s133 = sor.u32 %s131, %s132
    %s134 = ssub.s32 %s18, %s34
    %s135 = sor.u32 %s133, %s134
    %p136 = scmp.eq.s32.totalorder %s135, 0
    %s138 = sadd.s32 %s137, 1
    %s139 = scalar_select %p136, %s137, %s138
    %p142 = pneg %p136
    %p143 = scmp.eq.s32.totalorder %s9, 1
    %p144 = por %p142, %p143
    %p145 = scmp.ne.s32.totalorder %s137, %s140
    %p146 = scmp.eq.s32.totalorder %s9, 0
    %p147 = por %p145, %p146
    %p148 = scmp.ne.s32.totalorder %s137, %s140
    %p149 = scmp.eq.s32.totalorder %s14, 1
    %p150 = por %p148, %p149
    %p151 = scmp.ne.s32.totalorder %s140, %s141
    %p152 = scmp.eq.s32.totalorder %s14, 0
    %p153 = por %p151, %p152
    %p154 = scmp.ne.s32.totalorder %s140, %s141
    %p155 = scmp.eq.s32.totalorder %s15, 1
    %p156 = por %p154, %p155
    %p158 = scmp.ne.s32.totalorder %s141, %s157
    %p159 = scmp.eq.s32.totalorder %s15, 0
    %p160 = por %p158, %p159
    %p161 = scmp.le.s32.totalorder 1, %s9
    %p162 = scmp.lt.s32.totalorder %s9, 3
    %p163 = pnand %p161, %p162
    %p164 = pneg %p163
    // Predicated region
    $region9: #{gan_forward.11} parent=5 // pred_check
      _
    $region10: #{gan_forward.11} parent=5 // pred_check_branch
      %166 = sbr.rel (%p163) target = $region12
    $region11: #{gan_forward.11} parent=5 // pred_region
      %s167 = ssub.s32 %s9, 1
      // Predicated region
      $region13: #{gan_forward.11} parent=11 // pred_check
        %p168 = pneg %p123
      $region14: #{gan_forward.11} parent=11 // pred_check_branch
        %170 = sbr.rel (%p168) target = $region16
      $region15: #{gan_forward.11} parent=11 // pred_region
        %p171 = scmp.lt.s32.totalorder %s20, 0
        %s172 = scalar_select %p171, %s20, 0
        %p173 = scmp.lt.s32.totalorder %s22, 0
        %s174 = scalar_select %p173, %s22, 0
        %s175 = sadd.s32 %s174, %s172
        %s176 = scalar_lea.vmem %s2, %s175
      $region16: #{gan_forward.11} parent=11 // pred_fallthru
        _
    $region12: #{gan_forward.11} parent=5 // pred_fallthru
      _
    %p177 = scmp.lt.s32.totalorder %s9, 2
    // Predicated region
    $region17: #{gan_forward.11} parent=5 // pred_check
      %p178 = pneg %p177
    $region18: #{gan_forward.11} parent=5 // pred_check_branch
      %180 = sbr.rel (%p178) target = $region20
    $region19: #{gan_forward.11} parent=5 // pred_region
      // Predicated region
      $region21: #{gan_forward.11} parent=19 // pred_check
        %p181 = pneg %p59
      $region22: #{gan_forward.11} parent=19 // pred_check_branch
        %183 = sbr.rel (%p181) target = $region24
      $region23: #{gan_forward.11} parent=19 // pred_region
        %s184 = smul.u32 8, %s19
        %p185 = scmp.lt.s32.totalorder %s16, 0
        %s186 = scalar_select %p185, %s16, 0
        %p187 = scmp.lt.s32.totalorder %s17, 0
        %s188 = scalar_select %p187, %s17, 0
        %p189 = scmp.lt.s32.totalorder %s184, 15
        %s190 = scalar_select %p189, %s184, 15
        %s191 = smul.addr %s188, 16
        %s192 = sadd.s32 %s190, %s191
        %s193 = smul.addr %s186, 16
        %s194 = sadd.s32 %s192, %s193
        %s195 = scalar_lea.vmem %s0, %s194
        %s196 = smul.u32 8, %s19
      $region24: #{gan_forward.11} parent=19 // pred_fallthru
        _
      // Predicated region
      $region25: #{gan_forward.11} parent=19 // pred_check
        %p197 = pneg %p89
      $region26: #{gan_forward.11} parent=19 // pred_check_branch
        %199 = sbr.rel (%p197) target = $region28
      $region27: #{gan_forward.11} parent=19 // pred_region
        %s200 = smul.u32 128, %s19
        %p201 = scmp.lt.s32.totalorder %s16, 0
        %s202 = scalar_select %p201, %s16, 0
        %p203 = scmp.lt.s32.totalorder %s200, 255
        %s204 = scalar_select %p203, %s200, 255
        %p205 = scmp.lt.s32.totalorder %s18, 0
        %s206 = scalar_select %p205, %s18, 0
        %s207 = sadd.s32 %s206, %s204
        %s208 = smul.addr %s202, 256
        %s209 = sadd.s32 %s207, %s208
        %s210 = smul.addr %s209, 4
        %s211 = scalar_lea.vmem %s1, %s210
        %s212 = smul.u32 128, %s19
      $region28: #{gan_forward.11} parent=19 // pred_fallthru
        _
    $region20: #{gan_forward.11} parent=5 // pred_fallthru
      _
    %p213 = scmp.le.s32.totalorder 1, %s9
    %p214 = scmp.lt.s32.totalorder %s9, 3
    %p215 = pnand %p213, %p214
    %p216 = pneg %p215
    // Predicated region
    $region29: #{gan_forward.11} parent=5 // pred_check
      _
    $region30: #{gan_forward.11} parent=5 // pred_check_branch
      %218 = sbr.rel (%p215) target = $region32
    $region31: #{gan_forward.11} parent=5 // pred_region
      %s219 = ssub.s32 %s9, 1
      %s220 = smul.u32 8, %s23
      %p221 = scmp.lt.s32.totalorder %s20, 0
      %s222 = scalar_select %p221, %s20, 0
      %p223 = scmp.lt.s32.totalorder %s21, 0
      %s224 = scalar_select %p223, %s21, 0
      %p225 = scmp.lt.s32.totalorder %s220, 15
      %s226 = scalar_select %p225, %s220, 15
      %s227 = smul.addr %s224, 16
      %s228 = sadd.s32 %s226, %s227
      %s229 = smul.addr %s222, 16
      %s230 = sadd.s32 %s228, %s229
      %s231 = scalar_lea.vmem %s0, %s230
      %p232 = pneg %p65
      %p233 = pneg %p62
      %s234 = smul.u32 128, %s23
      %p235 = scmp.lt.s32.totalorder %s20, 0
      %s236 = scalar_select %p235, %s20, 0
      %p237 = scmp.lt.s32.totalorder %s234, 255
      %s238 = scalar_select %p237, %s234, 255
      %p239 = scmp.lt.s32.totalorder %s22, 0
      %s240 = scalar_select %p239, %s22, 0
      %s241 = sadd.s32 %s240, %s238
      %s242 = smul.addr %s236, 256
      %s243 = sadd.s32 %s241, %s242
      %s244 = smul.addr %s243, 4
      %s245 = scalar_lea.vmem %s1, %s244
      %p246 = pneg %p95
      %p247 = pneg %p92
      %p248 = scmp.lt.s32.totalorder %s20, 0
      %s249 = scalar_select %p248, %s20, 0
      %p250 = scmp.lt.s32.totalorder %s22, 0
      %s251 = scalar_select %p250, %s22, 0
      %s252 = sadd.s32 %s251, %s249
      %s253 = scalar_lea.vmem %s2, %s252
      %p254 = pneg %p123
      %p255 = pneg %p120
      %p256 = pneg %p153
      %p257 = pneg %p150
      %p258 = scmp.lt.s32.totalorder %s20, 0
      %s259 = scalar_select %p258, %s20, 0
      %p260 = scmp.lt.s32.totalorder %s21, 0
      %s261 = scalar_select %p260, %s21, 0
      %p262 = scmp.lt.s32.totalorder %s22, 0
      %s263 = scalar_select %p262, %s22, 0
      %s264 = sadd.s32 %s263, %s261
      %s265 = sadd.s32 %s264, %s259
      %s266 = smul.addr %s265, 2
      %s267 = scalar_lea.vmem %s3, %s266
      %s268 = smul.u32 8, %s23
      %p269 = scmp.lt.s32.totalorder %s20, 0
      %s270 = scalar_select %p269, %s20, 0
      %p271 = scmp.lt.s32.totalorder %s21, 0
      %s272 = scalar_select %p271, %s21, 0
      %p273 = scmp.lt.s32.totalorder %s268, 15
      %s274 = scalar_select %p273, %s268, 15
      %s275 = smul.addr %s272, 16
      %s276 = sadd.s32 %s274, %s275
      %s277 = smul.addr %s270, 16
      %s278 = sadd.s32 %s276, %s277
      %s279 = scalar_lea.vmem %s0, %s278
      %s280 = smul.u32 8, %s23
      %s281 = smul.u32 128, %s23
      %p282 = scmp.lt.s32.totalorder %s20, 0
      %s283 = scalar_select %p282, %s20, 0
      %p284 = scmp.lt.s32.totalorder %s281, 255
      %s285 = scalar_select %p284, %s281, 255
      %p286 = scmp.lt.s32.totalorder %s22, 0
      %s287 = scalar_select %p286, %s22, 0
      %s288 = sadd.s32 %s287, %s285
      %s289 = smul.addr %s283, 256
      %s290 = sadd.s32 %s288, %s289
      %s291 = smul.addr %s290, 4
      %s292 = scalar_lea.vmem %s1, %s291
      %s293 = smul.u32 128, %s23
      %p294 = scmp.lt.s32.totalorder %s20, 0
      %s295 = scalar_select %p294, %s20, 0
      %p296 = scmp.lt.s32.totalorder %s22, 0
      %s297 = scalar_select %p296, %s22, 0
      %s298 = sadd.s32 %s297, %s295
      %s299 = scalar_lea.vmem %s2, %s298
      %p300 = scmp.lt.s32.totalorder %s20, 0
      %s301 = scalar_select %p300, %s20, 0
      %p302 = scmp.lt.s32.totalorder %s21, 0
      %s303 = scalar_select %p302, %s21, 0
      %p304 = scmp.lt.s32.totalorder %s22, 0
      %s305 = scalar_select %p304, %s22, 0
      %s306 = sadd.s32 %s305, %s303
      %s307 = sadd.s32 %s306, %s301
      %s308 = smul.addr %s307, 2
      %s309 = scalar_lea.vmem %s3, %s308
      %p311 = scmp.eq.s32.totalorder %s23, 0
      // Predicated region
      $region33: #{gan_forward.11} parent=31 // pred_check
        %p312 = pneg %p311
      $region34: #{gan_forward.11} parent=31 // pred_check_branch
        %314 = sbr.rel (%p312) target = $region36
      $region35: #{gan_forward.11} parent=31 // pred_region
        %315 = vst [vmem:[#allocation2] sm:$0x3] 0.0
      $region36: #{gan_forward.11} parent=31 // pred_fallthru
        _
      %v316 = vld [vmem:[#allocation2] sm:$0x3]
      %v317 = vld [vmem:[%s279] sm:$0xff]
      %v318 = vld [vmem:[%s292] sm:$0xf]
      %v319 = vld [vmem:[%s292 + $0x4] sm:$0xf]
      %v320 = vld [vmem:[%s292 + $0x8] sm:$0xf]
      %v321 = vld [vmem:[%s292 + $0xc] sm:$0xf]
      %v322 = vld [vmem:[%s292 + $0x10] sm:$0xf]
      %v323 = vld [vmem:[%s292 + $0x14] sm:$0xf]
      %v324 = vld [vmem:[%s292 + $0x18] sm:$0xf]
      %v325 = vld [vmem:[%s292 + $0x1c] sm:$0xf]
      %v326 = vld [vmem:[%s292 + $0x20] sm:$0xf]
      %v327 = vld [vmem:[%s292 + $0x24] sm:$0xf]
      %v328 = vld [vmem:[%s292 + $0x28] sm:$0xf]
      %v329 = vld [vmem:[%s292 + $0x2c] sm:$0xf]
      %v330 = vld [vmem:[%s292 + $0x30] sm:$0xf]
      %v331 = vld [vmem:[%s292 + $0x34] sm:$0xf]
      %v332 = vld [vmem:[%s292 + $0x38] sm:$0xf]
      %v333 = vld [vmem:[%s292 + $0x3c] sm:$0xf]
      %v334 = vld [vmem:[%s292 + $0x40] sm:$0xf]
      %v335 = vld [vmem:[%s292 + $0x44] sm:$0xf]
      %v336 = vld [vmem:[%s292 + $0x48] sm:$0xf]
      %v337 = vld [vmem:[%s292 + $0x4c] sm:$0xf]
      %v338 = vld [vmem:[%s292 + $0x50] sm:$0xf]
      %v339 = vld [vmem:[%s292 + $0x54] sm:$0xf]
      %v340 = vld [vmem:[%s292 + $0x58] sm:$0xf]
      %v341 = vld [vmem:[%s292 + $0x5c] sm:$0xf]
      %v342 = vld [vmem:[%s292 + $0x60] sm:$0xf]
      %v343 = vld [vmem:[%s292 + $0x64] sm:$0xf]
      %v344 = vld [vmem:[%s292 + $0x68] sm:$0xf]
      %v345 = vld [vmem:[%s292 + $0x6c] sm:$0xf]
      %v346 = vld [vmem:[%s292 + $0x70] sm:$0xf]
      %v347 = vld [vmem:[%s292 + $0x74] sm:$0xf]
      %v348 = vld [vmem:[%s292 + $0x78] sm:$0xf]
      %v349 = vld [vmem:[%s292 + $0x7c] sm:$0xf]
      %v350 = vld [vmem:[%s292 + $0x80] sm:$0xf]
      %v351 = vld [vmem:[%s292 + $0x84] sm:$0xf]
      %v352 = vld [vmem:[%s292 + $0x88] sm:$0xf]
      %v353 = vld [vmem:[%s292 + $0x8c] sm:$0xf]
      %v354 = vld [vmem:[%s292 + $0x90] sm:$0xf]
      %v355 = vld [vmem:[%s292 + $0x94] sm:$0xf]
      %v356 = vld [vmem:[%s292 + $0x98] sm:$0xf]
      %v357 = vld [vmem:[%s292 + $0x9c] sm:$0xf]
      %v358 = vld [vmem:[%s292 + $0xa0] sm:$0xf]
      %v359 = vld [vmem:[%s292 + $0xa4] sm:$0xf]
      %v360 = vld [vmem:[%s292 + $0xa8] sm:$0xf]
      %v361 = vld [vmem:[%s292 + $0xac] sm:$0xf]
      %v362 = vld [vmem:[%s292 + $0xb0] sm:$0xf]
      %v363 = vld [vmem:[%s292 + $0xb4] sm:$0xf]
      %v364 = vld [vmem:[%s292 + $0xb8] sm:$0xf]
      %v365 = vld [vmem:[%s292 + $0xbc] sm:$0xf]
      %v366 = vld [vmem:[%s292 + $0xc0] sm:$0xf]
      %v367 = vld [vmem:[%s292 + $0xc4] sm:$0xf]
      %v368 = vld [vmem:[%s292 + $0xc8] sm:$0xf]
      %v369 = vld [vmem:[%s292 + $0xcc] sm:$0xf]
      %v370 = vld [vmem:[%s292 + $0xd0] sm:$0xf]
      %v371 = vld [vmem:[%s292 + $0xd4] sm:$0xf]
      %v372 = vld [vmem:[%s292 + $0xd8] sm:$0xf]
      %v373 = vld [vmem:[%s292 + $0xdc] sm:$0xf]
      %v374 = vld [vmem:[%s292 + $0xe0] sm:$0xf]
      %v375 = vld [vmem:[%s292 + $0xe4] sm:$0xf]
      %v376 = vld [vmem:[%s292 + $0xe8] sm:$0xf]
      %v377 = vld [vmem:[%s292 + $0xec] sm:$0xf]
      %v378 = vld [vmem:[%s292 + $0xf0] sm:$0xf]
      %v379 = vld [vmem:[%s292 + $0xf4] sm:$0xf]
      %v380 = vld [vmem:[%s292 + $0xf8] sm:$0xf]
      %v381 = vld [vmem:[%s292 + $0xfc] sm:$0xf]
      %v382 = vld [vmem:[%s292 + $0x100] sm:$0xf]
      %v383 = vld [vmem:[%s292 + $0x104] sm:$0xf]
      %v384 = vld [vmem:[%s292 + $0x108] sm:$0xf]
      %v385 = vld [vmem:[%s292 + $0x10c] sm:$0xf]
      %v386 = vld [vmem:[%s292 + $0x110] sm:$0xf]
      %v387 = vld [vmem:[%s292 + $0x114] sm:$0xf]
      %v388 = vld [vmem:[%s292 + $0x118] sm:$0xf]
      %v389 = vld [vmem:[%s292 + $0x11c] sm:$0xf]
      %v390 = vld [vmem:[%s292 + $0x120] sm:$0xf]
      %v391 = vld [vmem:[%s292 + $0x124] sm:$0xf]
      %v392 = vld [vmem:[%s292 + $0x128] sm:$0xf]
      %v393 = vld [vmem:[%s292 + $0x12c] sm:$0xf]
      %v394 = vld [vmem:[%s292 + $0x130] sm:$0xf]
      %v395 = vld [vmem:[%s292 + $0x134] sm:$0xf]
      %v396 = vld [vmem:[%s292 + $0x138] sm:$0xf]
      %v397 = vld [vmem:[%s292 + $0x13c] sm:$0xf]
      %v398 = vld [vmem:[%s292 + $0x140] sm:$0xf]
      %v399 = vld [vmem:[%s292 + $0x144] sm:$0xf]
      %v400 = vld [vmem:[%s292 + $0x148] sm:$0xf]
      %v401 = vld [vmem:[%s292 + $0x14c] sm:$0xf]
      %v402 = vld [vmem:[%s292 + $0x150] sm:$0xf]
      %v403 = vld [vmem:[%s292 + $0x154] sm:$0xf]
      %v404 = vld [vmem:[%s292 + $0x158] sm:$0xf]
      %v405 = vld [vmem:[%s292 + $0x15c] sm:$0xf]
      %v406 = vld [vmem:[%s292 + $0x160] sm:$0xf]
      %v407 = vld [vmem:[%s292 + $0x164] sm:$0xf]
      %v408 = vld [vmem:[%s292 + $0x168] sm:$0xf]
      %v409 = vld [vmem:[%s292 + $0x16c] sm:$0xf]
      %v410 = vld [vmem:[%s292 + $0x170] sm:$0xf]
      %v411 = vld [vmem:[%s292 + $0x174] sm:$0xf]
      %v412 = vld [vmem:[%s292 + $0x178] sm:$0xf]
      %v413 = vld [vmem:[%s292 + $0x17c] sm:$0xf]
      %v414 = vld [vmem:[%s292 + $0x180] sm:$0xf]
      %v415 = vld [vmem:[%s292 + $0x184] sm:$0xf]
      %v416 = vld [vmem:[%s292 + $0x188] sm:$0xf]
      %v417 = vld [vmem:[%s292 + $0x18c] sm:$0xf]
      %v418 = vld [vmem:[%s292 + $0x190] sm:$0xf]
      %v419 = vld [vmem:[%s292 + $0x194] sm:$0xf]
      %v420 = vld [vmem:[%s292 + $0x198] sm:$0xf]
      %v421 = vld [vmem:[%s292 + $0x19c] sm:$0xf]
      %v422 = vld [vmem:[%s292 + $0x1a0] sm:$0xf]
      %v423 = vld [vmem:[%s292 + $0x1a4] sm:$0xf]
      %v424 = vld [vmem:[%s292 + $0x1a8] sm:$0xf]
      %v425 = vld [vmem:[%s292 + $0x1ac] sm:$0xf]
      %v426 = vld [vmem:[%s292 + $0x1b0] sm:$0xf]
      %v427 = vld [vmem:[%s292 + $0x1b4] sm:$0xf]
      %v428 = vld [vmem:[%s292 + $0x1b8] sm:$0xf]
      %v429 = vld [vmem:[%s292 + $0x1bc] sm:$0xf]
      %v430 = vld [vmem:[%s292 + $0x1c0] sm:$0xf]
      %v431 = vld [vmem:[%s292 + $0x1c4] sm:$0xf]
      %v432 = vld [vmem:[%s292 + $0x1c8] sm:$0xf]
      %v433 = vld [vmem:[%s292 + $0x1cc] sm:$0xf]
      %v434 = vld [vmem:[%s292 + $0x1d0] sm:$0xf]
      %v435 = vld [vmem:[%s292 + $0x1d4] sm:$0xf]
      %v436 = vld [vmem:[%s292 + $0x1d8] sm:$0xf]
      %v437 = vld [vmem:[%s292 + $0x1dc] sm:$0xf]
      %v438 = vld [vmem:[%s292 + $0x1e0] sm:$0xf]
      %v439 = vld [vmem:[%s292 + $0x1e4] sm:$0xf]
      %v440 = vld [vmem:[%s292 + $0x1e8] sm:$0xf]
      %v441 = vld [vmem:[%s292 + $0x1ec] sm:$0xf]
      %v442 = vld [vmem:[%s292 + $0x1f0] sm:$0xf]
      %v443 = vld [vmem:[%s292 + $0x1f4] sm:$0xf]
      %v444 = vld [vmem:[%s292 + $0x1f8] sm:$0xf]
      %v445 = vld [vmem:[%s292 + $0x1fc] sm:$0xf]
      %v447 = vcombine.high %v317, %v317
      %v449 = vunpack.c.l.s4 1966171168
      %v450 = vunpack.c.0.s8 %v449
      %v451 = vlaneseq
      %v452 = vshrl.u32 %v451, 7
      %v453 = vsub.s32 %v450, %v452
      %v454 = vrot.slane %v317, %v453
      %v456 = vunpack.c.l.s4 1966171168
      %v457 = vunpack.c.0.s8 %v456
      %v458 = vlaneseq
      %v459 = vshrl.u32 %v458, 7
      %v460 = vsub.s32 %v457, %v459
      %v461 = vrot.slane %v447, %v460
      %v462 = vcombine.high %v454, %v454
      %v463 = vcombine.high %v461, %v461
      %v465 = vunpack.c.l.s4 1966171168
      %v466 = vunpack.c.0.s8 %v465
      %v467 = vlaneseq
      %v468 = vshrl.u32 %v467, 7
      %v469 = vsub.s32 %v466, %v468
      %v470 = vrot.slane %v454, %v469
      %v472 = vunpack.c.l.s4 1966171168
      %v473 = vunpack.c.0.s8 %v472
      %v474 = vlaneseq
      %v475 = vshrl.u32 %v474, 7
      %v476 = vsub.s32 %v473, %v475
      %v477 = vrot.slane %v461, %v476
      %v479 = vunpack.c.l.s4 1966171168
      %v480 = vunpack.c.0.s8 %v479
      %v481 = vlaneseq
      %v482 = vshrl.u32 %v481, 7
      %v483 = vsub.s32 %v480, %v482
      %v484 = vrot.slane %v462, %v483
      %v486 = vunpack.c.l.s4 1966171168
      %v487 = vunpack.c.0.s8 %v486
      %v488 = vlaneseq
      %v489 = vshrl.u32 %v488, 7
      %v490 = vsub.s32 %v487, %v489
      %v491 = vrot.slane %v463, %v490
      %v492 = vcombine.high %v470, %v470
      %v493 = vcombine.high %v477, %v477
      %v494 = vcombine.high %v484, %v484
      %v495 = vcombine.high %v491, %v491
      %v632 = vunpack.c.l.b16 %v318
      %v633 = vunpack.c.l.b16 %v319
      %v634 = vunpack.c.l.b16 %v320
      %v635 = vunpack.c.l.b16 %v321
      %v636 = vunpack.c.l.b16 %v322
      %v637 = vunpack.c.l.b16 %v323
      %v638 = vunpack.c.l.b16 %v324
      %v639 = vunpack.c.l.b16 %v325
      %v640 = vunpack.c.l.b16 %v326
      %v641 = vunpack.c.l.b16 %v327
      %v642 = vunpack.c.l.b16 %v328
      %v643 = vunpack.c.l.b16 %v329
      %v644 = vunpack.c.l.b16 %v330
      %v645 = vunpack.c.l.b16 %v331
      %v646 = vunpack.c.l.b16 %v332
      %v647 = vunpack.c.l.b16 %v333
      %v648 = vunpack.c.l.b16 %v334
      %v649 = vunpack.c.l.b16 %v335
      %v650 = vunpack.c.l.b16 %v336
      %v651 = vunpack.c.l.b16 %v337
      %v652 = vunpack.c.l.b16 %v338
      %v653 = vunpack.c.l.b16 %v339
      %v654 = vunpack.c.l.b16 %v340
      %v655 = vunpack.c.l.b16 %v341
      %v656 = vunpack.c.l.b16 %v342
      %v657 = vunpack.c.l.b16 %v343
      %v658 = vunpack.c.l.b16 %v344
      %v659 = vunpack.c.l.b16 %v345
      %v660 = vunpack.c.l.b16 %v346
      %v661 = vunpack.c.l.b16 %v347
      %v662 = vunpack.c.l.b16 %v348
      %v663 = vunpack.c.l.b16 %v349
      %v664 = vunpack.c.l.b16 %v350
      %v665 = vunpack.c.l.b16 %v351
      %v666 = vunpack.c.l.b16 %v352
      %v667 = vunpack.c.l.b16 %v353
      %v668 = vunpack.c.l.b16 %v354
      %v669 = vunpack.c.l.b16 %v355
      %v670 = vunpack.c.l.b16 %v356
      %v671 = vunpack.c.l.b16 %v357
      %v672 = vunpack.c.l.b16 %v358
      %v673 = vunpack.c.l.b16 %v359
      %v674 = vunpack.c.l.b16 %v360
      %v675 = vunpack.c.l.b16 %v361
      %v676 = vunpack.c.l.b16 %v362
      %v677 = vunpack.c.l.b16 %v363
      %v678 = vunpack.c.l.b16 %v364
      %v679 = vunpack.c.l.b16 %v365
      %v680 = vunpack.c.l.b16 %v366
      %v681 = vunpack.c.l.b16 %v367
      %v682 = vunpack.c.l.b16 %v368
      %v683 = vunpack.c.l.b16 %v369
      %v684 = vunpack.c.l.b16 %v370
      %v685 = vunpack.c.l.b16 %v371
      %v686 = vunpack.c.l.b16 %v372
      %v687 = vunpack.c.l.b16 %v373
      %v688 = vunpack.c.l.b16 %v374
      %v689 = vunpack.c.l.b16 %v375
      %v690 = vunpack.c.l.b16 %v376
      %v691 = vunpack.c.l.b16 %v377
      %v692 = vunpack.c.l.b16 %v378
      %v693 = vunpack.c.l.b16 %v379
      %v694 = vunpack.c.l.b16 %v380
      %v695 = vunpack.c.l.b16 %v381
      %v696 = vunpack.c.l.b16 %v382
      %v697 = vunpack.c.l.b16 %v383
      %v698 = vunpack.c.l.b16 %v384
      %v699 = vunpack.c.l.b16 %v385
      %v700 = vunpack.c.l.b16 %v386
      %v701 = vunpack.c.l.b16 %v387
      %v702 = vunpack.c.l.b16 %v388
      %v703 = vunpack.c.l.b16 %v389
      %v704 = vunpack.c.l.b16 %v390
      %v705 = vunpack.c.l.b16 %v391
      %v706 = vunpack.c.l.b16 %v392
      %v707 = vunpack.c.l.b16 %v393
      %v708 = vunpack.c.l.b16 %v394
      %v709 = vunpack.c.l.b16 %v395
      %v710 = vunpack.c.l.b16 %v396
      %v711 = vunpack.c.l.b16 %v397
      %v712 = vunpack.c.l.b16 %v398
      %v713 = vunpack.c.l.b16 %v399
      %v714 = vunpack.c.l.b16 %v400
      %v715 = vunpack.c.l.b16 %v401
      %v716 = vunpack.c.l.b16 %v402
      %v717 = vunpack.c.l.b16 %v403
      %v718 = vunpack.c.l.b16 %v404
      %v719 = vunpack.c.l.b16 %v405
      %v720 = vunpack.c.l.b16 %v406
      %v721 = vunpack.c.l.b16 %v407
      %v722 = vunpack.c.l.b16 %v408
      %v723 = vunpack.c.l.b16 %v409
      %v724 = vunpack.c.l.b16 %v410
      %v725 = vunpack.c.l.b16 %v411
      %v726 = vunpack.c.l.b16 %v412
      %v727 = vunpack.c.l.b16 %v413
      %v728 = vunpack.c.l.b16 %v414
      %v729 = vunpack.c.l.b16 %v415
      %v730 = vunpack.c.l.b16 %v416
      %v731 = vunpack.c.l.b16 %v417
      %v732 = vunpack.c.l.b16 %v418
      %v733 = vunpack.c.l.b16 %v419
      %v734 = vunpack.c.l.b16 %v420
      %v735 = vunpack.c.l.b16 %v421
      %v736 = vunpack.c.l.b16 %v422
      %v737 = vunpack.c.l.b16 %v423
      %v738 = vunpack.c.l.b16 %v424
      %v739 = vunpack.c.l.b16 %v425
      %v740 = vunpack.c.l.b16 %v426
      %v741 = vunpack.c.l.b16 %v427
      %v742 = vunpack.c.l.b16 %v428
      %v743 = vunpack.c.l.b16 %v429
      %v744 = vunpack.c.l.b16 %v430
      %v745 = vunpack.c.l.b16 %v431
      %v746 = vunpack.c.l.b16 %v432
      %v747 = vunpack.c.l.b16 %v433
      %v748 = vunpack.c.l.b16 %v434
      %v749 = vunpack.c.l.b16 %v435
      %v750 = vunpack.c.l.b16 %v436
      %v751 = vunpack.c.l.b16 %v437
      %v752 = vunpack.c.l.b16 %v438
      %v753 = vunpack.c.l.b16 %v439
      %v754 = vunpack.c.l.b16 %v440
      %v755 = vunpack.c.l.b16 %v441
      %v756 = vunpack.c.l.b16 %v442
      %v757 = vunpack.c.l.b16 %v443
      %v758 = vunpack.c.l.b16 %v444
      %v759 = vunpack.c.l.b16 %v445
      %v760 = vpack.c.b16 %v633, %v632
      %v761 = vpack.c.b16 %v635, %v634
      %v762 = vpack.c.b16 %v637, %v636
      %v763 = vpack.c.b16 %v639, %v638
      %v764 = vpack.c.b16 %v641, %v640
      %v765 = vpack.c.b16 %v643, %v642
      %v766 = vpack.c.b16 %v645, %v644
      %v767 = vpack.c.b16 %v647, %v646
      %v768 = vpack.c.b16 %v649, %v648
      %v769 = vpack.c.b16 %v651, %v650
      %v770 = vpack.c.b16 %v653, %v652
      %v771 = vpack.c.b16 %v655, %v654
      %v772 = vpack.c.b16 %v657, %v656
      %v773 = vpack.c.b16 %v659, %v658
      %v774 = vpack.c.b16 %v661, %v660
      %v775 = vpack.c.b16 %v663, %v662
      %v776 = vpack.c.b16 %v665, %v664
      %v777 = vpack.c.b16 %v667, %v666
      %v778 = vpack.c.b16 %v669, %v668
      %v779 = vpack.c.b16 %v671, %v670
      %v780 = vpack.c.b16 %v673, %v672
      %v781 = vpack.c.b16 %v675, %v674
      %v782 = vpack.c.b16 %v677, %v676
      %v783 = vpack.c.b16 %v679, %v678
      %v784 = vpack.c.b16 %v681, %v680
      %v785 = vpack.c.b16 %v683, %v682
      %v786 = vpack.c.b16 %v685, %v684
      %v787 = vpack.c.b16 %v687, %v686
      %v788 = vpack.c.b16 %v689, %v688
      %v789 = vpack.c.b16 %v691, %v690
      %v790 = vpack.c.b16 %v693, %v692
      %v791 = vpack.c.b16 %v695, %v694
      %v792 = vpack.c.b16 %v697, %v696
      %v793 = vpack.c.b16 %v699, %v698
      %v794 = vpack.c.b16 %v701, %v700
      %v795 = vpack.c.b16 %v703, %v702
      %v796 = vpack.c.b16 %v705, %v704
      %v797 = vpack.c.b16 %v707, %v706
      %v798 = vpack.c.b16 %v709, %v708
      %v799 = vpack.c.b16 %v711, %v710
      %v800 = vpack.c.b16 %v713, %v712
      %v801 = vpack.c.b16 %v715, %v714
      %v802 = vpack.c.b16 %v717, %v716
      %v803 = vpack.c.b16 %v719, %v718
      %v804 = vpack.c.b16 %v721, %v720
      %v805 = vpack.c.b16 %v723, %v722
      %v806 = vpack.c.b16 %v725, %v724
      %v807 = vpack.c.b16 %v727, %v726
      %v808 = vpack.c.b16 %v729, %v728
      %v809 = vpack.c.b16 %v731, %v730
      %v810 = vpack.c.b16 %v733, %v732
      %v811 = vpack.c.b16 %v735, %v734
      %v812 = vpack.c.b16 %v737, %v736
      %v813 = vpack.c.b16 %v739, %v738
      %v814 = vpack.c.b16 %v741, %v740
      %v815 = vpack.c.b16 %v743, %v742
      %v816 = vpack.c.b16 %v745, %v744
      %v817 = vpack.c.b16 %v747, %v746
      %v818 = vpack.c.b16 %v749, %v748
      %v819 = vpack.c.b16 %v751, %v750
      %v820 = vpack.c.b16 %v753, %v752
      %v821 = vpack.c.b16 %v755, %v754
      %v822 = vpack.c.b16 %v757, %v756
      %v823 = vpack.c.b16 %v759, %v758
      %888 = vmatprep.subr.bf16.mxu0 0
      %889 = vmatpush1.bf16.msra.mxu0 %v760
      %890 = vmatprep.subr.bf16.mxu0 0
      %891 = vmatpush1.bf16.msra.mxu0 %v761
      %892 = vmatprep.subr.bf16.mxu0 0
      %893 = vmatpush1.bf16.msra.mxu0 %v762
      %894 = vmatprep.subr.bf16.mxu0 0
      %895 = vmatpush1.bf16.msra.mxu0 %v763
      %896 = vmatprep.subr.bf16.mxu0 0
      %897 = vmatpush1.bf16.msra.mxu0 %v764
      %898 = vmatprep.subr.bf16.mxu0 0
      %899 = vmatpush1.bf16.msra.mxu0 %v765
      %900 = vmatprep.subr.bf16.mxu0 0
      %901 = vmatpush1.bf16.msra.mxu0 %v766
      %902 = vmatprep.subr.bf16.mxu0 0
      %903 = vmatpush1.bf16.msra.mxu0 %v767
      %904 = vmatprep.subr.bf16.mxu0 0
      %905 = vmatpush1.bf16.msra.mxu0 %v768
      %906 = vmatprep.subr.bf16.mxu0 0
      %907 = vmatpush1.bf16.msra.mxu0 %v769
      %908 = vmatprep.subr.bf16.mxu0 0
      %909 = vmatpush1.bf16.msra.mxu0 %v770
      %910 = vmatprep.subr.bf16.mxu0 0
      %911 = vmatpush1.bf16.msra.mxu0 %v771
      %912 = vmatprep.subr.bf16.mxu0 0
      %913 = vmatpush1.bf16.msra.mxu0 %v772
      %914 = vmatprep.subr.bf16.mxu0 0
      %915 = vmatpush1.bf16.msra.mxu0 %v773
      %916 = vmatprep.subr.bf16.mxu0 0
      %917 = vmatpush1.bf16.msra.mxu0 %v774
      %918 = vmatprep.subr.bf16.mxu0 0
      %919 = vmatpush1.bf16.msra.mxu0 %v775
      %920 = vmatprep.mubr.bf16.mxu0 %v484
      %921 = vmatmul.mubr.bf16.gmra.mrb[0].mxu0 %v470
      %v922 = vpop.f32.mrb[0].mxu0
      %v923 = vadd.f32 0.0, %v922
      %v924 = vpop.f32.mrb[0].mxu0
      %v925 = vpop.f32.mrb[0].mxu0
      %v926 = vpop.f32.mrb[0].mxu0
      %927 = vdwg.mxu0
      %928 = vmatprep.subr.bf16.mxu0 0
      %929 = vmatpush1.bf16.msra.mxu0 %v776
      %930 = vmatprep.subr.bf16.mxu0 0
      %931 = vmatpush1.bf16.msra.mxu0 %v777
      %932 = vmatprep.subr.bf16.mxu0 0
      %933 = vmatpush1.bf16.msra.mxu0 %v778
      %934 = vmatprep.subr.bf16.mxu0 0
      %935 = vmatpush1.bf16.msra.mxu0 %v779
      %936 = vmatprep.subr.bf16.mxu0 0
      %937 = vmatpush1.bf16.msra.mxu0 %v780
      %938 = vmatprep.subr.bf16.mxu0 0
      %939 = vmatpush1.bf16.msra.mxu0 %v781
      %940 = vmatprep.subr.bf16.mxu0 0
      %941 = vmatpush1.bf16.msra.mxu0 %v782
      %942 = vmatprep.subr.bf16.mxu0 0
      %943 = vmatpush1.bf16.msra.mxu0 %v783
      %944 = vmatprep.subr.bf16.mxu0 0
      %945 = vmatpush1.bf16.msra.mxu0 %v784
      %946 = vmatprep.subr.bf16.mxu0 0
      %947 = vmatpush1.bf16.msra.mxu0 %v785
      %948 = vmatprep.subr.bf16.mxu0 0
      %949 = vmatpush1.bf16.msra.mxu0 %v786
      %950 = vmatprep.subr.bf16.mxu0 0
      %951 = vmatpush1.bf16.msra.mxu0 %v787
      %952 = vmatprep.subr.bf16.mxu0 0
      %953 = vmatpush1.bf16.msra.mxu0 %v788
      %954 = vmatprep.subr.bf16.mxu0 0
      %955 = vmatpush1.bf16.msra.mxu0 %v789
      %956 = vmatprep.subr.bf16.mxu0 0
      %957 = vmatpush1.bf16.msra.mxu0 %v790
      %958 = vmatprep.subr.bf16.mxu0 0
      %959 = vmatpush1.bf16.msra.mxu0 %v791
      %960 = vmatprep.mubr.bf16.mxu0 %v494
      %961 = vmatmul.mubr.bf16.gmra.mrb[0].mxu0 %v492
      %v962 = vpop.f32.mrb[0].mxu0
      %v963 = vadd.f32 %v923, %v962
      %v964 = vpop.f32.mrb[0].mxu0
      %v965 = vpop.f32.mrb[0].mxu0
      %v966 = vpop.f32.mrb[0].mxu0
      %967 = vdwg.mxu0
      %968 = vmatprep.subr.bf16.mxu0 0
      %969 = vmatpush1.bf16.msra.mxu0 %v792
      %970 = vmatprep.subr.bf16.mxu0 0
      %971 = vmatpush1.bf16.msra.mxu0 %v793
      %972 = vmatprep.subr.bf16.mxu0 0
      %973 = vmatpush1.bf16.msra.mxu0 %v794
      %974 = vmatprep.subr.bf16.mxu0 0
      %975 = vmatpush1.bf16.msra.mxu0 %v795
      %976 = vmatprep.subr.bf16.mxu0 0
      %977 = vmatpush1.bf16.msra.mxu0 %v796
      %978 = vmatprep.subr.bf16.mxu0 0
      %979 = vmatpush1.bf16.msra.mxu0 %v797
      %980 = vmatprep.subr.bf16.mxu0 0
      %981 = vmatpush1.bf16.msra.mxu0 %v798
      %982 = vmatprep.subr.bf16.mxu0 0
      %983 = vmatpush1.bf16.msra.mxu0 %v799
      %984 = vmatprep.subr.bf16.mxu0 0
      %985 = vmatpush1.bf16.msra.mxu0 %v800
      %986 = vmatprep.subr.bf16.mxu0 0
      %987 = vmatpush1.bf16.msra.mxu0 %v801
      %988 = vmatprep.subr.bf16.mxu0 0
      %989 = vmatpush1.bf16.msra.mxu0 %v802
      %990 = vmatprep.subr.bf16.mxu0 0
      %991 = vmatpush1.bf16.msra.mxu0 %v803
      %992 = vmatprep.subr.bf16.mxu0 0
      %993 = vmatpush1.bf16.msra.mxu0 %v804
      %994 = vmatprep.subr.bf16.mxu0 0
      %995 = vmatpush1.bf16.msra.mxu0 %v805
      %996 = vmatprep.subr.bf16.mxu0 0
      %997 = vmatpush1.bf16.msra.mxu0 %v806
      %998 = vmatprep.subr.bf16.mxu0 0
      %999 = vmatpush1.bf16.msra.mxu0 %v807
      %1000 = vmatprep.mubr.bf16.mxu0 %v491
      %1001 = vmatmul.mubr.bf16.gmra.mrb[0].mxu0 %v477
      %v1002 = vpop.f32.mrb[0].mxu0
      %v1003 = vadd.f32 %v963, %v1002
      %v1004 = vpop.f32.mrb[0].mxu0
      %v1005 = vpop.f32.mrb[0].mxu0
      %v1006 = vpop.f32.mrb[0].mxu0
      %1007 = vdwg.mxu0
      %1008 = vmatprep.subr.bf16.mxu0 0
      %1009 = vmatpush1.bf16.msra.mxu0 %v808
      %1010 = vmatprep.subr.bf16.mxu0 0
      %1011 = vmatpush1.bf16.msra.mxu0 %v809
      %1012 = vmatprep.subr.bf16.mxu0 0
      %1013 = vmatpush1.bf16.msra.mxu0 %v810
      %1014 = vmatprep.subr.bf16.mxu0 0
      %1015 = vmatpush1.bf16.msra.mxu0 %v811
      %1016 = vmatprep.subr.bf16.mxu0 0
      %1017 = vmatpush1.bf16.msra.mxu0 %v812
      %1018 = vmatprep.subr.bf16.mxu0 0
      %1019 = vmatpush1.bf16.msra.mxu0 %v813
      %1020 = vmatprep.subr.bf16.mxu0 0
      %1021 = vmatpush1.bf16.msra.mxu0 %v814
      %1022 = vmatprep.subr.bf16.mxu0 0
      %1023 = vmatpush1.bf16.msra.mxu0 %v815
      %1024 = vmatprep.subr.bf16.mxu0 0
      %1025 = vmatpush1.bf16.msra.mxu0 %v816
      %1026 = vmatprep.subr.bf16.mxu0 0
      %1027 = vmatpush1.bf16.msra.mxu0 %v817
      %1028 = vmatprep.subr.bf16.mxu0 0
      %1029 = vmatpush1.bf16.msra.mxu0 %v818
      %1030 = vmatprep.subr.bf16.mxu0 0
      %1031 = vmatpush1.bf16.msra.mxu0 %v819
      %1032 = vmatprep.subr.bf16.mxu0 0
      %1033 = vmatpush1.bf16.msra.mxu0 %v820
      %1034 = vmatprep.subr.bf16.mxu0 0
      %1035 = vmatpush1.bf16.msra.mxu0 %v821
      %1036 = vmatprep.subr.bf16.mxu0 0
      %1037 = vmatpush1.bf16.msra.mxu0 %v822
      %1038 = vmatprep.subr.bf16.mxu0 0
      %1039 = vmatpush1.bf16.msra.mxu0 %v823
      %1040 = vmatprep.mubr.bf16.mxu0 %v495
      %1041 = vmatmul.mubr.bf16.gmra.mrb[0].mxu0 %v493
      %v1042 = vpop.f32.mrb[0].mxu0
      %v1043 = vadd.f32 %v1003, %v1042
      %v1044 = vpop.f32.mrb[0].mxu0
      %v1045 = vpop.f32.mrb[0].mxu0
      %v1046 = vpop.f32.mrb[0].mxu0
      %1047 = vdwg.mxu0
      %v1048 = vadd.f32 %v316, %v1043
      %1049 = vst [vmem:[#allocation2] sm:$0x3] %v1048
      %p1050 = scmp.eq.s32.totalorder %s23, 1
      // Predicated region
      $region37: #{gan_forward.11} parent=31 // pred_check
        %p1051 = pneg %p1050
      $region38: #{gan_forward.11} parent=31 // pred_check_branch
        %1053 = sbr.rel (%p1051) target = $region40
      $region39: #{gan_forward.11} parent=31 // pred_region
        %v1054 = vld [vmem:[#allocation2] sm:$0x3]
        %v1055 = vld [vmem:[%s299] sm:$0x1]
        %v1057 = vlaneseq
        %v1058 = vshrl.u32 %v1057, 7
        %v1059 = vsub.s32 0, %v1058
        %v1060 = vrot.slane %v1055, %v1059
        %v1062 = vadd.f32 %v1054, %v1060
        %1063 = vst [vmem:[%s309] sm:$0x3] %v1062
      $region40: #{gan_forward.11} parent=31 // pred_fallthru
        _
      %p1064 = scmp.lt.s32.totalorder %s20, 0
      %s1065 = scalar_select %p1064, %s20, 0
      %p1066 = scmp.lt.s32.totalorder %s21, 0
      %s1067 = scalar_select %p1066, %s21, 0
      %p1068 = scmp.lt.s32.totalorder %s22, 0
      %s1069 = scalar_select %p1068, %s22, 0
      %s1070 = sadd.s32 %s1069, %s1067
      %s1071 = sadd.s32 %s1070, %s1065
      %s1072 = smul.addr %s1071, 2
      %s1073 = scalar_lea.vmem %s3, %s1072
      // Predicated region
      $region41: #{gan_forward.11} parent=31 // pred_check
        %p1074 = pneg %p150
      $region42: #{gan_forward.11} parent=31 // pred_check_branch
        %1076 = sbr.rel (%p1074) target = $region44
      $region43: #{gan_forward.11} parent=31 // pred_region
        _
      $region44: #{gan_forward.11} parent=31 // pred_fallthru
        _
      // Predicated region
      $region45: #{gan_forward.11} parent=31 // pred_check
        %p1077 = pneg %p150
      $region46: #{gan_forward.11} parent=31 // pred_check_branch
        %1079 = sbr.rel (%p1077) target = $region48
      $region47: #{gan_forward.11} parent=31 // pred_region
        %p1080 = scmp.lt.s32.totalorder %s20, 0
        %s1081 = scalar_select %p1080, %s20, 0
        %p1082 = scmp.lt.s32.totalorder %s21, 0
        %s1083 = scalar_select %p1082, %s21, 0
        %p1084 = scmp.lt.s32.totalorder %s22, 0
        %s1085 = scalar_select %p1084, %s22, 0
        %s1086 = sadd.s32 %s1085, %s1083
        %s1087 = sadd.s32 %s1086, %s1081
        %s1088 = smul.addr %s1087, 2
        %s1089 = scalar_lea.vmem %s3, %s1088
      $region48: #{gan_forward.11} parent=31 // pred_fallthru
        _
    $region32: #{gan_forward.11} parent=5 // pred_fallthru
      _
    %p1090 = scmp.le.s32.totalorder 2, %s9
    // Predicated region
    $region49: #{gan_forward.11} parent=5 // pred_check
      %p1091 = pneg %p1090
    $region50: #{gan_forward.11} parent=5 // pred_check_branch
      %1093 = sbr.rel (%p1091) target = $region52
    $region51: #{gan_forward.11} parent=5 // pred_region
      %s1094 = ssub.s32 %s9, 2
    $region52: #{gan_forward.11} parent=5 // pred_fallthru
      _
  $region6: #{gan_forward.11} parent=0 // loop_footer
    %s13 = sadd.s32 1, %s9
  $region7: #{gan_forward.11} parent=0 // loop_footer_branch
    %8 = sbr.rel target = $region3
  $region8: #{gan_forward.11} parent=0 // loop_exit
    _

</llo_original>
